<compile_context>
chip_gen: v7x
topology: tpu7x:2x2x1
jax: 0.10.0
libtpu: 0.0.40
codegen_flags: <defaults>
</compile_context>

<pallas_src>
import functools

import jax
import jax.numpy as jnp
from jax.experimental import pallas as pl
from jax.experimental.pallas import tpu as pltpu

EPS = 1e-5


def _round_up(x, m):
    return (x + m - 1) // m * m


def _pad_channels(c):
    # Lane-dense padding: 128 multiple for realistic ResNet widths, 8 for toy widths.
    return _round_up(c, 128) if c >= 64 else _round_up(c, 8)


@functools.lru_cache(maxsize=1)
def _vmem_limit_bytes():
    # Generation-aware VMEM budget (v7x: 64 MiB/TC physical; v5e/v6e: 128 MiB).
    try:
        cap = int(pltpu.get_tpu_info().vmem_capacity_bytes)
    except Exception:
        cap = 64 * 1024 * 1024
    return min(int(cap * 0.6), 100 * 1024 * 1024)


# --------------------------------- kernel ----------------------------------- #
def _basic_block_kernel(x_ref, w1_ref, s1_ref, w2_ref, s2_ref, *rest,
                        KH, KW, WR, Mout, Wof, Cmid_p, CIg, Cin_p, co_t,
                        Y1rows, sc_row_off, sc_ch_off, has_proj):
    """Fused BasicBlock for one image x one output-channel tile.

    x_ref  : (Xrows, CIg)          flattened spatially-padded input image
                                   (stride 2: space-to-depth, CIg = 4*Cin_p)
    w1_ref : (KH, KW*CIg, Cmid_p)  conv1 weights, BN1 scale folded, kw folded into K
    s1_ref : (1, Cmid_p)           BN1 shift
    w2_ref : (3, 3*Cmid_p, co_t)   conv2 weights, BN2 scale folded, kw folded into K
    s2_ref : (1, co_t)             BN2 shift (+ projection-BN shift when present)
    wsc_ref: (Cin_p, co_t)         1x1 projection shortcut weights (optional)
    o_ref  : (Mout, co_t)          flat output rows (junk W columns cropped later)
    y1_ref : (Y1rows, Cmid_p)      VMEM: spatially padded relu(bn1(conv1(x)))
    lhs1/2 : VMEM staging buffers for the kw-folded matmul LHS
    """
    if has_proj:
        wsc_ref, o_ref, y1_ref, lhs1_ref, lhs2_ref = rest
    else:
        o_ref, y1_ref, lhs1_ref, lhs2_ref = rest

    j = pl.program_id(1)
    Hof = Mout // WR

    # ---- conv1 -> bn1 -> relu, result kept in VMEM (once per image) --------- #
    @pl.when(j == 0)
    def _():
        acc = None
        for kh in range(KH):
            for kw in range(KW):
                lhs1_ref[:, kw * CIg:(kw + 1) * CIg] = (
                    x_ref[pl.ds(kh * WR + kw, Mout), :])
            part = jnp.dot(lhs1_ref[...], w1_ref[kh],
                           preferred_element_type=jnp.float32)
            acc = part if acc is None else acc + part
        y1 = jnp.maximum(acc + s1_ref[...], 0.0)
        # Zero the junk W columns so they double as conv2's zero halo columns.
        col = jax.lax.broadcasted_iota(jnp.int32, (Mout, 1), 0) % WR
        y1 = jnp.where(col < Wof, y1, 0.0).astype(y1_ref.dtype)
        # Zero the halo rows, then place y1 at its padded interior:
        # y1_pad[h+1, w+1] = y1[h, w].
        y1_ref[pl.ds(0, 2 * WR), :] = jnp.zeros((2 * WR, Cmid_p), y1_ref.dtype)
        tail = Y1rows - (Hof + 1) * WR
        y1_ref[pl.ds((Hof + 1) * WR, tail), :] = (
            jnp.zeros((tail, Cmid_p), y1_ref.dtype))
        y1_ref[pl.ds(WR + 1, Mout), :] = y1

    # ---- conv2 -> bn2 -> +shortcut -> relu ----------------------------------- #
    acc = None
    for kh in range(3):
        for kw in range(3):
            lhs2_ref[:, kw * Cmid_p:(kw + 1) * Cmid_p] = (
                y1_ref[pl.ds(kh * WR + kw, Mout), :])
        part = jnp.dot(lhs2_ref[...], w2_ref[kh],
                       preferred_element_type=jnp.float32)
        acc = part if acc is None else acc + part
    out = acc + s2_ref[...]
    if has_proj:
        xs = x_ref[pl.ds(sc_row_off, Mout), pl.ds(sc_ch_off, Cin_p)]
        out = out + jnp.dot(xs, wsc_ref[...], preferred_element_type=jnp.float32)
    else:
        out = out + x_ref[pl.ds(sc_row_off, Mout), :].astype(jnp.float32)
    o_ref[...] = jnp.maximum(out, 0.0).astype(o_ref.dtype)


# ------------------------------ weight prep --------------------------------- #
def bn_fold(gamma, beta, mean, var):
    scale = gamma / jnp.sqrt(var + EPS)
    shift = beta - mean * scale
    return scale, shift


def _prep_conv3_w(w_oihw, scale, cin_p, cout_p, dtype):
    # (Cout, Cin, 3, 3) -> (3, 3*cin_p, cout_p); BN scale folded, K = (kw, cin).
    cout, cin = w_oihw.shape[:2]
    w = jnp.transpose(w_oihw, (2, 3, 1, 0)) * scale[None, None, None, :]
    w = jnp.pad(w, ((0, 0), (0, 0), (0, cin_p - cin), (0, cout_p - cout)))
    return w.reshape(3, 3 * cin_p, cout_p).astype(dtype)


def _prep_conv3_w_s2d(w_oihw, scale, cin_p, cout_p, dtype):
    # stride-2 conv1 as a 2x2 VALID conv over the space-to-depth input:
    # (Cout, Cin, 3, 3) -> (2, 2*4*cin_p, cout_p), K ordered (kw=b, ph, pw, cin).
    cout, cin = w_oihw.shape[:2]
    w = jnp.transpose(w_oihw, (2, 3, 1, 0)) * scale[None, None, None, :]
    w = jnp.pad(w, ((0, 1), (0, 1), (0, cin_p - cin), (0, cout_p - cout)))
    w = w.reshape(2, 2, 2, 2, cin_p, cout_p)            # (a, ph, b, pw, c, o)
    w = jnp.transpose(w, (0, 2, 1, 3, 4, 5))            # (a, b, ph, pw, c, o)
    return w.reshape(2, 2 * 4 * cin_p, cout_p).astype(dtype)


# --------------------------------- forward ---------------------------------- #
@functools.partial(jax.jit, static_argnames=("stride", "compute_dtype"))
def basic_block_forward(x_nchw, p, stride, compute_dtype=jnp.float32):
    """Inference forward of BasicBlock via a single fused Pallas kernel."""
    assert stride in (1, 2), "only stride 1 / 2 supported"
    x = jnp.transpose(x_nchw, (0, 2, 3, 1))                       # NHWC
    N, H, W, Cin = x.shape
    Cout = p["conv1_w"].shape[0]
    Hof = (H - 1) // stride + 1
    Wof = (W - 1) // stride + 1
    Cin_p = _pad_channels(Cin)
    Cout_p = _pad_channels(Cout)
    WR = _round_up(Wof + 2, 8)              # flattened row width (junk cols >= Wof)
    Mout = Hof * WR
    Y1rows = (Hof + 2) * WR + 8
    has_proj = "sc_w" in p

    s1, b1 = bn_fold(p["bn1_g"], p["bn1_b"], p["bn1_m"], p["bn1_v"])
    s2, b2 = bn_fold(p["bn2_g"], p["bn2_b"], p["bn2_m"], p["bn2_v"])

    # ---- activations: one pad/reshape pass into the flat padded layout ------ #
    xc = x.astype(compute_dtype)
    if stride == 1:
        KH = KW = 3
        CIg = Cin_p
        Xrows = (H + 3) * WR
        xf = jnp.pad(xc, ((0, 0), (1, 2), (1, WR - W - 1), (0, Cin_p - Cin)))
        xf = xf.reshape(N, Xrows, CIg)
        w1 = _prep_conv3_w(p["conv1_w"], s1, Cin_p, Cout_p, compute_dtype)
        sc_row_off, sc_ch_off = WR + 1, 0
    else:
        # space-to-depth: 3x3/s2 conv == 2x2/s1 conv over 4*Cin parity channels.
        KH = KW = 2
        CIg = 4 * Cin_p
        HIp = Hof + 2
        Xrows = HIp * WR
        xf = jnp.pad(xc, ((0, 0), (1, 2 * HIp - H - 1),
                          (1, 2 * WR - W - 1), (0, Cin_p - Cin)))
        xf = xf.reshape(N, HIp, 2, WR, 2, Cin_p).transpose(0, 1, 3, 2, 4, 5)
        xf = xf.reshape(N, Xrows, CIg)
        w1 = _prep_conv3_w_s2d(p["conv1_w"], s1, Cin_p, Cout_p, compute_dtype)
        sc_row_off, sc_ch_off = 0, 3 * Cin_p      # parity (1,1) channels = x[::2, ::2]

    w2 = _prep_conv3_w(p["conv2_w"], s2, Cout_p, Cout_p, compute_dtype)
    shift1 = jnp.pad(b1, (0, Cout_p - Cout)).reshape(1, Cout_p).astype(jnp.float32)

    if has_proj:
        s_sc, b_sc = bn_fold(p["sc_bn_g"], p["sc_bn_b"], p["sc_bn_m"], p["sc_bn_v"])
        wsc = p["sc_w"][:, :, 0, 0].T * s_sc[None, :]
        wsc = jnp.pad(wsc, ((0, Cin_p - Cin), (0, Cout_p - Cout))).astype(compute_dtype)
        b2 = b2 + b_sc                         # fold shortcut BN shift into shift2
        co_t = 128 if Cout_p % 128 == 0 else Cout_p
    else:
        assert Cin == Cout and stride == 1     # identity shortcut
        co_t = Cout_p                          # identity add uses the full x channels
    shift2 = jnp.pad(b2, (0, Cout_p - Cout)).reshape(1, Cout_p).astype(jnp.float32)
    n_co = Cout_p // co_t

    kernel = functools.partial(
        _basic_block_kernel, KH=KH, KW=KW, WR=WR, Mout=Mout, Wof=Wof,
        Cmid_p=Cout_p, CIg=CIg, Cin_p=Cin_p, co_t=co_t, Y1rows=Y1rows,
        sc_row_off=sc_row_off, sc_ch_off=sc_ch_off, has_proj=has_proj)

    in_specs = [
        pl.BlockSpec((None, Xrows, CIg), lambda n, j: (n, 0, 0)),       # x (once / n)
        pl.BlockSpec((KH, KW * CIg, Cout_p), lambda n, j: (0, 0, 0)),   # w1
        pl.BlockSpec((1, Cout_p), lambda n, j: (0, 0)),                 # shift1
        pl.BlockSpec((3, 3 * Cout_p, co_t), lambda n, j: (0, 0, j)),    # w2 tile
        pl.BlockSpec((1, co_t), lambda n, j: (0, j)),                   # shift2 tile
    ]
    args = [xf, w1, shift1, w2, shift2]
    if has_proj:
        in_specs.append(pl.BlockSpec((Cin_p, co_t), lambda n, j: (0, j)))
        args.append(wsc)

    out = pl.pallas_call(
        kernel,
        out_shape=jax.ShapeDtypeStruct((N, Mout, Cout_p), jnp.float32),
        grid_spec=pltpu.PrefetchScalarGridSpec(
            num_scalar_prefetch=0,
            grid=(N, n_co),
            in_specs=in_specs,
            out_specs=pl.BlockSpec((None, Mout, co_t), lambda n, j: (n, 0, j)),
            scratch_shapes=[
                pltpu.VMEM((Y1rows, Cout_p), compute_dtype),    # y1 (padded)
                pltpu.VMEM((Mout, KW * CIg), compute_dtype),    # conv1 folded LHS
                pltpu.VMEM((Mout, 3 * Cout_p), compute_dtype),  # conv2 folded LHS
            ]),
        compiler_params=pltpu.CompilerParams(
            dimension_semantics=("parallel", "arbitrary"),
            vmem_limit_bytes=_vmem_limit_bytes()),
    )(*args)

    out = out.reshape(N, Hof, WR, Cout_p)[:, :, :Wof, :Cout]
    return jnp.transpose(out, (0, 3, 1, 2))                       # NCHW


# ---------------------------- deterministic params --------------------------- #
def init_params(key, ch_in, ch_out, stride):
    ks = iter(jax.random.split(key, 20))
    p = {}
    p["conv1_w"] = 0.1 * jax.random.normal(next(ks), (ch_out, ch_in, 3, 3), jnp.float32)
    p["conv2_w"] = 0.1 * jax.random.normal(next(ks), (ch_out, ch_out, 3, 3), jnp.float32)
    for name in ("bn1", "bn2"):
        p[f"{name}_g"] = 1.0 + 0.1 * jax.random.normal(next(ks), (ch_out,), jnp.float32)
        p[f"{name}_b"] = 0.1 * jax.random.normal(next(ks), (ch_out,), jnp.float32)
        p[f"{name}_m"] = 0.1 * jax.random.normal(next(ks), (ch_out,), jnp.float32)
        p[f"{name}_v"] = 1.0 + 0.1 * jax.random.uniform(next(ks), (ch_out,), jnp.float32)
    if stride != 1 or ch_in != ch_out:
        p["sc_w"] = 0.1 * jax.random.normal(next(ks), (ch_out, ch_in, 1, 1), jnp.float32)
        p["sc_bn_g"] = 1.0 + 0.1 * jax.random.normal(next(ks), (ch_out,), jnp.float32)
        p["sc_bn_b"] = 0.1 * jax.random.normal(next(ks), (ch_out,), jnp.float32)
        p["sc_bn_m"] = 0.1 * jax.random.normal(next(ks), (ch_out,), jnp.float32)
        p["sc_bn_v"] = 1.0 + 0.1 * jax.random.uniform(next(ks), (ch_out,), jnp.float32)
    return p


# ---------------------------------- reference -------------------------------- #
def ref_forward(x, p, stride):
    def conv(z, w, s, pad):
        return jax.lax.conv_general_dilated(
            z, w, (s, s), [(pad, pad), (pad, pad)],
            dimension_numbers=("NCHW", "OIHW", "NCHW"))

    def bn(z, g, b, m, v):
        g, b, m, v = (t[None, :, None, None] for t in (g, b, m, v))
        return (z - m) / jnp.sqrt(v + EPS) * g + b

    if "sc_w" in p:
        shortcut = bn(conv(x, p["sc_w"], stride, 0),
                      p["sc_bn_g"], p["sc_bn_b"], p["sc_bn_m"], p["sc_bn_v"])
    else:
        shortcut = x
    out = conv(x, p["conv1_w"], stride, 1)
    out = jnp.maximum(bn(out, p["bn1_g"], p["bn1_b"], p["bn1_m"], p["bn1_v"]), 0.0)
    out = bn(conv(out, p["conv2_w"], 1, 1),
             p["bn2_g"], p["bn2_b"], p["bn2_m"], p["bn2_v"])
    return jnp.maximum(out + shortcut, 0.0)


if __name__ == "__main__":
    key = jax.random.PRNGKey(0)
    N, H, W = 2, 16, 16

    configs = [
        (4, 8, 1),   # projection shortcut (ch_in != ch_out)
        (8, 8, 1),   # identity shortcut
        (4, 8, 2),   # strided projection shortcut
    ]
    for idx, (C_in, C_out, stride) in enumerate(configs):
        kx, kp = jax.random.split(jax.random.fold_in(key, idx))
        x = jax.random.normal(kx, (N, C_in, H, W), jnp.float32)
        params = init_params(kp, C_in, C_out, stride)
        ref = ref_forward(x, params, stride)

        # f32 path: strict structural-correctness check.
        out = jax.block_until_ready(
            basic_block_forward(x, params, stride=stride,
                                compute_dtype=jnp.float32))
        assert out.shape == ref.shape == (N, C_out, H // stride, W // stride)
        err = float(jnp.max(jnp.abs(out - ref)))
        assert jnp.allclose(out, ref, atol=1e-3, rtol=1e-3), f"f32 cfg{idx} max_err={err}"

        # bf16 production path (half HBM traffic, native MXU rate), f32 accumulation.
        out16 = jax.block_until_ready(
            basic_block_forward(x, params, stride=stride,
                                compute_dtype=jnp.bfloat16))
        err16 = float(jnp.max(jnp.abs(out16 - ref)))
        assert jnp.allclose(out16, ref, atol=1e-1, rtol=1e-1), f"bf16 cfg{idx} max_err={err16}"

    print("KERNEL_OK")
</pallas_src>

<mosaic_0001>
module attributes {stable_mosaic.version = 11 : i64} {
  func.func @_basic_block_kernel(%arg0: i32, %arg1: i32, %arg2: memref<1x456x8xf32, #tpu.memory_space<vmem>>, %arg3: memref<3x24x8xf32, #tpu.memory_space<vmem>>, %arg4: memref<1x8xf32, #tpu.memory_space<vmem>>, %arg5: memref<3x24x8xf32, #tpu.memory_space<vmem>>, %arg6: memref<1x8xf32, #tpu.memory_space<vmem>>, %arg7: memref<8x8xf32, #tpu.memory_space<vmem>>, %arg8: memref<1x384x8xf32, #tpu.memory_space<vmem>>, %arg9: memref<440x8xf32, #tpu.memory_space<vmem>>, %arg10: memref<384x24xf32, #tpu.memory_space<vmem>>, %arg11: memref<384x24xf32, #tpu.memory_space<vmem>>) attributes {dimension_semantics = [#tpu.dimension_semantics<parallel>, #tpu.dimension_semantics<arbitrary>], iteration_bounds = array<i64: 2, 1>, scalar_prefetch = 0 : i64, scratch_operands = 3 : i64, tpu.core_type = #tpu.core_type<tc>, window_params = [{transform_indices = @transform_0, window_bounds = array<i64: 1, 456, 8>}, {pipeline_mode = #tpu.pipeline_mode<synchronous>, transform_indices = @transform_1, window_bounds = array<i64: 3, 24, 8>}, {pipeline_mode = #tpu.pipeline_mode<synchronous>, transform_indices = @transform_2, window_bounds = array<i64: 1, 8>}, {transform_indices = @transform_3, window_bounds = array<i64: 3, 24, 8>}, {transform_indices = @transform_4, window_bounds = array<i64: 1, 8>}, {transform_indices = @transform_5, window_bounds = array<i64: 8, 8>}, {transform_indices = @transform_6, window_bounds = array<i64: 1, 384, 8>}]} {
    %c0_i32 = arith.constant 0 : i32
    %0 = arith.cmpi eq, %arg1, %c0_i32 : i32
    %1 = arith.extui %0 : i1 to i32
    %c0_i32_0 = arith.constant 0 : i32
    %2 = arith.cmpi ne, %1, %c0_i32_0 : i32
    scf.if %2 {
      %c0_55 = arith.constant 0 : index
      %c0_56 = arith.constant 0 : index
      %c0_57 = arith.constant 0 : index
      %48 = vector.load %arg2[%c0_55, %c0_56, %c0_57] : memref<1x456x8xf32, #tpu.memory_space<vmem>>, vector<1x384x8xf32>
      %49 = vector.shape_cast %48 : vector<1x384x8xf32> to vector<384x8xf32>
      %c0_58 = arith.constant 0 : index
      %c0_59 = arith.constant 0 : index
      %50 = vector.load %arg10[%c0_58, %c0_59] : memref<384x24xf32, #tpu.memory_space<vmem>>, vector<384x8xf32>
      tpu.vector_store %arg10[%c0_58, %c0_59], %49 {strides = array<i32>} : memref<384x24xf32, #tpu.memory_space<vmem>>, vector<384x8xf32>,
      %c0_60 = arith.constant 0 : index
      %c1_61 = arith.constant 1 : index
      %c0_62 = arith.constant 0 : index
      %51 = vector.load %arg2[%c0_60, %c1_61, %c0_62] : memref<1x456x8xf32, #tpu.memory_space<vmem>>, vector<1x384x8xf32>
      %52 = vector.shape_cast %51 : vector<1x384x8xf32> to vector<384x8xf32>
      %c0_63 = arith.constant 0 : index
      %c8_64 = arith.constant 8 : index
      %53 = vector.load %arg10[%c0_63, %c8_64] : memref<384x24xf32, #tpu.memory_space<vmem>>, vector<384x8xf32>
      tpu.vector_store %arg10[%c0_63, %c8_64], %52 {strides = array<i32>} : memref<384x24xf32, #tpu.memory_space<vmem>>, vector<384x8xf32>,
      %c0_65 = arith.constant 0 : index
      %c2_66 = arith.constant 2 : index
      %c0_67 = arith.constant 0 : index
      %54 = vector.load %arg2[%c0_65, %c2_66, %c0_67] : memref<1x456x8xf32, #tpu.memory_space<vmem>>, vector<1x384x8xf32>
      %55 = vector.shape_cast %54 : vector<1x384x8xf32> to vector<384x8xf32>
      %c0_68 = arith.constant 0 : index
      %c16_69 = arith.constant 16 : index
      %56 = vector.load %arg10[%c0_68, %c16_69] : memref<384x24xf32, #tpu.memory_space<vmem>>, vector<384x8xf32>
      tpu.vector_store %arg10[%c0_68, %c16_69], %55 {strides = array<i32>} : memref<384x24xf32, #tpu.memory_space<vmem>>, vector<384x8xf32>,
      %c0_70 = arith.constant 0 : index
      %c0_71 = arith.constant 0 : index
      %57 = vector.load %arg10[%c0_70, %c0_71] : memref<384x24xf32, #tpu.memory_space<vmem>>, vector<384x24xf32>
      %c0_72 = arith.constant 0 : index
      %c0_73 = arith.constant 0 : index
      %c0_74 = arith.constant 0 : index
      %58 = vector.load %arg3[%c0_72, %c0_73, %c0_74] : memref<3x24x8xf32, #tpu.memory_space<vmem>>, vector<1x24x8xf32>
      %59 = vector.shape_cast %58 : vector<1x24x8xf32> to vector<24x8xf32>
      %cst_75 = arith.constant dense<0.000000e+00> : vector<384x8xf32>
      %60 = tpu.matmul %57, %59, %cst_75 {dimension_numbers = #tpu.dot_dimension_numbers<[1], [0], [0], [1], [0, 0, 1, 1], [], []>} : vector<384x24xf32>, vector<24x8xf32>, vector<384x8xf32> -> vector<384x8xf32>
      %c0_76 = arith.constant 0 : index
      %c24_77 = arith.constant 24 : index
      %c0_78 = arith.constant 0 : index
      %61 = vector.load %arg2[%c0_76, %c24_77, %c0_78] : memref<1x456x8xf32, #tpu.memory_space<vmem>>, vector<1x384x8xf32>
      %62 = vector.shape_cast %61 : vector<1x384x8xf32> to vector<384x8xf32>
      %c0_79 = arith.constant 0 : index
      %c0_80 = arith.constant 0 : index
      %63 = vector.load %arg10[%c0_79, %c0_80] : memref<384x24xf32, #tpu.memory_space<vmem>>, vector<384x8xf32>
      tpu.vector_store %arg10[%c0_79, %c0_80], %62 {strides = array<i32>} : memref<384x24xf32, #tpu.memory_space<vmem>>, vector<384x8xf32>,
      %c0_81 = arith.constant 0 : index
      %c25_82 = arith.constant 25 : index
      %c0_83 = arith.constant 0 : index
      %64 = vector.load %arg2[%c0_81, %c25_82, %c0_83] : memref<1x456x8xf32, #tpu.memory_space<vmem>>, vector<1x384x8xf32>
      %65 = vector.shape_cast %64 : vector<1x384x8xf32> to vector<384x8xf32>
      %c0_84 = arith.constant 0 : index
      %c8_85 = arith.constant 8 : index
      %66 = vector.load %arg10[%c0_84, %c8_85] : memref<384x24xf32, #tpu.memory_space<vmem>>, vector<384x8xf32>
      tpu.vector_store %arg10[%c0_84, %c8_85], %65 {strides = array<i32>} : memref<384x24xf32, #tpu.memory_space<vmem>>, vector<384x8xf32>,
      %c0_86 = arith.constant 0 : index
      %c26_87 = arith.constant 26 : index
      %c0_88 = arith.constant 0 : index
      %67 = vector.load %arg2[%c0_86, %c26_87, %c0_88] : memref<1x456x8xf32, #tpu.memory_space<vmem>>, vector<1x384x8xf32>
      %68 = vector.shape_cast %67 : vector<1x384x8xf32> to vector<384x8xf32>
      %c0_89 = arith.constant 0 : index
      %c16_90 = arith.constant 16 : index
      %69 = vector.load %arg10[%c0_89, %c16_90] : memref<384x24xf32, #tpu.memory_space<vmem>>, vector<384x8xf32>
      tpu.vector_store %arg10[%c0_89, %c16_90], %68 {strides = array<i32>} : memref<384x24xf32, #tpu.memory_space<vmem>>, vector<384x8xf32>,
      %c0_91 = arith.constant 0 : index
      %c0_92 = arith.constant 0 : index
      %70 = vector.load %arg10[%c0_91, %c0_92] : memref<384x24xf32, #tpu.memory_space<vmem>>, vector<384x24xf32>
      %c1_93 = arith.constant 1 : index
      %c0_94 = arith.constant 0 : index
      %c0_95 = arith.constant 0 : index
      %71 = vector.load %arg3[%c1_93, %c0_94, %c0_95] : memref<3x24x8xf32, #tpu.memory_space<vmem>>, vector<1x24x8xf32>
      %72 = vector.shape_cast %71 : vector<1x24x8xf32> to vector<24x8xf32>
      %cst_96 = arith.constant dense<0.000000e+00> : vector<384x8xf32>
      %73 = tpu.matmul %70, %72, %cst_96 {dimension_numbers = #tpu.dot_dimension_numbers<[1], [0], [0], [1], [0, 0, 1, 1], [], []>} : vector<384x24xf32>, vector<24x8xf32>, vector<384x8xf32> -> vector<384x8xf32>
      %74 = arith.addf %60, %73 : vector<384x8xf32>
      %c0_97 = arith.constant 0 : index
      %c48_98 = arith.constant 48 : index
      %c0_99 = arith.constant 0 : index
      %75 = vector.load %arg2[%c0_97, %c48_98, %c0_99] : memref<1x456x8xf32, #tpu.memory_space<vmem>>, vector<1x384x8xf32>
      %76 = vector.shape_cast %75 : vector<1x384x8xf32> to vector<384x8xf32>
      %c0_100 = arith.constant 0 : index
      %c0_101 = arith.constant 0 : index
      %77 = vector.load %arg10[%c0_100, %c0_101] : memref<384x24xf32, #tpu.memory_space<vmem>>, vector<384x8xf32>
      tpu.vector_store %arg10[%c0_100, %c0_101], %76 {strides = array<i32>} : memref<384x24xf32, #tpu.memory_space<vmem>>, vector<384x8xf32>,
      %c0_102 = arith.constant 0 : index
      %c49_103 = arith.constant 49 : index
      %c0_104 = arith.constant 0 : index
      %78 = vector.load %arg2[%c0_102, %c49_103, %c0_104] : memref<1x456x8xf32, #tpu.memory_space<vmem>>, vector<1x384x8xf32>
      %79 = vector.shape_cast %78 : vector<1x384x8xf32> to vector<384x8xf32>
      %c0_105 = arith.constant 0 : index
      %c8_106 = arith.constant 8 : index
      %80 = vector.load %arg10[%c0_105, %c8_106] : memref<384x24xf32, #tpu.memory_space<vmem>>, vector<384x8xf32>
      tpu.vector_store %arg10[%c0_105, %c8_106], %79 {strides = array<i32>} : memref<384x24xf32, #tpu.memory_space<vmem>>, vector<384x8xf32>,
      %c0_107 = arith.constant 0 : index
      %c50_108 = arith.constant 50 : index
      %c0_109 = arith.constant 0 : index
      %81 = vector.load %arg2[%c0_107, %c50_108, %c0_109] : memref<1x456x8xf32, #tpu.memory_space<vmem>>, vector<1x384x8xf32>
      %82 = vector.shape_cast %81 : vector<1x384x8xf32> to vector<384x8xf32>
      %c0_110 = arith.constant 0 : index
      %c16_111 = arith.constant 16 : index
      %83 = vector.load %arg10[%c0_110, %c16_111] : memref<384x24xf32, #tpu.memory_space<vmem>>, vector<384x8xf32>
      tpu.vector_store %arg10[%c0_110, %c16_111], %82 {strides = array<i32>} : memref<384x24xf32, #tpu.memory_space<vmem>>, vector<384x8xf32>,
      %c0_112 = arith.constant 0 : index
      %c0_113 = arith.constant 0 : index
      %84 = vector.load %arg10[%c0_112, %c0_113] : memref<384x24xf32, #tpu.memory_space<vmem>>, vector<384x24xf32>
      %c2_114 = arith.constant 2 : index
      %c0_115 = arith.constant 0 : index
      %c0_116 = arith.constant 0 : index
      %85 = vector.load %arg3[%c2_114, %c0_115, %c0_116] : memref<3x24x8xf32, #tpu.memory_space<vmem>>, vector<1x24x8xf32>
      %86 = vector.shape_cast %85 : vector<1x24x8xf32> to vector<24x8xf32>
      %cst_117 = arith.constant dense<0.000000e+00> : vector<384x8xf32>
      %87 = tpu.matmul %84, %86, %cst_117 {dimension_numbers = #tpu.dot_dimension_numbers<[1], [0], [0], [1], [0, 0, 1, 1], [], []>} : vector<384x24xf32>, vector<24x8xf32>, vector<384x8xf32> -> vector<384x8xf32>
      %88 = arith.addf %74, %87 : vector<384x8xf32>
      %c0_118 = arith.constant 0 : index
      %c0_119 = arith.constant 0 : index
      %89 = vector.load %arg4[%c0_118, %c0_119] : memref<1x8xf32, #tpu.memory_space<vmem>>, vector<1x8xf32>
      %90 = vector.broadcast %89 : vector<1x8xf32> to vector<384x8xf32>
      %91 = arith.addf %88, %90 : vector<384x8xf32>
      %cst_120 = arith.constant 0.000000e+00 : f32
      %92 = vector.broadcast %cst_120 : f32 to vector<384x8xf32>
      %93 = arith.maximumf %91, %92 : vector<384x8xf32>
      %94 = tpu.iota {dimensions = array<i32: 0>} : vector<384x1xi32>
      %c24_i32 = arith.constant 24 : i32
      %c0_i32_121 = arith.constant 0 : i32
      %95 = arith.cmpi eq, %c24_i32, %c0_i32_121 : i32
      %c1_i32 = arith.constant 1 : i32
      %96 = arith.select %95, %c1_i32, %c24_i32 : i32
      %97 = vector.broadcast %96 : i32 to vector<384x1xi32>
      %98 = arith.remsi %94, %97 : vector<384x1xi32>
      %c0_i32_122 = arith.constant 0 : i32
      %99 = vector.broadcast %c0_i32_122 : i32 to vector<384x1xi32>
      %100 = arith.cmpi ne, %98, %99 : vector<384x1xi32>
      %c0_i32_123 = arith.constant 0 : i32
      %101 = vector.broadcast %c0_i32_123 : i32 to vector<384x1xi32>
      %102 = arith.cmpi slt, %98, %101 : vector<384x1xi32>
      %c0_i32_124 = arith.constant 0 : i32
      %103 = arith.cmpi slt, %96, %c0_i32_124 : i32
      %104 = vector.broadcast %103 : i1 to vector<384x1xi1>
      %105 = vector.broadcast %104 : vector<384x1xi1> to vector<384x1xi1>
      %106 = arith.xori %102, %105 : vector<384x1xi1>
      %107 = arith.andi %106, %100 : vector<384x1xi1>
      %108 = vector.broadcast %96 : i32 to vector<384x1xi32>
      %109 = arith.addi %98, %108 : vector<384x1xi32>
      %110 = arith.select %107, %109, %98 : vector<384x1xi1>, vector<384x1xi32>
      %c16_i32 = arith.constant 16 : i32
      %111 = vector.broadcast %c16_i32 : i32 to vector<384x1xi32>
      %112 = arith.cmpi slt, %110, %111 : vector<384x1xi32>
      %cst_125 = arith.constant 0.000000e+00 : f32
      %113 = vector.shape_cast %112 : vector<384x1xi1> to vector<384x1xi1>
      %114 = vector.broadcast %113 : vector<384x1xi1> to vector<384x8xi1>
      %115 = vector.broadcast %cst_125 : f32 to vector<384x8xf32>
      %116 = arith.select %114, %93, %115 : vector<384x8xi1>, vector<384x8xf32>
      %cst_126 = arith.constant 0.000000e+00 : f32
      %117 = vector.broadcast %cst_126 : f32 to vector<48x8xf32>
      %c0_127 = arith.constant 0 : index
      %c0_128 = arith.constant 0 : index
      %118 = vector.load %arg9[%c0_127, %c0_128] : memref<440x8xf32, #tpu.memory_space<vmem>>, vector<48x8xf32>
      tpu.vector_store %arg9[%c0_127, %c0_128], %117 {strides = array<i32>} : memref<440x8xf32, #tpu.memory_space<vmem>>, vector<48x8xf32>,
      %cst_129 = arith.constant 0.000000e+00 : f32
      %119 = vector.broadcast %cst_129 : f32 to vector<32x8xf32>
      %c408 = arith.constant 408 : index
      %c0_130 = arith.constant 0 : index
      %120 = vector.load %arg9[%c408, %c0_130] : memref<440x8xf32, #tpu.memory_space<vmem>>, vector<32x8xf32>
      tpu.vector_store %arg9[%c408, %c0_130], %119 {strides = array<i32>} : memref<440x8xf32, #tpu.memory_space<vmem>>, vector<32x8xf32>,
      %c25_131 = arith.constant 25 : index
      %c0_132 = arith.constant 0 : index
      %121 = vector.load %arg9[%c25_131, %c0_132] : memref<440x8xf32, #tpu.memory_space<vmem>>, vector<384x8xf32>
      tpu.vector_store %arg9[%c25_131, %c0_132], %116 {strides = array<i32>} : memref<440x8xf32, #tpu.memory_space<vmem>>, vector<384x8xf32>,
    } else {
    }
    %c0 = arith.constant 0 : index
    %c0_1 = arith.constant 0 : index
    %3 = vector.load %arg9[%c0, %c0_1] : memref<440x8xf32, #tpu.memory_space<vmem>>, vector<384x8xf32>
    %c0_2 = arith.constant 0 : index
    %c0_3 = arith.constant 0 : index
    %4 = vector.load %arg11[%c0_2, %c0_3] : memref<384x24xf32, #tpu.memory_space<vmem>>, vector<384x8xf32>
    tpu.vector_store %arg11[%c0_2, %c0_3], %3 {strides = array<i32>} : memref<384x24xf32, #tpu.memory_space<vmem>>, vector<384x8xf32>,
    %c1 = arith.constant 1 : index
    %c0_4 = arith.constant 0 : index
    %5 = vector.load %arg9[%c1, %c0_4] : memref<440x8xf32, #tpu.memory_space<vmem>>, vector<384x8xf32>
    %c0_5 = arith.constant 0 : index
    %c8 = arith.constant 8 : index
    %6 = vector.load %arg11[%c0_5, %c8] : memref<384x24xf32, #tpu.memory_space<vmem>>, vector<384x8xf32>
    tpu.vector_store %arg11[%c0_5, %c8], %5 {strides = array<i32>} : memref<384x24xf32, #tpu.memory_space<vmem>>, vector<384x8xf32>,
    %c2 = arith.constant 2 : index
    %c0_6 = arith.constant 0 : index
    %7 = vector.load %arg9[%c2, %c0_6] : memref<440x8xf32, #tpu.memory_space<vmem>>, vector<384x8xf32>
    %c0_7 = arith.constant 0 : index
    %c16 = arith.constant 16 : index
    %8 = vector.load %arg11[%c0_7, %c16] : memref<384x24xf32, #tpu.memory_space<vmem>>, vector<384x8xf32>
    tpu.vector_store %arg11[%c0_7, %c16], %7 {strides = array<i32>} : memref<384x24xf32, #tpu.memory_space<vmem>>, vector<384x8xf32>,
    %c0_8 = arith.constant 0 : index
    %c0_9 = arith.constant 0 : index
    %9 = vector.load %arg11[%c0_8, %c0_9] : memref<384x24xf32, #tpu.memory_space<vmem>>, vector<384x24xf32>
    %c0_10 = arith.constant 0 : index
    %c0_11 = arith.constant 0 : index
    %c0_12 = arith.constant 0 : index
    %10 = vector.load %arg5[%c0_10, %c0_11, %c0_12] : memref<3x24x8xf32, #tpu.memory_space<vmem>>, vector<1x24x8xf32>
    %11 = vector.shape_cast %10 : vector<1x24x8xf32> to vector<24x8xf32>
    %cst = arith.constant dense<0.000000e+00> : vector<384x8xf32>
    %12 = tpu.matmul %9, %11, %cst {dimension_numbers = #tpu.dot_dimension_numbers<[1], [0], [0], [1], [0, 0, 1, 1], [], []>} : vector<384x24xf32>, vector<24x8xf32>, vector<384x8xf32> -> vector<384x8xf32>
    %c24 = arith.constant 24 : index
    %c0_13 = arith.constant 0 : index
    %13 = vector.load %arg9[%c24, %c0_13] : memref<440x8xf32, #tpu.memory_space<vmem>>, vector<384x8xf32>
    %c0_14 = arith.constant 0 : index
    %c0_15 = arith.constant 0 : index
    %14 = vector.load %arg11[%c0_14, %c0_15] : memref<384x24xf32, #tpu.memory_space<vmem>>, vector<384x8xf32>
    tpu.vector_store %arg11[%c0_14, %c0_15], %13 {strides = array<i32>} : memref<384x24xf32, #tpu.memory_space<vmem>>, vector<384x8xf32>,
    %c25 = arith.constant 25 : index
    %c0_16 = arith.constant 0 : index
    %15 = vector.load %arg9[%c25, %c0_16] : memref<440x8xf32, #tpu.memory_space<vmem>>, vector<384x8xf32>
    %c0_17 = arith.constant 0 : index
    %c8_18 = arith.constant 8 : index
    %16 = vector.load %arg11[%c0_17, %c8_18] : memref<384x24xf32, #tpu.memory_space<vmem>>, vector<384x8xf32>
    tpu.vector_store %arg11[%c0_17, %c8_18], %15 {strides = array<i32>} : memref<384x24xf32, #tpu.memory_space<vmem>>, vector<384x8xf32>,
    %c26 = arith.constant 26 : index
    %c0_19 = arith.constant 0 : index
    %17 = vector.load %arg9[%c26, %c0_19] : memref<440x8xf32, #tpu.memory_space<vmem>>, vector<384x8xf32>
    %c0_20 = arith.constant 0 : index
    %c16_21 = arith.constant 16 : index
    %18 = vector.load %arg11[%c0_20, %c16_21] : memref<384x24xf32, #tpu.memory_space<vmem>>, vector<384x8xf32>
    tpu.vector_store %arg11[%c0_20, %c16_21], %17 {strides = array<i32>} : memref<384x24xf32, #tpu.memory_space<vmem>>, vector<384x8xf32>,
    %c0_22 = arith.constant 0 : index
    %c0_23 = arith.constant 0 : index
    %19 = vector.load %arg11[%c0_22, %c0_23] : memref<384x24xf32, #tpu.memory_space<vmem>>, vector<384x24xf32>
    %c1_24 = arith.constant 1 : index
    %c0_25 = arith.constant 0 : index
    %c0_26 = arith.constant 0 : index
    %20 = vector.load %arg5[%c1_24, %c0_25, %c0_26] : memref<3x24x8xf32, #tpu.memory_space<vmem>>, vector<1x24x8xf32>
    %21 = vector.shape_cast %20 : vector<1x24x8xf32> to vector<24x8xf32>
    %cst_27 = arith.constant dense<0.000000e+00> : vector<384x8xf32>
    %22 = tpu.matmul %19, %21, %cst_27 {dimension_numbers = #tpu.dot_dimension_numbers<[1], [0], [0], [1], [0, 0, 1, 1], [], []>} : vector<384x24xf32>, vector<24x8xf32>, vector<384x8xf32> -> vector<384x8xf32>
    %23 = arith.addf %12, %22 : vector<384x8xf32>
    %c48 = arith.constant 48 : index
    %c0_28 = arith.constant 0 : index
    %24 = vector.load %arg9[%c48, %c0_28] : memref<440x8xf32, #tpu.memory_space<vmem>>, vector<384x8xf32>
    %c0_29 = arith.constant 0 : index
    %c0_30 = arith.constant 0 : index
    %25 = vector.load %arg11[%c0_29, %c0_30] : memref<384x24xf32, #tpu.memory_space<vmem>>, vector<384x8xf32>
    tpu.vector_store %arg11[%c0_29, %c0_30], %24 {strides = array<i32>} : memref<384x24xf32, #tpu.memory_space<vmem>>, vector<384x8xf32>,
    %c49 = arith.constant 49 : index
    %c0_31 = arith.constant 0 : index
    %26 = vector.load %arg9[%c49, %c0_31] : memref<440x8xf32, #tpu.memory_space<vmem>>, vector<384x8xf32>
    %c0_32 = arith.constant 0 : index
    %c8_33 = arith.constant 8 : index
    %27 = vector.load %arg11[%c0_32, %c8_33] : memref<384x24xf32, #tpu.memory_space<vmem>>, vector<384x8xf32>
    tpu.vector_store %arg11[%c0_32, %c8_33], %26 {strides = array<i32>} : memref<384x24xf32, #tpu.memory_space<vmem>>, vector<384x8xf32>,
    %c50 = arith.constant 50 : index
    %c0_34 = arith.constant 0 : index
    %28 = vector.load %arg9[%c50, %c0_34] : memref<440x8xf32, #tpu.memory_space<vmem>>, vector<384x8xf32>
    %c0_35 = arith.constant 0 : index
    %c16_36 = arith.constant 16 : index
    %29 = vector.load %arg11[%c0_35, %c16_36] : memref<384x24xf32, #tpu.memory_space<vmem>>, vector<384x8xf32>
    tpu.vector_store %arg11[%c0_35, %c16_36], %28 {strides = array<i32>} : memref<384x24xf32, #tpu.memory_space<vmem>>, vector<384x8xf32>,
    %c0_37 = arith.constant 0 : index
    %c0_38 = arith.constant 0 : index
    %30 = vector.load %arg11[%c0_37, %c0_38] : memref<384x24xf32, #tpu.memory_space<vmem>>, vector<384x24xf32>
    %c2_39 = arith.constant 2 : index
    %c0_40 = arith.constant 0 : index
    %c0_41 = arith.constant 0 : index
    %31 = vector.load %arg5[%c2_39, %c0_40, %c0_41] : memref<3x24x8xf32, #tpu.memory_space<vmem>>, vector<1x24x8xf32>
    %32 = vector.shape_cast %31 : vector<1x24x8xf32> to vector<24x8xf32>
    %cst_42 = arith.constant dense<0.000000e+00> : vector<384x8xf32>
    %33 = tpu.matmul %30, %32, %cst_42 {dimension_numbers = #tpu.dot_dimension_numbers<[1], [0], [0], [1], [0, 0, 1, 1], [], []>} : vector<384x24xf32>, vector<24x8xf32>, vector<384x8xf32> -> vector<384x8xf32>
    %34 = arith.addf %23, %33 : vector<384x8xf32>
    %c0_43 = arith.constant 0 : index
    %c0_44 = arith.constant 0 : index
    %35 = vector.load %arg6[%c0_43, %c0_44] : memref<1x8xf32, #tpu.memory_space<vmem>>, vector<1x8xf32>
    %36 = vector.broadcast %35 : vector<1x8xf32> to vector<384x8xf32>
    %37 = arith.addf %34, %36 : vector<384x8xf32>
    %c0_45 = arith.constant 0 : index
    %c25_46 = arith.constant 25 : index
    %c0_47 = arith.constant 0 : index
    %38 = vector.load %arg2[%c0_45, %c25_46, %c0_47] : memref<1x456x8xf32, #tpu.memory_space<vmem>>, vector<1x384x8xf32>
    %39 = vector.shape_cast %38 : vector<1x384x8xf32> to vector<384x8xf32>
    %c0_48 = arith.constant 0 : index
    %c0_49 = arith.constant 0 : index
    %40 = vector.load %arg7[%c0_48, %c0_49] : memref<8x8xf32, #tpu.memory_space<vmem>>, vector<8x8xf32>
    %cst_50 = arith.constant dense<0.000000e+00> : vector<384x8xf32>
    %41 = tpu.matmul %39, %40, %cst_50 {dimension_numbers = #tpu.dot_dimension_numbers<[1], [0], [0], [1], [0, 0, 1, 1], [], []>} : vector<384x8xf32>, vector<8x8xf32>, vector<384x8xf32> -> vector<384x8xf32>
    %42 = arith.addf %37, %41 : vector<384x8xf32>
    %cst_51 = arith.constant 0.000000e+00 : f32
    %43 = vector.broadcast %cst_51 : f32 to vector<384x8xf32>
    %44 = arith.maximumf %42, %43 : vector<384x8xf32>
    %c0_52 = arith.constant 0 : index
    %c0_53 = arith.constant 0 : index
    %c0_54 = arith.constant 0 : index
    %45 = vector.load %arg8[%c0_52, %c0_53, %c0_54] : memref<1x384x8xf32, #tpu.memory_space<vmem>>, vector<1x384x8xf32>
    %46 = vector.shape_cast %45 : vector<1x384x8xf32> to vector<384x8xf32>
    %47 = vector.shape_cast %44 : vector<384x8xf32> to vector<1x384x8xf32>
    tpu.vector_store %arg8[%c0_52, %c0_53, %c0_54], %47 {strides = array<i32>} : memref<1x384x8xf32, #tpu.memory_space<vmem>>, vector<1x384x8xf32>,
    return
  }
  func.func @transform_0(%arg0: i32, %arg1: i32) -> (i32, i32, i32) {
    %c0_i32 = arith.constant 0 : i32
    %c0_i32_0 = arith.constant 0 : i32
    %c0_i32_1 = arith.constant 0 : i32
    return %arg0, %c0_i32, %c0_i32_0 : i32, i32, i32
  }
  func.func @transform_1(%arg0: i32, %arg1: i32) -> (i32, i32, i32) {
    %c0_i32 = arith.constant 0 : i32
    %c0_i32_0 = arith.constant 0 : i32
    %c0_i32_1 = arith.constant 0 : i32
    %c0_i32_2 = arith.constant 0 : i32
    return %c0_i32, %c0_i32_0, %c0_i32_1 : i32, i32, i32
  }
  func.func @transform_2(%arg0: i32, %arg1: i32) -> (i32, i32) {
    %c0_i32 = arith.constant 0 : i32
    %c0_i32_0 = arith.constant 0 : i32
    %c0_i32_1 = arith.constant 0 : i32
    return %c0_i32, %c0_i32_0 : i32, i32
  }
  func.func @transform_3(%arg0: i32, %arg1: i32) -> (i32, i32, i32) {
    %c0_i32 = arith.constant 0 : i32
    %c0_i32_0 = arith.constant 0 : i32
    %c0_i32_1 = arith.constant 0 : i32
    return %c0_i32, %c0_i32_0, %arg1 : i32, i32, i32
  }
  func.func @transform_4(%arg0: i32, %arg1: i32) -> (i32, i32) {
    %c0_i32 = arith.constant 0 : i32
    %c0_i32_0 = arith.constant 0 : i32
    return %c0_i32, %arg1 : i32, i32
  }
  func.func @transform_5(%arg0: i32, %arg1: i32) -> (i32, i32) {
    %c0_i32 = arith.constant 0 : i32
    %c0_i32_0 = arith.constant 0 : i32
    return %c0_i32, %arg1 : i32, i32
  }
  func.func @transform_6(%arg0: i32, %arg1: i32) -> (i32, i32, i32) {
    %c0_i32 = arith.constant 0 : i32
    %c0_i32_0 = arith.constant 0 : i32
    return %arg0, %c0_i32, %arg1 : i32, i32, i32
  }
}

</mosaic_0001>

<llo_original>
// kernel: basic_block_forward.1
$region0: #{basic_block_forward.1}
  #allocation0 [shape = 'u32[]', space=smem, size = 0x4, offset = 0x4, fixed_abs, tag = 'smem constant byte address 0x4 - core index']
  #allocation1 [shape = 'u32[144,128]{1,0:T(1,128)}', space=vmem, size = 0x12000, scoped, tag = 'internal scratch']
  #allocation2 [shape = 'f32[440,8]{1,0:T(8,128)}', space=vmem, size = 0x37000, scoped, tag = 'scratch operand']
  #allocation3 [shape = 'f32[384,24]{1,0:T(8,128)}', space=vmem, size = 0x30000, scoped, tag = 'scratch operand']
  #allocation4 [shape = 'f32[384,24]{1,0:T(8,128)}', space=vmem, size = 0x30000, scoped, tag = 'scratch operand']
  %s0 = inlined_call_operand.vmem [shape: f32[2,456,8], index: 0, kind: input, shape index: {}]
  %s1 = inlined_call_operand.vmem [shape: f32[3,24,8], index: 1, kind: input, shape index: {}]
  %s2 = inlined_call_operand.vmem [shape: f32[1,8], index: 2, kind: input, shape index: {}]
  %s3 = inlined_call_operand.vmem [shape: f32[3,24,8], index: 3, kind: input, shape index: {}]
  %s4 = inlined_call_operand.vmem [shape: f32[1,8], index: 4, kind: input, shape index: {}]
  %s5 = inlined_call_operand.vmem [shape: f32[8,8], index: 5, kind: input, shape index: {}]
  %s6 = inlined_call_operand.vmem [shape: f32[2,384,8], index: 6, kind: output, shape index: {}]
  %s7 = sld [smem:[#allocation0]]
  $region61: #{basic_block_forward.1} parent=0
    _
  %s9 = ssub.s32 1, %s7
  %s10 = scalar_select 0, %s9, %s7
  loop: start=0, step=1, limit=4
  $region2: #{basic_block_forward.1} parent=0 // loop_pre_header
    _
  $region3: #{basic_block_forward.1} parent=0 // loop_header
    %s12 = sphi 0, %s16
    %p13 = scmp.ge.s32.totalorder %s12, 4
    %s19 = sphi 0, %s31
    %s20 = sphi 0, %s27
    %s21 = sphi 0, %s19
    %s22 = sphi 0, %s20
    %s23 = sphi 0, %s21
    %s24 = sphi 0, %s22
    %s34 = sphi 0, %s36
    %s37 = sphi 0, %s34
    %s38 = sphi 0, %s37
    %s54 = sphi 0, %s38
    %s58 = sphi 0, %s58
    %s60 = sphi 0, %s58
    %s61 = sphi 0, %s60
    %s75 = sphi 0, %s61
    %s79 = sphi 0, %s79
    %s81 = sphi 0, %s79
    %s82 = sphi 0, %s81
    %s96 = sphi 0, %s82
    %s102 = sphi 0, %s104
    %s105 = sphi 0, %s102
    %s106 = sphi 0, %s105
    %s122 = sphi 0, %s106
    %s128 = sphi 0, %s130
    %s131 = sphi 0, %s128
    %s132 = sphi 0, %s131
    %s148 = sphi 0, %s132
    %s154 = sphi 0, %s156
    %s157 = sphi 0, %s154
    %s158 = sphi 0, %s157
    %s174 = sphi 0, %s158
    %s182 = sphi 0, %s184
    %s185 = sphi 0, %s182
    %s186 = sphi 0, %s185
    %s202 = sphi 0, %s186
  $region4: #{basic_block_forward.1} parent=0 // loop_header_branch
    %15 = sbr.rel (%p13) target = $region8
  $region5: #{basic_block_forward.1} parent=0 // loop_body
    %s17 = ssub.s32 %s12, 1
    %s18 = ssub.s32 %s12, 2
    %s25 = sadd.s32 1, %s20
    %p26 = scmp.ge.s32.totalorder %s25, 1
    %s27 = scalar_select %p26, 0, %s25
    %s28 = sadd.s32 1, %s19
    %s29 = scalar_select %p26, %s28, %s19
    %p30 = scmp.ge.s32.totalorder %s29, 2
    %s31 = scalar_select %p30, 0, %s29
    %s32 = ssub.s32 %s19, %s31
    %p33 = scmp.eq.s32.totalorder %s32, 0
    %s35 = sadd.s32 %s34, 1
    %s36 = scalar_select %p33, %s34, %s35
    %p39 = pneg %p33
    %p40 = scmp.eq.s32.totalorder %s12, 1
    %p41 = por %p39, %p40
    %p42 = scmp.ne.s32.totalorder %s34, %s37
    %p43 = scmp.eq.s32.totalorder %s12, 0
    %p44 = por %p42, %p43
    %p45 = scmp.ne.s32.totalorder %s34, %s37
    %p46 = scmp.eq.s32.totalorder %s17, 1
    %p47 = por %p45, %p46
    %p48 = scmp.ne.s32.totalorder %s37, %s38
    %p49 = scmp.eq.s32.totalorder %s17, 0
    %p50 = por %p48, %p49
    %p51 = scmp.ne.s32.totalorder %s37, %s38
    %p52 = scmp.eq.s32.totalorder %s18, 1
    %p53 = por %p51, %p52
    %p55 = scmp.ne.s32.totalorder %s38, %s54
    %p56 = scmp.eq.s32.totalorder %s18, 0
    %p57 = por %p55, %p56
    %s59 = sadd.s32 %s58, 1
    %p62 = scmp.eq.s32.totalorder %s12, 1
    %p63 = scmp.ne.s32.totalorder %s58, %s60
    %p64 = scmp.eq.s32.totalorder %s12, 0
    %p65 = por %p63, %p64
    %p66 = scmp.ne.s32.totalorder %s58, %s60
    %p67 = scmp.eq.s32.totalorder %s17, 1
    %p68 = por %p66, %p67
    %p69 = scmp.ne.s32.totalorder %s60, %s61
    %p70 = scmp.eq.s32.totalorder %s17, 0
    %p71 = por %p69, %p70
    %p72 = scmp.ne.s32.totalorder %s60, %s61
    %p73 = scmp.eq.s32.totalorder %s18, 1
    %p74 = por %p72, %p73
    %p76 = scmp.ne.s32.totalorder %s61, %s75
    %p77 = scmp.eq.s32.totalorder %s18, 0
    %p78 = por %p76, %p77
    %s80 = sadd.s32 %s79, 1
    %p83 = scmp.eq.s32.totalorder %s12, 1
    %p84 = scmp.ne.s32.totalorder %s79, %s81
    %p85 = scmp.eq.s32.totalorder %s12, 0
    %p86 = por %p84, %p85
    %p87 = scmp.ne.s32.totalorder %s79, %s81
    %p88 = scmp.eq.s32.totalorder %s17, 1
    %p89 = por %p87, %p88
    %p90 = scmp.ne.s32.totalorder %s81, %s82
    %p91 = scmp.eq.s32.totalorder %s17, 0
    %p92 = por %p90, %p91
    %p93 = scmp.ne.s32.totalorder %s81, %s82
    %p94 = scmp.eq.s32.totalorder %s18, 1
    %p95 = por %p93, %p94
    %p97 = scmp.ne.s32.totalorder %s82, %s96
    %p98 = scmp.eq.s32.totalorder %s18, 0
    %p99 = por %p97, %p98
    %s100 = ssub.s32 %s20, %s27
    %p101 = scmp.eq.s32.totalorder %s100, 0
    %s103 = sadd.s32 %s102, 1
    %s104 = scalar_select %p101, %s102, %s103
    %p107 = pneg %p101
    %p108 = scmp.eq.s32.totalorder %s12, 1
    %p109 = por %p107, %p108
    %p110 = scmp.ne.s32.totalorder %s102, %s105
    %p111 = scmp.eq.s32.totalorder %s12, 0
    %p112 = por %p110, %p111
    %p113 = scmp.ne.s32.totalorder %s102, %s105
    %p114 = scmp.eq.s32.totalorder %s17, 1
    %p115 = por %p113, %p114
    %p116 = scmp.ne.s32.totalorder %s105, %s106
    %p117 = scmp.eq.s32.totalorder %s17, 0
    %p118 = por %p116, %p117
    %p119 = scmp.ne.s32.totalorder %s105, %s106
    %p120 = scmp.eq.s32.totalorder %s18, 1
    %p121 = por %p119, %p120
    %p123 = scmp.ne.s32.totalorder %s106, %s122
    %p124 = scmp.eq.s32.totalorder %s18, 0
    %p125 = por %p123, %p124
    %s126 = ssub.s32 %s20, %s27
    %p127 = scmp.eq.s32.totalorder %s126, 0
    %s129 = sadd.s32 %s128, 1
    %s130 = scalar_select %p127, %s128, %s129
    %p133 = pneg %p127
    %p134 = scmp.eq.s32.totalorder %s12, 1
    %p135 = por %p133, %p134
    %p136 = scmp.ne.s32.totalorder %s128, %s131
    %p137 = scmp.eq.s32.totalorder %s12, 0
    %p138 = por %p136, %p137
    %p139 = scmp.ne.s32.totalorder %s128, %s131
    %p140 = scmp.eq.s32.totalorder %s17, 1
    %p141 = por %p139, %p140
    %p142 = scmp.ne.s32.totalorder %s131, %s132
    %p143 = scmp.eq.s32.totalorder %s17, 0
    %p144 = por %p142, %p143
    %p145 = scmp.ne.s32.totalorder %s131, %s132
    %p146 = scmp.eq.s32.totalorder %s18, 1
    %p147 = por %p145, %p146
    %p149 = scmp.ne.s32.totalorder %s132, %s148
    %p150 = scmp.eq.s32.totalorder %s18, 0
    %p151 = por %p149, %p150
    %s152 = ssub.s32 %s20, %s27
    %p153 = scmp.eq.s32.totalorder %s152, 0
    %s155 = sadd.s32 %s154, 1
    %s156 = scalar_select %p153, %s154, %s155
    %p159 = pneg %p153
    %p160 = scmp.eq.s32.totalorder %s12, 1
    %p161 = por %p159, %p160
    %p162 = scmp.ne.s32.totalorder %s154, %s157
    %p163 = scmp.eq.s32.totalorder %s12, 0
    %p164 = por %p162, %p163
    %p165 = scmp.ne.s32.totalorder %s154, %s157
    %p166 = scmp.eq.s32.totalorder %s17, 1
    %p167 = por %p165, %p166
    %p168 = scmp.ne.s32.totalorder %s157, %s158
    %p169 = scmp.eq.s32.totalorder %s17, 0
    %p170 = por %p168, %p169
    %p171 = scmp.ne.s32.totalorder %s157, %s158
    %p172 = scmp.eq.s32.totalorder %s18, 1
    %p173 = por %p171, %p172
    %p175 = scmp.ne.s32.totalorder %s158, %s174
    %p176 = scmp.eq.s32.totalorder %s18, 0
    %p177 = por %p175, %p176
    %s178 = ssub.s32 %s19, %s31
    %s179 = ssub.s32 %s20, %s27
    %s180 = sor.u32 %s178, %s179
    %p181 = scmp.eq.s32.totalorder %s180, 0
    %s183 = sadd.s32 %s182, 1
    %s184 = scalar_select %p181, %s182, %s183
    %p187 = pneg %p181
    %p188 = scmp.eq.s32.totalorder %s12, 1
    %p189 = por %p187, %p188
    %p190 = scmp.ne.s32.totalorder %s182, %s185
    %p191 = scmp.eq.s32.totalorder %s12, 0
    %p192 = por %p190, %p191
    %p193 = scmp.ne.s32.totalorder %s182, %s185
    %p194 = scmp.eq.s32.totalorder %s17, 1
    %p195 = por %p193, %p194
    %p196 = scmp.ne.s32.totalorder %s185, %s186
    %p197 = scmp.eq.s32.totalorder %s17, 0
    %p198 = por %p196, %p197
    %p199 = scmp.ne.s32.totalorder %s185, %s186
    %p200 = scmp.eq.s32.totalorder %s18, 1
    %p201 = por %p199, %p200
    %p203 = scmp.ne.s32.totalorder %s186, %s202
    %p204 = scmp.eq.s32.totalorder %s18, 0
    %p205 = por %p203, %p204
    %p206 = scmp.le.s32.totalorder 1, %s12
    %p207 = scmp.lt.s32.totalorder %s12, 3
    %p208 = pnand %p206, %p207
    %p209 = pneg %p208
    // Predicated region
    $region9: #{basic_block_forward.1} parent=5 // pred_check
      _
    $region10: #{basic_block_forward.1} parent=5 // pred_check_branch
      %211 = sbr.rel (%p208) target = $region12
    $region11: #{basic_block_forward.1} parent=5 // pred_region
      %s212 = ssub.s32 %s12, 1
      // Predicated region
      $region13: #{basic_block_forward.1} parent=11 // pred_check
        %p213 = pneg %p71
      $region14: #{basic_block_forward.1} parent=11 // pred_check_branch
        %215 = sbr.rel (%p213) target = $region16
      $region15: #{basic_block_forward.1} parent=11 // pred_region
        _
      $region16: #{basic_block_forward.1} parent=11 // pred_fallthru
        _
      // Predicated region
      $region17: #{basic_block_forward.1} parent=11 // pred_check
        %p216 = pneg %p92
      $region18: #{basic_block_forward.1} parent=11 // pred_check_branch
        %218 = sbr.rel (%p216) target = $region20
      $region19: #{basic_block_forward.1} parent=11 // pred_region
        _
      $region20: #{basic_block_forward.1} parent=11 // pred_fallthru
        _
      // Predicated region
      $region21: #{basic_block_forward.1} parent=11 // pred_check
        %p219 = pneg %p118
      $region22: #{basic_block_forward.1} parent=11 // pred_check_branch
        %221 = sbr.rel (%p219) target = $region24
      $region23: #{basic_block_forward.1} parent=11 // pred_region
        %p222 = scmp.lt.s32.totalorder %s22, 0
        %s223 = scalar_select %p222, %s22, 0
        %s224 = smul.addr %s223, 8
        %s225 = scalar_lea.vmem %s3, %s224
      $region24: #{basic_block_forward.1} parent=11 // pred_fallthru
        _
      // Predicated region
      $region25: #{basic_block_forward.1} parent=11 // pred_check
        %p226 = pneg %p144
      $region26: #{basic_block_forward.1} parent=11 // pred_check_branch
        %228 = sbr.rel (%p226) target = $region28
      $region27: #{basic_block_forward.1} parent=11 // pred_region
        %p229 = scmp.lt.s32.totalorder %s22, 0
        %s230 = scalar_select %p229, %s22, 0
        %s231 = scalar_lea.vmem %s4, %s230
      $region28: #{basic_block_forward.1} parent=11 // pred_fallthru
        _
      // Predicated region
      $region29: #{basic_block_forward.1} parent=11 // pred_check
        %p232 = pneg %p170
      $region30: #{basic_block_forward.1} parent=11 // pred_check_branch
        %234 = sbr.rel (%p232) target = $region32
      $region31: #{basic_block_forward.1} parent=11 // pred_region
        %p235 = scmp.lt.s32.totalorder %s22, 0
        %s236 = scalar_select %p235, %s22, 0
        %s237 = smul.addr %s236, 8
        %s238 = scalar_lea.vmem %s5, %s237
      $region32: #{basic_block_forward.1} parent=11 // pred_fallthru
        _
    $region12: #{basic_block_forward.1} parent=5 // pred_fallthru
      _
    %p239 = scmp.lt.s32.totalorder %s12, 2
    // Predicated region
    $region33: #{basic_block_forward.1} parent=5 // pred_check
      %p240 = pneg %p239
    $region34: #{basic_block_forward.1} parent=5 // pred_check_branch
      %242 = sbr.rel (%p240) target = $region36
    $region35: #{basic_block_forward.1} parent=5 // pred_region
      // Predicated region
      $region37: #{basic_block_forward.1} parent=35 // pred_check
        %p243 = pneg %p44
      $region38: #{basic_block_forward.1} parent=35 // pred_check_branch
        %245 = sbr.rel (%p243) target = $region40
      $region39: #{basic_block_forward.1} parent=35 // pred_region
        %p246 = scmp.lt.s32.totalorder %s19, 1
        %s247 = scalar_select %p246, %s19, 1
        %s248 = smul.addr %s247, 57
        %s249 = smul.addr %s248, 8
        %s250 = scalar_lea.vmem %s0, %s249
      $region40: #{basic_block_forward.1} parent=35 // pred_fallthru
        _
    $region36: #{basic_block_forward.1} parent=5 // pred_fallthru
      _
    %p251 = scmp.le.s32.totalorder 1, %s12
    %p252 = scmp.lt.s32.totalorder %s12, 3
    %p253 = pnand %p251, %p252
    %p254 = pneg %p253
    // Predicated region
    $region41: #{basic_block_forward.1} parent=5 // pred_check
      _
    $region42: #{basic_block_forward.1} parent=5 // pred_check_branch
      %256 = sbr.rel (%p253) target = $region44
    $region43: #{basic_block_forward.1} parent=5 // pred_region
      %s257 = ssub.s32 %s12, 1
      %p258 = scmp.lt.s32.totalorder %s21, 1
      %s259 = scalar_select %p258, %s21, 1
      %s260 = smul.addr %s259, 57
      %s261 = smul.addr %s260, 8
      %s262 = scalar_lea.vmem %s0, %s261
      %p263 = pneg %p50
      %p264 = pneg %p47
      %p265 = pneg %p71
      %p266 = pneg %p68
      %p267 = pneg %p92
      %p268 = pneg %p89
      %p269 = scmp.lt.s32.totalorder %s22, 0
      %s270 = scalar_select %p269, %s22, 0
      %s271 = smul.addr %s270, 8
      %s272 = scalar_lea.vmem %s3, %s271
      %p273 = pneg %p118
      %p274 = pneg %p115
      %p275 = scmp.lt.s32.totalorder %s22, 0
      %s276 = scalar_select %p275, %s22, 0
      %s277 = scalar_lea.vmem %s4, %s276
      %p278 = pneg %p144
      %p279 = pneg %p141
      %p280 = scmp.lt.s32.totalorder %s22, 0
      %s281 = scalar_select %p280, %s22, 0
      %s282 = smul.addr %s281, 8
      %s283 = scalar_lea.vmem %s5, %s282
      %p284 = pneg %p170
      %p285 = pneg %p167
      %p286 = pneg %p198
      %p287 = pneg %p195
      %p288 = scmp.lt.s32.totalorder %s21, 1
      %s289 = scalar_select %p288, %s21, 1
      %p290 = scmp.lt.s32.totalorder %s22, 0
      %s291 = scalar_select %p290, %s22, 0
      %s292 = smul.addr %s289, 48
      %s293 = sadd.s32 %s291, %s292
      %s294 = smul.addr %s293, 8
      %s295 = scalar_lea.vmem %s6, %s294
      %p296 = scmp.lt.s32.totalorder %s21, 1
      %s297 = scalar_select %p296, %s21, 1
      %s298 = smul.addr %s297, 57
      %s299 = smul.addr %s298, 8
      %s300 = scalar_lea.vmem %s0, %s299
      %p301 = scmp.lt.s32.totalorder %s22, 0
      %s302 = scalar_select %p301, %s22, 0
      %s303 = smul.addr %s302, 8
      %s304 = scalar_lea.vmem %s3, %s303
      %p305 = scmp.lt.s32.totalorder %s22, 0
      %s306 = scalar_select %p305, %s22, 0
      %s307 = scalar_lea.vmem %s4, %s306
      %p308 = scmp.lt.s32.totalorder %s22, 0
      %s309 = scalar_select %p308, %s22, 0
      %s310 = smul.addr %s309, 8
      %s311 = scalar_lea.vmem %s5, %s310
      %p312 = scmp.lt.s32.totalorder %s21, 1
      %s313 = scalar_select %p312, %s21, 1
      %p314 = scmp.lt.s32.totalorder %s22, 0
      %s315 = scalar_select %p314, %s22, 0
      %s316 = smul.addr %s313, 48
      %s317 = sadd.s32 %s315, %s316
      %s318 = smul.addr %s317, 8
      %s319 = scalar_lea.vmem %s6, %s318
      %p320 = scmp.eq.s32.totalorder %s22, 0
      // Predicated region
      $region45: #{basic_block_forward.1} parent=43 // pred_check
        %p321 = pneg %p320
      $region46: #{basic_block_forward.1} parent=43 // pred_check_branch
        %323 = sbr.rel (%p321) target = $region48
      $region47: #{basic_block_forward.1} parent=43 // pred_region
        %v324 = vld [vmem:[%s300] sm:$0xff]
        %v325 = vld [vmem:[%s300 + $0x8] sm:$0xff]
        %v326 = vld [vmem:[%s300 + $0x10] sm:$0xff]
        %v327 = vld [vmem:[%s300 + $0x18] sm:$0xff]
        %v328 = vld [vmem:[%s300 + $0x20] sm:$0xff]
        %v329 = vld [vmem:[%s300 + $0x28] sm:$0xff]
        %v330 = vld [vmem:[%s300 + $0x30] sm:$0xff]
        %v331 = vld [vmem:[%s300 + $0x38] sm:$0xff]
        %v332 = vld [vmem:[%s300 + $0x40] sm:$0xff]
        %v333 = vld [vmem:[%s300 + $0x48] sm:$0xff]
        %v334 = vld [vmem:[%s300 + $0x50] sm:$0xff]
        %v335 = vld [vmem:[%s300 + $0x58] sm:$0xff]
        %v336 = vld [vmem:[%s300 + $0x60] sm:$0xff]
        %v337 = vld [vmem:[%s300 + $0x68] sm:$0xff]
        %v338 = vld [vmem:[%s300 + $0x70] sm:$0xff]
        %v339 = vld [vmem:[%s300 + $0x78] sm:$0xff]
        %v340 = vld [vmem:[%s300 + $0x80] sm:$0xff]
        %v341 = vld [vmem:[%s300 + $0x88] sm:$0xff]
        %v342 = vld [vmem:[%s300 + $0x90] sm:$0xff]
        %v343 = vld [vmem:[%s300 + $0x98] sm:$0xff]
        %v344 = vld [vmem:[%s300 + $0xa0] sm:$0xff]
        %v345 = vld [vmem:[%s300 + $0xa8] sm:$0xff]
        %v346 = vld [vmem:[%s300 + $0xb0] sm:$0xff]
        %v347 = vld [vmem:[%s300 + $0xb8] sm:$0xff]
        %v348 = vld [vmem:[%s300 + $0xc0] sm:$0xff]
        %v349 = vld [vmem:[%s300 + $0xc8] sm:$0xff]
        %v350 = vld [vmem:[%s300 + $0xd0] sm:$0xff]
        %v351 = vld [vmem:[%s300 + $0xd8] sm:$0xff]
        %v352 = vld [vmem:[%s300 + $0xe0] sm:$0xff]
        %v353 = vld [vmem:[%s300 + $0xe8] sm:$0xff]
        %v354 = vld [vmem:[%s300 + $0xf0] sm:$0xff]
        %v355 = vld [vmem:[%s300 + $0xf8] sm:$0xff]
        %v356 = vld [vmem:[%s300 + $0x100] sm:$0xff]
        %v357 = vld [vmem:[%s300 + $0x108] sm:$0xff]
        %v358 = vld [vmem:[%s300 + $0x110] sm:$0xff]
        %v359 = vld [vmem:[%s300 + $0x118] sm:$0xff]
        %v360 = vld [vmem:[%s300 + $0x120] sm:$0xff]
        %v361 = vld [vmem:[%s300 + $0x128] sm:$0xff]
        %v362 = vld [vmem:[%s300 + $0x130] sm:$0xff]
        %v363 = vld [vmem:[%s300 + $0x138] sm:$0xff]
        %v364 = vld [vmem:[%s300 + $0x140] sm:$0xff]
        %v365 = vld [vmem:[%s300 + $0x148] sm:$0xff]
        %v366 = vld [vmem:[%s300 + $0x150] sm:$0xff]
        %v367 = vld [vmem:[%s300 + $0x158] sm:$0xff]
        %v368 = vld [vmem:[%s300 + $0x160] sm:$0xff]
        %v369 = vld [vmem:[%s300 + $0x168] sm:$0xff]
        %v370 = vld [vmem:[%s300 + $0x170] sm:$0xff]
        %v371 = vld [vmem:[%s300 + $0x178] sm:$0xff]
        %vm372 = vcmask 64512
        %373 = vst.msk [vmem:[#allocation3] sm:$0xff] %vm372, %v324
        %374 = vst.msk [vmem:[#allocation3 + $0x8] sm:$0xff] %vm372, %v325
        %375 = vst.msk [vmem:[#allocation3 + $0x10] sm:$0xff] %vm372, %v326
        %376 = vst.msk [vmem:[#allocation3 + $0x18] sm:$0xff] %vm372, %v327
        %377 = vst.msk [vmem:[#allocation3 + $0x20] sm:$0xff] %vm372, %v328
        %378 = vst.msk [vmem:[#allocation3 + $0x28] sm:$0xff] %vm372, %v329
        %379 = vst.msk [vmem:[#allocation3 + $0x30] sm:$0xff] %vm372, %v330
        %380 = vst.msk [vmem:[#allocation3 + $0x38] sm:$0xff] %vm372, %v331
        %381 = vst.msk [vmem:[#allocation3 + $0x40] sm:$0xff] %vm372, %v332
        %382 = vst.msk [vmem:[#allocation3 + $0x48] sm:$0xff] %vm372, %v333
        %383 = vst.msk [vmem:[#allocation3 + $0x50] sm:$0xff] %vm372, %v334
        %384 = vst.msk [vmem:[#allocation3 + $0x58] sm:$0xff] %vm372, %v335
        %385 = vst.msk [vmem:[#allocation3 + $0x60] sm:$0xff] %vm372, %v336
        %386 = vst.msk [vmem:[#allocation3 + $0x68] sm:$0xff] %vm372, %v337
        %387 = vst.msk [vmem:[#allocation3 + $0x70] sm:$0xff] %vm372, %v338
        %388 = vst.msk [vmem:[#allocation3 + $0x78] sm:$0xff] %vm372, %v339
        %389 = vst.msk [vmem:[#allocation3 + $0x80] sm:$0xff] %vm372, %v340
        %390 = vst.msk [vmem:[#allocation3 + $0x88] sm:$0xff] %vm372, %v341
        %391 = vst.msk [vmem:[#allocation3 + $0x90] sm:$0xff] %vm372, %v342
        %392 = vst.msk [vmem:[#allocation3 + $0x98] sm:$0xff] %vm372, %v343
        %393 = vst.msk [vmem:[#allocation3 + $0xa0] sm:$0xff] %vm372, %v344
        %394 = vst.msk [vmem:[#allocation3 + $0xa8] sm:$0xff] %vm372, %v345
        %395 = vst.msk [vmem:[#allocation3 + $0xb0] sm:$0xff] %vm372, %v346
        %396 = vst.msk [vmem:[#allocation3 + $0xb8] sm:$0xff] %vm372, %v347
        %397 = vst.msk [vmem:[#allocation3 + $0xc0] sm:$0xff] %vm372, %v348
        %398 = vst.msk [vmem:[#allocation3 + $0xc8] sm:$0xff] %vm372, %v349
        %399 = vst.msk [vmem:[#allocation3 + $0xd0] sm:$0xff] %vm372, %v350
        %400 = vst.msk [vmem:[#allocation3 + $0xd8] sm:$0xff] %vm372, %v351
        %401 = vst.msk [vmem:[#allocation3 + $0xe0] sm:$0xff] %vm372, %v352
        %402 = vst.msk [vmem:[#allocation3 + $0xe8] sm:$0xff] %vm372, %v353
        %403 = vst.msk [vmem:[#allocation3 + $0xf0] sm:$0xff] %vm372, %v354
        %404 = vst.msk [vmem:[#allocation3 + $0xf8] sm:$0xff] %vm372, %v355
        %405 = vst.msk [vmem:[#allocation3 + $0x100] sm:$0xff] %vm372, %v356
        %406 = vst.msk [vmem:[#allocation3 + $0x108] sm:$0xff] %vm372, %v357
        %407 = vst.msk [vmem:[#allocation3 + $0x110] sm:$0xff] %vm372, %v358
        %408 = vst.msk [vmem:[#allocation3 + $0x118] sm:$0xff] %vm372, %v359
        %409 = vst.msk [vmem:[#allocation3 + $0x120] sm:$0xff] %vm372, %v360
        %410 = vst.msk [vmem:[#allocation3 + $0x128] sm:$0xff] %vm372, %v361
        %411 = vst.msk [vmem:[#allocation3 + $0x130] sm:$0xff] %vm372, %v362
        %412 = vst.msk [vmem:[#allocation3 + $0x138] sm:$0xff] %vm372, %v363
        %413 = vst.msk [vmem:[#allocation3 + $0x140] sm:$0xff] %vm372, %v364
        %414 = vst.msk [vmem:[#allocation3 + $0x148] sm:$0xff] %vm372, %v365
        %415 = vst.msk [vmem:[#allocation3 + $0x150] sm:$0xff] %vm372, %v366
        %416 = vst.msk [vmem:[#allocation3 + $0x158] sm:$0xff] %vm372, %v367
        %417 = vst.msk [vmem:[#allocation3 + $0x160] sm:$0xff] %vm372, %v368
        %418 = vst.msk [vmem:[#allocation3 + $0x168] sm:$0xff] %vm372, %v369
        %419 = vst.msk [vmem:[#allocation3 + $0x170] sm:$0xff] %vm372, %v370
        %420 = vst.msk [vmem:[#allocation3 + $0x178] sm:$0xff] %vm372, %v371
        %v421 = vld [vmem:[%s300 + $0x1] sm:$0xff]
        %v422 = vld [vmem:[%s300 + $0x9] sm:$0xff]
        %v423 = vld [vmem:[%s300 + $0x11] sm:$0xff]
        %v424 = vld [vmem:[%s300 + $0x19] sm:$0xff]
        %v425 = vld [vmem:[%s300 + $0x21] sm:$0xff]
        %v426 = vld [vmem:[%s300 + $0x29] sm:$0xff]
        %v427 = vld [vmem:[%s300 + $0x31] sm:$0xff]
        %v428 = vld [vmem:[%s300 + $0x39] sm:$0xff]
        %v429 = vld [vmem:[%s300 + $0x41] sm:$0xff]
        %v430 = vld [vmem:[%s300 + $0x49] sm:$0xff]
        %v431 = vld [vmem:[%s300 + $0x51] sm:$0xff]
        %v432 = vld [vmem:[%s300 + $0x59] sm:$0xff]
        %v433 = vld [vmem:[%s300 + $0x61] sm:$0xff]
        %v434 = vld [vmem:[%s300 + $0x69] sm:$0xff]
        %v435 = vld [vmem:[%s300 + $0x71] sm:$0xff]
        %v436 = vld [vmem:[%s300 + $0x79] sm:$0xff]
        %v437 = vld [vmem:[%s300 + $0x81] sm:$0xff]
        %v438 = vld [vmem:[%s300 + $0x89] sm:$0xff]
        %v439 = vld [vmem:[%s300 + $0x91] sm:$0xff]
        %v440 = vld [vmem:[%s300 + $0x99] sm:$0xff]
        %v441 = vld [vmem:[%s300 + $0xa1] sm:$0xff]
        %v442 = vld [vmem:[%s300 + $0xa9] sm:$0xff]
        %v443 = vld [vmem:[%s300 + $0xb1] sm:$0xff]
        %v444 = vld [vmem:[%s300 + $0xb9] sm:$0xff]
        %v445 = vld [vmem:[%s300 + $0xc1] sm:$0xff]
        %v446 = vld [vmem:[%s300 + $0xc9] sm:$0xff]
        %v447 = vld [vmem:[%s300 + $0xd1] sm:$0xff]
        %v448 = vld [vmem:[%s300 + $0xd9] sm:$0xff]
        %v449 = vld [vmem:[%s300 + $0xe1] sm:$0xff]
        %v450 = vld [vmem:[%s300 + $0xe9] sm:$0xff]
        %v451 = vld [vmem:[%s300 + $0xf1] sm:$0xff]
        %v452 = vld [vmem:[%s300 + $0xf9] sm:$0xff]
        %v453 = vld [vmem:[%s300 + $0x101] sm:$0xff]
        %v454 = vld [vmem:[%s300 + $0x109] sm:$0xff]
        %v455 = vld [vmem:[%s300 + $0x111] sm:$0xff]
        %v456 = vld [vmem:[%s300 + $0x119] sm:$0xff]
        %v457 = vld [vmem:[%s300 + $0x121] sm:$0xff]
        %v458 = vld [vmem:[%s300 + $0x129] sm:$0xff]
        %v459 = vld [vmem:[%s300 + $0x131] sm:$0xff]
        %v460 = vld [vmem:[%s300 + $0x139] sm:$0xff]
        %v461 = vld [vmem:[%s300 + $0x141] sm:$0xff]
        %v462 = vld [vmem:[%s300 + $0x149] sm:$0xff]
        %v463 = vld [vmem:[%s300 + $0x151] sm:$0xff]
        %v464 = vld [vmem:[%s300 + $0x159] sm:$0xff]
        %v465 = vld [vmem:[%s300 + $0x161] sm:$0xff]
        %v466 = vld [vmem:[%s300 + $0x169] sm:$0xff]
        %v467 = vld [vmem:[%s300 + $0x171] sm:$0xff]
        %v468 = vld [vmem:[%s300 + $0x179] sm:$0xff]
        %517 = vrot.lane.b32.xlu0 %v421, 8
        %v518 = vpop.permute.xlu0 %517
        %519 = vrot.lane.b32.xlu0 %v422, 8
        %v520 = vpop.permute.xlu0 %519
        %521 = vrot.lane.b32.xlu0 %v423, 8
        %v522 = vpop.permute.xlu0 %521
        %523 = vrot.lane.b32.xlu0 %v424, 8
        %v524 = vpop.permute.xlu0 %523
        %525 = vrot.lane.b32.xlu0 %v425, 8
        %v526 = vpop.permute.xlu0 %525
        %527 = vrot.lane.b32.xlu0 %v426, 8
        %v528 = vpop.permute.xlu0 %527
        %529 = vrot.lane.b32.xlu0 %v427, 8
        %v530 = vpop.permute.xlu0 %529
        %531 = vrot.lane.b32.xlu0 %v428, 8
        %v532 = vpop.permute.xlu0 %531
        %533 = vrot.lane.b32.xlu0 %v429, 8
        %v534 = vpop.permute.xlu0 %533
        %535 = vrot.lane.b32.xlu0 %v430, 8
        %v536 = vpop.permute.xlu0 %535
        %537 = vrot.lane.b32.xlu0 %v431, 8
        %v538 = vpop.permute.xlu0 %537
        %539 = vrot.lane.b32.xlu0 %v432, 8
        %v540 = vpop.permute.xlu0 %539
        %541 = vrot.lane.b32.xlu0 %v433, 8
        %v542 = vpop.permute.xlu0 %541
        %543 = vrot.lane.b32.xlu0 %v434, 8
        %v544 = vpop.permute.xlu0 %543
        %545 = vrot.lane.b32.xlu0 %v435, 8
        %v546 = vpop.permute.xlu0 %545
        %547 = vrot.lane.b32.xlu0 %v436, 8
        %v548 = vpop.permute.xlu0 %547
        %549 = vrot.lane.b32.xlu0 %v437, 8
        %v550 = vpop.permute.xlu0 %549
        %551 = vrot.lane.b32.xlu0 %v438, 8
        %v552 = vpop.permute.xlu0 %551
        %553 = vrot.lane.b32.xlu0 %v439, 8
        %v554 = vpop.permute.xlu0 %553
        %555 = vrot.lane.b32.xlu0 %v440, 8
        %v556 = vpop.permute.xlu0 %555
        %557 = vrot.lane.b32.xlu0 %v441, 8
        %v558 = vpop.permute.xlu0 %557
        %559 = vrot.lane.b32.xlu0 %v442, 8
        %v560 = vpop.permute.xlu0 %559
        %561 = vrot.lane.b32.xlu0 %v443, 8
        %v562 = vpop.permute.xlu0 %561
        %563 = vrot.lane.b32.xlu0 %v444, 8
        %v564 = vpop.permute.xlu0 %563
        %565 = vrot.lane.b32.xlu0 %v445, 8
        %v566 = vpop.permute.xlu0 %565
        %567 = vrot.lane.b32.xlu0 %v446, 8
        %v568 = vpop.permute.xlu0 %567
        %569 = vrot.lane.b32.xlu0 %v447, 8
        %v570 = vpop.permute.xlu0 %569
        %571 = vrot.lane.b32.xlu0 %v448, 8
        %v572 = vpop.permute.xlu0 %571
        %573 = vrot.lane.b32.xlu0 %v449, 8
        %v574 = vpop.permute.xlu0 %573
        %575 = vrot.lane.b32.xlu0 %v450, 8
        %v576 = vpop.permute.xlu0 %575
        %577 = vrot.lane.b32.xlu0 %v451, 8
        %v578 = vpop.permute.xlu0 %577
        %579 = vrot.lane.b32.xlu0 %v452, 8
        %v580 = vpop.permute.xlu0 %579
        %581 = vrot.lane.b32.xlu0 %v453, 8
        %v582 = vpop.permute.xlu0 %581
        %583 = vrot.lane.b32.xlu0 %v454, 8
        %v584 = vpop.permute.xlu0 %583
        %585 = vrot.lane.b32.xlu0 %v455, 8
        %v586 = vpop.permute.xlu0 %585
        %587 = vrot.lane.b32.xlu0 %v456, 8
        %v588 = vpop.permute.xlu0 %587
        %589 = vrot.lane.b32.xlu0 %v457, 8
        %v590 = vpop.permute.xlu0 %589
        %591 = vrot.lane.b32.xlu0 %v458, 8
        %v592 = vpop.permute.xlu0 %591
        %593 = vrot.lane.b32.xlu0 %v459, 8
        %v594 = vpop.permute.xlu0 %593
        %595 = vrot.lane.b32.xlu0 %v460, 8
        %v596 = vpop.permute.xlu0 %595
        %597 = vrot.lane.b32.xlu0 %v461, 8
        %v598 = vpop.permute.xlu0 %597
        %599 = vrot.lane.b32.xlu0 %v462, 8
        %v600 = vpop.permute.xlu0 %599
        %601 = vrot.lane.b32.xlu0 %v463, 8
        %v602 = vpop.permute.xlu0 %601
        %603 = vrot.lane.b32.xlu0 %v464, 8
        %v604 = vpop.permute.xlu0 %603
        %605 = vrot.lane.b32.xlu0 %v465, 8
        %v606 = vpop.permute.xlu0 %605
        %607 = vrot.lane.b32.xlu0 %v466, 8
        %v608 = vpop.permute.xlu0 %607
        %609 = vrot.lane.b32.xlu0 %v467, 8
        %v610 = vpop.permute.xlu0 %609
        %611 = vrot.lane.b32.xlu0 %v468, 8
        %v612 = vpop.permute.xlu0 %611
        %vm661 = vcmask 130112
        %662 = vst.msk [vmem:[#allocation3] sm:$0xff] %vm661, %v518
        %663 = vst.msk [vmem:[#allocation3 + $0x8] sm:$0xff] %vm661, %v520
        %664 = vst.msk [vmem:[#allocation3 + $0x10] sm:$0xff] %vm661, %v522
        %665 = vst.msk [vmem:[#allocation3 + $0x18] sm:$0xff] %vm661, %v524
        %666 = vst.msk [vmem:[#allocation3 + $0x20] sm:$0xff] %vm661, %v526
        %667 = vst.msk [vmem:[#allocation3 + $0x28] sm:$0xff] %vm661, %v528
        %668 = vst.msk [vmem:[#allocation3 + $0x30] sm:$0xff] %vm661, %v530
        %669 = vst.msk [vmem:[#allocation3 + $0x38] sm:$0xff] %vm661, %v532
        %670 = vst.msk [vmem:[#allocation3 + $0x40] sm:$0xff] %vm661, %v534
        %671 = vst.msk [vmem:[#allocation3 + $0x48] sm:$0xff] %vm661, %v536
        %672 = vst.msk [vmem:[#allocation3 + $0x50] sm:$0xff] %vm661, %v538
        %673 = vst.msk [vmem:[#allocation3 + $0x58] sm:$0xff] %vm661, %v540
        %674 = vst.msk [vmem:[#allocation3 + $0x60] sm:$0xff] %vm661, %v542
        %675 = vst.msk [vmem:[#allocation3 + $0x68] sm:$0xff] %vm661, %v544
        %676 = vst.msk [vmem:[#allocation3 + $0x70] sm:$0xff] %vm661, %v546
        %677 = vst.msk [vmem:[#allocation3 + $0x78] sm:$0xff] %vm661, %v548
        %678 = vst.msk [vmem:[#allocation3 + $0x80] sm:$0xff] %vm661, %v550
        %679 = vst.msk [vmem:[#allocation3 + $0x88] sm:$0xff] %vm661, %v552
        %680 = vst.msk [vmem:[#allocation3 + $0x90] sm:$0xff] %vm661, %v554
        %681 = vst.msk [vmem:[#allocation3 + $0x98] sm:$0xff] %vm661, %v556
        %682 = vst.msk [vmem:[#allocation3 + $0xa0] sm:$0xff] %vm661, %v558
        %683 = vst.msk [vmem:[#allocation3 + $0xa8] sm:$0xff] %vm661, %v560
        %684 = vst.msk [vmem:[#allocation3 + $0xb0] sm:$0xff] %vm661, %v562
        %685 = vst.msk [vmem:[#allocation3 + $0xb8] sm:$0xff] %vm661, %v564
        %686 = vst.msk [vmem:[#allocation3 + $0xc0] sm:$0xff] %vm661, %v566
        %687 = vst.msk [vmem:[#allocation3 + $0xc8] sm:$0xff] %vm661, %v568
        %688 = vst.msk [vmem:[#allocation3 + $0xd0] sm:$0xff] %vm661, %v570
        %689 = vst.msk [vmem:[#allocation3 + $0xd8] sm:$0xff] %vm661, %v572
        %690 = vst.msk [vmem:[#allocation3 + $0xe0] sm:$0xff] %vm661, %v574
        %691 = vst.msk [vmem:[#allocation3 + $0xe8] sm:$0xff] %vm661, %v576
        %692 = vst.msk [vmem:[#allocation3 + $0xf0] sm:$0xff] %vm661, %v578
        %693 = vst.msk [vmem:[#allocation3 + $0xf8] sm:$0xff] %vm661, %v580
        %694 = vst.msk [vmem:[#allocation3 + $0x100] sm:$0xff] %vm661, %v582
        %695 = vst.msk [vmem:[#allocation3 + $0x108] sm:$0xff] %vm661, %v584
        %696 = vst.msk [vmem:[#allocation3 + $0x110] sm:$0xff] %vm661, %v586
        %697 = vst.msk [vmem:[#allocation3 + $0x118] sm:$0xff] %vm661, %v588
        %698 = vst.msk [vmem:[#allocation3 + $0x120] sm:$0xff] %vm661, %v590
        %699 = vst.msk [vmem:[#allocation3 + $0x128] sm:$0xff] %vm661, %v592
        %700 = vst.msk [vmem:[#allocation3 + $0x130] sm:$0xff] %vm661, %v594
        %701 = vst.msk [vmem:[#allocation3 + $0x138] sm:$0xff] %vm661, %v596
        %702 = vst.msk [vmem:[#allocation3 + $0x140] sm:$0xff] %vm661, %v598
        %703 = vst.msk [vmem:[#allocation3 + $0x148] sm:$0xff] %vm661, %v600
        %704 = vst.msk [vmem:[#allocation3 + $0x150] sm:$0xff] %vm661, %v602
        %705 = vst.msk [vmem:[#allocation3 + $0x158] sm:$0xff] %vm661, %v604
        %706 = vst.msk [vmem:[#allocation3 + $0x160] sm:$0xff] %vm661, %v606
        %707 = vst.msk [vmem:[#allocation3 + $0x168] sm:$0xff] %vm661, %v608
        %708 = vst.msk [vmem:[#allocation3 + $0x170] sm:$0xff] %vm661, %v610
        %709 = vst.msk [vmem:[#allocation3 + $0x178] sm:$0xff] %vm661, %v612
        %v710 = vld [vmem:[%s300 + $0x2] sm:$0xff]
        %v711 = vld [vmem:[%s300 + $0xa] sm:$0xff]
        %v712 = vld [vmem:[%s300 + $0x12] sm:$0xff]
        %v713 = vld [vmem:[%s300 + $0x1a] sm:$0xff]
        %v714 = vld [vmem:[%s300 + $0x22] sm:$0xff]
        %v715 = vld [vmem:[%s300 + $0x2a] sm:$0xff]
        %v716 = vld [vmem:[%s300 + $0x32] sm:$0xff]
        %v717 = vld [vmem:[%s300 + $0x3a] sm:$0xff]
        %v718 = vld [vmem:[%s300 + $0x42] sm:$0xff]
        %v719 = vld [vmem:[%s300 + $0x4a] sm:$0xff]
        %v720 = vld [vmem:[%s300 + $0x52] sm:$0xff]
        %v721 = vld [vmem:[%s300 + $0x5a] sm:$0xff]
        %v722 = vld [vmem:[%s300 + $0x62] sm:$0xff]
        %v723 = vld [vmem:[%s300 + $0x6a] sm:$0xff]
        %v724 = vld [vmem:[%s300 + $0x72] sm:$0xff]
        %v725 = vld [vmem:[%s300 + $0x7a] sm:$0xff]
        %v726 = vld [vmem:[%s300 + $0x82] sm:$0xff]
        %v727 = vld [vmem:[%s300 + $0x8a] sm:$0xff]
        %v728 = vld [vmem:[%s300 + $0x92] sm:$0xff]
        %v729 = vld [vmem:[%s300 + $0x9a] sm:$0xff]
        %v730 = vld [vmem:[%s300 + $0xa2] sm:$0xff]
        %v731 = vld [vmem:[%s300 + $0xaa] sm:$0xff]
        %v732 = vld [vmem:[%s300 + $0xb2] sm:$0xff]
        %v733 = vld [vmem:[%s300 + $0xba] sm:$0xff]
        %v734 = vld [vmem:[%s300 + $0xc2] sm:$0xff]
        %v735 = vld [vmem:[%s300 + $0xca] sm:$0xff]
        %v736 = vld [vmem:[%s300 + $0xd2] sm:$0xff]
        %v737 = vld [vmem:[%s300 + $0xda] sm:$0xff]
        %v738 = vld [vmem:[%s300 + $0xe2] sm:$0xff]
        %v739 = vld [vmem:[%s300 + $0xea] sm:$0xff]
        %v740 = vld [vmem:[%s300 + $0xf2] sm:$0xff]
        %v741 = vld [vmem:[%s300 + $0xfa] sm:$0xff]
        %v742 = vld [vmem:[%s300 + $0x102] sm:$0xff]
        %v743 = vld [vmem:[%s300 + $0x10a] sm:$0xff]
        %v744 = vld [vmem:[%s300 + $0x112] sm:$0xff]
        %v745 = vld [vmem:[%s300 + $0x11a] sm:$0xff]
        %v746 = vld [vmem:[%s300 + $0x122] sm:$0xff]
        %v747 = vld [vmem:[%s300 + $0x12a] sm:$0xff]
        %v748 = vld [vmem:[%s300 + $0x132] sm:$0xff]
        %v749 = vld [vmem:[%s300 + $0x13a] sm:$0xff]
        %v750 = vld [vmem:[%s300 + $0x142] sm:$0xff]
        %v751 = vld [vmem:[%s300 + $0x14a] sm:$0xff]
        %v752 = vld [vmem:[%s300 + $0x152] sm:$0xff]
        %v753 = vld [vmem:[%s300 + $0x15a] sm:$0xff]
        %v754 = vld [vmem:[%s300 + $0x162] sm:$0xff]
        %v755 = vld [vmem:[%s300 + $0x16a] sm:$0xff]
        %v756 = vld [vmem:[%s300 + $0x172] sm:$0xff]
        %v757 = vld [vmem:[%s300 + $0x17a] sm:$0xff]
        %806 = vrot.lane.b32.xlu0 %v710, 16
        %v807 = vpop.permute.xlu0 %806
        %808 = vrot.lane.b32.xlu0 %v711, 16
        %v809 = vpop.permute.xlu0 %808
        %810 = vrot.lane.b32.xlu0 %v712, 16
        %v811 = vpop.permute.xlu0 %810
        %812 = vrot.lane.b32.xlu0 %v713, 16
        %v813 = vpop.permute.xlu0 %812
        %814 = vrot.lane.b32.xlu0 %v714, 16
        %v815 = vpop.permute.xlu0 %814
        %816 = vrot.lane.b32.xlu0 %v715, 16
        %v817 = vpop.permute.xlu0 %816
        %818 = vrot.lane.b32.xlu0 %v716, 16
        %v819 = vpop.permute.xlu0 %818
        %820 = vrot.lane.b32.xlu0 %v717, 16
        %v821 = vpop.permute.xlu0 %820
        %822 = vrot.lane.b32.xlu0 %v718, 16
        %v823 = vpop.permute.xlu0 %822
        %824 = vrot.lane.b32.xlu0 %v719, 16
        %v825 = vpop.permute.xlu0 %824
        %826 = vrot.lane.b32.xlu0 %v720, 16
        %v827 = vpop.permute.xlu0 %826
        %828 = vrot.lane.b32.xlu0 %v721, 16
        %v829 = vpop.permute.xlu0 %828
        %830 = vrot.lane.b32.xlu0 %v722, 16
        %v831 = vpop.permute.xlu0 %830
        %832 = vrot.lane.b32.xlu0 %v723, 16
        %v833 = vpop.permute.xlu0 %832
        %834 = vrot.lane.b32.xlu0 %v724, 16
        %v835 = vpop.permute.xlu0 %834
        %836 = vrot.lane.b32.xlu0 %v725, 16
        %v837 = vpop.permute.xlu0 %836
        %838 = vrot.lane.b32.xlu0 %v726, 16
        %v839 = vpop.permute.xlu0 %838
        %840 = vrot.lane.b32.xlu0 %v727, 16
        %v841 = vpop.permute.xlu0 %840
        %842 = vrot.lane.b32.xlu0 %v728, 16
        %v843 = vpop.permute.xlu0 %842
        %844 = vrot.lane.b32.xlu0 %v729, 16
        %v845 = vpop.permute.xlu0 %844
        %846 = vrot.lane.b32.xlu0 %v730, 16
        %v847 = vpop.permute.xlu0 %846
        %848 = vrot.lane.b32.xlu0 %v731, 16
        %v849 = vpop.permute.xlu0 %848
        %850 = vrot.lane.b32.xlu0 %v732, 16
        %v851 = vpop.permute.xlu0 %850
        %852 = vrot.lane.b32.xlu0 %v733, 16
        %v853 = vpop.permute.xlu0 %852
        %854 = vrot.lane.b32.xlu0 %v734, 16
        %v855 = vpop.permute.xlu0 %854
        %856 = vrot.lane.b32.xlu0 %v735, 16
        %v857 = vpop.permute.xlu0 %856
        %858 = vrot.lane.b32.xlu0 %v736, 16
        %v859 = vpop.permute.xlu0 %858
        %860 = vrot.lane.b32.xlu0 %v737, 16
        %v861 = vpop.permute.xlu0 %860
        %862 = vrot.lane.b32.xlu0 %v738, 16
        %v863 = vpop.permute.xlu0 %862
        %864 = vrot.lane.b32.xlu0 %v739, 16
        %v865 = vpop.permute.xlu0 %864
        %866 = vrot.lane.b32.xlu0 %v740, 16
        %v867 = vpop.permute.xlu0 %866
        %868 = vrot.lane.b32.xlu0 %v741, 16
        %v869 = vpop.permute.xlu0 %868
        %870 = vrot.lane.b32.xlu0 %v742, 16
        %v871 = vpop.permute.xlu0 %870
        %872 = vrot.lane.b32.xlu0 %v743, 16
        %v873 = vpop.permute.xlu0 %872
        %874 = vrot.lane.b32.xlu0 %v744, 16
        %v875 = vpop.permute.xlu0 %874
        %876 = vrot.lane.b32.xlu0 %v745, 16
        %v877 = vpop.permute.xlu0 %876
        %878 = vrot.lane.b32.xlu0 %v746, 16
        %v879 = vpop.permute.xlu0 %878
        %880 = vrot.lane.b32.xlu0 %v747, 16
        %v881 = vpop.permute.xlu0 %880
        %882 = vrot.lane.b32.xlu0 %v748, 16
        %v883 = vpop.permute.xlu0 %882
        %884 = vrot.lane.b32.xlu0 %v749, 16
        %v885 = vpop.permute.xlu0 %884
        %886 = vrot.lane.b32.xlu0 %v750, 16
        %v887 = vpop.permute.xlu0 %886
        %888 = vrot.lane.b32.xlu0 %v751, 16
        %v889 = vpop.permute.xlu0 %888
        %890 = vrot.lane.b32.xlu0 %v752, 16
        %v891 = vpop.permute.xlu0 %890
        %892 = vrot.lane.b32.xlu0 %v753, 16
        %v893 = vpop.permute.xlu0 %892
        %894 = vrot.lane.b32.xlu0 %v754, 16
        %v895 = vpop.permute.xlu0 %894
        %896 = vrot.lane.b32.xlu0 %v755, 16
        %v897 = vpop.permute.xlu0 %896
        %898 = vrot.lane.b32.xlu0 %v756, 16
        %v899 = vpop.permute.xlu0 %898
        %900 = vrot.lane.b32.xlu0 %v757, 16
        %v901 = vpop.permute.xlu0 %900
        %vm950 = vcmask 195712
        %951 = vst.msk [vmem:[#allocation3] sm:$0xff] %vm950, %v807
        %952 = vst.msk [vmem:[#allocation3 + $0x8] sm:$0xff] %vm950, %v809
        %953 = vst.msk [vmem:[#allocation3 + $0x10] sm:$0xff] %vm950, %v811
        %954 = vst.msk [vmem:[#allocation3 + $0x18] sm:$0xff] %vm950, %v813
        %955 = vst.msk [vmem:[#allocation3 + $0x20] sm:$0xff] %vm950, %v815
        %956 = vst.msk [vmem:[#allocation3 + $0x28] sm:$0xff] %vm950, %v817
        %957 = vst.msk [vmem:[#allocation3 + $0x30] sm:$0xff] %vm950, %v819
        %958 = vst.msk [vmem:[#allocation3 + $0x38] sm:$0xff] %vm950, %v821
        %959 = vst.msk [vmem:[#allocation3 + $0x40] sm:$0xff] %vm950, %v823
        %960 = vst.msk [vmem:[#allocation3 + $0x48] sm:$0xff] %vm950, %v825
        %961 = vst.msk [vmem:[#allocation3 + $0x50] sm:$0xff] %vm950, %v827
        %962 = vst.msk [vmem:[#allocation3 + $0x58] sm:$0xff] %vm950, %v829
        %963 = vst.msk [vmem:[#allocation3 + $0x60] sm:$0xff] %vm950, %v831
        %964 = vst.msk [vmem:[#allocation3 + $0x68] sm:$0xff] %vm950, %v833
        %965 = vst.msk [vmem:[#allocation3 + $0x70] sm:$0xff] %vm950, %v835
        %966 = vst.msk [vmem:[#allocation3 + $0x78] sm:$0xff] %vm950, %v837
        %967 = vst.msk [vmem:[#allocation3 + $0x80] sm:$0xff] %vm950, %v839
        %968 = vst.msk [vmem:[#allocation3 + $0x88] sm:$0xff] %vm950, %v841
        %969 = vst.msk [vmem:[#allocation3 + $0x90] sm:$0xff] %vm950, %v843
        %970 = vst.msk [vmem:[#allocation3 + $0x98] sm:$0xff] %vm950, %v845
        %971 = vst.msk [vmem:[#allocation3 + $0xa0] sm:$0xff] %vm950, %v847
        %972 = vst.msk [vmem:[#allocation3 + $0xa8] sm:$0xff] %vm950, %v849
        %973 = vst.msk [vmem:[#allocation3 + $0xb0] sm:$0xff] %vm950, %v851
        %974 = vst.msk [vmem:[#allocation3 + $0xb8] sm:$0xff] %vm950, %v853
        %975 = vst.msk [vmem:[#allocation3 + $0xc0] sm:$0xff] %vm950, %v855
        %976 = vst.msk [vmem:[#allocation3 + $0xc8] sm:$0xff] %vm950, %v857
        %977 = vst.msk [vmem:[#allocation3 + $0xd0] sm:$0xff] %vm950, %v859
        %978 = vst.msk [vmem:[#allocation3 + $0xd8] sm:$0xff] %vm950, %v861
        %979 = vst.msk [vmem:[#allocation3 + $0xe0] sm:$0xff] %vm950, %v863
        %980 = vst.msk [vmem:[#allocation3 + $0xe8] sm:$0xff] %vm950, %v865
        %981 = vst.msk [vmem:[#allocation3 + $0xf0] sm:$0xff] %vm950, %v867
        %982 = vst.msk [vmem:[#allocation3 + $0xf8] sm:$0xff] %vm950, %v869
        %983 = vst.msk [vmem:[#allocation3 + $0x100] sm:$0xff] %vm950, %v871
        %984 = vst.msk [vmem:[#allocation3 + $0x108] sm:$0xff] %vm950, %v873
        %985 = vst.msk [vmem:[#allocation3 + $0x110] sm:$0xff] %vm950, %v875
        %986 = vst.msk [vmem:[#allocation3 + $0x118] sm:$0xff] %vm950, %v877
        %987 = vst.msk [vmem:[#allocation3 + $0x120] sm:$0xff] %vm950, %v879
        %988 = vst.msk [vmem:[#allocation3 + $0x128] sm:$0xff] %vm950, %v881
        %989 = vst.msk [vmem:[#allocation3 + $0x130] sm:$0xff] %vm950, %v883
        %990 = vst.msk [vmem:[#allocation3 + $0x138] sm:$0xff] %vm950, %v885
        %991 = vst.msk [vmem:[#allocation3 + $0x140] sm:$0xff] %vm950, %v887
        %992 = vst.msk [vmem:[#allocation3 + $0x148] sm:$0xff] %vm950, %v889
        %993 = vst.msk [vmem:[#allocation3 + $0x150] sm:$0xff] %vm950, %v891
        %994 = vst.msk [vmem:[#allocation3 + $0x158] sm:$0xff] %vm950, %v893
        %995 = vst.msk [vmem:[#allocation3 + $0x160] sm:$0xff] %vm950, %v895
        %996 = vst.msk [vmem:[#allocation3 + $0x168] sm:$0xff] %vm950, %v897
        %997 = vst.msk [vmem:[#allocation3 + $0x170] sm:$0xff] %vm950, %v899
        %998 = vst.msk [vmem:[#allocation3 + $0x178] sm:$0xff] %vm950, %v901
        %v999 = vld [vmem:[#allocation3] sm:$0xff]
        %v1000 = vld [vmem:[#allocation3 + $0x8] sm:$0xff]
        %v1001 = vld [vmem:[#allocation3 + $0x10] sm:$0xff]
        %v1002 = vld [vmem:[#allocation3 + $0x18] sm:$0xff]
        %v1003 = vld [vmem:[#allocation3 + $0x20] sm:$0xff]
        %v1004 = vld [vmem:[#allocation3 + $0x28] sm:$0xff]
        %v1005 = vld [vmem:[#allocation3 + $0x30] sm:$0xff]
        %v1006 = vld [vmem:[#allocation3 + $0x38] sm:$0xff]
        %v1007 = vld [vmem:[#allocation3 + $0x40] sm:$0xff]
        %v1008 = vld [vmem:[#allocation3 + $0x48] sm:$0xff]
        %v1009 = vld [vmem:[#allocation3 + $0x50] sm:$0xff]
        %v1010 = vld [vmem:[#allocation3 + $0x58] sm:$0xff]
        %v1011 = vld [vmem:[#allocation3 + $0x60] sm:$0xff]
        %v1012 = vld [vmem:[#allocation3 + $0x68] sm:$0xff]
        %v1013 = vld [vmem:[#allocation3 + $0x70] sm:$0xff]
        %v1014 = vld [vmem:[#allocation3 + $0x78] sm:$0xff]
        %v1015 = vld [vmem:[#allocation3 + $0x80] sm:$0xff]
        %v1016 = vld [vmem:[#allocation3 + $0x88] sm:$0xff]
        %v1017 = vld [vmem:[#allocation3 + $0x90] sm:$0xff]
        %v1018 = vld [vmem:[#allocation3 + $0x98] sm:$0xff]
        %v1019 = vld [vmem:[#allocation3 + $0xa0] sm:$0xff]
        %v1020 = vld [vmem:[#allocation3 + $0xa8] sm:$0xff]
        %v1021 = vld [vmem:[#allocation3 + $0xb0] sm:$0xff]
        %v1022 = vld [vmem:[#allocation3 + $0xb8] sm:$0xff]
        %v1023 = vld [vmem:[#allocation3 + $0xc0] sm:$0xff]
        %v1024 = vld [vmem:[#allocation3 + $0xc8] sm:$0xff]
        %v1025 = vld [vmem:[#allocation3 + $0xd0] sm:$0xff]
        %v1026 = vld [vmem:[#allocation3 + $0xd8] sm:$0xff]
        %v1027 = vld [vmem:[#allocation3 + $0xe0] sm:$0xff]
        %v1028 = vld [vmem:[#allocation3 + $0xe8] sm:$0xff]
        %v1029 = vld [vmem:[#allocation3 + $0xf0] sm:$0xff]
        %v1030 = vld [vmem:[#allocation3 + $0xf8] sm:$0xff]
        %v1031 = vld [vmem:[#allocation3 + $0x100] sm:$0xff]
        %v1032 = vld [vmem:[#allocation3 + $0x108] sm:$0xff]
        %v1033 = vld [vmem:[#allocation3 + $0x110] sm:$0xff]
        %v1034 = vld [vmem:[#allocation3 + $0x118] sm:$0xff]
        %v1035 = vld [vmem:[#allocation3 + $0x120] sm:$0xff]
        %v1036 = vld [vmem:[#allocation3 + $0x128] sm:$0xff]
        %v1037 = vld [vmem:[#allocation3 + $0x130] sm:$0xff]
        %v1038 = vld [vmem:[#allocation3 + $0x138] sm:$0xff]
        %v1039 = vld [vmem:[#allocation3 + $0x140] sm:$0xff]
        %v1040 = vld [vmem:[#allocation3 + $0x148] sm:$0xff]
        %v1041 = vld [vmem:[#allocation3 + $0x150] sm:$0xff]
        %v1042 = vld [vmem:[#allocation3 + $0x158] sm:$0xff]
        %v1043 = vld [vmem:[#allocation3 + $0x160] sm:$0xff]
        %v1044 = vld [vmem:[#allocation3 + $0x168] sm:$0xff]
        %v1045 = vld [vmem:[#allocation3 + $0x170] sm:$0xff]
        %v1046 = vld [vmem:[#allocation3 + $0x178] sm:$0xff]
        %v1047 = vld [vmem:[%s1] sm:$0xff]
        %v1048 = vld [vmem:[%s1 + $0x8] sm:$0xff]
        %v1049 = vld [vmem:[%s1 + $0x10] sm:$0xff]
        %v1050 = vld [vmem:[%s300 + $0x18] sm:$0xff]
        %v1051 = vld [vmem:[%s300 + $0x20] sm:$0xff]
        %v1052 = vld [vmem:[%s300 + $0x28] sm:$0xff]
        %v1053 = vld [vmem:[%s300 + $0x30] sm:$0xff]
        %v1054 = vld [vmem:[%s300 + $0x38] sm:$0xff]
        %v1055 = vld [vmem:[%s300 + $0x40] sm:$0xff]
        %v1056 = vld [vmem:[%s300 + $0x48] sm:$0xff]
        %v1057 = vld [vmem:[%s300 + $0x50] sm:$0xff]
        %v1058 = vld [vmem:[%s300 + $0x58] sm:$0xff]
        %v1059 = vld [vmem:[%s300 + $0x60] sm:$0xff]
        %v1060 = vld [vmem:[%s300 + $0x68] sm:$0xff]
        %v1061 = vld [vmem:[%s300 + $0x70] sm:$0xff]
        %v1062 = vld [vmem:[%s300 + $0x78] sm:$0xff]
        %v1063 = vld [vmem:[%s300 + $0x80] sm:$0xff]
        %v1064 = vld [vmem:[%s300 + $0x88] sm:$0xff]
        %v1065 = vld [vmem:[%s300 + $0x90] sm:$0xff]
        %v1066 = vld [vmem:[%s300 + $0x98] sm:$0xff]
        %v1067 = vld [vmem:[%s300 + $0xa0] sm:$0xff]
        %v1068 = vld [vmem:[%s300 + $0xa8] sm:$0xff]
        %v1069 = vld [vmem:[%s300 + $0xb0] sm:$0xff]
        %v1070 = vld [vmem:[%s300 + $0xb8] sm:$0xff]
        %v1071 = vld [vmem:[%s300 + $0xc0] sm:$0xff]
        %v1072 = vld [vmem:[%s300 + $0xc8] sm:$0xff]
        %v1073 = vld [vmem:[%s300 + $0xd0] sm:$0xff]
        %v1074 = vld [vmem:[%s300 + $0xd8] sm:$0xff]
        %v1075 = vld [vmem:[%s300 + $0xe0] sm:$0xff]
        %v1076 = vld [vmem:[%s300 + $0xe8] sm:$0xff]
        %v1077 = vld [vmem:[%s300 + $0xf0] sm:$0xff]
        %v1078 = vld [vmem:[%s300 + $0xf8] sm:$0xff]
        %v1079 = vld [vmem:[%s300 + $0x100] sm:$0xff]
        %v1080 = vld [vmem:[%s300 + $0x108] sm:$0xff]
        %v1081 = vld [vmem:[%s300 + $0x110] sm:$0xff]
        %v1082 = vld [vmem:[%s300 + $0x118] sm:$0xff]
        %v1083 = vld [vmem:[%s300 + $0x120] sm:$0xff]
        %v1084 = vld [vmem:[%s300 + $0x128] sm:$0xff]
        %v1085 = vld [vmem:[%s300 + $0x130] sm:$0xff]
        %v1086 = vld [vmem:[%s300 + $0x138] sm:$0xff]
        %v1087 = vld [vmem:[%s300 + $0x140] sm:$0xff]
        %v1088 = vld [vmem:[%s300 + $0x148] sm:$0xff]
        %v1089 = vld [vmem:[%s300 + $0x150] sm:$0xff]
        %v1090 = vld [vmem:[%s300 + $0x158] sm:$0xff]
        %v1091 = vld [vmem:[%s300 + $0x160] sm:$0xff]
        %v1092 = vld [vmem:[%s300 + $0x168] sm:$0xff]
        %v1093 = vld [vmem:[%s300 + $0x170] sm:$0xff]
        %v1094 = vld [vmem:[%s300 + $0x178] sm:$0xff]
        %v1095 = vld [vmem:[%s300 + $0x180] sm:$0xff]
        %v1096 = vld [vmem:[%s300 + $0x188] sm:$0xff]
        %v1097 = vld [vmem:[%s300 + $0x190] sm:$0xff]
        %1098 = vst.msk [vmem:[#allocation3] sm:$0xff] %vm372, %v1050
        %1099 = vst.msk [vmem:[#allocation3 + $0x8] sm:$0xff] %vm372, %v1051
        %1100 = vst.msk [vmem:[#allocation3 + $0x10] sm:$0xff] %vm372, %v1052
        %1101 = vst.msk [vmem:[#allocation3 + $0x18] sm:$0xff] %vm372, %v1053
        %1102 = vst.msk [vmem:[#allocation3 + $0x20] sm:$0xff] %vm372, %v1054
        %1103 = vst.msk [vmem:[#allocation3 + $0x28] sm:$0xff] %vm372, %v1055
        %1104 = vst.msk [vmem:[#allocation3 + $0x30] sm:$0xff] %vm372, %v1056
        %1105 = vst.msk [vmem:[#allocation3 + $0x38] sm:$0xff] %vm372, %v1057
        %1106 = vst.msk [vmem:[#allocation3 + $0x40] sm:$0xff] %vm372, %v1058
        %1107 = vst.msk [vmem:[#allocation3 + $0x48] sm:$0xff] %vm372, %v1059
        %1108 = vst.msk [vmem:[#allocation3 + $0x50] sm:$0xff] %vm372, %v1060
        %1109 = vst.msk [vmem:[#allocation3 + $0x58] sm:$0xff] %vm372, %v1061
        %1110 = vst.msk [vmem:[#allocation3 + $0x60] sm:$0xff] %vm372, %v1062
        %1111 = vst.msk [vmem:[#allocation3 + $0x68] sm:$0xff] %vm372, %v1063
        %1112 = vst.msk [vmem:[#allocation3 + $0x70] sm:$0xff] %vm372, %v1064
        %1113 = vst.msk [vmem:[#allocation3 + $0x78] sm:$0xff] %vm372, %v1065
        %1114 = vst.msk [vmem:[#allocation3 + $0x80] sm:$0xff] %vm372, %v1066
        %1115 = vst.msk [vmem:[#allocation3 + $0x88] sm:$0xff] %vm372, %v1067
        %1116 = vst.msk [vmem:[#allocation3 + $0x90] sm:$0xff] %vm372, %v1068
        %1117 = vst.msk [vmem:[#allocation3 + $0x98] sm:$0xff] %vm372, %v1069
        %1118 = vst.msk [vmem:[#allocation3 + $0xa0] sm:$0xff] %vm372, %v1070
        %1119 = vst.msk [vmem:[#allocation3 + $0xa8] sm:$0xff] %vm372, %v1071
        %1120 = vst.msk [vmem:[#allocation3 + $0xb0] sm:$0xff] %vm372, %v1072
        %1121 = vst.msk [vmem:[#allocation3 + $0xb8] sm:$0xff] %vm372, %v1073
        %1122 = vst.msk [vmem:[#allocation3 + $0xc0] sm:$0xff] %vm372, %v1074
        %1123 = vst.msk [vmem:[#allocation3 + $0xc8] sm:$0xff] %vm372, %v1075
        %1124 = vst.msk [vmem:[#allocation3 + $0xd0] sm:$0xff] %vm372, %v1076
        %1125 = vst.msk [vmem:[#allocation3 + $0xd8] sm:$0xff] %vm372, %v1077
        %1126 = vst.msk [vmem:[#allocation3 + $0xe0] sm:$0xff] %vm372, %v1078
        %1127 = vst.msk [vmem:[#allocation3 + $0xe8] sm:$0xff] %vm372, %v1079
        %1128 = vst.msk [vmem:[#allocation3 + $0xf0] sm:$0xff] %vm372, %v1080
        %1129 = vst.msk [vmem:[#allocation3 + $0xf8] sm:$0xff] %vm372, %v1081
        %1130 = vst.msk [vmem:[#allocation3 + $0x100] sm:$0xff] %vm372, %v1082
        %1131 = vst.msk [vmem:[#allocation3 + $0x108] sm:$0xff] %vm372, %v1083
        %1132 = vst.msk [vmem:[#allocation3 + $0x110] sm:$0xff] %vm372, %v1084
        %1133 = vst.msk [vmem:[#allocation3 + $0x118] sm:$0xff] %vm372, %v1085
        %1134 = vst.msk [vmem:[#allocation3 + $0x120] sm:$0xff] %vm372, %v1086
        %1135 = vst.msk [vmem:[#allocation3 + $0x128] sm:$0xff] %vm372, %v1087
        %1136 = vst.msk [vmem:[#allocation3 + $0x130] sm:$0xff] %vm372, %v1088
        %1137 = vst.msk [vmem:[#allocation3 + $0x138] sm:$0xff] %vm372, %v1089
        %1138 = vst.msk [vmem:[#allocation3 + $0x140] sm:$0xff] %vm372, %v1090
        %1139 = vst.msk [vmem:[#allocation3 + $0x148] sm:$0xff] %vm372, %v1091
        %1140 = vst.msk [vmem:[#allocation3 + $0x150] sm:$0xff] %vm372, %v1092
        %1141 = vst.msk [vmem:[#allocation3 + $0x158] sm:$0xff] %vm372, %v1093
        %1142 = vst.msk [vmem:[#allocation3 + $0x160] sm:$0xff] %vm372, %v1094
        %1143 = vst.msk [vmem:[#allocation3 + $0x168] sm:$0xff] %vm372, %v1095
        %1144 = vst.msk [vmem:[#allocation3 + $0x170] sm:$0xff] %vm372, %v1096
        %1145 = vst.msk [vmem:[#allocation3 + $0x178] sm:$0xff] %vm372, %v1097
        %v1146 = vld [vmem:[%s300 + $0x19] sm:$0xff]
        %v1147 = vld [vmem:[%s300 + $0x21] sm:$0xff]
        %v1148 = vld [vmem:[%s300 + $0x29] sm:$0xff]
        %v1149 = vld [vmem:[%s300 + $0x31] sm:$0xff]
        %v1150 = vld [vmem:[%s300 + $0x39] sm:$0xff]
        %v1151 = vld [vmem:[%s300 + $0x41] sm:$0xff]
        %v1152 = vld [vmem:[%s300 + $0x49] sm:$0xff]
        %v1153 = vld [vmem:[%s300 + $0x51] sm:$0xff]
        %v1154 = vld [vmem:[%s300 + $0x59] sm:$0xff]
        %v1155 = vld [vmem:[%s300 + $0x61] sm:$0xff]
        %v1156 = vld [vmem:[%s300 + $0x69] sm:$0xff]
        %v1157 = vld [vmem:[%s300 + $0x71] sm:$0xff]
        %v1158 = vld [vmem:[%s300 + $0x79] sm:$0xff]
        %v1159 = vld [vmem:[%s300 + $0x81] sm:$0xff]
        %v1160 = vld [vmem:[%s300 + $0x89] sm:$0xff]
        %v1161 = vld [vmem:[%s300 + $0x91] sm:$0xff]
        %v1162 = vld [vmem:[%s300 + $0x99] sm:$0xff]
        %v1163 = vld [vmem:[%s300 + $0xa1] sm:$0xff]
        %v1164 = vld [vmem:[%s300 + $0xa9] sm:$0xff]
        %v1165 = vld [vmem:[%s300 + $0xb1] sm:$0xff]
        %v1166 = vld [vmem:[%s300 + $0xb9] sm:$0xff]
        %v1167 = vld [vmem:[%s300 + $0xc1] sm:$0xff]
        %v1168 = vld [vmem:[%s300 + $0xc9] sm:$0xff]
        %v1169 = vld [vmem:[%s300 + $0xd1] sm:$0xff]
        %v1170 = vld [vmem:[%s300 + $0xd9] sm:$0xff]
        %v1171 = vld [vmem:[%s300 + $0xe1] sm:$0xff]
        %v1172 = vld [vmem:[%s300 + $0xe9] sm:$0xff]
        %v1173 = vld [vmem:[%s300 + $0xf1] sm:$0xff]
        %v1174 = vld [vmem:[%s300 + $0xf9] sm:$0xff]
        %v1175 = vld [vmem:[%s300 + $0x101] sm:$0xff]
        %v1176 = vld [vmem:[%s300 + $0x109] sm:$0xff]
        %v1177 = vld [vmem:[%s300 + $0x111] sm:$0xff]
        %v1178 = vld [vmem:[%s300 + $0x119] sm:$0xff]
        %v1179 = vld [vmem:[%s300 + $0x121] sm:$0xff]
        %v1180 = vld [vmem:[%s300 + $0x129] sm:$0xff]
        %v1181 = vld [vmem:[%s300 + $0x131] sm:$0xff]
        %v1182 = vld [vmem:[%s300 + $0x139] sm:$0xff]
        %v1183 = vld [vmem:[%s300 + $0x141] sm:$0xff]
        %v1184 = vld [vmem:[%s300 + $0x149] sm:$0xff]
        %v1185 = vld [vmem:[%s300 + $0x151] sm:$0xff]
        %v1186 = vld [vmem:[%s300 + $0x159] sm:$0xff]
        %v1187 = vld [vmem:[%s300 + $0x161] sm:$0xff]
        %v1188 = vld [vmem:[%s300 + $0x169] sm:$0xff]
        %v1189 = vld [vmem:[%s300 + $0x171] sm:$0xff]
        %v1190 = vld [vmem:[%s300 + $0x179] sm:$0xff]
        %v1191 = vld [vmem:[%s300 + $0x181] sm:$0xff]
        %v1192 = vld [vmem:[%s300 + $0x189] sm:$0xff]
        %v1193 = vld [vmem:[%s300 + $0x191] sm:$0xff]
        %1242 = vrot.lane.b32.xlu0 %v1146, 8
        %v1243 = vpop.permute.xlu0 %1242
        %1244 = vrot.lane.b32.xlu0 %v1147, 8
        %v1245 = vpop.permute.xlu0 %1244
        %1246 = vrot.lane.b32.xlu0 %v1148, 8
        %v1247 = vpop.permute.xlu0 %1246
        %1248 = vrot.lane.b32.xlu0 %v1149, 8
        %v1249 = vpop.permute.xlu0 %1248
        %1250 = vrot.lane.b32.xlu0 %v1150, 8
        %v1251 = vpop.permute.xlu0 %1250
        %1252 = vrot.lane.b32.xlu0 %v1151, 8
        %v1253 = vpop.permute.xlu0 %1252
        %1254 = vrot.lane.b32.xlu0 %v1152, 8
        %v1255 = vpop.permute.xlu0 %1254
        %1256 = vrot.lane.b32.xlu0 %v1153, 8
        %v1257 = vpop.permute.xlu0 %1256
        %1258 = vrot.lane.b32.xlu0 %v1154, 8
        %v1259 = vpop.permute.xlu0 %1258
        %1260 = vrot.lane.b32.xlu0 %v1155, 8
        %v1261 = vpop.permute.xlu0 %1260
        %1262 = vrot.lane.b32.xlu0 %v1156, 8
        %v1263 = vpop.permute.xlu0 %1262
        %1264 = vrot.lane.b32.xlu0 %v1157, 8
        %v1265 = vpop.permute.xlu0 %1264
        %1266 = vrot.lane.b32.xlu0 %v1158, 8
        %v1267 = vpop.permute.xlu0 %1266
        %1268 = vrot.lane.b32.xlu0 %v1159, 8
        %v1269 = vpop.permute.xlu0 %1268
        %1270 = vrot.lane.b32.xlu0 %v1160, 8
        %v1271 = vpop.permute.xlu0 %1270
        %1272 = vrot.lane.b32.xlu0 %v1161, 8
        %v1273 = vpop.permute.xlu0 %1272
        %1274 = vrot.lane.b32.xlu0 %v1162, 8
        %v1275 = vpop.permute.xlu0 %1274
        %1276 = vrot.lane.b32.xlu0 %v1163, 8
        %v1277 = vpop.permute.xlu0 %1276
        %1278 = vrot.lane.b32.xlu0 %v1164, 8
        %v1279 = vpop.permute.xlu0 %1278
        %1280 = vrot.lane.b32.xlu0 %v1165, 8
        %v1281 = vpop.permute.xlu0 %1280
        %1282 = vrot.lane.b32.xlu0 %v1166, 8
        %v1283 = vpop.permute.xlu0 %1282
        %1284 = vrot.lane.b32.xlu0 %v1167, 8
        %v1285 = vpop.permute.xlu0 %1284
        %1286 = vrot.lane.b32.xlu0 %v1168, 8
        %v1287 = vpop.permute.xlu0 %1286
        %1288 = vrot.lane.b32.xlu0 %v1169, 8
        %v1289 = vpop.permute.xlu0 %1288
        %1290 = vrot.lane.b32.xlu0 %v1170, 8
        %v1291 = vpop.permute.xlu0 %1290
        %1292 = vrot.lane.b32.xlu0 %v1171, 8
        %v1293 = vpop.permute.xlu0 %1292
        %1294 = vrot.lane.b32.xlu0 %v1172, 8
        %v1295 = vpop.permute.xlu0 %1294
        %1296 = vrot.lane.b32.xlu0 %v1173, 8
        %v1297 = vpop.permute.xlu0 %1296
        %1298 = vrot.lane.b32.xlu0 %v1174, 8
        %v1299 = vpop.permute.xlu0 %1298
        %1300 = vrot.lane.b32.xlu0 %v1175, 8
        %v1301 = vpop.permute.xlu0 %1300
        %1302 = vrot.lane.b32.xlu0 %v1176, 8
        %v1303 = vpop.permute.xlu0 %1302
        %1304 = vrot.lane.b32.xlu0 %v1177, 8
        %v1305 = vpop.permute.xlu0 %1304
        %1306 = vrot.lane.b32.xlu0 %v1178, 8
        %v1307 = vpop.permute.xlu0 %1306
        %1308 = vrot.lane.b32.xlu0 %v1179, 8
        %v1309 = vpop.permute.xlu0 %1308
        %1310 = vrot.lane.b32.xlu0 %v1180, 8
        %v1311 = vpop.permute.xlu0 %1310
        %1312 = vrot.lane.b32.xlu0 %v1181, 8
        %v1313 = vpop.permute.xlu0 %1312
        %1314 = vrot.lane.b32.xlu0 %v1182, 8
        %v1315 = vpop.permute.xlu0 %1314
        %1316 = vrot.lane.b32.xlu0 %v1183, 8
        %v1317 = vpop.permute.xlu0 %1316
        %1318 = vrot.lane.b32.xlu0 %v1184, 8
        %v1319 = vpop.permute.xlu0 %1318
        %1320 = vrot.lane.b32.xlu0 %v1185, 8
        %v1321 = vpop.permute.xlu0 %1320
        %1322 = vrot.lane.b32.xlu0 %v1186, 8
        %v1323 = vpop.permute.xlu0 %1322
        %1324 = vrot.lane.b32.xlu0 %v1187, 8
        %v1325 = vpop.permute.xlu0 %1324
        %1326 = vrot.lane.b32.xlu0 %v1188, 8
        %v1327 = vpop.permute.xlu0 %1326
        %1328 = vrot.lane.b32.xlu0 %v1189, 8
        %v1329 = vpop.permute.xlu0 %1328
        %1330 = vrot.lane.b32.xlu0 %v1190, 8
        %v1331 = vpop.permute.xlu0 %1330
        %1332 = vrot.lane.b32.xlu0 %v1191, 8
        %v1333 = vpop.permute.xlu0 %1332
        %1334 = vrot.lane.b32.xlu0 %v1192, 8
        %v1335 = vpop.permute.xlu0 %1334
        %1336 = vrot.lane.b32.xlu0 %v1193, 8
        %v1337 = vpop.permute.xlu0 %1336
        %1386 = vst.msk [vmem:[#allocation3] sm:$0xff] %vm661, %v1243
        %1387 = vst.msk [vmem:[#allocation3 + $0x8] sm:$0xff] %vm661, %v1245
        %1388 = vst.msk [vmem:[#allocation3 + $0x10] sm:$0xff] %vm661, %v1247
        %1389 = vst.msk [vmem:[#allocation3 + $0x18] sm:$0xff] %vm661, %v1249
        %1390 = vst.msk [vmem:[#allocation3 + $0x20] sm:$0xff] %vm661, %v1251
        %1391 = vst.msk [vmem:[#allocation3 + $0x28] sm:$0xff] %vm661, %v1253
        %1392 = vst.msk [vmem:[#allocation3 + $0x30] sm:$0xff] %vm661, %v1255
        %1393 = vst.msk [vmem:[#allocation3 + $0x38] sm:$0xff] %vm661, %v1257
        %1394 = vst.msk [vmem:[#allocation3 + $0x40] sm:$0xff] %vm661, %v1259
        %1395 = vst.msk [vmem:[#allocation3 + $0x48] sm:$0xff] %vm661, %v1261
        %1396 = vst.msk [vmem:[#allocation3 + $0x50] sm:$0xff] %vm661, %v1263
        %1397 = vst.msk [vmem:[#allocation3 + $0x58] sm:$0xff] %vm661, %v1265
        %1398 = vst.msk [vmem:[#allocation3 + $0x60] sm:$0xff] %vm661, %v1267
        %1399 = vst.msk [vmem:[#allocation3 + $0x68] sm:$0xff] %vm661, %v1269
        %1400 = vst.msk [vmem:[#allocation3 + $0x70] sm:$0xff] %vm661, %v1271
        %1401 = vst.msk [vmem:[#allocation3 + $0x78] sm:$0xff] %vm661, %v1273
        %1402 = vst.msk [vmem:[#allocation3 + $0x80] sm:$0xff] %vm661, %v1275
        %1403 = vst.msk [vmem:[#allocation3 + $0x88] sm:$0xff] %vm661, %v1277
        %1404 = vst.msk [vmem:[#allocation3 + $0x90] sm:$0xff] %vm661, %v1279
        %1405 = vst.msk [vmem:[#allocation3 + $0x98] sm:$0xff] %vm661, %v1281
        %1406 = vst.msk [vmem:[#allocation3 + $0xa0] sm:$0xff] %vm661, %v1283
        %1407 = vst.msk [vmem:[#allocation3 + $0xa8] sm:$0xff] %vm661, %v1285
        %1408 = vst.msk [vmem:[#allocation3 + $0xb0] sm:$0xff] %vm661, %v1287
        %1409 = vst.msk [vmem:[#allocation3 + $0xb8] sm:$0xff] %vm661, %v1289
        %1410 = vst.msk [vmem:[#allocation3 + $0xc0] sm:$0xff] %vm661, %v1291
        %1411 = vst.msk [vmem:[#allocation3 + $0xc8] sm:$0xff] %vm661, %v1293
        %1412 = vst.msk [vmem:[#allocation3 + $0xd0] sm:$0xff] %vm661, %v1295
        %1413 = vst.msk [vmem:[#allocation3 + $0xd8] sm:$0xff] %vm661, %v1297
        %1414 = vst.msk [vmem:[#allocation3 + $0xe0] sm:$0xff] %vm661, %v1299
        %1415 = vst.msk [vmem:[#allocation3 + $0xe8] sm:$0xff] %vm661, %v1301
        %1416 = vst.msk [vmem:[#allocation3 + $0xf0] sm:$0xff] %vm661, %v1303
        %1417 = vst.msk [vmem:[#allocation3 + $0xf8] sm:$0xff] %vm661, %v1305
        %1418 = vst.msk [vmem:[#allocation3 + $0x100] sm:$0xff] %vm661, %v1307
        %1419 = vst.msk [vmem:[#allocation3 + $0x108] sm:$0xff] %vm661, %v1309
        %1420 = vst.msk [vmem:[#allocation3 + $0x110] sm:$0xff] %vm661, %v1311
        %1421 = vst.msk [vmem:[#allocation3 + $0x118] sm:$0xff] %vm661, %v1313
        %1422 = vst.msk [vmem:[#allocation3 + $0x120] sm:$0xff] %vm661, %v1315
        %1423 = vst.msk [vmem:[#allocation3 + $0x128] sm:$0xff] %vm661, %v1317
        %1424 = vst.msk [vmem:[#allocation3 + $0x130] sm:$0xff] %vm661, %v1319
        %1425 = vst.msk [vmem:[#allocation3 + $0x138] sm:$0xff] %vm661, %v1321
        %1426 = vst.msk [vmem:[#allocation3 + $0x140] sm:$0xff] %vm661, %v1323
        %1427 = vst.msk [vmem:[#allocation3 + $0x148] sm:$0xff] %vm661, %v1325
        %1428 = vst.msk [vmem:[#allocation3 + $0x150] sm:$0xff] %vm661, %v1327
        %1429 = vst.msk [vmem:[#allocation3 + $0x158] sm:$0xff] %vm661, %v1329
        %1430 = vst.msk [vmem:[#allocation3 + $0x160] sm:$0xff] %vm661, %v1331
        %1431 = vst.msk [vmem:[#allocation3 + $0x168] sm:$0xff] %vm661, %v1333
        %1432 = vst.msk [vmem:[#allocation3 + $0x170] sm:$0xff] %vm661, %v1335
        %1433 = vst.msk [vmem:[#allocation3 + $0x178] sm:$0xff] %vm661, %v1337
        %v1434 = vld [vmem:[%s300 + $0x1a] sm:$0xff]
        %v1435 = vld [vmem:[%s300 + $0x22] sm:$0xff]
        %v1436 = vld [vmem:[%s300 + $0x2a] sm:$0xff]
        %v1437 = vld [vmem:[%s300 + $0x32] sm:$0xff]
        %v1438 = vld [vmem:[%s300 + $0x3a] sm:$0xff]
        %v1439 = vld [vmem:[%s300 + $0x42] sm:$0xff]
        %v1440 = vld [vmem:[%s300 + $0x4a] sm:$0xff]
        %v1441 = vld [vmem:[%s300 + $0x52] sm:$0xff]
        %v1442 = vld [vmem:[%s300 + $0x5a] sm:$0xff]
        %v1443 = vld [vmem:[%s300 + $0x62] sm:$0xff]
        %v1444 = vld [vmem:[%s300 + $0x6a] sm:$0xff]
        %v1445 = vld [vmem:[%s300 + $0x72] sm:$0xff]
        %v1446 = vld [vmem:[%s300 + $0x7a] sm:$0xff]
        %v1447 = vld [vmem:[%s300 + $0x82] sm:$0xff]
        %v1448 = vld [vmem:[%s300 + $0x8a] sm:$0xff]
        %v1449 = vld [vmem:[%s300 + $0x92] sm:$0xff]
        %v1450 = vld [vmem:[%s300 + $0x9a] sm:$0xff]
        %v1451 = vld [vmem:[%s300 + $0xa2] sm:$0xff]
        %v1452 = vld [vmem:[%s300 + $0xaa] sm:$0xff]
        %v1453 = vld [vmem:[%s300 + $0xb2] sm:$0xff]
        %v1454 = vld [vmem:[%s300 + $0xba] sm:$0xff]
        %v1455 = vld [vmem:[%s300 + $0xc2] sm:$0xff]
        %v1456 = vld [vmem:[%s300 + $0xca] sm:$0xff]
        %v1457 = vld [vmem:[%s300 + $0xd2] sm:$0xff]
        %v1458 = vld [vmem:[%s300 + $0xda] sm:$0xff]
        %v1459 = vld [vmem:[%s300 + $0xe2] sm:$0xff]
        %v1460 = vld [vmem:[%s300 + $0xea] sm:$0xff]
        %v1461 = vld [vmem:[%s300 + $0xf2] sm:$0xff]
        %v1462 = vld [vmem:[%s300 + $0xfa] sm:$0xff]
        %v1463 = vld [vmem:[%s300 + $0x102] sm:$0xff]
        %v1464 = vld [vmem:[%s300 + $0x10a] sm:$0xff]
        %v1465 = vld [vmem:[%s300 + $0x112] sm:$0xff]
        %v1466 = vld [vmem:[%s300 + $0x11a] sm:$0xff]
        %v1467 = vld [vmem:[%s300 + $0x122] sm:$0xff]
        %v1468 = vld [vmem:[%s300 + $0x12a] sm:$0xff]
        %v1469 = vld [vmem:[%s300 + $0x132] sm:$0xff]
        %v1470 = vld [vmem:[%s300 + $0x13a] sm:$0xff]
        %v1471 = vld [vmem:[%s300 + $0x142] sm:$0xff]
        %v1472 = vld [vmem:[%s300 + $0x14a] sm:$0xff]
        %v1473 = vld [vmem:[%s300 + $0x152] sm:$0xff]
        %v1474 = vld [vmem:[%s300 + $0x15a] sm:$0xff]
        %v1475 = vld [vmem:[%s300 + $0x162] sm:$0xff]
        %v1476 = vld [vmem:[%s300 + $0x16a] sm:$0xff]
        %v1477 = vld [vmem:[%s300 + $0x172] sm:$0xff]
        %v1478 = vld [vmem:[%s300 + $0x17a] sm:$0xff]
        %v1479 = vld [vmem:[%s300 + $0x182] sm:$0xff]
        %v1480 = vld [vmem:[%s300 + $0x18a] sm:$0xff]
        %v1481 = vld [vmem:[%s300 + $0x192] sm:$0xff]
        %1530 = vrot.lane.b32.xlu0 %v1434, 16
        %v1531 = vpop.permute.xlu0 %1530
        %1532 = vrot.lane.b32.xlu0 %v1435, 16
        %v1533 = vpop.permute.xlu0 %1532
        %1534 = vrot.lane.b32.xlu0 %v1436, 16
        %v1535 = vpop.permute.xlu0 %1534
        %1536 = vrot.lane.b32.xlu0 %v1437, 16
        %v1537 = vpop.permute.xlu0 %1536
        %1538 = vrot.lane.b32.xlu0 %v1438, 16
        %v1539 = vpop.permute.xlu0 %1538
        %1540 = vrot.lane.b32.xlu0 %v1439, 16
        %v1541 = vpop.permute.xlu0 %1540
        %1542 = vrot.lane.b32.xlu0 %v1440, 16
        %v1543 = vpop.permute.xlu0 %1542
        %1544 = vrot.lane.b32.xlu0 %v1441, 16
        %v1545 = vpop.permute.xlu0 %1544
        %1546 = vrot.lane.b32.xlu0 %v1442, 16
        %v1547 = vpop.permute.xlu0 %1546
        %1548 = vrot.lane.b32.xlu0 %v1443, 16
        %v1549 = vpop.permute.xlu0 %1548
        %1550 = vrot.lane.b32.xlu0 %v1444, 16
        %v1551 = vpop.permute.xlu0 %1550
        %1552 = vrot.lane.b32.xlu0 %v1445, 16
        %v1553 = vpop.permute.xlu0 %1552
        %1554 = vrot.lane.b32.xlu0 %v1446, 16
        %v1555 = vpop.permute.xlu0 %1554
        %1556 = vrot.lane.b32.xlu0 %v1447, 16
        %v1557 = vpop.permute.xlu0 %1556
        %1558 = vrot.lane.b32.xlu0 %v1448, 16
        %v1559 = vpop.permute.xlu0 %1558
        %1560 = vrot.lane.b32.xlu0 %v1449, 16
        %v1561 = vpop.permute.xlu0 %1560
        %1562 = vrot.lane.b32.xlu0 %v1450, 16
        %v1563 = vpop.permute.xlu0 %1562
        %1564 = vrot.lane.b32.xlu0 %v1451, 16
        %v1565 = vpop.permute.xlu0 %1564
        %1566 = vrot.lane.b32.xlu0 %v1452, 16
        %v1567 = vpop.permute.xlu0 %1566
        %1568 = vrot.lane.b32.xlu0 %v1453, 16
        %v1569 = vpop.permute.xlu0 %1568
        %1570 = vrot.lane.b32.xlu0 %v1454, 16
        %v1571 = vpop.permute.xlu0 %1570
        %1572 = vrot.lane.b32.xlu0 %v1455, 16
        %v1573 = vpop.permute.xlu0 %1572
        %1574 = vrot.lane.b32.xlu0 %v1456, 16
        %v1575 = vpop.permute.xlu0 %1574
        %1576 = vrot.lane.b32.xlu0 %v1457, 16
        %v1577 = vpop.permute.xlu0 %1576
        %1578 = vrot.lane.b32.xlu0 %v1458, 16
        %v1579 = vpop.permute.xlu0 %1578
        %1580 = vrot.lane.b32.xlu0 %v1459, 16
        %v1581 = vpop.permute.xlu0 %1580
        %1582 = vrot.lane.b32.xlu0 %v1460, 16
        %v1583 = vpop.permute.xlu0 %1582
        %1584 = vrot.lane.b32.xlu0 %v1461, 16
        %v1585 = vpop.permute.xlu0 %1584
        %1586 = vrot.lane.b32.xlu0 %v1462, 16
        %v1587 = vpop.permute.xlu0 %1586
        %1588 = vrot.lane.b32.xlu0 %v1463, 16
        %v1589 = vpop.permute.xlu0 %1588
        %1590 = vrot.lane.b32.xlu0 %v1464, 16
        %v1591 = vpop.permute.xlu0 %1590
        %1592 = vrot.lane.b32.xlu0 %v1465, 16
        %v1593 = vpop.permute.xlu0 %1592
        %1594 = vrot.lane.b32.xlu0 %v1466, 16
        %v1595 = vpop.permute.xlu0 %1594
        %1596 = vrot.lane.b32.xlu0 %v1467, 16
        %v1597 = vpop.permute.xlu0 %1596
        %1598 = vrot.lane.b32.xlu0 %v1468, 16
        %v1599 = vpop.permute.xlu0 %1598
        %1600 = vrot.lane.b32.xlu0 %v1469, 16
        %v1601 = vpop.permute.xlu0 %1600
        %1602 = vrot.lane.b32.xlu0 %v1470, 16
        %v1603 = vpop.permute.xlu0 %1602
        %1604 = vrot.lane.b32.xlu0 %v1471, 16
        %v1605 = vpop.permute.xlu0 %1604
        %1606 = vrot.lane.b32.xlu0 %v1472, 16
        %v1607 = vpop.permute.xlu0 %1606
        %1608 = vrot.lane.b32.xlu0 %v1473, 16
        %v1609 = vpop.permute.xlu0 %1608
        %1610 = vrot.lane.b32.xlu0 %v1474, 16
        %v1611 = vpop.permute.xlu0 %1610
        %1612 = vrot.lane.b32.xlu0 %v1475, 16
        %v1613 = vpop.permute.xlu0 %1612
        %1614 = vrot.lane.b32.xlu0 %v1476, 16
        %v1615 = vpop.permute.xlu0 %1614
        %1616 = vrot.lane.b32.xlu0 %v1477, 16
        %v1617 = vpop.permute.xlu0 %1616
        %1618 = vrot.lane.b32.xlu0 %v1478, 16
        %v1619 = vpop.permute.xlu0 %1618
        %1620 = vrot.lane.b32.xlu0 %v1479, 16
        %v1621 = vpop.permute.xlu0 %1620
        %1622 = vrot.lane.b32.xlu0 %v1480, 16
        %v1623 = vpop.permute.xlu0 %1622
        %1624 = vrot.lane.b32.xlu0 %v1481, 16
        %v1625 = vpop.permute.xlu0 %1624
        %1674 = vst.msk [vmem:[#allocation3] sm:$0xff] %vm950, %v1531
        %1675 = vst.msk [vmem:[#allocation3 + $0x8] sm:$0xff] %vm950, %v1533
        %1676 = vst.msk [vmem:[#allocation3 + $0x10] sm:$0xff] %vm950, %v1535
        %1677 = vst.msk [vmem:[#allocation3 + $0x18] sm:$0xff] %vm950, %v1537
        %1678 = vst.msk [vmem:[#allocation3 + $0x20] sm:$0xff] %vm950, %v1539
        %1679 = vst.msk [vmem:[#allocation3 + $0x28] sm:$0xff] %vm950, %v1541
        %1680 = vst.msk [vmem:[#allocation3 + $0x30] sm:$0xff] %vm950, %v1543
        %1681 = vst.msk [vmem:[#allocation3 + $0x38] sm:$0xff] %vm950, %v1545
        %1682 = vst.msk [vmem:[#allocation3 + $0x40] sm:$0xff] %vm950, %v1547
        %1683 = vst.msk [vmem:[#allocation3 + $0x48] sm:$0xff] %vm950, %v1549
        %1684 = vst.msk [vmem:[#allocation3 + $0x50] sm:$0xff] %vm950, %v1551
        %1685 = vst.msk [vmem:[#allocation3 + $0x58] sm:$0xff] %vm950, %v1553
        %1686 = vst.msk [vmem:[#allocation3 + $0x60] sm:$0xff] %vm950, %v1555
        %1687 = vst.msk [vmem:[#allocation3 + $0x68] sm:$0xff] %vm950, %v1557
        %1688 = vst.msk [vmem:[#allocation3 + $0x70] sm:$0xff] %vm950, %v1559
        %1689 = vst.msk [vmem:[#allocation3 + $0x78] sm:$0xff] %vm950, %v1561
        %1690 = vst.msk [vmem:[#allocation3 + $0x80] sm:$0xff] %vm950, %v1563
        %1691 = vst.msk [vmem:[#allocation3 + $0x88] sm:$0xff] %vm950, %v1565
        %1692 = vst.msk [vmem:[#allocation3 + $0x90] sm:$0xff] %vm950, %v1567
        %1693 = vst.msk [vmem:[#allocation3 + $0x98] sm:$0xff] %vm950, %v1569
        %1694 = vst.msk [vmem:[#allocation3 + $0xa0] sm:$0xff] %vm950, %v1571
        %1695 = vst.msk [vmem:[#allocation3 + $0xa8] sm:$0xff] %vm950, %v1573
        %1696 = vst.msk [vmem:[#allocation3 + $0xb0] sm:$0xff] %vm950, %v1575
        %1697 = vst.msk [vmem:[#allocation3 + $0xb8] sm:$0xff] %vm950, %v1577
        %1698 = vst.msk [vmem:[#allocation3 + $0xc0] sm:$0xff] %vm950, %v1579
        %1699 = vst.msk [vmem:[#allocation3 + $0xc8] sm:$0xff] %vm950, %v1581
        %1700 = vst.msk [vmem:[#allocation3 + $0xd0] sm:$0xff] %vm950, %v1583
        %1701 = vst.msk [vmem:[#allocation3 + $0xd8] sm:$0xff] %vm950, %v1585
        %1702 = vst.msk [vmem:[#allocation3 + $0xe0] sm:$0xff] %vm950, %v1587
        %1703 = vst.msk [vmem:[#allocation3 + $0xe8] sm:$0xff] %vm950, %v1589
        %1704 = vst.msk [vmem:[#allocation3 + $0xf0] sm:$0xff] %vm950, %v1591
        %1705 = vst.msk [vmem:[#allocation3 + $0xf8] sm:$0xff] %vm950, %v1593
        %1706 = vst.msk [vmem:[#allocation3 + $0x100] sm:$0xff] %vm950, %v1595
        %1707 = vst.msk [vmem:[#allocation3 + $0x108] sm:$0xff] %vm950, %v1597
        %1708 = vst.msk [vmem:[#allocation3 + $0x110] sm:$0xff] %vm950, %v1599
        %1709 = vst.msk [vmem:[#allocation3 + $0x118] sm:$0xff] %vm950, %v1601
        %1710 = vst.msk [vmem:[#allocation3 + $0x120] sm:$0xff] %vm950, %v1603
        %1711 = vst.msk [vmem:[#allocation3 + $0x128] sm:$0xff] %vm950, %v1605
        %1712 = vst.msk [vmem:[#allocation3 + $0x130] sm:$0xff] %vm950, %v1607
        %1713 = vst.msk [vmem:[#allocation3 + $0x138] sm:$0xff] %vm950, %v1609
        %1714 = vst.msk [vmem:[#allocation3 + $0x140] sm:$0xff] %vm950, %v1611
        %1715 = vst.msk [vmem:[#allocation3 + $0x148] sm:$0xff] %vm950, %v1613
        %1716 = vst.msk [vmem:[#allocation3 + $0x150] sm:$0xff] %vm950, %v1615
        %1717 = vst.msk [vmem:[#allocation3 + $0x158] sm:$0xff] %vm950, %v1617
        %1718 = vst.msk [vmem:[#allocation3 + $0x160] sm:$0xff] %vm950, %v1619
        %1719 = vst.msk [vmem:[#allocation3 + $0x168] sm:$0xff] %vm950, %v1621
        %1720 = vst.msk [vmem:[#allocation3 + $0x170] sm:$0xff] %vm950, %v1623
        %1721 = vst.msk [vmem:[#allocation3 + $0x178] sm:$0xff] %vm950, %v1625
        %v1722 = vld [vmem:[#allocation3] sm:$0xff]
        %v1723 = vld [vmem:[#allocation3 + $0x8] sm:$0xff]
        %v1724 = vld [vmem:[#allocation3 + $0x10] sm:$0xff]
        %v1725 = vld [vmem:[#allocation3 + $0x18] sm:$0xff]
        %v1726 = vld [vmem:[#allocation3 + $0x20] sm:$0xff]
        %v1727 = vld [vmem:[#allocation3 + $0x28] sm:$0xff]
        %v1728 = vld [vmem:[#allocation3 + $0x30] sm:$0xff]
        %v1729 = vld [vmem:[#allocation3 + $0x38] sm:$0xff]
        %v1730 = vld [vmem:[#allocation3 + $0x40] sm:$0xff]
        %v1731 = vld [vmem:[#allocation3 + $0x48] sm:$0xff]
        %v1732 = vld [vmem:[#allocation3 + $0x50] sm:$0xff]
        %v1733 = vld [vmem:[#allocation3 + $0x58] sm:$0xff]
        %v1734 = vld [vmem:[#allocation3 + $0x60] sm:$0xff]
        %v1735 = vld [vmem:[#allocation3 + $0x68] sm:$0xff]
        %v1736 = vld [vmem:[#allocation3 + $0x70] sm:$0xff]
        %v1737 = vld [vmem:[#allocation3 + $0x78] sm:$0xff]
        %v1738 = vld [vmem:[#allocation3 + $0x80] sm:$0xff]
        %v1739 = vld [vmem:[#allocation3 + $0x88] sm:$0xff]
        %v1740 = vld [vmem:[#allocation3 + $0x90] sm:$0xff]
        %v1741 = vld [vmem:[#allocation3 + $0x98] sm:$0xff]
        %v1742 = vld [vmem:[#allocation3 + $0xa0] sm:$0xff]
        %v1743 = vld [vmem:[#allocation3 + $0xa8] sm:$0xff]
        %v1744 = vld [vmem:[#allocation3 + $0xb0] sm:$0xff]
        %v1745 = vld [vmem:[#allocation3 + $0xb8] sm:$0xff]
        %v1746 = vld [vmem:[#allocation3 + $0xc0] sm:$0xff]
        %v1747 = vld [vmem:[#allocation3 + $0xc8] sm:$0xff]
        %v1748 = vld [vmem:[#allocation3 + $0xd0] sm:$0xff]
        %v1749 = vld [vmem:[#allocation3 + $0xd8] sm:$0xff]
        %v1750 = vld [vmem:[#allocation3 + $0xe0] sm:$0xff]
        %v1751 = vld [vmem:[#allocation3 + $0xe8] sm:$0xff]
        %v1752 = vld [vmem:[#allocation3 + $0xf0] sm:$0xff]
        %v1753 = vld [vmem:[#allocation3 + $0xf8] sm:$0xff]
        %v1754 = vld [vmem:[#allocation3 + $0x100] sm:$0xff]
        %v1755 = vld [vmem:[#allocation3 + $0x108] sm:$0xff]
        %v1756 = vld [vmem:[#allocation3 + $0x110] sm:$0xff]
        %v1757 = vld [vmem:[#allocation3 + $0x118] sm:$0xff]
        %v1758 = vld [vmem:[#allocation3 + $0x120] sm:$0xff]
        %v1759 = vld [vmem:[#allocation3 + $0x128] sm:$0xff]
        %v1760 = vld [vmem:[#allocation3 + $0x130] sm:$0xff]
        %v1761 = vld [vmem:[#allocation3 + $0x138] sm:$0xff]
        %v1762 = vld [vmem:[#allocation3 + $0x140] sm:$0xff]
        %v1763 = vld [vmem:[#allocation3 + $0x148] sm:$0xff]
        %v1764 = vld [vmem:[#allocation3 + $0x150] sm:$0xff]
        %v1765 = vld [vmem:[#allocation3 + $0x158] sm:$0xff]
        %v1766 = vld [vmem:[#allocation3 + $0x160] sm:$0xff]
        %v1767 = vld [vmem:[#allocation3 + $0x168] sm:$0xff]
        %v1768 = vld [vmem:[#allocation3 + $0x170] sm:$0xff]
        %v1769 = vld [vmem:[#allocation3 + $0x178] sm:$0xff]
        %s1770 = scalar_lea.vmem %s1, 24
        %v1771 = vld [vmem:[%s1770] sm:$0xff]
        %v1772 = vld [vmem:[%s1770 + $0x8] sm:$0xff]
        %v1773 = vld [vmem:[%s1770 + $0x10] sm:$0xff]
        %vm1774 = vcmask 195584
        %v1776 = vsel %vm1774, %v1722, 0
        %v1779 = vsel %vm1774, %v1723, 0
        %v1782 = vsel %vm1774, %v1724, 0
        %v1785 = vsel %vm1774, %v1725, 0
        %v1788 = vsel %vm1774, %v1726, 0
        %v1791 = vsel %vm1774, %v1727, 0
        %v1794 = vsel %vm1774, %v1728, 0
        %v1797 = vsel %vm1774, %v1729, 0
        %v1800 = vsel %vm1774, %v1730, 0
        %v1803 = vsel %vm1774, %v1731, 0
        %v1806 = vsel %vm1774, %v1732, 0
        %v1809 = vsel %vm1774, %v1733, 0
        %v1812 = vsel %vm1774, %v1734, 0
        %v1815 = vsel %vm1774, %v1735, 0
        %v1818 = vsel %vm1774, %v1736, 0
        %v1821 = vsel %vm1774, %v1737, 0
        %v1824 = vsel %vm1774, %v1738, 0
        %v1827 = vsel %vm1774, %v1739, 0
        %v1830 = vsel %vm1774, %v1740, 0
        %v1833 = vsel %vm1774, %v1741, 0
        %v1836 = vsel %vm1774, %v1742, 0
        %v1839 = vsel %vm1774, %v1743, 0
        %v1842 = vsel %vm1774, %v1744, 0
        %v1845 = vsel %vm1774, %v1745, 0
        %v1848 = vsel %vm1774, %v1746, 0
        %v1851 = vsel %vm1774, %v1747, 0
        %v1854 = vsel %vm1774, %v1748, 0
        %v1857 = vsel %vm1774, %v1749, 0
        %v1860 = vsel %vm1774, %v1750, 0
        %v1863 = vsel %vm1774, %v1751, 0
        %v1866 = vsel %vm1774, %v1752, 0
        %v1869 = vsel %vm1774, %v1753, 0
        %v1872 = vsel %vm1774, %v1754, 0
        %v1875 = vsel %vm1774, %v1755, 0
        %v1878 = vsel %vm1774, %v1756, 0
        %v1881 = vsel %vm1774, %v1757, 0
        %v1884 = vsel %vm1774, %v1758, 0
        %v1887 = vsel %vm1774, %v1759, 0
        %v1890 = vsel %vm1774, %v1760, 0
        %v1893 = vsel %vm1774, %v1761, 0
        %v1896 = vsel %vm1774, %v1762, 0
        %v1899 = vsel %vm1774, %v1763, 0
        %v1902 = vsel %vm1774, %v1764, 0
        %v1905 = vsel %vm1774, %v1765, 0
        %v1908 = vsel %vm1774, %v1766, 0
        %v1911 = vsel %vm1774, %v1767, 0
        %v1914 = vsel %vm1774, %v1768, 0
        %v1917 = vsel %vm1774, %v1769, 0
        %1919 = vmatprep.subr.mxu0 0.0
        %1920 = vmatpush1.msra.mxu0 %v1771
        %1921 = vmatprep.subr.mxu0 0.0
        %1922 = vmatpush1.msra.mxu0 %v1772
        %1923 = vmatprep.subr.mxu0 0.0
        %1924 = vmatpush1.msra.mxu0 %v1773
        %1925 = vmatprep.subr.mxu0 0.0
        %1926 = vmatpush1.msra.mxu0 0.0
        %1927 = vmatprep.subr.mxu0 0.0
        %1928 = vmatpush1.msra.mxu0 0.0
        %1929 = vmatprep.subr.mxu0 0.0
        %1930 = vmatpush1.msra.mxu0 0.0
        %1931 = vmatprep.subr.mxu0 0.0
        %1932 = vmatpush1.msra.mxu0 0.0
        %1933 = vmatprep.subr.mxu0 0.0
        %1934 = vmatpush1.msra.mxu0 0.0
        %1935 = vmatprep.subr.mxu0 0.0
        %1936 = vmatpush1.msra.mxu0 0.0
        %1937 = vmatprep.subr.mxu0 0.0
        %1938 = vmatpush1.msra.mxu0 0.0
        %1939 = vmatprep.subr.mxu0 0.0
        %1940 = vmatpush1.msra.mxu0 0.0
        %1941 = vmatprep.subr.mxu0 0.0
        %1942 = vmatpush1.msra.mxu0 0.0
        %1943 = vmatprep.subr.mxu0 0.0
        %1944 = vmatpush1.msra.mxu0 0.0
        %1945 = vmatprep.subr.mxu0 0.0
        %1946 = vmatpush1.msra.mxu0 0.0
        %1947 = vmatprep.subr.mxu0 0.0
        %1948 = vmatpush1.msra.mxu0 0.0
        %1949 = vmatprep.subr.mxu0 0.0
        %1950 = vmatpush1.msra.mxu0 0.0
        %1951 = vmatprep.subr.mxu0 0.0
        %1952 = vmatpush1.msra.mxu0 0.0
        %1953 = vmatprep.subr.mxu0 0.0
        %1954 = vmatpush1.msra.mxu0 0.0
        %1955 = vmatprep.subr.mxu0 0.0
        %1956 = vmatpush1.msra.mxu0 0.0
        %1957 = vmatprep.subr.mxu0 0.0
        %1958 = vmatpush1.msra.mxu0 0.0
        %1959 = vmatprep.subr.mxu0 0.0
        %1960 = vmatpush1.msra.mxu0 0.0
        %1961 = vmatprep.subr.mxu0 0.0
        %1962 = vmatpush1.msra.mxu0 0.0
        %1963 = vmatprep.subr.mxu0 0.0
        %1964 = vmatpush1.msra.mxu0 0.0
        %1965 = vmatprep.subr.mxu0 0.0
        %1966 = vmatpush1.msra.mxu0 0.0
        %1967 = vmatprep.subr.mxu0 0.0
        %1968 = vmatpush1.msra.mxu0 0.0
        %1969 = vmatprep.subr.mxu0 0.0
        %1970 = vmatpush1.msra.mxu0 0.0
        %1971 = vmatprep.subr.mxu0 0.0
        %1972 = vmatpush1.msra.mxu0 0.0
        %1973 = vmatprep.subr.mxu0 0.0
        %1974 = vmatpush1.msra.mxu0 0.0
        %1975 = vmatprep.subr.mxu0 0.0
        %1976 = vmatpush1.msra.mxu0 0.0
        %1977 = vmatprep.subr.mxu0 0.0
        %1978 = vmatpush1.msra.mxu0 0.0
        %1979 = vmatprep.subr.mxu0 0.0
        %1980 = vmatpush1.msra.mxu0 0.0
        %1981 = vmatprep.subr.mxu0 0.0
        %1982 = vmatpush1.msra.mxu0 0.0
        %1983 = vmatprep.mubr.f32.mxu0 0.0
        %1984 = vmatmul.mubr.f32.gmra.mrb[0].mxu0 %v1776
        %v1985 = vpop.f32.mrb[0].mxu0
        %v1986 = vadd.f32 0.0, %v1985
        %v1987 = vpop.f32.mrb[0].mxu0
        %1988 = vmatprep.mubr.f32.mxu0 0.0
        %1989 = vmatmul.mubr.f32.gmra.mrb[0].mxu0 %v1779
        %v1990 = vpop.f32.mrb[0].mxu0
        %v1991 = vadd.f32 0.0, %v1990
        %v1992 = vpop.f32.mrb[0].mxu0
        %1993 = vmatprep.mubr.f32.mxu0 0.0
        %1994 = vmatmul.mubr.f32.gmra.mrb[0].mxu0 %v1782
        %v1995 = vpop.f32.mrb[0].mxu0
        %v1996 = vadd.f32 0.0, %v1995
        %v1997 = vpop.f32.mrb[0].mxu0
        %1998 = vmatprep.mubr.f32.mxu0 0.0
        %1999 = vmatmul.mubr.f32.gmra.mrb[0].mxu0 %v1785
        %v2000 = vpop.f32.mrb[0].mxu0
        %v2001 = vadd.f32 0.0, %v2000
        %v2002 = vpop.f32.mrb[0].mxu0
        %2003 = vmatprep.mubr.f32.mxu0 0.0
        %2004 = vmatmul.mubr.f32.gmra.mrb[0].mxu0 %v1788
        %v2005 = vpop.f32.mrb[0].mxu0
        %v2006 = vadd.f32 0.0, %v2005
        %v2007 = vpop.f32.mrb[0].mxu0
        %2008 = vmatprep.mubr.f32.mxu0 0.0
        %2009 = vmatmul.mubr.f32.gmra.mrb[0].mxu0 %v1791
        %v2010 = vpop.f32.mrb[0].mxu0
        %v2011 = vadd.f32 0.0, %v2010
        %v2012 = vpop.f32.mrb[0].mxu0
        %2013 = vmatprep.mubr.f32.mxu0 0.0
        %2014 = vmatmul.mubr.f32.gmra.mrb[0].mxu0 %v1794
        %v2015 = vpop.f32.mrb[0].mxu0
        %v2016 = vadd.f32 0.0, %v2015
        %v2017 = vpop.f32.mrb[0].mxu0
        %2018 = vmatprep.mubr.f32.mxu0 0.0
        %2019 = vmatmul.mubr.f32.gmra.mrb[0].mxu0 %v1797
        %v2020 = vpop.f32.mrb[0].mxu0
        %v2021 = vadd.f32 0.0, %v2020
        %v2022 = vpop.f32.mrb[0].mxu0
        %2023 = vmatprep.mubr.f32.mxu0 0.0
        %2024 = vmatmul.mubr.f32.gmra.mrb[0].mxu0 %v1800
        %v2025 = vpop.f32.mrb[0].mxu0
        %v2026 = vadd.f32 0.0, %v2025
        %v2027 = vpop.f32.mrb[0].mxu0
        %2028 = vmatprep.mubr.f32.mxu0 0.0
        %2029 = vmatmul.mubr.f32.gmra.mrb[0].mxu0 %v1803
        %v2030 = vpop.f32.mrb[0].mxu0
        %v2031 = vadd.f32 0.0, %v2030
        %v2032 = vpop.f32.mrb[0].mxu0
        %2033 = vmatprep.mubr.f32.mxu0 0.0
        %2034 = vmatmul.mubr.f32.gmra.mrb[0].mxu0 %v1806
        %v2035 = vpop.f32.mrb[0].mxu0
        %v2036 = vadd.f32 0.0, %v2035
        %v2037 = vpop.f32.mrb[0].mxu0
        %2038 = vmatprep.mubr.f32.mxu0 0.0
        %2039 = vmatmul.mubr.f32.gmra.mrb[0].mxu0 %v1809
        %v2040 = vpop.f32.mrb[0].mxu0
        %v2041 = vadd.f32 0.0, %v2040
        %v2042 = vpop.f32.mrb[0].mxu0
        %2043 = vmatprep.mubr.f32.mxu0 0.0
        %2044 = vmatmul.mubr.f32.gmra.mrb[0].mxu0 %v1812
        %v2045 = vpop.f32.mrb[0].mxu0
        %v2046 = vadd.f32 0.0, %v2045
        %v2047 = vpop.f32.mrb[0].mxu0
        %2048 = vmatprep.mubr.f32.mxu0 0.0
        %2049 = vmatmul.mubr.f32.gmra.mrb[0].mxu0 %v1815
        %v2050 = vpop.f32.mrb[0].mxu0
        %v2051 = vadd.f32 0.0, %v2050
        %v2052 = vpop.f32.mrb[0].mxu0
        %2053 = vmatprep.mubr.f32.mxu0 0.0
        %2054 = vmatmul.mubr.f32.gmra.mrb[0].mxu0 %v1818
        %v2055 = vpop.f32.mrb[0].mxu0
        %v2056 = vadd.f32 0.0, %v2055
        %v2057 = vpop.f32.mrb[0].mxu0
        %2058 = vmatprep.mubr.f32.mxu0 0.0
        %2059 = vmatmul.mubr.f32.gmra.mrb[0].mxu0 %v1821
        %v2060 = vpop.f32.mrb[0].mxu0
        %v2061 = vadd.f32 0.0, %v2060
        %v2062 = vpop.f32.mrb[0].mxu0
        %2063 = vmatprep.mubr.f32.mxu0 0.0
        %2064 = vmatmul.mubr.f32.gmra.mrb[0].mxu0 %v1824
        %v2065 = vpop.f32.mrb[0].mxu0
        %v2066 = vadd.f32 0.0, %v2065
        %v2067 = vpop.f32.mrb[0].mxu0
        %2068 = vmatprep.mubr.f32.mxu0 0.0
        %2069 = vmatmul.mubr.f32.gmra.mrb[0].mxu0 %v1827
        %v2070 = vpop.f32.mrb[0].mxu0
        %v2071 = vadd.f32 0.0, %v2070
        %v2072 = vpop.f32.mrb[0].mxu0
        %2073 = vmatprep.mubr.f32.mxu0 0.0
        %2074 = vmatmul.mubr.f32.gmra.mrb[0].mxu0 %v1830
        %v2075 = vpop.f32.mrb[0].mxu0
        %v2076 = vadd.f32 0.0, %v2075
        %v2077 = vpop.f32.mrb[0].mxu0
        %2078 = vmatprep.mubr.f32.mxu0 0.0
        %2079 = vmatmul.mubr.f32.gmra.mrb[0].mxu0 %v1833
        %v2080 = vpop.f32.mrb[0].mxu0
        %v2081 = vadd.f32 0.0, %v2080
        %v2082 = vpop.f32.mrb[0].mxu0
        %2083 = vmatprep.mubr.f32.mxu0 0.0
        %2084 = vmatmul.mubr.f32.gmra.mrb[0].mxu0 %v1836
        %v2085 = vpop.f32.mrb[0].mxu0
        %v2086 = vadd.f32 0.0, %v2085
        %v2087 = vpop.f32.mrb[0].mxu0
        %2088 = vmatprep.mubr.f32.mxu0 0.0
        %2089 = vmatmul.mubr.f32.gmra.mrb[0].mxu0 %v1839
        %v2090 = vpop.f32.mrb[0].mxu0
        %v2091 = vadd.f32 0.0, %v2090
        %v2092 = vpop.f32.mrb[0].mxu0
        %2093 = vmatprep.mubr.f32.mxu0 0.0
        %2094 = vmatmul.mubr.f32.gmra.mrb[0].mxu0 %v1842
        %v2095 = vpop.f32.mrb[0].mxu0
        %v2096 = vadd.f32 0.0, %v2095
        %v2097 = vpop.f32.mrb[0].mxu0
        %2098 = vmatprep.mubr.f32.mxu0 0.0
        %2099 = vmatmul.mubr.f32.gmra.mrb[0].mxu0 %v1845
        %v2100 = vpop.f32.mrb[0].mxu0
        %v2101 = vadd.f32 0.0, %v2100
        %v2102 = vpop.f32.mrb[0].mxu0
        %2103 = vmatprep.mubr.f32.mxu0 0.0
        %2104 = vmatmul.mubr.f32.gmra.mrb[0].mxu0 %v1848
        %v2105 = vpop.f32.mrb[0].mxu0
        %v2106 = vadd.f32 0.0, %v2105
        %v2107 = vpop.f32.mrb[0].mxu0
        %2108 = vmatprep.mubr.f32.mxu0 0.0
        %2109 = vmatmul.mubr.f32.gmra.mrb[0].mxu0 %v1851
        %v2110 = vpop.f32.mrb[0].mxu0
        %v2111 = vadd.f32 0.0, %v2110
        %v2112 = vpop.f32.mrb[0].mxu0
        %2113 = vmatprep.mubr.f32.mxu0 0.0
        %2114 = vmatmul.mubr.f32.gmra.mrb[0].mxu0 %v1854
        %v2115 = vpop.f32.mrb[0].mxu0
        %v2116 = vadd.f32 0.0, %v2115
        %v2117 = vpop.f32.mrb[0].mxu0
        %2118 = vmatprep.mubr.f32.mxu0 0.0
        %2119 = vmatmul.mubr.f32.gmra.mrb[0].mxu0 %v1857
        %v2120 = vpop.f32.mrb[0].mxu0
        %v2121 = vadd.f32 0.0, %v2120
        %v2122 = vpop.f32.mrb[0].mxu0
        %2123 = vmatprep.mubr.f32.mxu0 0.0
        %2124 = vmatmul.mubr.f32.gmra.mrb[0].mxu0 %v1860
        %v2125 = vpop.f32.mrb[0].mxu0
        %v2126 = vadd.f32 0.0, %v2125
        %v2127 = vpop.f32.mrb[0].mxu0
        %2128 = vmatprep.mubr.f32.mxu0 0.0
        %2129 = vmatmul.mubr.f32.gmra.mrb[0].mxu0 %v1863
        %v2130 = vpop.f32.mrb[0].mxu0
        %v2131 = vadd.f32 0.0, %v2130
        %v2132 = vpop.f32.mrb[0].mxu0
        %2133 = vmatprep.mubr.f32.mxu0 0.0
        %2134 = vmatmul.mubr.f32.gmra.mrb[0].mxu0 %v1866
        %v2135 = vpop.f32.mrb[0].mxu0
        %v2136 = vadd.f32 0.0, %v2135
        %v2137 = vpop.f32.mrb[0].mxu0
        %2138 = vmatprep.mubr.f32.mxu0 0.0
        %2139 = vmatmul.mubr.f32.gmra.mrb[0].mxu0 %v1869
        %v2140 = vpop.f32.mrb[0].mxu0
        %v2141 = vadd.f32 0.0, %v2140
        %v2142 = vpop.f32.mrb[0].mxu0
        %2143 = vmatprep.mubr.f32.mxu0 0.0
        %2144 = vmatmul.mubr.f32.gmra.mrb[0].mxu0 %v1872
        %v2145 = vpop.f32.mrb[0].mxu0
        %v2146 = vadd.f32 0.0, %v2145
        %v2147 = vpop.f32.mrb[0].mxu0
        %2148 = vmatprep.mubr.f32.mxu0 0.0
        %2149 = vmatmul.mubr.f32.gmra.mrb[0].mxu0 %v1875
        %v2150 = vpop.f32.mrb[0].mxu0
        %v2151 = vadd.f32 0.0, %v2150
        %v2152 = vpop.f32.mrb[0].mxu0
        %2153 = vmatprep.mubr.f32.mxu0 0.0
        %2154 = vmatmul.mubr.f32.gmra.mrb[0].mxu0 %v1878
        %v2155 = vpop.f32.mrb[0].mxu0
        %v2156 = vadd.f32 0.0, %v2155
        %v2157 = vpop.f32.mrb[0].mxu0
        %2158 = vmatprep.mubr.f32.mxu0 0.0
        %2159 = vmatmul.mubr.f32.gmra.mrb[0].mxu0 %v1881
        %v2160 = vpop.f32.mrb[0].mxu0
        %v2161 = vadd.f32 0.0, %v2160
        %v2162 = vpop.f32.mrb[0].mxu0
        %2163 = vmatprep.mubr.f32.mxu0 0.0
        %2164 = vmatmul.mubr.f32.gmra.mrb[0].mxu0 %v1884
        %v2165 = vpop.f32.mrb[0].mxu0
        %v2166 = vadd.f32 0.0, %v2165
        %v2167 = vpop.f32.mrb[0].mxu0
        %2168 = vmatprep.mubr.f32.mxu0 0.0
        %2169 = vmatmul.mubr.f32.gmra.mrb[0].mxu0 %v1887
        %v2170 = vpop.f32.mrb[0].mxu0
        %v2171 = vadd.f32 0.0, %v2170
        %v2172 = vpop.f32.mrb[0].mxu0
        %2173 = vmatprep.mubr.f32.mxu0 0.0
        %2174 = vmatmul.mubr.f32.gmra.mrb[0].mxu0 %v1890
        %v2175 = vpop.f32.mrb[0].mxu0
        %v2176 = vadd.f32 0.0, %v2175
        %v2177 = vpop.f32.mrb[0].mxu0
        %2178 = vmatprep.mubr.f32.mxu0 0.0
        %2179 = vmatmul.mubr.f32.gmra.mrb[0].mxu0 %v1893
        %v2180 = vpop.f32.mrb[0].mxu0
        %v2181 = vadd.f32 0.0, %v2180
        %v2182 = vpop.f32.mrb[0].mxu0
        %2183 = vmatprep.mubr.f32.mxu0 0.0
        %2184 = vmatmul.mubr.f32.gmra.mrb[0].mxu0 %v1896
        %v2185 = vpop.f32.mrb[0].mxu0
        %v2186 = vadd.f32 0.0, %v2185
        %v2187 = vpop.f32.mrb[0].mxu0
        %2188 = vmatprep.mubr.f32.mxu0 0.0
        %2189 = vmatmul.mubr.f32.gmra.mrb[0].mxu0 %v1899
        %v2190 = vpop.f32.mrb[0].mxu0
        %v2191 = vadd.f32 0.0, %v2190
        %v2192 = vpop.f32.mrb[0].mxu0
        %2193 = vmatprep.mubr.f32.mxu0 0.0
        %2194 = vmatmul.mubr.f32.gmra.mrb[0].mxu0 %v1902
        %v2195 = vpop.f32.mrb[0].mxu0
        %v2196 = vadd.f32 0.0, %v2195
        %v2197 = vpop.f32.mrb[0].mxu0
        %2198 = vmatprep.mubr.f32.mxu0 0.0
        %2199 = vmatmul.mubr.f32.gmra.mrb[0].mxu0 %v1905
        %v2200 = vpop.f32.mrb[0].mxu0
        %v2201 = vadd.f32 0.0, %v2200
        %v2202 = vpop.f32.mrb[0].mxu0
        %2203 = vmatprep.mubr.f32.mxu0 0.0
        %2204 = vmatmul.mubr.f32.gmra.mrb[0].mxu0 %v1908
        %v2205 = vpop.f32.mrb[0].mxu0
        %v2206 = vadd.f32 0.0, %v2205
        %v2207 = vpop.f32.mrb[0].mxu0
        %2208 = vmatprep.mubr.f32.mxu0 0.0
        %2209 = vmatmul.mubr.f32.gmra.mrb[0].mxu0 %v1911
        %v2210 = vpop.f32.mrb[0].mxu0
        %v2211 = vadd.f32 0.0, %v2210
        %v2212 = vpop.f32.mrb[0].mxu0
        %2213 = vmatprep.mubr.f32.mxu0 0.0
        %2214 = vmatmul.mubr.f32.gmra.mrb[0].mxu0 %v1914
        %v2215 = vpop.f32.mrb[0].mxu0
        %v2216 = vadd.f32 0.0, %v2215
        %v2217 = vpop.f32.mrb[0].mxu0
        %2218 = vmatprep.mubr.f32.mxu0 0.0
        %2219 = vmatmul.mubr.f32.gmra.mrb[0].mxu0 %v1917
        %v2220 = vpop.f32.mrb[0].mxu0
        %v2221 = vadd.f32 0.0, %v2220
        %v2222 = vpop.f32.mrb[0].mxu0
        %2223 = vdwg.mxu0
        %v2225 = vsel %vm1774, %v999, 0
        %v2228 = vsel %vm1774, %v1000, 0
        %v2231 = vsel %vm1774, %v1001, 0
        %v2234 = vsel %vm1774, %v1002, 0
        %v2237 = vsel %vm1774, %v1003, 0
        %v2240 = vsel %vm1774, %v1004, 0
        %v2243 = vsel %vm1774, %v1005, 0
        %v2246 = vsel %vm1774, %v1006, 0
        %v2249 = vsel %vm1774, %v1007, 0
        %v2252 = vsel %vm1774, %v1008, 0
        %v2255 = vsel %vm1774, %v1009, 0
        %v2258 = vsel %vm1774, %v1010, 0
        %v2261 = vsel %vm1774, %v1011, 0
        %v2264 = vsel %vm1774, %v1012, 0
        %v2267 = vsel %vm1774, %v1013, 0
        %v2270 = vsel %vm1774, %v1014, 0
        %v2273 = vsel %vm1774, %v1015, 0
        %v2276 = vsel %vm1774, %v1016, 0
        %v2279 = vsel %vm1774, %v1017, 0
        %v2282 = vsel %vm1774, %v1018, 0
        %v2285 = vsel %vm1774, %v1019, 0
        %v2288 = vsel %vm1774, %v1020, 0
        %v2291 = vsel %vm1774, %v1021, 0
        %v2294 = vsel %vm1774, %v1022, 0
        %v2297 = vsel %vm1774, %v1023, 0
        %v2300 = vsel %vm1774, %v1024, 0
        %v2303 = vsel %vm1774, %v1025, 0
        %v2306 = vsel %vm1774, %v1026, 0
        %v2309 = vsel %vm1774, %v1027, 0
        %v2312 = vsel %vm1774, %v1028, 0
        %v2315 = vsel %vm1774, %v1029, 0
        %v2318 = vsel %vm1774, %v1030, 0
        %v2321 = vsel %vm1774, %v1031, 0
        %v2324 = vsel %vm1774, %v1032, 0
        %v2327 = vsel %vm1774, %v1033, 0
        %v2330 = vsel %vm1774, %v1034, 0
        %v2333 = vsel %vm1774, %v1035, 0
        %v2336 = vsel %vm1774, %v1036, 0
        %v2339 = vsel %vm1774, %v1037, 0
        %v2342 = vsel %vm1774, %v1038, 0
        %v2345 = vsel %vm1774, %v1039, 0
        %v2348 = vsel %vm1774, %v1040, 0
        %v2351 = vsel %vm1774, %v1041, 0
        %v2354 = vsel %vm1774, %v1042, 0
        %v2357 = vsel %vm1774, %v1043, 0
        %v2360 = vsel %vm1774, %v1044, 0
        %v2363 = vsel %vm1774, %v1045, 0
        %v2366 = vsel %vm1774, %v1046, 0
        %2368 = vmatprep.subr.mxu0 0.0
        %2369 = vmatpush1.msra.mxu0 %v1047
        %2370 = vmatprep.subr.mxu0 0.0
        %2371 = vmatpush1.msra.mxu0 %v1048
        %2372 = vmatprep.subr.mxu0 0.0
        %2373 = vmatpush1.msra.mxu0 %v1049
        %2374 = vmatprep.subr.mxu0 0.0
        %2375 = vmatpush1.msra.mxu0 0.0
        %2376 = vmatprep.subr.mxu0 0.0
        %2377 = vmatpush1.msra.mxu0 0.0
        %2378 = vmatprep.subr.mxu0 0.0
        %2379 = vmatpush1.msra.mxu0 0.0
        %2380 = vmatprep.subr.mxu0 0.0
        %2381 = vmatpush1.msra.mxu0 0.0
        %2382 = vmatprep.subr.mxu0 0.0
        %2383 = vmatpush1.msra.mxu0 0.0
        %2384 = vmatprep.subr.mxu0 0.0
        %2385 = vmatpush1.msra.mxu0 0.0
        %2386 = vmatprep.subr.mxu0 0.0
        %2387 = vmatpush1.msra.mxu0 0.0
        %2388 = vmatprep.subr.mxu0 0.0
        %2389 = vmatpush1.msra.mxu0 0.0
        %2390 = vmatprep.subr.mxu0 0.0
        %2391 = vmatpush1.msra.mxu0 0.0
        %2392 = vmatprep.subr.mxu0 0.0
        %2393 = vmatpush1.msra.mxu0 0.0
        %2394 = vmatprep.subr.mxu0 0.0
        %2395 = vmatpush1.msra.mxu0 0.0
        %2396 = vmatprep.subr.mxu0 0.0
        %2397 = vmatpush1.msra.mxu0 0.0
        %2398 = vmatprep.subr.mxu0 0.0
        %2399 = vmatpush1.msra.mxu0 0.0
        %2400 = vmatprep.subr.mxu0 0.0
        %2401 = vmatpush1.msra.mxu0 0.0
        %2402 = vmatprep.subr.mxu0 0.0
        %2403 = vmatpush1.msra.mxu0 0.0
        %2404 = vmatprep.subr.mxu0 0.0
        %2405 = vmatpush1.msra.mxu0 0.0
        %2406 = vmatprep.subr.mxu0 0.0
        %2407 = vmatpush1.msra.mxu0 0.0
        %2408 = vmatprep.subr.mxu0 0.0
        %2409 = vmatpush1.msra.mxu0 0.0
        %2410 = vmatprep.subr.mxu0 0.0
        %2411 = vmatpush1.msra.mxu0 0.0
        %2412 = vmatprep.subr.mxu0 0.0
        %2413 = vmatpush1.msra.mxu0 0.0
        %2414 = vmatprep.subr.mxu0 0.0
        %2415 = vmatpush1.msra.mxu0 0.0
        %2416 = vmatprep.subr.mxu0 0.0
        %2417 = vmatpush1.msra.mxu0 0.0
        %2418 = vmatprep.subr.mxu0 0.0
        %2419 = vmatpush1.msra.mxu0 0.0
        %2420 = vmatprep.subr.mxu0 0.0
        %2421 = vmatpush1.msra.mxu0 0.0
        %2422 = vmatprep.subr.mxu0 0.0
        %2423 = vmatpush1.msra.mxu0 0.0
        %2424 = vmatprep.subr.mxu0 0.0
        %2425 = vmatpush1.msra.mxu0 0.0
        %2426 = vmatprep.subr.mxu0 0.0
        %2427 = vmatpush1.msra.mxu0 0.0
        %2428 = vmatprep.subr.mxu0 0.0
        %2429 = vmatpush1.msra.mxu0 0.0
        %2430 = vmatprep.subr.mxu0 0.0
        %2431 = vmatpush1.msra.mxu0 0.0
        %2432 = vmatprep.mubr.f32.mxu0 0.0
        %2433 = vmatmul.mubr.f32.gmra.mrb[0].mxu0 %v2225
        %v2434 = vpop.f32.mrb[0].mxu0
        %v2435 = vadd.f32 %v1986, %v2434
        %v2436 = vpop.f32.mrb[0].mxu0
        %2437 = vmatprep.mubr.f32.mxu0 0.0
        %2438 = vmatmul.mubr.f32.gmra.mrb[0].mxu0 %v2228
        %v2439 = vpop.f32.mrb[0].mxu0
        %v2440 = vadd.f32 %v1991, %v2439
        %v2441 = vpop.f32.mrb[0].mxu0
        %2442 = vmatprep.mubr.f32.mxu0 0.0
        %2443 = vmatmul.mubr.f32.gmra.mrb[0].mxu0 %v2231
        %v2444 = vpop.f32.mrb[0].mxu0
        %v2445 = vadd.f32 %v1996, %v2444
        %v2446 = vpop.f32.mrb[0].mxu0
        %2447 = vmatprep.mubr.f32.mxu0 0.0
        %2448 = vmatmul.mubr.f32.gmra.mrb[0].mxu0 %v2234
        %v2449 = vpop.f32.mrb[0].mxu0
        %v2450 = vadd.f32 %v2001, %v2449
        %v2451 = vpop.f32.mrb[0].mxu0
        %2452 = vmatprep.mubr.f32.mxu0 0.0
        %2453 = vmatmul.mubr.f32.gmra.mrb[0].mxu0 %v2237
        %v2454 = vpop.f32.mrb[0].mxu0
        %v2455 = vadd.f32 %v2006, %v2454
        %v2456 = vpop.f32.mrb[0].mxu0
        %2457 = vmatprep.mubr.f32.mxu0 0.0
        %2458 = vmatmul.mubr.f32.gmra.mrb[0].mxu0 %v2240
        %v2459 = vpop.f32.mrb[0].mxu0
        %v2460 = vadd.f32 %v2011, %v2459
        %v2461 = vpop.f32.mrb[0].mxu0
        %2462 = vmatprep.mubr.f32.mxu0 0.0
        %2463 = vmatmul.mubr.f32.gmra.mrb[0].mxu0 %v2243
        %v2464 = vpop.f32.mrb[0].mxu0
        %v2465 = vadd.f32 %v2016, %v2464
        %v2466 = vpop.f32.mrb[0].mxu0
        %2467 = vmatprep.mubr.f32.mxu0 0.0
        %2468 = vmatmul.mubr.f32.gmra.mrb[0].mxu0 %v2246
        %v2469 = vpop.f32.mrb[0].mxu0
        %v2470 = vadd.f32 %v2021, %v2469
        %v2471 = vpop.f32.mrb[0].mxu0
        %2472 = vmatprep.mubr.f32.mxu0 0.0
        %2473 = vmatmul.mubr.f32.gmra.mrb[0].mxu0 %v2249
        %v2474 = vpop.f32.mrb[0].mxu0
        %v2475 = vadd.f32 %v2026, %v2474
        %v2476 = vpop.f32.mrb[0].mxu0
        %2477 = vmatprep.mubr.f32.mxu0 0.0
        %2478 = vmatmul.mubr.f32.gmra.mrb[0].mxu0 %v2252
        %v2479 = vpop.f32.mrb[0].mxu0
        %v2480 = vadd.f32 %v2031, %v2479
        %v2481 = vpop.f32.mrb[0].mxu0
        %2482 = vmatprep.mubr.f32.mxu0 0.0
        %2483 = vmatmul.mubr.f32.gmra.mrb[0].mxu0 %v2255
        %v2484 = vpop.f32.mrb[0].mxu0
        %v2485 = vadd.f32 %v2036, %v2484
        %v2486 = vpop.f32.mrb[0].mxu0
        %2487 = vmatprep.mubr.f32.mxu0 0.0
        %2488 = vmatmul.mubr.f32.gmra.mrb[0].mxu0 %v2258
        %v2489 = vpop.f32.mrb[0].mxu0
        %v2490 = vadd.f32 %v2041, %v2489
        %v2491 = vpop.f32.mrb[0].mxu0
        %2492 = vmatprep.mubr.f32.mxu0 0.0
        %2493 = vmatmul.mubr.f32.gmra.mrb[0].mxu0 %v2261
        %v2494 = vpop.f32.mrb[0].mxu0
        %v2495 = vadd.f32 %v2046, %v2494
        %v2496 = vpop.f32.mrb[0].mxu0
        %2497 = vmatprep.mubr.f32.mxu0 0.0
        %2498 = vmatmul.mubr.f32.gmra.mrb[0].mxu0 %v2264
        %v2499 = vpop.f32.mrb[0].mxu0
        %v2500 = vadd.f32 %v2051, %v2499
        %v2501 = vpop.f32.mrb[0].mxu0
        %2502 = vmatprep.mubr.f32.mxu0 0.0
        %2503 = vmatmul.mubr.f32.gmra.mrb[0].mxu0 %v2267
        %v2504 = vpop.f32.mrb[0].mxu0
        %v2505 = vadd.f32 %v2056, %v2504
        %v2506 = vpop.f32.mrb[0].mxu0
        %2507 = vmatprep.mubr.f32.mxu0 0.0
        %2508 = vmatmul.mubr.f32.gmra.mrb[0].mxu0 %v2270
        %v2509 = vpop.f32.mrb[0].mxu0
        %v2510 = vadd.f32 %v2061, %v2509
        %v2511 = vpop.f32.mrb[0].mxu0
        %2512 = vmatprep.mubr.f32.mxu0 0.0
        %2513 = vmatmul.mubr.f32.gmra.mrb[0].mxu0 %v2273
        %v2514 = vpop.f32.mrb[0].mxu0
        %v2515 = vadd.f32 %v2066, %v2514
        %v2516 = vpop.f32.mrb[0].mxu0
        %2517 = vmatprep.mubr.f32.mxu0 0.0
        %2518 = vmatmul.mubr.f32.gmra.mrb[0].mxu0 %v2276
        %v2519 = vpop.f32.mrb[0].mxu0
        %v2520 = vadd.f32 %v2071, %v2519
        %v2521 = vpop.f32.mrb[0].mxu0
        %2522 = vmatprep.mubr.f32.mxu0 0.0
        %2523 = vmatmul.mubr.f32.gmra.mrb[0].mxu0 %v2279
        %v2524 = vpop.f32.mrb[0].mxu0
        %v2525 = vadd.f32 %v2076, %v2524
        %v2526 = vpop.f32.mrb[0].mxu0
        %2527 = vmatprep.mubr.f32.mxu0 0.0
        %2528 = vmatmul.mubr.f32.gmra.mrb[0].mxu0 %v2282
        %v2529 = vpop.f32.mrb[0].mxu0
        %v2530 = vadd.f32 %v2081, %v2529
        %v2531 = vpop.f32.mrb[0].mxu0
        %2532 = vmatprep.mubr.f32.mxu0 0.0
        %2533 = vmatmul.mubr.f32.gmra.mrb[0].mxu0 %v2285
        %v2534 = vpop.f32.mrb[0].mxu0
        %v2535 = vadd.f32 %v2086, %v2534
        %v2536 = vpop.f32.mrb[0].mxu0
        %2537 = vmatprep.mubr.f32.mxu0 0.0
        %2538 = vmatmul.mubr.f32.gmra.mrb[0].mxu0 %v2288
        %v2539 = vpop.f32.mrb[0].mxu0
        %v2540 = vadd.f32 %v2091, %v2539
        %v2541 = vpop.f32.mrb[0].mxu0
        %2542 = vmatprep.mubr.f32.mxu0 0.0
        %2543 = vmatmul.mubr.f32.gmra.mrb[0].mxu0 %v2291
        %v2544 = vpop.f32.mrb[0].mxu0
        %v2545 = vadd.f32 %v2096, %v2544
        %v2546 = vpop.f32.mrb[0].mxu0
        %2547 = vmatprep.mubr.f32.mxu0 0.0
        %2548 = vmatmul.mubr.f32.gmra.mrb[0].mxu0 %v2294
        %v2549 = vpop.f32.mrb[0].mxu0
        %v2550 = vadd.f32 %v2101, %v2549
        %v2551 = vpop.f32.mrb[0].mxu0
        %2552 = vmatprep.mubr.f32.mxu0 0.0
        %2553 = vmatmul.mubr.f32.gmra.mrb[0].mxu0 %v2297
        %v2554 = vpop.f32.mrb[0].mxu0
        %v2555 = vadd.f32 %v2106, %v2554
        %v2556 = vpop.f32.mrb[0].mxu0
        %2557 = vmatprep.mubr.f32.mxu0 0.0
        %2558 = vmatmul.mubr.f32.gmra.mrb[0].mxu0 %v2300
        %v2559 = vpop.f32.mrb[0].mxu0
        %v2560 = vadd.f32 %v2111, %v2559
        %v2561 = vpop.f32.mrb[0].mxu0
        %2562 = vmatprep.mubr.f32.mxu0 0.0
        %2563 = vmatmul.mubr.f32.gmra.mrb[0].mxu0 %v2303
        %v2564 = vpop.f32.mrb[0].mxu0
        %v2565 = vadd.f32 %v2116, %v2564
        %v2566 = vpop.f32.mrb[0].mxu0
        %2567 = vmatprep.mubr.f32.mxu0 0.0
        %2568 = vmatmul.mubr.f32.gmra.mrb[0].mxu0 %v2306
        %v2569 = vpop.f32.mrb[0].mxu0
        %v2570 = vadd.f32 %v2121, %v2569
        %v2571 = vpop.f32.mrb[0].mxu0
        %2572 = vmatprep.mubr.f32.mxu0 0.0
        %2573 = vmatmul.mubr.f32.gmra.mrb[0].mxu0 %v2309
        %v2574 = vpop.f32.mrb[0].mxu0
        %v2575 = vadd.f32 %v2126, %v2574
        %v2576 = vpop.f32.mrb[0].mxu0
        %2577 = vmatprep.mubr.f32.mxu0 0.0
        %2578 = vmatmul.mubr.f32.gmra.mrb[0].mxu0 %v2312
        %v2579 = vpop.f32.mrb[0].mxu0
        %v2580 = vadd.f32 %v2131, %v2579
        %v2581 = vpop.f32.mrb[0].mxu0
        %2582 = vmatprep.mubr.f32.mxu0 0.0
        %2583 = vmatmul.mubr.f32.gmra.mrb[0].mxu0 %v2315
        %v2584 = vpop.f32.mrb[0].mxu0
        %v2585 = vadd.f32 %v2136, %v2584
        %v2586 = vpop.f32.mrb[0].mxu0
        %2587 = vmatprep.mubr.f32.mxu0 0.0
        %2588 = vmatmul.mubr.f32.gmra.mrb[0].mxu0 %v2318
        %v2589 = vpop.f32.mrb[0].mxu0
        %v2590 = vadd.f32 %v2141, %v2589
        %v2591 = vpop.f32.mrb[0].mxu0
        %2592 = vmatprep.mubr.f32.mxu0 0.0
        %2593 = vmatmul.mubr.f32.gmra.mrb[0].mxu0 %v2321
        %v2594 = vpop.f32.mrb[0].mxu0
        %v2595 = vadd.f32 %v2146, %v2594
        %v2596 = vpop.f32.mrb[0].mxu0
        %2597 = vmatprep.mubr.f32.mxu0 0.0
        %2598 = vmatmul.mubr.f32.gmra.mrb[0].mxu0 %v2324
        %v2599 = vpop.f32.mrb[0].mxu0
        %v2600 = vadd.f32 %v2151, %v2599
        %v2601 = vpop.f32.mrb[0].mxu0
        %2602 = vmatprep.mubr.f32.mxu0 0.0
        %2603 = vmatmul.mubr.f32.gmra.mrb[0].mxu0 %v2327
        %v2604 = vpop.f32.mrb[0].mxu0
        %v2605 = vadd.f32 %v2156, %v2604
        %v2606 = vpop.f32.mrb[0].mxu0
        %2607 = vmatprep.mubr.f32.mxu0 0.0
        %2608 = vmatmul.mubr.f32.gmra.mrb[0].mxu0 %v2330
        %v2609 = vpop.f32.mrb[0].mxu0
        %v2610 = vadd.f32 %v2161, %v2609
        %v2611 = vpop.f32.mrb[0].mxu0
        %2612 = vmatprep.mubr.f32.mxu0 0.0
        %2613 = vmatmul.mubr.f32.gmra.mrb[0].mxu0 %v2333
        %v2614 = vpop.f32.mrb[0].mxu0
        %v2615 = vadd.f32 %v2166, %v2614
        %v2616 = vpop.f32.mrb[0].mxu0
        %2617 = vmatprep.mubr.f32.mxu0 0.0
        %2618 = vmatmul.mubr.f32.gmra.mrb[0].mxu0 %v2336
        %v2619 = vpop.f32.mrb[0].mxu0
        %v2620 = vadd.f32 %v2171, %v2619
        %v2621 = vpop.f32.mrb[0].mxu0
        %2622 = vmatprep.mubr.f32.mxu0 0.0
        %2623 = vmatmul.mubr.f32.gmra.mrb[0].mxu0 %v2339
        %v2624 = vpop.f32.mrb[0].mxu0
        %v2625 = vadd.f32 %v2176, %v2624
        %v2626 = vpop.f32.mrb[0].mxu0
        %2627 = vmatprep.mubr.f32.mxu0 0.0
        %2628 = vmatmul.mubr.f32.gmra.mrb[0].mxu0 %v2342
        %v2629 = vpop.f32.mrb[0].mxu0
        %v2630 = vadd.f32 %v2181, %v2629
        %v2631 = vpop.f32.mrb[0].mxu0
        %2632 = vmatprep.mubr.f32.mxu0 0.0
        %2633 = vmatmul.mubr.f32.gmra.mrb[0].mxu0 %v2345
        %v2634 = vpop.f32.mrb[0].mxu0
        %v2635 = vadd.f32 %v2186, %v2634
        %v2636 = vpop.f32.mrb[0].mxu0
        %2637 = vmatprep.mubr.f32.mxu0 0.0
        %2638 = vmatmul.mubr.f32.gmra.mrb[0].mxu0 %v2348
        %v2639 = vpop.f32.mrb[0].mxu0
        %v2640 = vadd.f32 %v2191, %v2639
        %v2641 = vpop.f32.mrb[0].mxu0
        %2642 = vmatprep.mubr.f32.mxu0 0.0
        %2643 = vmatmul.mubr.f32.gmra.mrb[0].mxu0 %v2351
        %v2644 = vpop.f32.mrb[0].mxu0
        %v2645 = vadd.f32 %v2196, %v2644
        %v2646 = vpop.f32.mrb[0].mxu0
        %2647 = vmatprep.mubr.f32.mxu0 0.0
        %2648 = vmatmul.mubr.f32.gmra.mrb[0].mxu0 %v2354
        %v2649 = vpop.f32.mrb[0].mxu0
        %v2650 = vadd.f32 %v2201, %v2649
        %v2651 = vpop.f32.mrb[0].mxu0
        %2652 = vmatprep.mubr.f32.mxu0 0.0
        %2653 = vmatmul.mubr.f32.gmra.mrb[0].mxu0 %v2357
        %v2654 = vpop.f32.mrb[0].mxu0
        %v2655 = vadd.f32 %v2206, %v2654
        %v2656 = vpop.f32.mrb[0].mxu0
        %2657 = vmatprep.mubr.f32.mxu0 0.0
        %2658 = vmatmul.mubr.f32.gmra.mrb[0].mxu0 %v2360
        %v2659 = vpop.f32.mrb[0].mxu0
        %v2660 = vadd.f32 %v2211, %v2659
        %v2661 = vpop.f32.mrb[0].mxu0
        %2662 = vmatprep.mubr.f32.mxu0 0.0
        %2663 = vmatmul.mubr.f32.gmra.mrb[0].mxu0 %v2363
        %v2664 = vpop.f32.mrb[0].mxu0
        %v2665 = vadd.f32 %v2216, %v2664
        %v2666 = vpop.f32.mrb[0].mxu0
        %2667 = vmatprep.mubr.f32.mxu0 0.0
        %2668 = vmatmul.mubr.f32.gmra.mrb[0].mxu0 %v2366
        %v2669 = vpop.f32.mrb[0].mxu0
        %v2670 = vadd.f32 %v2221, %v2669
        %v2671 = vpop.f32.mrb[0].mxu0
        %2672 = vdwg.mxu0
        %v2673 = vld [vmem:[%s300 + $0x30] sm:$0xff]
        %v2674 = vld [vmem:[%s300 + $0x38] sm:$0xff]
        %v2675 = vld [vmem:[%s300 + $0x40] sm:$0xff]
        %v2676 = vld [vmem:[%s300 + $0x48] sm:$0xff]
        %v2677 = vld [vmem:[%s300 + $0x50] sm:$0xff]
        %v2678 = vld [vmem:[%s300 + $0x58] sm:$0xff]
        %v2679 = vld [vmem:[%s300 + $0x60] sm:$0xff]
        %v2680 = vld [vmem:[%s300 + $0x68] sm:$0xff]
        %v2681 = vld [vmem:[%s300 + $0x70] sm:$0xff]
        %v2682 = vld [vmem:[%s300 + $0x78] sm:$0xff]
        %v2683 = vld [vmem:[%s300 + $0x80] sm:$0xff]
        %v2684 = vld [vmem:[%s300 + $0x88] sm:$0xff]
        %v2685 = vld [vmem:[%s300 + $0x90] sm:$0xff]
        %v2686 = vld [vmem:[%s300 + $0x98] sm:$0xff]
        %v2687 = vld [vmem:[%s300 + $0xa0] sm:$0xff]
        %v2688 = vld [vmem:[%s300 + $0xa8] sm:$0xff]
        %v2689 = vld [vmem:[%s300 + $0xb0] sm:$0xff]
        %v2690 = vld [vmem:[%s300 + $0xb8] sm:$0xff]
        %v2691 = vld [vmem:[%s300 + $0xc0] sm:$0xff]
        %v2692 = vld [vmem:[%s300 + $0xc8] sm:$0xff]
        %v2693 = vld [vmem:[%s300 + $0xd0] sm:$0xff]
        %v2694 = vld [vmem:[%s300 + $0xd8] sm:$0xff]
        %v2695 = vld [vmem:[%s300 + $0xe0] sm:$0xff]
        %v2696 = vld [vmem:[%s300 + $0xe8] sm:$0xff]
        %v2697 = vld [vmem:[%s300 + $0xf0] sm:$0xff]
        %v2698 = vld [vmem:[%s300 + $0xf8] sm:$0xff]
        %v2699 = vld [vmem:[%s300 + $0x100] sm:$0xff]
        %v2700 = vld [vmem:[%s300 + $0x108] sm:$0xff]
        %v2701 = vld [vmem:[%s300 + $0x110] sm:$0xff]
        %v2702 = vld [vmem:[%s300 + $0x118] sm:$0xff]
        %v2703 = vld [vmem:[%s300 + $0x120] sm:$0xff]
        %v2704 = vld [vmem:[%s300 + $0x128] sm:$0xff]
        %v2705 = vld [vmem:[%s300 + $0x130] sm:$0xff]
        %v2706 = vld [vmem:[%s300 + $0x138] sm:$0xff]
        %v2707 = vld [vmem:[%s300 + $0x140] sm:$0xff]
        %v2708 = vld [vmem:[%s300 + $0x148] sm:$0xff]
        %v2709 = vld [vmem:[%s300 + $0x150] sm:$0xff]
        %v2710 = vld [vmem:[%s300 + $0x158] sm:$0xff]
        %v2711 = vld [vmem:[%s300 + $0x160] sm:$0xff]
        %v2712 = vld [vmem:[%s300 + $0x168] sm:$0xff]
        %v2713 = vld [vmem:[%s300 + $0x170] sm:$0xff]
        %v2714 = vld [vmem:[%s300 + $0x178] sm:$0xff]
        %v2715 = vld [vmem:[%s300 + $0x180] sm:$0xff]
        %v2716 = vld [vmem:[%s300 + $0x188] sm:$0xff]
        %v2717 = vld [vmem:[%s300 + $0x190] sm:$0xff]
        %v2718 = vld [vmem:[%s300 + $0x198] sm:$0xff]
        %v2719 = vld [vmem:[%s300 + $0x1a0] sm:$0xff]
        %v2720 = vld [vmem:[%s300 + $0x1a8] sm:$0xff]
        %2721 = vst.msk [vmem:[#allocation3] sm:$0xff] %vm372, %v2673
        %2722 = vst.msk [vmem:[#allocation3 + $0x8] sm:$0xff] %vm372, %v2674
        %2723 = vst.msk [vmem:[#allocation3 + $0x10] sm:$0xff] %vm372, %v2675
        %2724 = vst.msk [vmem:[#allocation3 + $0x18] sm:$0xff] %vm372, %v2676
        %2725 = vst.msk [vmem:[#allocation3 + $0x20] sm:$0xff] %vm372, %v2677
        %2726 = vst.msk [vmem:[#allocation3 + $0x28] sm:$0xff] %vm372, %v2678
        %2727 = vst.msk [vmem:[#allocation3 + $0x30] sm:$0xff] %vm372, %v2679
        %2728 = vst.msk [vmem:[#allocation3 + $0x38] sm:$0xff] %vm372, %v2680
        %2729 = vst.msk [vmem:[#allocation3 + $0x40] sm:$0xff] %vm372, %v2681
        %2730 = vst.msk [vmem:[#allocation3 + $0x48] sm:$0xff] %vm372, %v2682
        %2731 = vst.msk [vmem:[#allocation3 + $0x50] sm:$0xff] %vm372, %v2683
        %2732 = vst.msk [vmem:[#allocation3 + $0x58] sm:$0xff] %vm372, %v2684
        %2733 = vst.msk [vmem:[#allocation3 + $0x60] sm:$0xff] %vm372, %v2685
        %2734 = vst.msk [vmem:[#allocation3 + $0x68] sm:$0xff] %vm372, %v2686
        %2735 = vst.msk [vmem:[#allocation3 + $0x70] sm:$0xff] %vm372, %v2687
        %2736 = vst.msk [vmem:[#allocation3 + $0x78] sm:$0xff] %vm372, %v2688
        %2737 = vst.msk [vmem:[#allocation3 + $0x80] sm:$0xff] %vm372, %v2689
        %2738 = vst.msk [vmem:[#allocation3 + $0x88] sm:$0xff] %vm372, %v2690
        %2739 = vst.msk [vmem:[#allocation3 + $0x90] sm:$0xff] %vm372, %v2691
        %2740 = vst.msk [vmem:[#allocation3 + $0x98] sm:$0xff] %vm372, %v2692
        %2741 = vst.msk [vmem:[#allocation3 + $0xa0] sm:$0xff] %vm372, %v2693
        %2742 = vst.msk [vmem:[#allocation3 + $0xa8] sm:$0xff] %vm372, %v2694
        %2743 = vst.msk [vmem:[#allocation3 + $0xb0] sm:$0xff] %vm372, %v2695
        %2744 = vst.msk [vmem:[#allocation3 + $0xb8] sm:$0xff] %vm372, %v2696
        %2745 = vst.msk [vmem:[#allocation3 + $0xc0] sm:$0xff] %vm372, %v2697
        %2746 = vst.msk [vmem:[#allocation3 + $0xc8] sm:$0xff] %vm372, %v2698
        %2747 = vst.msk [vmem:[#allocation3 + $0xd0] sm:$0xff] %vm372, %v2699
        %2748 = vst.msk [vmem:[#allocation3 + $0xd8] sm:$0xff] %vm372, %v2700
        %2749 = vst.msk [vmem:[#allocation3 + $0xe0] sm:$0xff] %vm372, %v2701
        %2750 = vst.msk [vmem:[#allocation3 + $0xe8] sm:$0xff] %vm372, %v2702
        %2751 = vst.msk [vmem:[#allocation3 + $0xf0] sm:$0xff] %vm372, %v2703
        %2752 = vst.msk [vmem:[#allocation3 + $0xf8] sm:$0xff] %vm372, %v2704
        %2753 = vst.msk [vmem:[#allocation3 + $0x100] sm:$0xff] %vm372, %v2705
        %2754 = vst.msk [vmem:[#allocation3 + $0x108] sm:$0xff] %vm372, %v2706
        %2755 = vst.msk [vmem:[#allocation3 + $0x110] sm:$0xff] %vm372, %v2707
        %2756 = vst.msk [vmem:[#allocation3 + $0x118] sm:$0xff] %vm372, %v2708
        %2757 = vst.msk [vmem:[#allocation3 + $0x120] sm:$0xff] %vm372, %v2709
        %2758 = vst.msk [vmem:[#allocation3 + $0x128] sm:$0xff] %vm372, %v2710
        %2759 = vst.msk [vmem:[#allocation3 + $0x130] sm:$0xff] %vm372, %v2711
        %2760 = vst.msk [vmem:[#allocation3 + $0x138] sm:$0xff] %vm372, %v2712
        %2761 = vst.msk [vmem:[#allocation3 + $0x140] sm:$0xff] %vm372, %v2713
        %2762 = vst.msk [vmem:[#allocation3 + $0x148] sm:$0xff] %vm372, %v2714
        %2763 = vst.msk [vmem:[#allocation3 + $0x150] sm:$0xff] %vm372, %v2715
        %2764 = vst.msk [vmem:[#allocation3 + $0x158] sm:$0xff] %vm372, %v2716
        %2765 = vst.msk [vmem:[#allocation3 + $0x160] sm:$0xff] %vm372, %v2717
        %2766 = vst.msk [vmem:[#allocation3 + $0x168] sm:$0xff] %vm372, %v2718
        %2767 = vst.msk [vmem:[#allocation3 + $0x170] sm:$0xff] %vm372, %v2719
        %2768 = vst.msk [vmem:[#allocation3 + $0x178] sm:$0xff] %vm372, %v2720
        %v2769 = vld [vmem:[%s300 + $0x31] sm:$0xff]
        %v2770 = vld [vmem:[%s300 + $0x39] sm:$0xff]
        %v2771 = vld [vmem:[%s300 + $0x41] sm:$0xff]
        %v2772 = vld [vmem:[%s300 + $0x49] sm:$0xff]
        %v2773 = vld [vmem:[%s300 + $0x51] sm:$0xff]
        %v2774 = vld [vmem:[%s300 + $0x59] sm:$0xff]
        %v2775 = vld [vmem:[%s300 + $0x61] sm:$0xff]
        %v2776 = vld [vmem:[%s300 + $0x69] sm:$0xff]
        %v2777 = vld [vmem:[%s300 + $0x71] sm:$0xff]
        %v2778 = vld [vmem:[%s300 + $0x79] sm:$0xff]
        %v2779 = vld [vmem:[%s300 + $0x81] sm:$0xff]
        %v2780 = vld [vmem:[%s300 + $0x89] sm:$0xff]
        %v2781 = vld [vmem:[%s300 + $0x91] sm:$0xff]
        %v2782 = vld [vmem:[%s300 + $0x99] sm:$0xff]
        %v2783 = vld [vmem:[%s300 + $0xa1] sm:$0xff]
        %v2784 = vld [vmem:[%s300 + $0xa9] sm:$0xff]
        %v2785 = vld [vmem:[%s300 + $0xb1] sm:$0xff]
        %v2786 = vld [vmem:[%s300 + $0xb9] sm:$0xff]
        %v2787 = vld [vmem:[%s300 + $0xc1] sm:$0xff]
        %v2788 = vld [vmem:[%s300 + $0xc9] sm:$0xff]
        %v2789 = vld [vmem:[%s300 + $0xd1] sm:$0xff]
        %v2790 = vld [vmem:[%s300 + $0xd9] sm:$0xff]
        %v2791 = vld [vmem:[%s300 + $0xe1] sm:$0xff]
        %v2792 = vld [vmem:[%s300 + $0xe9] sm:$0xff]
        %v2793 = vld [vmem:[%s300 + $0xf1] sm:$0xff]
        %v2794 = vld [vmem:[%s300 + $0xf9] sm:$0xff]
        %v2795 = vld [vmem:[%s300 + $0x101] sm:$0xff]
        %v2796 = vld [vmem:[%s300 + $0x109] sm:$0xff]
        %v2797 = vld [vmem:[%s300 + $0x111] sm:$0xff]
        %v2798 = vld [vmem:[%s300 + $0x119] sm:$0xff]
        %v2799 = vld [vmem:[%s300 + $0x121] sm:$0xff]
        %v2800 = vld [vmem:[%s300 + $0x129] sm:$0xff]
        %v2801 = vld [vmem:[%s300 + $0x131] sm:$0xff]
        %v2802 = vld [vmem:[%s300 + $0x139] sm:$0xff]
        %v2803 = vld [vmem:[%s300 + $0x141] sm:$0xff]
        %v2804 = vld [vmem:[%s300 + $0x149] sm:$0xff]
        %v2805 = vld [vmem:[%s300 + $0x151] sm:$0xff]
        %v2806 = vld [vmem:[%s300 + $0x159] sm:$0xff]
        %v2807 = vld [vmem:[%s300 + $0x161] sm:$0xff]
        %v2808 = vld [vmem:[%s300 + $0x169] sm:$0xff]
        %v2809 = vld [vmem:[%s300 + $0x171] sm:$0xff]
        %v2810 = vld [vmem:[%s300 + $0x179] sm:$0xff]
        %v2811 = vld [vmem:[%s300 + $0x181] sm:$0xff]
        %v2812 = vld [vmem:[%s300 + $0x189] sm:$0xff]
        %v2813 = vld [vmem:[%s300 + $0x191] sm:$0xff]
        %v2814 = vld [vmem:[%s300 + $0x199] sm:$0xff]
        %v2815 = vld [vmem:[%s300 + $0x1a1] sm:$0xff]
        %v2816 = vld [vmem:[%s300 + $0x1a9] sm:$0xff]
        %2865 = vrot.lane.b32.xlu0 %v2769, 8
        %v2866 = vpop.permute.xlu0 %2865
        %2867 = vrot.lane.b32.xlu0 %v2770, 8
        %v2868 = vpop.permute.xlu0 %2867
        %2869 = vrot.lane.b32.xlu0 %v2771, 8
        %v2870 = vpop.permute.xlu0 %2869
        %2871 = vrot.lane.b32.xlu0 %v2772, 8
        %v2872 = vpop.permute.xlu0 %2871
        %2873 = vrot.lane.b32.xlu0 %v2773, 8
        %v2874 = vpop.permute.xlu0 %2873
        %2875 = vrot.lane.b32.xlu0 %v2774, 8
        %v2876 = vpop.permute.xlu0 %2875
        %2877 = vrot.lane.b32.xlu0 %v2775, 8
        %v2878 = vpop.permute.xlu0 %2877
        %2879 = vrot.lane.b32.xlu0 %v2776, 8
        %v2880 = vpop.permute.xlu0 %2879
        %2881 = vrot.lane.b32.xlu0 %v2777, 8
        %v2882 = vpop.permute.xlu0 %2881
        %2883 = vrot.lane.b32.xlu0 %v2778, 8
        %v2884 = vpop.permute.xlu0 %2883
        %2885 = vrot.lane.b32.xlu0 %v2779, 8
        %v2886 = vpop.permute.xlu0 %2885
        %2887 = vrot.lane.b32.xlu0 %v2780, 8
        %v2888 = vpop.permute.xlu0 %2887
        %2889 = vrot.lane.b32.xlu0 %v2781, 8
        %v2890 = vpop.permute.xlu0 %2889
        %2891 = vrot.lane.b32.xlu0 %v2782, 8
        %v2892 = vpop.permute.xlu0 %2891
        %2893 = vrot.lane.b32.xlu0 %v2783, 8
        %v2894 = vpop.permute.xlu0 %2893
        %2895 = vrot.lane.b32.xlu0 %v2784, 8
        %v2896 = vpop.permute.xlu0 %2895
        %2897 = vrot.lane.b32.xlu0 %v2785, 8
        %v2898 = vpop.permute.xlu0 %2897
        %2899 = vrot.lane.b32.xlu0 %v2786, 8
        %v2900 = vpop.permute.xlu0 %2899
        %2901 = vrot.lane.b32.xlu0 %v2787, 8
        %v2902 = vpop.permute.xlu0 %2901
        %2903 = vrot.lane.b32.xlu0 %v2788, 8
        %v2904 = vpop.permute.xlu0 %2903
        %2905 = vrot.lane.b32.xlu0 %v2789, 8
        %v2906 = vpop.permute.xlu0 %2905
        %2907 = vrot.lane.b32.xlu0 %v2790, 8
        %v2908 = vpop.permute.xlu0 %2907
        %2909 = vrot.lane.b32.xlu0 %v2791, 8
        %v2910 = vpop.permute.xlu0 %2909
        %2911 = vrot.lane.b32.xlu0 %v2792, 8
        %v2912 = vpop.permute.xlu0 %2911
        %2913 = vrot.lane.b32.xlu0 %v2793, 8
        %v2914 = vpop.permute.xlu0 %2913
        %2915 = vrot.lane.b32.xlu0 %v2794, 8
        %v2916 = vpop.permute.xlu0 %2915
        %2917 = vrot.lane.b32.xlu0 %v2795, 8
        %v2918 = vpop.permute.xlu0 %2917
        %2919 = vrot.lane.b32.xlu0 %v2796, 8
        %v2920 = vpop.permute.xlu0 %2919
        %2921 = vrot.lane.b32.xlu0 %v2797, 8
        %v2922 = vpop.permute.xlu0 %2921
        %2923 = vrot.lane.b32.xlu0 %v2798, 8
        %v2924 = vpop.permute.xlu0 %2923
        %2925 = vrot.lane.b32.xlu0 %v2799, 8
        %v2926 = vpop.permute.xlu0 %2925
        %2927 = vrot.lane.b32.xlu0 %v2800, 8
        %v2928 = vpop.permute.xlu0 %2927
        %2929 = vrot.lane.b32.xlu0 %v2801, 8
        %v2930 = vpop.permute.xlu0 %2929
        %2931 = vrot.lane.b32.xlu0 %v2802, 8
        %v2932 = vpop.permute.xlu0 %2931
        %2933 = vrot.lane.b32.xlu0 %v2803, 8
        %v2934 = vpop.permute.xlu0 %2933
        %2935 = vrot.lane.b32.xlu0 %v2804, 8
        %v2936 = vpop.permute.xlu0 %2935
        %2937 = vrot.lane.b32.xlu0 %v2805, 8
        %v2938 = vpop.permute.xlu0 %2937
        %2939 = vrot.lane.b32.xlu0 %v2806, 8
        %v2940 = vpop.permute.xlu0 %2939
        %2941 = vrot.lane.b32.xlu0 %v2807, 8
        %v2942 = vpop.permute.xlu0 %2941
        %2943 = vrot.lane.b32.xlu0 %v2808, 8
        %v2944 = vpop.permute.xlu0 %2943
        %2945 = vrot.lane.b32.xlu0 %v2809, 8
        %v2946 = vpop.permute.xlu0 %2945
        %2947 = vrot.lane.b32.xlu0 %v2810, 8
        %v2948 = vpop.permute.xlu0 %2947
        %2949 = vrot.lane.b32.xlu0 %v2811, 8
        %v2950 = vpop.permute.xlu0 %2949
        %2951 = vrot.lane.b32.xlu0 %v2812, 8
        %v2952 = vpop.permute.xlu0 %2951
        %2953 = vrot.lane.b32.xlu0 %v2813, 8
        %v2954 = vpop.permute.xlu0 %2953
        %2955 = vrot.lane.b32.xlu0 %v2814, 8
        %v2956 = vpop.permute.xlu0 %2955
        %2957 = vrot.lane.b32.xlu0 %v2815, 8
        %v2958 = vpop.permute.xlu0 %2957
        %2959 = vrot.lane.b32.xlu0 %v2816, 8
        %v2960 = vpop.permute.xlu0 %2959
        %3009 = vst.msk [vmem:[#allocation3] sm:$0xff] %vm661, %v2866
        %3010 = vst.msk [vmem:[#allocation3 + $0x8] sm:$0xff] %vm661, %v2868
        %3011 = vst.msk [vmem:[#allocation3 + $0x10] sm:$0xff] %vm661, %v2870
        %3012 = vst.msk [vmem:[#allocation3 + $0x18] sm:$0xff] %vm661, %v2872
        %3013 = vst.msk [vmem:[#allocation3 + $0x20] sm:$0xff] %vm661, %v2874
        %3014 = vst.msk [vmem:[#allocation3 + $0x28] sm:$0xff] %vm661, %v2876
        %3015 = vst.msk [vmem:[#allocation3 + $0x30] sm:$0xff] %vm661, %v2878
        %3016 = vst.msk [vmem:[#allocation3 + $0x38] sm:$0xff] %vm661, %v2880
        %3017 = vst.msk [vmem:[#allocation3 + $0x40] sm:$0xff] %vm661, %v2882
        %3018 = vst.msk [vmem:[#allocation3 + $0x48] sm:$0xff] %vm661, %v2884
        %3019 = vst.msk [vmem:[#allocation3 + $0x50] sm:$0xff] %vm661, %v2886
        %3020 = vst.msk [vmem:[#allocation3 + $0x58] sm:$0xff] %vm661, %v2888
        %3021 = vst.msk [vmem:[#allocation3 + $0x60] sm:$0xff] %vm661, %v2890
        %3022 = vst.msk [vmem:[#allocation3 + $0x68] sm:$0xff] %vm661, %v2892
        %3023 = vst.msk [vmem:[#allocation3 + $0x70] sm:$0xff] %vm661, %v2894
        %3024 = vst.msk [vmem:[#allocation3 + $0x78] sm:$0xff] %vm661, %v2896
        %3025 = vst.msk [vmem:[#allocation3 + $0x80] sm:$0xff] %vm661, %v2898
        %3026 = vst.msk [vmem:[#allocation3 + $0x88] sm:$0xff] %vm661, %v2900
        %3027 = vst.msk [vmem:[#allocation3 + $0x90] sm:$0xff] %vm661, %v2902
        %3028 = vst.msk [vmem:[#allocation3 + $0x98] sm:$0xff] %vm661, %v2904
        %3029 = vst.msk [vmem:[#allocation3 + $0xa0] sm:$0xff] %vm661, %v2906
        %3030 = vst.msk [vmem:[#allocation3 + $0xa8] sm:$0xff] %vm661, %v2908
        %3031 = vst.msk [vmem:[#allocation3 + $0xb0] sm:$0xff] %vm661, %v2910
        %3032 = vst.msk [vmem:[#allocation3 + $0xb8] sm:$0xff] %vm661, %v2912
        %3033 = vst.msk [vmem:[#allocation3 + $0xc0] sm:$0xff] %vm661, %v2914
        %3034 = vst.msk [vmem:[#allocation3 + $0xc8] sm:$0xff] %vm661, %v2916
        %3035 = vst.msk [vmem:[#allocation3 + $0xd0] sm:$0xff] %vm661, %v2918
        %3036 = vst.msk [vmem:[#allocation3 + $0xd8] sm:$0xff] %vm661, %v2920
        %3037 = vst.msk [vmem:[#allocation3 + $0xe0] sm:$0xff] %vm661, %v2922
        %3038 = vst.msk [vmem:[#allocation3 + $0xe8] sm:$0xff] %vm661, %v2924
        %3039 = vst.msk [vmem:[#allocation3 + $0xf0] sm:$0xff] %vm661, %v2926
        %3040 = vst.msk [vmem:[#allocation3 + $0xf8] sm:$0xff] %vm661, %v2928
        %3041 = vst.msk [vmem:[#allocation3 + $0x100] sm:$0xff] %vm661, %v2930
        %3042 = vst.msk [vmem:[#allocation3 + $0x108] sm:$0xff] %vm661, %v2932
        %3043 = vst.msk [vmem:[#allocation3 + $0x110] sm:$0xff] %vm661, %v2934
        %3044 = vst.msk [vmem:[#allocation3 + $0x118] sm:$0xff] %vm661, %v2936
        %3045 = vst.msk [vmem:[#allocation3 + $0x120] sm:$0xff] %vm661, %v2938
        %3046 = vst.msk [vmem:[#allocation3 + $0x128] sm:$0xff] %vm661, %v2940
        %3047 = vst.msk [vmem:[#allocation3 + $0x130] sm:$0xff] %vm661, %v2942
        %3048 = vst.msk [vmem:[#allocation3 + $0x138] sm:$0xff] %vm661, %v2944
        %3049 = vst.msk [vmem:[#allocation3 + $0x140] sm:$0xff] %vm661, %v2946
        %3050 = vst.msk [vmem:[#allocation3 + $0x148] sm:$0xff] %vm661, %v2948
        %3051 = vst.msk [vmem:[#allocation3 + $0x150] sm:$0xff] %vm661, %v2950
        %3052 = vst.msk [vmem:[#allocation3 + $0x158] sm:$0xff] %vm661, %v2952
        %3053 = vst.msk [vmem:[#allocation3 + $0x160] sm:$0xff] %vm661, %v2954
        %3054 = vst.msk [vmem:[#allocation3 + $0x168] sm:$0xff] %vm661, %v2956
        %3055 = vst.msk [vmem:[#allocation3 + $0x170] sm:$0xff] %vm661, %v2958
        %3056 = vst.msk [vmem:[#allocation3 + $0x178] sm:$0xff] %vm661, %v2960
        %v3057 = vld [vmem:[%s300 + $0x32] sm:$0xff]
        %v3058 = vld [vmem:[%s300 + $0x3a] sm:$0xff]
        %v3059 = vld [vmem:[%s300 + $0x42] sm:$0xff]
        %v3060 = vld [vmem:[%s300 + $0x4a] sm:$0xff]
        %v3061 = vld [vmem:[%s300 + $0x52] sm:$0xff]
        %v3062 = vld [vmem:[%s300 + $0x5a] sm:$0xff]
        %v3063 = vld [vmem:[%s300 + $0x62] sm:$0xff]
        %v3064 = vld [vmem:[%s300 + $0x6a] sm:$0xff]
        %v3065 = vld [vmem:[%s300 + $0x72] sm:$0xff]
        %v3066 = vld [vmem:[%s300 + $0x7a] sm:$0xff]
        %v3067 = vld [vmem:[%s300 + $0x82] sm:$0xff]
        %v3068 = vld [vmem:[%s300 + $0x8a] sm:$0xff]
        %v3069 = vld [vmem:[%s300 + $0x92] sm:$0xff]
        %v3070 = vld [vmem:[%s300 + $0x9a] sm:$0xff]
        %v3071 = vld [vmem:[%s300 + $0xa2] sm:$0xff]
        %v3072 = vld [vmem:[%s300 + $0xaa] sm:$0xff]
        %v3073 = vld [vmem:[%s300 + $0xb2] sm:$0xff]
        %v3074 = vld [vmem:[%s300 + $0xba] sm:$0xff]
        %v3075 = vld [vmem:[%s300 + $0xc2] sm:$0xff]
        %v3076 = vld [vmem:[%s300 + $0xca] sm:$0xff]
        %v3077 = vld [vmem:[%s300 + $0xd2] sm:$0xff]
        %v3078 = vld [vmem:[%s300 + $0xda] sm:$0xff]
        %v3079 = vld [vmem:[%s300 + $0xe2] sm:$0xff]
        %v3080 = vld [vmem:[%s300 + $0xea] sm:$0xff]
        %v3081 = vld [vmem:[%s300 + $0xf2] sm:$0xff]
        %v3082 = vld [vmem:[%s300 + $0xfa] sm:$0xff]
        %v3083 = vld [vmem:[%s300 + $0x102] sm:$0xff]
        %v3084 = vld [vmem:[%s300 + $0x10a] sm:$0xff]
        %v3085 = vld [vmem:[%s300 + $0x112] sm:$0xff]
        %v3086 = vld [vmem:[%s300 + $0x11a] sm:$0xff]
        %v3087 = vld [vmem:[%s300 + $0x122] sm:$0xff]
        %v3088 = vld [vmem:[%s300 + $0x12a] sm:$0xff]
        %v3089 = vld [vmem:[%s300 + $0x132] sm:$0xff]
        %v3090 = vld [vmem:[%s300 + $0x13a] sm:$0xff]
        %v3091 = vld [vmem:[%s300 + $0x142] sm:$0xff]
        %v3092 = vld [vmem:[%s300 + $0x14a] sm:$0xff]
        %v3093 = vld [vmem:[%s300 + $0x152] sm:$0xff]
        %v3094 = vld [vmem:[%s300 + $0x15a] sm:$0xff]
        %v3095 = vld [vmem:[%s300 + $0x162] sm:$0xff]
        %v3096 = vld [vmem:[%s300 + $0x16a] sm:$0xff]
        %v3097 = vld [vmem:[%s300 + $0x172] sm:$0xff]
        %v3098 = vld [vmem:[%s300 + $0x17a] sm:$0xff]
        %v3099 = vld [vmem:[%s300 + $0x182] sm:$0xff]
        %v3100 = vld [vmem:[%s300 + $0x18a] sm:$0xff]
        %v3101 = vld [vmem:[%s300 + $0x192] sm:$0xff]
        %v3102 = vld [vmem:[%s300 + $0x19a] sm:$0xff]
        %v3103 = vld [vmem:[%s300 + $0x1a2] sm:$0xff]
        %v3104 = vld [vmem:[%s300 + $0x1aa] sm:$0xff]
        %3153 = vrot.lane.b32.xlu0 %v3057, 16
        %v3154 = vpop.permute.xlu0 %3153
        %3155 = vrot.lane.b32.xlu0 %v3058, 16
        %v3156 = vpop.permute.xlu0 %3155
        %3157 = vrot.lane.b32.xlu0 %v3059, 16
        %v3158 = vpop.permute.xlu0 %3157
        %3159 = vrot.lane.b32.xlu0 %v3060, 16
        %v3160 = vpop.permute.xlu0 %3159
        %3161 = vrot.lane.b32.xlu0 %v3061, 16
        %v3162 = vpop.permute.xlu0 %3161
        %3163 = vrot.lane.b32.xlu0 %v3062, 16
        %v3164 = vpop.permute.xlu0 %3163
        %3165 = vrot.lane.b32.xlu0 %v3063, 16
        %v3166 = vpop.permute.xlu0 %3165
        %3167 = vrot.lane.b32.xlu0 %v3064, 16
        %v3168 = vpop.permute.xlu0 %3167
        %3169 = vrot.lane.b32.xlu0 %v3065, 16
        %v3170 = vpop.permute.xlu0 %3169
        %3171 = vrot.lane.b32.xlu0 %v3066, 16
        %v3172 = vpop.permute.xlu0 %3171
        %3173 = vrot.lane.b32.xlu0 %v3067, 16
        %v3174 = vpop.permute.xlu0 %3173
        %3175 = vrot.lane.b32.xlu0 %v3068, 16
        %v3176 = vpop.permute.xlu0 %3175
        %3177 = vrot.lane.b32.xlu0 %v3069, 16
        %v3178 = vpop.permute.xlu0 %3177
        %3179 = vrot.lane.b32.xlu0 %v3070, 16
        %v3180 = vpop.permute.xlu0 %3179
        %3181 = vrot.lane.b32.xlu0 %v3071, 16
        %v3182 = vpop.permute.xlu0 %3181
        %3183 = vrot.lane.b32.xlu0 %v3072, 16
        %v3184 = vpop.permute.xlu0 %3183
        %3185 = vrot.lane.b32.xlu0 %v3073, 16
        %v3186 = vpop.permute.xlu0 %3185
        %3187 = vrot.lane.b32.xlu0 %v3074, 16
        %v3188 = vpop.permute.xlu0 %3187
        %3189 = vrot.lane.b32.xlu0 %v3075, 16
        %v3190 = vpop.permute.xlu0 %3189
        %3191 = vrot.lane.b32.xlu0 %v3076, 16
        %v3192 = vpop.permute.xlu0 %3191
        %3193 = vrot.lane.b32.xlu0 %v3077, 16
        %v3194 = vpop.permute.xlu0 %3193
        %3195 = vrot.lane.b32.xlu0 %v3078, 16
        %v3196 = vpop.permute.xlu0 %3195
        %3197 = vrot.lane.b32.xlu0 %v3079, 16
        %v3198 = vpop.permute.xlu0 %3197
        %3199 = vrot.lane.b32.xlu0 %v3080, 16
        %v3200 = vpop.permute.xlu0 %3199
        %3201 = vrot.lane.b32.xlu0 %v3081, 16
        %v3202 = vpop.permute.xlu0 %3201
        %3203 = vrot.lane.b32.xlu0 %v3082, 16
        %v3204 = vpop.permute.xlu0 %3203
        %3205 = vrot.lane.b32.xlu0 %v3083, 16
        %v3206 = vpop.permute.xlu0 %3205
        %3207 = vrot.lane.b32.xlu0 %v3084, 16
        %v3208 = vpop.permute.xlu0 %3207
        %3209 = vrot.lane.b32.xlu0 %v3085, 16
        %v3210 = vpop.permute.xlu0 %3209
        %3211 = vrot.lane.b32.xlu0 %v3086, 16
        %v3212 = vpop.permute.xlu0 %3211
        %3213 = vrot.lane.b32.xlu0 %v3087, 16
        %v3214 = vpop.permute.xlu0 %3213
        %3215 = vrot.lane.b32.xlu0 %v3088, 16
        %v3216 = vpop.permute.xlu0 %3215
        %3217 = vrot.lane.b32.xlu0 %v3089, 16
        %v3218 = vpop.permute.xlu0 %3217
        %3219 = vrot.lane.b32.xlu0 %v3090, 16
        %v3220 = vpop.permute.xlu0 %3219
        %3221 = vrot.lane.b32.xlu0 %v3091, 16
        %v3222 = vpop.permute.xlu0 %3221
        %3223 = vrot.lane.b32.xlu0 %v3092, 16
        %v3224 = vpop.permute.xlu0 %3223
        %3225 = vrot.lane.b32.xlu0 %v3093, 16
        %v3226 = vpop.permute.xlu0 %3225
        %3227 = vrot.lane.b32.xlu0 %v3094, 16
        %v3228 = vpop.permute.xlu0 %3227
        %3229 = vrot.lane.b32.xlu0 %v3095, 16
        %v3230 = vpop.permute.xlu0 %3229
        %3231 = vrot.lane.b32.xlu0 %v3096, 16
        %v3232 = vpop.permute.xlu0 %3231
        %3233 = vrot.lane.b32.xlu0 %v3097, 16
        %v3234 = vpop.permute.xlu0 %3233
        %3235 = vrot.lane.b32.xlu0 %v3098, 16
        %v3236 = vpop.permute.xlu0 %3235
        %3237 = vrot.lane.b32.xlu0 %v3099, 16
        %v3238 = vpop.permute.xlu0 %3237
        %3239 = vrot.lane.b32.xlu0 %v3100, 16
        %v3240 = vpop.permute.xlu0 %3239
        %3241 = vrot.lane.b32.xlu0 %v3101, 16
        %v3242 = vpop.permute.xlu0 %3241
        %3243 = vrot.lane.b32.xlu0 %v3102, 16
        %v3244 = vpop.permute.xlu0 %3243
        %3245 = vrot.lane.b32.xlu0 %v3103, 16
        %v3246 = vpop.permute.xlu0 %3245
        %3247 = vrot.lane.b32.xlu0 %v3104, 16
        %v3248 = vpop.permute.xlu0 %3247
        %3297 = vst.msk [vmem:[#allocation3] sm:$0xff] %vm950, %v3154
        %3298 = vst.msk [vmem:[#allocation3 + $0x8] sm:$0xff] %vm950, %v3156
        %3299 = vst.msk [vmem:[#allocation3 + $0x10] sm:$0xff] %vm950, %v3158
        %3300 = vst.msk [vmem:[#allocation3 + $0x18] sm:$0xff] %vm950, %v3160
        %3301 = vst.msk [vmem:[#allocation3 + $0x20] sm:$0xff] %vm950, %v3162
        %3302 = vst.msk [vmem:[#allocation3 + $0x28] sm:$0xff] %vm950, %v3164
        %3303 = vst.msk [vmem:[#allocation3 + $0x30] sm:$0xff] %vm950, %v3166
        %3304 = vst.msk [vmem:[#allocation3 + $0x38] sm:$0xff] %vm950, %v3168
        %3305 = vst.msk [vmem:[#allocation3 + $0x40] sm:$0xff] %vm950, %v3170
        %3306 = vst.msk [vmem:[#allocation3 + $0x48] sm:$0xff] %vm950, %v3172
        %3307 = vst.msk [vmem:[#allocation3 + $0x50] sm:$0xff] %vm950, %v3174
        %3308 = vst.msk [vmem:[#allocation3 + $0x58] sm:$0xff] %vm950, %v3176
        %3309 = vst.msk [vmem:[#allocation3 + $0x60] sm:$0xff] %vm950, %v3178
        %3310 = vst.msk [vmem:[#allocation3 + $0x68] sm:$0xff] %vm950, %v3180
        %3311 = vst.msk [vmem:[#allocation3 + $0x70] sm:$0xff] %vm950, %v3182
        %3312 = vst.msk [vmem:[#allocation3 + $0x78] sm:$0xff] %vm950, %v3184
        %3313 = vst.msk [vmem:[#allocation3 + $0x80] sm:$0xff] %vm950, %v3186
        %3314 = vst.msk [vmem:[#allocation3 + $0x88] sm:$0xff] %vm950, %v3188
        %3315 = vst.msk [vmem:[#allocation3 + $0x90] sm:$0xff] %vm950, %v3190
        %3316 = vst.msk [vmem:[#allocation3 + $0x98] sm:$0xff] %vm950, %v3192
        %3317 = vst.msk [vmem:[#allocation3 + $0xa0] sm:$0xff] %vm950, %v3194
        %3318 = vst.msk [vmem:[#allocation3 + $0xa8] sm:$0xff] %vm950, %v3196
        %3319 = vst.msk [vmem:[#allocation3 + $0xb0] sm:$0xff] %vm950, %v3198
        %3320 = vst.msk [vmem:[#allocation3 + $0xb8] sm:$0xff] %vm950, %v3200
        %3321 = vst.msk [vmem:[#allocation3 + $0xc0] sm:$0xff] %vm950, %v3202
        %3322 = vst.msk [vmem:[#allocation3 + $0xc8] sm:$0xff] %vm950, %v3204
        %3323 = vst.msk [vmem:[#allocation3 + $0xd0] sm:$0xff] %vm950, %v3206
        %3324 = vst.msk [vmem:[#allocation3 + $0xd8] sm:$0xff] %vm950, %v3208
        %3325 = vst.msk [vmem:[#allocation3 + $0xe0] sm:$0xff] %vm950, %v3210
        %3326 = vst.msk [vmem:[#allocation3 + $0xe8] sm:$0xff] %vm950, %v3212
        %3327 = vst.msk [vmem:[#allocation3 + $0xf0] sm:$0xff] %vm950, %v3214
        %3328 = vst.msk [vmem:[#allocation3 + $0xf8] sm:$0xff] %vm950, %v3216
        %3329 = vst.msk [vmem:[#allocation3 + $0x100] sm:$0xff] %vm950, %v3218
        %3330 = vst.msk [vmem:[#allocation3 + $0x108] sm:$0xff] %vm950, %v3220
        %3331 = vst.msk [vmem:[#allocation3 + $0x110] sm:$0xff] %vm950, %v3222
        %3332 = vst.msk [vmem:[#allocation3 + $0x118] sm:$0xff] %vm950, %v3224
        %3333 = vst.msk [vmem:[#allocation3 + $0x120] sm:$0xff] %vm950, %v3226
        %3334 = vst.msk [vmem:[#allocation3 + $0x128] sm:$0xff] %vm950, %v3228
        %3335 = vst.msk [vmem:[#allocation3 + $0x130] sm:$0xff] %vm950, %v3230
        %3336 = vst.msk [vmem:[#allocation3 + $0x138] sm:$0xff] %vm950, %v3232
        %3337 = vst.msk [vmem:[#allocation3 + $0x140] sm:$0xff] %vm950, %v3234
        %3338 = vst.msk [vmem:[#allocation3 + $0x148] sm:$0xff] %vm950, %v3236
        %3339 = vst.msk [vmem:[#allocation3 + $0x150] sm:$0xff] %vm950, %v3238
        %3340 = vst.msk [vmem:[#allocation3 + $0x158] sm:$0xff] %vm950, %v3240
        %3341 = vst.msk [vmem:[#allocation3 + $0x160] sm:$0xff] %vm950, %v3242
        %3342 = vst.msk [vmem:[#allocation3 + $0x168] sm:$0xff] %vm950, %v3244
        %3343 = vst.msk [vmem:[#allocation3 + $0x170] sm:$0xff] %vm950, %v3246
        %3344 = vst.msk [vmem:[#allocation3 + $0x178] sm:$0xff] %vm950, %v3248
        %v3345 = vld [vmem:[#allocation3] sm:$0xff]
        %v3346 = vld [vmem:[#allocation3 + $0x8] sm:$0xff]
        %v3347 = vld [vmem:[#allocation3 + $0x10] sm:$0xff]
        %v3348 = vld [vmem:[#allocation3 + $0x18] sm:$0xff]
        %v3349 = vld [vmem:[#allocation3 + $0x20] sm:$0xff]
        %v3350 = vld [vmem:[#allocation3 + $0x28] sm:$0xff]
        %v3351 = vld [vmem:[#allocation3 + $0x30] sm:$0xff]
        %v3352 = vld [vmem:[#allocation3 + $0x38] sm:$0xff]
        %v3353 = vld [vmem:[#allocation3 + $0x40] sm:$0xff]
        %v3354 = vld [vmem:[#allocation3 + $0x48] sm:$0xff]
        %v3355 = vld [vmem:[#allocation3 + $0x50] sm:$0xff]
        %v3356 = vld [vmem:[#allocation3 + $0x58] sm:$0xff]
        %v3357 = vld [vmem:[#allocation3 + $0x60] sm:$0xff]
        %v3358 = vld [vmem:[#allocation3 + $0x68] sm:$0xff]
        %v3359 = vld [vmem:[#allocation3 + $0x70] sm:$0xff]
        %v3360 = vld [vmem:[#allocation3 + $0x78] sm:$0xff]
        %v3361 = vld [vmem:[#allocation3 + $0x80] sm:$0xff]
        %v3362 = vld [vmem:[#allocation3 + $0x88] sm:$0xff]
        %v3363 = vld [vmem:[#allocation3 + $0x90] sm:$0xff]
        %v3364 = vld [vmem:[#allocation3 + $0x98] sm:$0xff]
        %v3365 = vld [vmem:[#allocation3 + $0xa0] sm:$0xff]
        %v3366 = vld [vmem:[#allocation3 + $0xa8] sm:$0xff]
        %v3367 = vld [vmem:[#allocation3 + $0xb0] sm:$0xff]
        %v3368 = vld [vmem:[#allocation3 + $0xb8] sm:$0xff]
        %v3369 = vld [vmem:[#allocation3 + $0xc0] sm:$0xff]
        %v3370 = vld [vmem:[#allocation3 + $0xc8] sm:$0xff]
        %v3371 = vld [vmem:[#allocation3 + $0xd0] sm:$0xff]
        %v3372 = vld [vmem:[#allocation3 + $0xd8] sm:$0xff]
        %v3373 = vld [vmem:[#allocation3 + $0xe0] sm:$0xff]
        %v3374 = vld [vmem:[#allocation3 + $0xe8] sm:$0xff]
        %v3375 = vld [vmem:[#allocation3 + $0xf0] sm:$0xff]
        %v3376 = vld [vmem:[#allocation3 + $0xf8] sm:$0xff]
        %v3377 = vld [vmem:[#allocation3 + $0x100] sm:$0xff]
        %v3378 = vld [vmem:[#allocation3 + $0x108] sm:$0xff]
        %v3379 = vld [vmem:[#allocation3 + $0x110] sm:$0xff]
        %v3380 = vld [vmem:[#allocation3 + $0x118] sm:$0xff]
        %v3381 = vld [vmem:[#allocation3 + $0x120] sm:$0xff]
        %v3382 = vld [vmem:[#allocation3 + $0x128] sm:$0xff]
        %v3383 = vld [vmem:[#allocation3 + $0x130] sm:$0xff]
        %v3384 = vld [vmem:[#allocation3 + $0x138] sm:$0xff]
        %v3385 = vld [vmem:[#allocation3 + $0x140] sm:$0xff]
        %v3386 = vld [vmem:[#allocation3 + $0x148] sm:$0xff]
        %v3387 = vld [vmem:[#allocation3 + $0x150] sm:$0xff]
        %v3388 = vld [vmem:[#allocation3 + $0x158] sm:$0xff]
        %v3389 = vld [vmem:[#allocation3 + $0x160] sm:$0xff]
        %v3390 = vld [vmem:[#allocation3 + $0x168] sm:$0xff]
        %v3391 = vld [vmem:[#allocation3 + $0x170] sm:$0xff]
        %v3392 = vld [vmem:[#allocation3 + $0x178] sm:$0xff]
        %s3393 = scalar_lea.vmem %s1, 48
        %v3394 = vld [vmem:[%s3393] sm:$0xff]
        %v3395 = vld [vmem:[%s3393 + $0x8] sm:$0xff]
        %v3396 = vld [vmem:[%s3393 + $0x10] sm:$0xff]
        %v3398 = vsel %vm1774, %v3345, 0
        %v3401 = vsel %vm1774, %v3346, 0
        %v3404 = vsel %vm1774, %v3347, 0
        %v3407 = vsel %vm1774, %v3348, 0
        %v3410 = vsel %vm1774, %v3349, 0
        %v3413 = vsel %vm1774, %v3350, 0
        %v3416 = vsel %vm1774, %v3351, 0
        %v3419 = vsel %vm1774, %v3352, 0
        %v3422 = vsel %vm1774, %v3353, 0
        %v3425 = vsel %vm1774, %v3354, 0
        %v3428 = vsel %vm1774, %v3355, 0
        %v3431 = vsel %vm1774, %v3356, 0
        %v3434 = vsel %vm1774, %v3357, 0
        %v3437 = vsel %vm1774, %v3358, 0
        %v3440 = vsel %vm1774, %v3359, 0
        %v3443 = vsel %vm1774, %v3360, 0
        %v3446 = vsel %vm1774, %v3361, 0
        %v3449 = vsel %vm1774, %v3362, 0
        %v3452 = vsel %vm1774, %v3363, 0
        %v3455 = vsel %vm1774, %v3364, 0
        %v3458 = vsel %vm1774, %v3365, 0
        %v3461 = vsel %vm1774, %v3366, 0
        %v3464 = vsel %vm1774, %v3367, 0
        %v3467 = vsel %vm1774, %v3368, 0
        %v3470 = vsel %vm1774, %v3369, 0
        %v3473 = vsel %vm1774, %v3370, 0
        %v3476 = vsel %vm1774, %v3371, 0
        %v3479 = vsel %vm1774, %v3372, 0
        %v3482 = vsel %vm1774, %v3373, 0
        %v3485 = vsel %vm1774, %v3374, 0
        %v3488 = vsel %vm1774, %v3375, 0
        %v3491 = vsel %vm1774, %v3376, 0
        %v3494 = vsel %vm1774, %v3377, 0
        %v3497 = vsel %vm1774, %v3378, 0
        %v3500 = vsel %vm1774, %v3379, 0
        %v3503 = vsel %vm1774, %v3380, 0
        %v3506 = vsel %vm1774, %v3381, 0
        %v3509 = vsel %vm1774, %v3382, 0
        %v3512 = vsel %vm1774, %v3383, 0
        %v3515 = vsel %vm1774, %v3384, 0
        %v3518 = vsel %vm1774, %v3385, 0
        %v3521 = vsel %vm1774, %v3386, 0
        %v3524 = vsel %vm1774, %v3387, 0
        %v3527 = vsel %vm1774, %v3388, 0
        %v3530 = vsel %vm1774, %v3389, 0
        %v3533 = vsel %vm1774, %v3390, 0
        %v3536 = vsel %vm1774, %v3391, 0
        %v3539 = vsel %vm1774, %v3392, 0
        %3541 = vmatprep.subr.mxu0 0.0
        %3542 = vmatpush1.msra.mxu0 %v3394
        %3543 = vmatprep.subr.mxu0 0.0
        %3544 = vmatpush1.msra.mxu0 %v3395
        %3545 = vmatprep.subr.mxu0 0.0
        %3546 = vmatpush1.msra.mxu0 %v3396
        %3547 = vmatprep.subr.mxu0 0.0
        %3548 = vmatpush1.msra.mxu0 0.0
        %3549 = vmatprep.subr.mxu0 0.0
        %3550 = vmatpush1.msra.mxu0 0.0
        %3551 = vmatprep.subr.mxu0 0.0
        %3552 = vmatpush1.msra.mxu0 0.0
        %3553 = vmatprep.subr.mxu0 0.0
        %3554 = vmatpush1.msra.mxu0 0.0
        %3555 = vmatprep.subr.mxu0 0.0
        %3556 = vmatpush1.msra.mxu0 0.0
        %3557 = vmatprep.subr.mxu0 0.0
        %3558 = vmatpush1.msra.mxu0 0.0
        %3559 = vmatprep.subr.mxu0 0.0
        %3560 = vmatpush1.msra.mxu0 0.0
        %3561 = vmatprep.subr.mxu0 0.0
        %3562 = vmatpush1.msra.mxu0 0.0
        %3563 = vmatprep.subr.mxu0 0.0
        %3564 = vmatpush1.msra.mxu0 0.0
        %3565 = vmatprep.subr.mxu0 0.0
        %3566 = vmatpush1.msra.mxu0 0.0
        %3567 = vmatprep.subr.mxu0 0.0
        %3568 = vmatpush1.msra.mxu0 0.0
        %3569 = vmatprep.subr.mxu0 0.0
        %3570 = vmatpush1.msra.mxu0 0.0
        %3571 = vmatprep.subr.mxu0 0.0
        %3572 = vmatpush1.msra.mxu0 0.0
        %3573 = vmatprep.subr.mxu0 0.0
        %3574 = vmatpush1.msra.mxu0 0.0
        %3575 = vmatprep.subr.mxu0 0.0
        %3576 = vmatpush1.msra.mxu0 0.0
        %3577 = vmatprep.subr.mxu0 0.0
        %3578 = vmatpush1.msra.mxu0 0.0
        %3579 = vmatprep.subr.mxu0 0.0
        %3580 = vmatpush1.msra.mxu0 0.0
        %3581 = vmatprep.subr.mxu0 0.0
        %3582 = vmatpush1.msra.mxu0 0.0
        %3583 = vmatprep.subr.mxu0 0.0
        %3584 = vmatpush1.msra.mxu0 0.0
        %3585 = vmatprep.subr.mxu0 0.0
        %3586 = vmatpush1.msra.mxu0 0.0
        %3587 = vmatprep.subr.mxu0 0.0
        %3588 = vmatpush1.msra.mxu0 0.0
        %3589 = vmatprep.subr.mxu0 0.0
        %3590 = vmatpush1.msra.mxu0 0.0
        %3591 = vmatprep.subr.mxu0 0.0
        %3592 = vmatpush1.msra.mxu0 0.0
        %3593 = vmatprep.subr.mxu0 0.0
        %3594 = vmatpush1.msra.mxu0 0.0
        %3595 = vmatprep.subr.mxu0 0.0
        %3596 = vmatpush1.msra.mxu0 0.0
        %3597 = vmatprep.subr.mxu0 0.0
        %3598 = vmatpush1.msra.mxu0 0.0
        %3599 = vmatprep.subr.mxu0 0.0
        %3600 = vmatpush1.msra.mxu0 0.0
        %3601 = vmatprep.subr.mxu0 0.0
        %3602 = vmatpush1.msra.mxu0 0.0
        %3603 = vmatprep.subr.mxu0 0.0
        %3604 = vmatpush1.msra.mxu0 0.0
        %3605 = vmatprep.mubr.f32.mxu0 0.0
        %3606 = vmatmul.mubr.f32.gmra.mrb[0].mxu0 %v3398
        %v3607 = vpop.f32.mrb[0].mxu0
        %v3608 = vadd.f32 0.0, %v3607
        %v3609 = vpop.f32.mrb[0].mxu0
        %3610 = vmatprep.mubr.f32.mxu0 0.0
        %3611 = vmatmul.mubr.f32.gmra.mrb[0].mxu0 %v3401
        %v3612 = vpop.f32.mrb[0].mxu0
        %v3613 = vadd.f32 0.0, %v3612
        %v3614 = vpop.f32.mrb[0].mxu0
        %3615 = vmatprep.mubr.f32.mxu0 0.0
        %3616 = vmatmul.mubr.f32.gmra.mrb[0].mxu0 %v3404
        %v3617 = vpop.f32.mrb[0].mxu0
        %v3618 = vadd.f32 0.0, %v3617
        %v3619 = vpop.f32.mrb[0].mxu0
        %3620 = vmatprep.mubr.f32.mxu0 0.0
        %3621 = vmatmul.mubr.f32.gmra.mrb[0].mxu0 %v3407
        %v3622 = vpop.f32.mrb[0].mxu0
        %v3623 = vadd.f32 0.0, %v3622
        %v3624 = vpop.f32.mrb[0].mxu0
        %3625 = vmatprep.mubr.f32.mxu0 0.0
        %3626 = vmatmul.mubr.f32.gmra.mrb[0].mxu0 %v3410
        %v3627 = vpop.f32.mrb[0].mxu0
        %v3628 = vadd.f32 0.0, %v3627
        %v3629 = vpop.f32.mrb[0].mxu0
        %3630 = vmatprep.mubr.f32.mxu0 0.0
        %3631 = vmatmul.mubr.f32.gmra.mrb[0].mxu0 %v3413
        %v3632 = vpop.f32.mrb[0].mxu0
        %v3633 = vadd.f32 0.0, %v3632
        %v3634 = vpop.f32.mrb[0].mxu0
        %3635 = vmatprep.mubr.f32.mxu0 0.0
        %3636 = vmatmul.mubr.f32.gmra.mrb[0].mxu0 %v3416
        %v3637 = vpop.f32.mrb[0].mxu0
        %v3638 = vadd.f32 0.0, %v3637
        %v3639 = vpop.f32.mrb[0].mxu0
        %3640 = vmatprep.mubr.f32.mxu0 0.0
        %3641 = vmatmul.mubr.f32.gmra.mrb[0].mxu0 %v3419
        %v3642 = vpop.f32.mrb[0].mxu0
        %v3643 = vadd.f32 0.0, %v3642
        %v3644 = vpop.f32.mrb[0].mxu0
        %3645 = vmatprep.mubr.f32.mxu0 0.0
        %3646 = vmatmul.mubr.f32.gmra.mrb[0].mxu0 %v3422
        %v3647 = vpop.f32.mrb[0].mxu0
        %v3648 = vadd.f32 0.0, %v3647
        %v3649 = vpop.f32.mrb[0].mxu0
        %3650 = vmatprep.mubr.f32.mxu0 0.0
        %3651 = vmatmul.mubr.f32.gmra.mrb[0].mxu0 %v3425
        %v3652 = vpop.f32.mrb[0].mxu0
        %v3653 = vadd.f32 0.0, %v3652
        %v3654 = vpop.f32.mrb[0].mxu0
        %3655 = vmatprep.mubr.f32.mxu0 0.0
        %3656 = vmatmul.mubr.f32.gmra.mrb[0].mxu0 %v3428
        %v3657 = vpop.f32.mrb[0].mxu0
        %v3658 = vadd.f32 0.0, %v3657
        %v3659 = vpop.f32.mrb[0].mxu0
        %3660 = vmatprep.mubr.f32.mxu0 0.0
        %3661 = vmatmul.mubr.f32.gmra.mrb[0].mxu0 %v3431
        %v3662 = vpop.f32.mrb[0].mxu0
        %v3663 = vadd.f32 0.0, %v3662
        %v3664 = vpop.f32.mrb[0].mxu0
        %3665 = vmatprep.mubr.f32.mxu0 0.0
        %3666 = vmatmul.mubr.f32.gmra.mrb[0].mxu0 %v3434
        %v3667 = vpop.f32.mrb[0].mxu0
        %v3668 = vadd.f32 0.0, %v3667
        %v3669 = vpop.f32.mrb[0].mxu0
        %3670 = vmatprep.mubr.f32.mxu0 0.0
        %3671 = vmatmul.mubr.f32.gmra.mrb[0].mxu0 %v3437
        %v3672 = vpop.f32.mrb[0].mxu0
        %v3673 = vadd.f32 0.0, %v3672
        %v3674 = vpop.f32.mrb[0].mxu0
        %3675 = vmatprep.mubr.f32.mxu0 0.0
        %3676 = vmatmul.mubr.f32.gmra.mrb[0].mxu0 %v3440
        %v3677 = vpop.f32.mrb[0].mxu0
        %v3678 = vadd.f32 0.0, %v3677
        %v3679 = vpop.f32.mrb[0].mxu0
        %3680 = vmatprep.mubr.f32.mxu0 0.0
        %3681 = vmatmul.mubr.f32.gmra.mrb[0].mxu0 %v3443
        %v3682 = vpop.f32.mrb[0].mxu0
        %v3683 = vadd.f32 0.0, %v3682
        %v3684 = vpop.f32.mrb[0].mxu0
        %3685 = vmatprep.mubr.f32.mxu0 0.0
        %3686 = vmatmul.mubr.f32.gmra.mrb[0].mxu0 %v3446
        %v3687 = vpop.f32.mrb[0].mxu0
        %v3688 = vadd.f32 0.0, %v3687
        %v3689 = vpop.f32.mrb[0].mxu0
        %3690 = vmatprep.mubr.f32.mxu0 0.0
        %3691 = vmatmul.mubr.f32.gmra.mrb[0].mxu0 %v3449
        %v3692 = vpop.f32.mrb[0].mxu0
        %v3693 = vadd.f32 0.0, %v3692
        %v3694 = vpop.f32.mrb[0].mxu0
        %3695 = vmatprep.mubr.f32.mxu0 0.0
        %3696 = vmatmul.mubr.f32.gmra.mrb[0].mxu0 %v3452
        %v3697 = vpop.f32.mrb[0].mxu0
        %v3698 = vadd.f32 0.0, %v3697
        %v3699 = vpop.f32.mrb[0].mxu0
        %3700 = vmatprep.mubr.f32.mxu0 0.0
        %3701 = vmatmul.mubr.f32.gmra.mrb[0].mxu0 %v3455
        %v3702 = vpop.f32.mrb[0].mxu0
        %v3703 = vadd.f32 0.0, %v3702
        %v3704 = vpop.f32.mrb[0].mxu0
        %3705 = vmatprep.mubr.f32.mxu0 0.0
        %3706 = vmatmul.mubr.f32.gmra.mrb[0].mxu0 %v3458
        %v3707 = vpop.f32.mrb[0].mxu0
        %v3708 = vadd.f32 0.0, %v3707
        %v3709 = vpop.f32.mrb[0].mxu0
        %3710 = vmatprep.mubr.f32.mxu0 0.0
        %3711 = vmatmul.mubr.f32.gmra.mrb[0].mxu0 %v3461
        %v3712 = vpop.f32.mrb[0].mxu0
        %v3713 = vadd.f32 0.0, %v3712
        %v3714 = vpop.f32.mrb[0].mxu0
        %3715 = vmatprep.mubr.f32.mxu0 0.0
        %3716 = vmatmul.mubr.f32.gmra.mrb[0].mxu0 %v3464
        %v3717 = vpop.f32.mrb[0].mxu0
        %v3718 = vadd.f32 0.0, %v3717
        %v3719 = vpop.f32.mrb[0].mxu0
        %3720 = vmatprep.mubr.f32.mxu0 0.0
        %3721 = vmatmul.mubr.f32.gmra.mrb[0].mxu0 %v3467
        %v3722 = vpop.f32.mrb[0].mxu0
        %v3723 = vadd.f32 0.0, %v3722
        %v3724 = vpop.f32.mrb[0].mxu0
        %3725 = vmatprep.mubr.f32.mxu0 0.0
        %3726 = vmatmul.mubr.f32.gmra.mrb[0].mxu0 %v3470
        %v3727 = vpop.f32.mrb[0].mxu0
        %v3728 = vadd.f32 0.0, %v3727
        %v3729 = vpop.f32.mrb[0].mxu0
        %3730 = vmatprep.mubr.f32.mxu0 0.0
        %3731 = vmatmul.mubr.f32.gmra.mrb[0].mxu0 %v3473
        %v3732 = vpop.f32.mrb[0].mxu0
        %v3733 = vadd.f32 0.0, %v3732
        %v3734 = vpop.f32.mrb[0].mxu0
        %3735 = vmatprep.mubr.f32.mxu0 0.0
        %3736 = vmatmul.mubr.f32.gmra.mrb[0].mxu0 %v3476
        %v3737 = vpop.f32.mrb[0].mxu0
        %v3738 = vadd.f32 0.0, %v3737
        %v3739 = vpop.f32.mrb[0].mxu0
        %3740 = vmatprep.mubr.f32.mxu0 0.0
        %3741 = vmatmul.mubr.f32.gmra.mrb[0].mxu0 %v3479
        %v3742 = vpop.f32.mrb[0].mxu0
        %v3743 = vadd.f32 0.0, %v3742
        %v3744 = vpop.f32.mrb[0].mxu0
        %3745 = vmatprep.mubr.f32.mxu0 0.0
        %3746 = vmatmul.mubr.f32.gmra.mrb[0].mxu0 %v3482
        %v3747 = vpop.f32.mrb[0].mxu0
        %v3748 = vadd.f32 0.0, %v3747
        %v3749 = vpop.f32.mrb[0].mxu0
        %3750 = vmatprep.mubr.f32.mxu0 0.0
        %3751 = vmatmul.mubr.f32.gmra.mrb[0].mxu0 %v3485
        %v3752 = vpop.f32.mrb[0].mxu0
        %v3753 = vadd.f32 0.0, %v3752
        %v3754 = vpop.f32.mrb[0].mxu0
        %3755 = vmatprep.mubr.f32.mxu0 0.0
        %3756 = vmatmul.mubr.f32.gmra.mrb[0].mxu0 %v3488
        %v3757 = vpop.f32.mrb[0].mxu0
        %v3758 = vadd.f32 0.0, %v3757
        %v3759 = vpop.f32.mrb[0].mxu0
        %3760 = vmatprep.mubr.f32.mxu0 0.0
        %3761 = vmatmul.mubr.f32.gmra.mrb[0].mxu0 %v3491
        %v3762 = vpop.f32.mrb[0].mxu0
        %v3763 = vadd.f32 0.0, %v3762
        %v3764 = vpop.f32.mrb[0].mxu0
        %3765 = vmatprep.mubr.f32.mxu0 0.0
        %3766 = vmatmul.mubr.f32.gmra.mrb[0].mxu0 %v3494
        %v3767 = vpop.f32.mrb[0].mxu0
        %v3768 = vadd.f32 0.0, %v3767
        %v3769 = vpop.f32.mrb[0].mxu0
        %3770 = vmatprep.mubr.f32.mxu0 0.0
        %3771 = vmatmul.mubr.f32.gmra.mrb[0].mxu0 %v3497
        %v3772 = vpop.f32.mrb[0].mxu0
        %v3773 = vadd.f32 0.0, %v3772
        %v3774 = vpop.f32.mrb[0].mxu0
        %3775 = vmatprep.mubr.f32.mxu0 0.0
        %3776 = vmatmul.mubr.f32.gmra.mrb[0].mxu0 %v3500
        %v3777 = vpop.f32.mrb[0].mxu0
        %v3778 = vadd.f32 0.0, %v3777
        %v3779 = vpop.f32.mrb[0].mxu0
        %3780 = vmatprep.mubr.f32.mxu0 0.0
        %3781 = vmatmul.mubr.f32.gmra.mrb[0].mxu0 %v3503
        %v3782 = vpop.f32.mrb[0].mxu0
        %v3783 = vadd.f32 0.0, %v3782
        %v3784 = vpop.f32.mrb[0].mxu0
        %3785 = vmatprep.mubr.f32.mxu0 0.0
        %3786 = vmatmul.mubr.f32.gmra.mrb[0].mxu0 %v3506
        %v3787 = vpop.f32.mrb[0].mxu0
        %v3788 = vadd.f32 0.0, %v3787
        %v3789 = vpop.f32.mrb[0].mxu0
        %3790 = vmatprep.mubr.f32.mxu0 0.0
        %3791 = vmatmul.mubr.f32.gmra.mrb[0].mxu0 %v3509
        %v3792 = vpop.f32.mrb[0].mxu0
        %v3793 = vadd.f32 0.0, %v3792
        %v3794 = vpop.f32.mrb[0].mxu0
        %3795 = vmatprep.mubr.f32.mxu0 0.0
        %3796 = vmatmul.mubr.f32.gmra.mrb[0].mxu0 %v3512
        %v3797 = vpop.f32.mrb[0].mxu0
        %v3798 = vadd.f32 0.0, %v3797
        %v3799 = vpop.f32.mrb[0].mxu0
        %3800 = vmatprep.mubr.f32.mxu0 0.0
        %3801 = vmatmul.mubr.f32.gmra.mrb[0].mxu0 %v3515
        %v3802 = vpop.f32.mrb[0].mxu0
        %v3803 = vadd.f32 0.0, %v3802
        %v3804 = vpop.f32.mrb[0].mxu0
        %3805 = vmatprep.mubr.f32.mxu0 0.0
        %3806 = vmatmul.mubr.f32.gmra.mrb[0].mxu0 %v3518
        %v3807 = vpop.f32.mrb[0].mxu0
        %v3808 = vadd.f32 0.0, %v3807
        %v3809 = vpop.f32.mrb[0].mxu0
        %3810 = vmatprep.mubr.f32.mxu0 0.0
        %3811 = vmatmul.mubr.f32.gmra.mrb[0].mxu0 %v3521
        %v3812 = vpop.f32.mrb[0].mxu0
        %v3813 = vadd.f32 0.0, %v3812
        %v3814 = vpop.f32.mrb[0].mxu0
        %3815 = vmatprep.mubr.f32.mxu0 0.0
        %3816 = vmatmul.mubr.f32.gmra.mrb[0].mxu0 %v3524
        %v3817 = vpop.f32.mrb[0].mxu0
        %v3818 = vadd.f32 0.0, %v3817
        %v3819 = vpop.f32.mrb[0].mxu0
        %3820 = vmatprep.mubr.f32.mxu0 0.0
        %3821 = vmatmul.mubr.f32.gmra.mrb[0].mxu0 %v3527
        %v3822 = vpop.f32.mrb[0].mxu0
        %v3823 = vadd.f32 0.0, %v3822
        %v3824 = vpop.f32.mrb[0].mxu0
        %3825 = vmatprep.mubr.f32.mxu0 0.0
        %3826 = vmatmul.mubr.f32.gmra.mrb[0].mxu0 %v3530
        %v3827 = vpop.f32.mrb[0].mxu0
        %v3828 = vadd.f32 0.0, %v3827
        %v3829 = vpop.f32.mrb[0].mxu0
        %3830 = vmatprep.mubr.f32.mxu0 0.0
        %3831 = vmatmul.mubr.f32.gmra.mrb[0].mxu0 %v3533
        %v3832 = vpop.f32.mrb[0].mxu0
        %v3833 = vadd.f32 0.0, %v3832
        %v3834 = vpop.f32.mrb[0].mxu0
        %3835 = vmatprep.mubr.f32.mxu0 0.0
        %3836 = vmatmul.mubr.f32.gmra.mrb[0].mxu0 %v3536
        %v3837 = vpop.f32.mrb[0].mxu0
        %v3838 = vadd.f32 0.0, %v3837
        %v3839 = vpop.f32.mrb[0].mxu0
        %3840 = vmatprep.mubr.f32.mxu0 0.0
        %3841 = vmatmul.mubr.f32.gmra.mrb[0].mxu0 %v3539
        %v3842 = vpop.f32.mrb[0].mxu0
        %v3843 = vadd.f32 0.0, %v3842
        %v3844 = vpop.f32.mrb[0].mxu0
        %3845 = vdwg.mxu0
        %v3846 = vadd.f32 %v2435, %v3608
        %v3847 = vadd.f32 %v2440, %v3613
        %v3848 = vadd.f32 %v2445, %v3618
        %v3849 = vadd.f32 %v2450, %v3623
        %v3850 = vadd.f32 %v2455, %v3628
        %v3851 = vadd.f32 %v2460, %v3633
        %v3852 = vadd.f32 %v2465, %v3638
        %v3853 = vadd.f32 %v2470, %v3643
        %v3854 = vadd.f32 %v2475, %v3648
        %v3855 = vadd.f32 %v2480, %v3653
        %v3856 = vadd.f32 %v2485, %v3658
        %v3857 = vadd.f32 %v2490, %v3663
        %v3858 = vadd.f32 %v2495, %v3668
        %v3859 = vadd.f32 %v2500, %v3673
        %v3860 = vadd.f32 %v2505, %v3678
        %v3861 = vadd.f32 %v2510, %v3683
        %v3862 = vadd.f32 %v2515, %v3688
        %v3863 = vadd.f32 %v2520, %v3693
        %v3864 = vadd.f32 %v2525, %v3698
        %v3865 = vadd.f32 %v2530, %v3703
        %v3866 = vadd.f32 %v2535, %v3708
        %v3867 = vadd.f32 %v2540, %v3713
        %v3868 = vadd.f32 %v2545, %v3718
        %v3869 = vadd.f32 %v2550, %v3723
        %v3870 = vadd.f32 %v2555, %v3728
        %v3871 = vadd.f32 %v2560, %v3733
        %v3872 = vadd.f32 %v2565, %v3738
        %v3873 = vadd.f32 %v2570, %v3743
        %v3874 = vadd.f32 %v2575, %v3748
        %v3875 = vadd.f32 %v2580, %v3753
        %v3876 = vadd.f32 %v2585, %v3758
        %v3877 = vadd.f32 %v2590, %v3763
        %v3878 = vadd.f32 %v2595, %v3768
        %v3879 = vadd.f32 %v2600, %v3773
        %v3880 = vadd.f32 %v2605, %v3778
        %v3881 = vadd.f32 %v2610, %v3783
        %v3882 = vadd.f32 %v2615, %v3788
        %v3883 = vadd.f32 %v2620, %v3793
        %v3884 = vadd.f32 %v2625, %v3798
        %v3885 = vadd.f32 %v2630, %v3803
        %v3886 = vadd.f32 %v2635, %v3808
        %v3887 = vadd.f32 %v2640, %v3813
        %v3888 = vadd.f32 %v2645, %v3818
        %v3889 = vadd.f32 %v2650, %v3823
        %v3890 = vadd.f32 %v2655, %v3828
        %v3891 = vadd.f32 %v2660, %v3833
        %v3892 = vadd.f32 %v2665, %v3838
        %v3893 = vadd.f32 %v2670, %v3843
        %v3894 = vld [vmem:[%s2] sm:$0x1]
        %v3896 = vlaneseq
        %v3897 = vshrl.u32 %v3896, 7
        %v3898 = vsub.s32 0, %v3897
        %v3899 = vrot.slane %v3894, %v3898
        %v3901 = vadd.f32 %v3846, %v3899
        %v3902 = vadd.f32 %v3847, %v3899
        %v3903 = vadd.f32 %v3848, %v3899
        %v3904 = vadd.f32 %v3849, %v3899
        %v3905 = vadd.f32 %v3850, %v3899
        %v3906 = vadd.f32 %v3851, %v3899
        %v3907 = vadd.f32 %v3852, %v3899
        %v3908 = vadd.f32 %v3853, %v3899
        %v3909 = vadd.f32 %v3854, %v3899
        %v3910 = vadd.f32 %v3855, %v3899
        %v3911 = vadd.f32 %v3856, %v3899
        %v3912 = vadd.f32 %v3857, %v3899
        %v3913 = vadd.f32 %v3858, %v3899
        %v3914 = vadd.f32 %v3859, %v3899
        %v3915 = vadd.f32 %v3860, %v3899
        %v3916 = vadd.f32 %v3861, %v3899
        %v3917 = vadd.f32 %v3862, %v3899
        %v3918 = vadd.f32 %v3863, %v3899
        %v3919 = vadd.f32 %v3864, %v3899
        %v3920 = vadd.f32 %v3865, %v3899
        %v3921 = vadd.f32 %v3866, %v3899
        %v3922 = vadd.f32 %v3867, %v3899
        %v3923 = vadd.f32 %v3868, %v3899
        %v3924 = vadd.f32 %v3869, %v3899
        %v3925 = vadd.f32 %v3870, %v3899
        %v3926 = vadd.f32 %v3871, %v3899
        %v3927 = vadd.f32 %v3872, %v3899
        %v3928 = vadd.f32 %v3873, %v3899
        %v3929 = vadd.f32 %v3874, %v3899
        %v3930 = vadd.f32 %v3875, %v3899
        %v3931 = vadd.f32 %v3876, %v3899
        %v3932 = vadd.f32 %v3877, %v3899
        %v3933 = vadd.f32 %v3878, %v3899
        %v3934 = vadd.f32 %v3879, %v3899
        %v3935 = vadd.f32 %v3880, %v3899
        %v3936 = vadd.f32 %v3881, %v3899
        %v3937 = vadd.f32 %v3882, %v3899
        %v3938 = vadd.f32 %v3883, %v3899
        %v3939 = vadd.f32 %v3884, %v3899
        %v3940 = vadd.f32 %v3885, %v3899
        %v3941 = vadd.f32 %v3886, %v3899
        %v3942 = vadd.f32 %v3887, %v3899
        %v3943 = vadd.f32 %v3888, %v3899
        %v3944 = vadd.f32 %v3889, %v3899
        %v3945 = vadd.f32 %v3890, %v3899
        %v3946 = vadd.f32 %v3891, %v3899
        %v3947 = vadd.f32 %v3892, %v3899
        %v3948 = vadd.f32 %v3893, %v3899
        %v3949 = vmax.f32 %v3901, 0.0
        %v3950 = vmax.f32 %v3902, 0.0
        %v3951 = vmax.f32 %v3903, 0.0
        %v3952 = vmax.f32 %v3904, 0.0
        %v3953 = vmax.f32 %v3905, 0.0
        %v3954 = vmax.f32 %v3906, 0.0
        %v3955 = vmax.f32 %v3907, 0.0
        %v3956 = vmax.f32 %v3908, 0.0
        %v3957 = vmax.f32 %v3909, 0.0
        %v3958 = vmax.f32 %v3910, 0.0
        %v3959 = vmax.f32 %v3911, 0.0
        %v3960 = vmax.f32 %v3912, 0.0
        %v3961 = vmax.f32 %v3913, 0.0
        %v3962 = vmax.f32 %v3914, 0.0
        %v3963 = vmax.f32 %v3915, 0.0
        %v3964 = vmax.f32 %v3916, 0.0
        %v3965 = vmax.f32 %v3917, 0.0
        %v3966 = vmax.f32 %v3918, 0.0
        %v3967 = vmax.f32 %v3919, 0.0
        %v3968 = vmax.f32 %v3920, 0.0
        %v3969 = vmax.f32 %v3921, 0.0
        %v3970 = vmax.f32 %v3922, 0.0
        %v3971 = vmax.f32 %v3923, 0.0
        %v3972 = vmax.f32 %v3924, 0.0
        %v3973 = vmax.f32 %v3925, 0.0
        %v3974 = vmax.f32 %v3926, 0.0
        %v3975 = vmax.f32 %v3927, 0.0
        %v3976 = vmax.f32 %v3928, 0.0
        %v3977 = vmax.f32 %v3929, 0.0
        %v3978 = vmax.f32 %v3930, 0.0
        %v3979 = vmax.f32 %v3931, 0.0
        %v3980 = vmax.f32 %v3932, 0.0
        %v3981 = vmax.f32 %v3933, 0.0
        %v3982 = vmax.f32 %v3934, 0.0
        %v3983 = vmax.f32 %v3935, 0.0
        %v3984 = vmax.f32 %v3936, 0.0
        %v3985 = vmax.f32 %v3937, 0.0
        %v3986 = vmax.f32 %v3938, 0.0
        %v3987 = vmax.f32 %v3939, 0.0
        %v3988 = vmax.f32 %v3940, 0.0
        %v3989 = vmax.f32 %v3941, 0.0
        %v3990 = vmax.f32 %v3942, 0.0
        %v3991 = vmax.f32 %v3943, 0.0
        %v3992 = vmax.f32 %v3944, 0.0
        %v3993 = vmax.f32 %v3945, 0.0
        %v3994 = vmax.f32 %v3946, 0.0
        %v3995 = vmax.f32 %v3947, 0.0
        %v3996 = vmax.f32 %v3948, 0.0
        %v3997 = vlaneseq
        %v3998 = vshrl.u32 %v3997, 7
        %v3999 = vadd.s32 %v3998, 8
        %v4000 = vadd.s32 %v3998, 16
        %v4001 = vadd.s32 %v3998, 24
        %v4002 = vadd.s32 %v3998, 32
        %v4003 = vadd.s32 %v3998, 40
        %v4004 = vadd.s32 %v3998, 48
        %v4005 = vadd.s32 %v3998, 56
        %v4006 = vadd.s32 %v3998, 64
        %v4007 = vadd.s32 %v3998, 72
        %v4008 = vadd.s32 %v3998, 80
        %v4009 = vadd.s32 %v3998, 88
        %v4010 = vadd.s32 %v3998, 96
        %v4011 = vadd.s32 %v3998, 104
        %v4012 = vadd.s32 %v3998, 112
        %v4013 = vadd.s32 %v3998, 120
        %v4014 = vadd.s32 %v3998, 128
        %v4015 = vadd.s32 %v3998, 136
        %v4016 = vadd.s32 %v3998, 144
        %v4017 = vadd.s32 %v3998, 152
        %v4018 = vadd.s32 %v3998, 160
        %v4019 = vadd.s32 %v3998, 168
        %v4020 = vadd.s32 %v3998, 176
        %v4021 = vadd.s32 %v3998, 184
        %v4022 = vadd.s32 %v3998, 192
        %v4023 = vadd.s32 %v3998, 200
        %v4024 = vadd.s32 %v3998, 208
        %v4025 = vadd.s32 %v3998, 216
        %v4026 = vadd.s32 %v3998, 224
        %v4027 = vadd.s32 %v3998, 232
        %v4028 = vadd.s32 %v3998, 240
        %v4029 = vadd.s32 %v3998, 248
        %v4030 = vadd.s32 %v3998, 256
        %v4031 = vadd.s32 %v3998, 264
        %v4032 = vadd.s32 %v3998, 272
        %v4033 = vadd.s32 %v3998, 280
        %v4034 = vadd.s32 %v3998, 288
        %v4035 = vadd.s32 %v3998, 296
        %v4036 = vadd.s32 %v3998, 304
        %v4037 = vadd.s32 %v3998, 312
        %v4038 = vadd.s32 %v3998, 320
        %v4039 = vadd.s32 %v3998, 328
        %v4040 = vadd.s32 %v3998, 336
        %v4041 = vadd.s32 %v3998, 344
        %v4042 = vadd.s32 %v3998, 352
        %v4043 = vadd.s32 %v3998, 360
        %v4044 = vadd.s32 %v3998, 368
        %v4045 = vadd.s32 %v3998, 376
        %vm4046 = vcmp.lt.s32.totalorder %v3998, 0
        %v4047 = vsub.s32 0, %v3998
        %v4048 = vsel %vm4046, %v4047, %v3998
        %v4049 = vmul.u32.u64.compose %v4048, 2863311531
        %v4050 = vextract.low.u32 %v4049
        %v4051 = vextract.high.u32 %v4049
        %v4052 = vshrl.u32 %v4051, 4
        %v4053 = vmul.u32 %v4052, 24
        %v4054 = vsub.s32 %v4048, %v4053
        %v4055 = vsub.s32 0, %v4054
        %v4056 = vsel %vm4046, %v4055, %v4054
        %vm4057 = vcmp.lt.s32.totalorder %v3999, 0
        %v4058 = vsub.s32 0, %v3999
        %v4059 = vsel %vm4057, %v4058, %v3999
        %v4060 = vmul.u32.u64.compose %v4059, 2863311531
        %v4061 = vextract.low.u32 %v4060
        %v4062 = vextract.high.u32 %v4060
        %v4063 = vshrl.u32 %v4062, 4
        %v4064 = vmul.u32 %v4063, 24
        %v4065 = vsub.s32 %v4059, %v4064
        %v4066 = vsub.s32 0, %v4065
        %v4067 = vsel %vm4057, %v4066, %v4065
        %vm4068 = vcmp.lt.s32.totalorder %v4000, 0
        %v4069 = vsub.s32 0, %v4000
        %v4070 = vsel %vm4068, %v4069, %v4000
        %v4071 = vmul.u32.u64.compose %v4070, 2863311531
        %v4072 = vextract.low.u32 %v4071
        %v4073 = vextract.high.u32 %v4071
        %v4074 = vshrl.u32 %v4073, 4
        %v4075 = vmul.u32 %v4074, 24
        %v4076 = vsub.s32 %v4070, %v4075
        %v4077 = vsub.s32 0, %v4076
        %v4078 = vsel %vm4068, %v4077, %v4076
        %vm4079 = vcmp.lt.s32.totalorder %v4001, 0
        %v4080 = vsub.s32 0, %v4001
        %v4081 = vsel %vm4079, %v4080, %v4001
        %v4082 = vmul.u32.u64.compose %v4081, 2863311531
        %v4083 = vextract.low.u32 %v4082
        %v4084 = vextract.high.u32 %v4082
        %v4085 = vshrl.u32 %v4084, 4
        %v4086 = vmul.u32 %v4085, 24
        %v4087 = vsub.s32 %v4081, %v4086
        %v4088 = vsub.s32 0, %v4087
        %v4089 = vsel %vm4079, %v4088, %v4087
        %vm4090 = vcmp.lt.s32.totalorder %v4002, 0
        %v4091 = vsub.s32 0, %v4002
        %v4092 = vsel %vm4090, %v4091, %v4002
        %v4093 = vmul.u32.u64.compose %v4092, 2863311531
        %v4094 = vextract.low.u32 %v4093
        %v4095 = vextract.high.u32 %v4093
        %v4096 = vshrl.u32 %v4095, 4
        %v4097 = vmul.u32 %v4096, 24
        %v4098 = vsub.s32 %v4092, %v4097
        %v4099 = vsub.s32 0, %v4098
        %v4100 = vsel %vm4090, %v4099, %v4098
        %vm4101 = vcmp.lt.s32.totalorder %v4003, 0
        %v4102 = vsub.s32 0, %v4003
        %v4103 = vsel %vm4101, %v4102, %v4003
        %v4104 = vmul.u32.u64.compose %v4103, 2863311531
        %v4105 = vextract.low.u32 %v4104
        %v4106 = vextract.high.u32 %v4104
        %v4107 = vshrl.u32 %v4106, 4
        %v4108 = vmul.u32 %v4107, 24
        %v4109 = vsub.s32 %v4103, %v4108
        %v4110 = vsub.s32 0, %v4109
        %v4111 = vsel %vm4101, %v4110, %v4109
        %vm4112 = vcmp.lt.s32.totalorder %v4004, 0
        %v4113 = vsub.s32 0, %v4004
        %v4114 = vsel %vm4112, %v4113, %v4004
        %v4115 = vmul.u32.u64.compose %v4114, 2863311531
        %v4116 = vextract.low.u32 %v4115
        %v4117 = vextract.high.u32 %v4115
        %v4118 = vshrl.u32 %v4117, 4
        %v4119 = vmul.u32 %v4118, 24
        %v4120 = vsub.s32 %v4114, %v4119
        %v4121 = vsub.s32 0, %v4120
        %v4122 = vsel %vm4112, %v4121, %v4120
        %vm4123 = vcmp.lt.s32.totalorder %v4005, 0
        %v4124 = vsub.s32 0, %v4005
        %v4125 = vsel %vm4123, %v4124, %v4005
        %v4126 = vmul.u32.u64.compose %v4125, 2863311531
        %v4127 = vextract.low.u32 %v4126
        %v4128 = vextract.high.u32 %v4126
        %v4129 = vshrl.u32 %v4128, 4
        %v4130 = vmul.u32 %v4129, 24
        %v4131 = vsub.s32 %v4125, %v4130
        %v4132 = vsub.s32 0, %v4131
        %v4133 = vsel %vm4123, %v4132, %v4131
        %vm4134 = vcmp.lt.s32.totalorder %v4006, 0
        %v4135 = vsub.s32 0, %v4006
        %v4136 = vsel %vm4134, %v4135, %v4006
        %v4137 = vmul.u32.u64.compose %v4136, 2863311531
        %v4138 = vextract.low.u32 %v4137
        %v4139 = vextract.high.u32 %v4137
        %v4140 = vshrl.u32 %v4139, 4
        %v4141 = vmul.u32 %v4140, 24
        %v4142 = vsub.s32 %v4136, %v4141
        %v4143 = vsub.s32 0, %v4142
        %v4144 = vsel %vm4134, %v4143, %v4142
        %vm4145 = vcmp.lt.s32.totalorder %v4007, 0
        %v4146 = vsub.s32 0, %v4007
        %v4147 = vsel %vm4145, %v4146, %v4007
        %v4148 = vmul.u32.u64.compose %v4147, 2863311531
        %v4149 = vextract.low.u32 %v4148
        %v4150 = vextract.high.u32 %v4148
        %v4151 = vshrl.u32 %v4150, 4
        %v4152 = vmul.u32 %v4151, 24
        %v4153 = vsub.s32 %v4147, %v4152
        %v4154 = vsub.s32 0, %v4153
        %v4155 = vsel %vm4145, %v4154, %v4153
        %vm4156 = vcmp.lt.s32.totalorder %v4008, 0
        %v4157 = vsub.s32 0, %v4008
        %v4158 = vsel %vm4156, %v4157, %v4008
        %v4159 = vmul.u32.u64.compose %v4158, 2863311531
        %v4160 = vextract.low.u32 %v4159
        %v4161 = vextract.high.u32 %v4159
        %v4162 = vshrl.u32 %v4161, 4
        %v4163 = vmul.u32 %v4162, 24
        %v4164 = vsub.s32 %v4158, %v4163
        %v4165 = vsub.s32 0, %v4164
        %v4166 = vsel %vm4156, %v4165, %v4164
        %vm4167 = vcmp.lt.s32.totalorder %v4009, 0
        %v4168 = vsub.s32 0, %v4009
        %v4169 = vsel %vm4167, %v4168, %v4009
        %v4170 = vmul.u32.u64.compose %v4169, 2863311531
        %v4171 = vextract.low.u32 %v4170
        %v4172 = vextract.high.u32 %v4170
        %v4173 = vshrl.u32 %v4172, 4
        %v4174 = vmul.u32 %v4173, 24
        %v4175 = vsub.s32 %v4169, %v4174
        %v4176 = vsub.s32 0, %v4175
        %v4177 = vsel %vm4167, %v4176, %v4175
        %vm4178 = vcmp.lt.s32.totalorder %v4010, 0
        %v4179 = vsub.s32 0, %v4010
        %v4180 = vsel %vm4178, %v4179, %v4010
        %v4181 = vmul.u32.u64.compose %v4180, 2863311531
        %v4182 = vextract.low.u32 %v4181
        %v4183 = vextract.high.u32 %v4181
        %v4184 = vshrl.u32 %v4183, 4
        %v4185 = vmul.u32 %v4184, 24
        %v4186 = vsub.s32 %v4180, %v4185
        %v4187 = vsub.s32 0, %v4186
        %v4188 = vsel %vm4178, %v4187, %v4186
        %vm4189 = vcmp.lt.s32.totalorder %v4011, 0
        %v4190 = vsub.s32 0, %v4011
        %v4191 = vsel %vm4189, %v4190, %v4011
        %v4192 = vmul.u32.u64.compose %v4191, 2863311531
        %v4193 = vextract.low.u32 %v4192
        %v4194 = vextract.high.u32 %v4192
        %v4195 = vshrl.u32 %v4194, 4
        %v4196 = vmul.u32 %v4195, 24
        %v4197 = vsub.s32 %v4191, %v4196
        %v4198 = vsub.s32 0, %v4197
        %v4199 = vsel %vm4189, %v4198, %v4197
        %vm4200 = vcmp.lt.s32.totalorder %v4012, 0
        %v4201 = vsub.s32 0, %v4012
        %v4202 = vsel %vm4200, %v4201, %v4012
        %v4203 = vmul.u32.u64.compose %v4202, 2863311531
        %v4204 = vextract.low.u32 %v4203
        %v4205 = vextract.high.u32 %v4203
        %v4206 = vshrl.u32 %v4205, 4
        %v4207 = vmul.u32 %v4206, 24
        %v4208 = vsub.s32 %v4202, %v4207
        %v4209 = vsub.s32 0, %v4208
        %v4210 = vsel %vm4200, %v4209, %v4208
        %vm4211 = vcmp.lt.s32.totalorder %v4013, 0
        %v4212 = vsub.s32 0, %v4013
        %v4213 = vsel %vm4211, %v4212, %v4013
        %v4214 = vmul.u32.u64.compose %v4213, 2863311531
        %v4215 = vextract.low.u32 %v4214
        %v4216 = vextract.high.u32 %v4214
        %v4217 = vshrl.u32 %v4216, 4
        %v4218 = vmul.u32 %v4217, 24
        %v4219 = vsub.s32 %v4213, %v4218
        %v4220 = vsub.s32 0, %v4219
        %v4221 = vsel %vm4211, %v4220, %v4219
        %vm4222 = vcmp.lt.s32.totalorder %v4014, 0
        %v4223 = vsub.s32 0, %v4014
        %v4224 = vsel %vm4222, %v4223, %v4014
        %v4225 = vmul.u32.u64.compose %v4224, 2863311531
        %v4226 = vextract.low.u32 %v4225
        %v4227 = vextract.high.u32 %v4225
        %v4228 = vshrl.u32 %v4227, 4
        %v4229 = vmul.u32 %v4228, 24
        %v4230 = vsub.s32 %v4224, %v4229
        %v4231 = vsub.s32 0, %v4230
        %v4232 = vsel %vm4222, %v4231, %v4230
        %vm4233 = vcmp.lt.s32.totalorder %v4015, 0
        %v4234 = vsub.s32 0, %v4015
        %v4235 = vsel %vm4233, %v4234, %v4015
        %v4236 = vmul.u32.u64.compose %v4235, 2863311531
        %v4237 = vextract.low.u32 %v4236
        %v4238 = vextract.high.u32 %v4236
        %v4239 = vshrl.u32 %v4238, 4
        %v4240 = vmul.u32 %v4239, 24
        %v4241 = vsub.s32 %v4235, %v4240
        %v4242 = vsub.s32 0, %v4241
        %v4243 = vsel %vm4233, %v4242, %v4241
        %vm4244 = vcmp.lt.s32.totalorder %v4016, 0
        %v4245 = vsub.s32 0, %v4016
        %v4246 = vsel %vm4244, %v4245, %v4016
        %v4247 = vmul.u32.u64.compose %v4246, 2863311531
        %v4248 = vextract.low.u32 %v4247
        %v4249 = vextract.high.u32 %v4247
        %v4250 = vshrl.u32 %v4249, 4
        %v4251 = vmul.u32 %v4250, 24
        %v4252 = vsub.s32 %v4246, %v4251
        %v4253 = vsub.s32 0, %v4252
        %v4254 = vsel %vm4244, %v4253, %v4252
        %vm4255 = vcmp.lt.s32.totalorder %v4017, 0
        %v4256 = vsub.s32 0, %v4017
        %v4257 = vsel %vm4255, %v4256, %v4017
        %v4258 = vmul.u32.u64.compose %v4257, 2863311531
        %v4259 = vextract.low.u32 %v4258
        %v4260 = vextract.high.u32 %v4258
        %v4261 = vshrl.u32 %v4260, 4
        %v4262 = vmul.u32 %v4261, 24
        %v4263 = vsub.s32 %v4257, %v4262
        %v4264 = vsub.s32 0, %v4263
        %v4265 = vsel %vm4255, %v4264, %v4263
        %vm4266 = vcmp.lt.s32.totalorder %v4018, 0
        %v4267 = vsub.s32 0, %v4018
        %v4268 = vsel %vm4266, %v4267, %v4018
        %v4269 = vmul.u32.u64.compose %v4268, 2863311531
        %v4270 = vextract.low.u32 %v4269
        %v4271 = vextract.high.u32 %v4269
        %v4272 = vshrl.u32 %v4271, 4
        %v4273 = vmul.u32 %v4272, 24
        %v4274 = vsub.s32 %v4268, %v4273
        %v4275 = vsub.s32 0, %v4274
        %v4276 = vsel %vm4266, %v4275, %v4274
        %vm4277 = vcmp.lt.s32.totalorder %v4019, 0
        %v4278 = vsub.s32 0, %v4019
        %v4279 = vsel %vm4277, %v4278, %v4019
        %v4280 = vmul.u32.u64.compose %v4279, 2863311531
        %v4281 = vextract.low.u32 %v4280
        %v4282 = vextract.high.u32 %v4280
        %v4283 = vshrl.u32 %v4282, 4
        %v4284 = vmul.u32 %v4283, 24
        %v4285 = vsub.s32 %v4279, %v4284
        %v4286 = vsub.s32 0, %v4285
        %v4287 = vsel %vm4277, %v4286, %v4285
        %vm4288 = vcmp.lt.s32.totalorder %v4020, 0
        %v4289 = vsub.s32 0, %v4020
        %v4290 = vsel %vm4288, %v4289, %v4020
        %v4291 = vmul.u32.u64.compose %v4290, 2863311531
        %v4292 = vextract.low.u32 %v4291
        %v4293 = vextract.high.u32 %v4291
        %v4294 = vshrl.u32 %v4293, 4
        %v4295 = vmul.u32 %v4294, 24
        %v4296 = vsub.s32 %v4290, %v4295
        %v4297 = vsub.s32 0, %v4296
        %v4298 = vsel %vm4288, %v4297, %v4296
        %vm4299 = vcmp.lt.s32.totalorder %v4021, 0
        %v4300 = vsub.s32 0, %v4021
        %v4301 = vsel %vm4299, %v4300, %v4021
        %v4302 = vmul.u32.u64.compose %v4301, 2863311531
        %v4303 = vextract.low.u32 %v4302
        %v4304 = vextract.high.u32 %v4302
        %v4305 = vshrl.u32 %v4304, 4
        %v4306 = vmul.u32 %v4305, 24
        %v4307 = vsub.s32 %v4301, %v4306
        %v4308 = vsub.s32 0, %v4307
        %v4309 = vsel %vm4299, %v4308, %v4307
        %vm4310 = vcmp.lt.s32.totalorder %v4022, 0
        %v4311 = vsub.s32 0, %v4022
        %v4312 = vsel %vm4310, %v4311, %v4022
        %v4313 = vmul.u32.u64.compose %v4312, 2863311531
        %v4314 = vextract.low.u32 %v4313
        %v4315 = vextract.high.u32 %v4313
        %v4316 = vshrl.u32 %v4315, 4
        %v4317 = vmul.u32 %v4316, 24
        %v4318 = vsub.s32 %v4312, %v4317
        %v4319 = vsub.s32 0, %v4318
        %v4320 = vsel %vm4310, %v4319, %v4318
        %vm4321 = vcmp.lt.s32.totalorder %v4023, 0
        %v4322 = vsub.s32 0, %v4023
        %v4323 = vsel %vm4321, %v4322, %v4023
        %v4324 = vmul.u32.u64.compose %v4323, 2863311531
        %v4325 = vextract.low.u32 %v4324
        %v4326 = vextract.high.u32 %v4324
        %v4327 = vshrl.u32 %v4326, 4
        %v4328 = vmul.u32 %v4327, 24
        %v4329 = vsub.s32 %v4323, %v4328
        %v4330 = vsub.s32 0, %v4329
        %v4331 = vsel %vm4321, %v4330, %v4329
        %vm4332 = vcmp.lt.s32.totalorder %v4024, 0
        %v4333 = vsub.s32 0, %v4024
        %v4334 = vsel %vm4332, %v4333, %v4024
        %v4335 = vmul.u32.u64.compose %v4334, 2863311531
        %v4336 = vextract.low.u32 %v4335
        %v4337 = vextract.high.u32 %v4335
        %v4338 = vshrl.u32 %v4337, 4
        %v4339 = vmul.u32 %v4338, 24
        %v4340 = vsub.s32 %v4334, %v4339
        %v4341 = vsub.s32 0, %v4340
        %v4342 = vsel %vm4332, %v4341, %v4340
        %vm4343 = vcmp.lt.s32.totalorder %v4025, 0
        %v4344 = vsub.s32 0, %v4025
        %v4345 = vsel %vm4343, %v4344, %v4025
        %v4346 = vmul.u32.u64.compose %v4345, 2863311531
        %v4347 = vextract.low.u32 %v4346
        %v4348 = vextract.high.u32 %v4346
        %v4349 = vshrl.u32 %v4348, 4
        %v4350 = vmul.u32 %v4349, 24
        %v4351 = vsub.s32 %v4345, %v4350
        %v4352 = vsub.s32 0, %v4351
        %v4353 = vsel %vm4343, %v4352, %v4351
        %vm4354 = vcmp.lt.s32.totalorder %v4026, 0
        %v4355 = vsub.s32 0, %v4026
        %v4356 = vsel %vm4354, %v4355, %v4026
        %v4357 = vmul.u32.u64.compose %v4356, 2863311531
        %v4358 = vextract.low.u32 %v4357
        %v4359 = vextract.high.u32 %v4357
        %v4360 = vshrl.u32 %v4359, 4
        %v4361 = vmul.u32 %v4360, 24
        %v4362 = vsub.s32 %v4356, %v4361
        %v4363 = vsub.s32 0, %v4362
        %v4364 = vsel %vm4354, %v4363, %v4362
        %vm4365 = vcmp.lt.s32.totalorder %v4027, 0
        %v4366 = vsub.s32 0, %v4027
        %v4367 = vsel %vm4365, %v4366, %v4027
        %v4368 = vmul.u32.u64.compose %v4367, 2863311531
        %v4369 = vextract.low.u32 %v4368
        %v4370 = vextract.high.u32 %v4368
        %v4371 = vshrl.u32 %v4370, 4
        %v4372 = vmul.u32 %v4371, 24
        %v4373 = vsub.s32 %v4367, %v4372
        %v4374 = vsub.s32 0, %v4373
        %v4375 = vsel %vm4365, %v4374, %v4373
        %vm4376 = vcmp.lt.s32.totalorder %v4028, 0
        %v4377 = vsub.s32 0, %v4028
        %v4378 = vsel %vm4376, %v4377, %v4028
        %v4379 = vmul.u32.u64.compose %v4378, 2863311531
        %v4380 = vextract.low.u32 %v4379
        %v4381 = vextract.high.u32 %v4379
        %v4382 = vshrl.u32 %v4381, 4
        %v4383 = vmul.u32 %v4382, 24
        %v4384 = vsub.s32 %v4378, %v4383
        %v4385 = vsub.s32 0, %v4384
        %v4386 = vsel %vm4376, %v4385, %v4384
        %vm4387 = vcmp.lt.s32.totalorder %v4029, 0
        %v4388 = vsub.s32 0, %v4029
        %v4389 = vsel %vm4387, %v4388, %v4029
        %v4390 = vmul.u32.u64.compose %v4389, 2863311531
        %v4391 = vextract.low.u32 %v4390
        %v4392 = vextract.high.u32 %v4390
        %v4393 = vshrl.u32 %v4392, 4
        %v4394 = vmul.u32 %v4393, 24
        %v4395 = vsub.s32 %v4389, %v4394
        %v4396 = vsub.s32 0, %v4395
        %v4397 = vsel %vm4387, %v4396, %v4395
        %vm4398 = vcmp.lt.s32.totalorder %v4030, 0
        %v4399 = vsub.s32 0, %v4030
        %v4400 = vsel %vm4398, %v4399, %v4030
        %v4401 = vmul.u32.u64.compose %v4400, 2863311531
        %v4402 = vextract.low.u32 %v4401
        %v4403 = vextract.high.u32 %v4401
        %v4404 = vshrl.u32 %v4403, 4
        %v4405 = vmul.u32 %v4404, 24
        %v4406 = vsub.s32 %v4400, %v4405
        %v4407 = vsub.s32 0, %v4406
        %v4408 = vsel %vm4398, %v4407, %v4406
        %vm4409 = vcmp.lt.s32.totalorder %v4031, 0
        %v4410 = vsub.s32 0, %v4031
        %v4411 = vsel %vm4409, %v4410, %v4031
        %v4412 = vmul.u32.u64.compose %v4411, 2863311531
        %v4413 = vextract.low.u32 %v4412
        %v4414 = vextract.high.u32 %v4412
        %v4415 = vshrl.u32 %v4414, 4
        %v4416 = vmul.u32 %v4415, 24
        %v4417 = vsub.s32 %v4411, %v4416
        %v4418 = vsub.s32 0, %v4417
        %v4419 = vsel %vm4409, %v4418, %v4417
        %vm4420 = vcmp.lt.s32.totalorder %v4032, 0
        %v4421 = vsub.s32 0, %v4032
        %v4422 = vsel %vm4420, %v4421, %v4032
        %v4423 = vmul.u32.u64.compose %v4422, 2863311531
        %v4424 = vextract.low.u32 %v4423
        %v4425 = vextract.high.u32 %v4423
        %v4426 = vshrl.u32 %v4425, 4
        %v4427 = vmul.u32 %v4426, 24
        %v4428 = vsub.s32 %v4422, %v4427
        %v4429 = vsub.s32 0, %v4428
        %v4430 = vsel %vm4420, %v4429, %v4428
        %vm4431 = vcmp.lt.s32.totalorder %v4033, 0
        %v4432 = vsub.s32 0, %v4033
        %v4433 = vsel %vm4431, %v4432, %v4033
        %v4434 = vmul.u32.u64.compose %v4433, 2863311531
        %v4435 = vextract.low.u32 %v4434
        %v4436 = vextract.high.u32 %v4434
        %v4437 = vshrl.u32 %v4436, 4
        %v4438 = vmul.u32 %v4437, 24
        %v4439 = vsub.s32 %v4433, %v4438
        %v4440 = vsub.s32 0, %v4439
        %v4441 = vsel %vm4431, %v4440, %v4439
        %vm4442 = vcmp.lt.s32.totalorder %v4034, 0
        %v4443 = vsub.s32 0, %v4034
        %v4444 = vsel %vm4442, %v4443, %v4034
        %v4445 = vmul.u32.u64.compose %v4444, 2863311531
        %v4446 = vextract.low.u32 %v4445
        %v4447 = vextract.high.u32 %v4445
        %v4448 = vshrl.u32 %v4447, 4
        %v4449 = vmul.u32 %v4448, 24
        %v4450 = vsub.s32 %v4444, %v4449
        %v4451 = vsub.s32 0, %v4450
        %v4452 = vsel %vm4442, %v4451, %v4450
        %vm4453 = vcmp.lt.s32.totalorder %v4035, 0
        %v4454 = vsub.s32 0, %v4035
        %v4455 = vsel %vm4453, %v4454, %v4035
        %v4456 = vmul.u32.u64.compose %v4455, 2863311531
        %v4457 = vextract.low.u32 %v4456
        %v4458 = vextract.high.u32 %v4456
        %v4459 = vshrl.u32 %v4458, 4
        %v4460 = vmul.u32 %v4459, 24
        %v4461 = vsub.s32 %v4455, %v4460
        %v4462 = vsub.s32 0, %v4461
        %v4463 = vsel %vm4453, %v4462, %v4461
        %vm4464 = vcmp.lt.s32.totalorder %v4036, 0
        %v4465 = vsub.s32 0, %v4036
        %v4466 = vsel %vm4464, %v4465, %v4036
        %v4467 = vmul.u32.u64.compose %v4466, 2863311531
        %v4468 = vextract.low.u32 %v4467
        %v4469 = vextract.high.u32 %v4467
        %v4470 = vshrl.u32 %v4469, 4
        %v4471 = vmul.u32 %v4470, 24
        %v4472 = vsub.s32 %v4466, %v4471
        %v4473 = vsub.s32 0, %v4472
        %v4474 = vsel %vm4464, %v4473, %v4472
        %vm4475 = vcmp.lt.s32.totalorder %v4037, 0
        %v4476 = vsub.s32 0, %v4037
        %v4477 = vsel %vm4475, %v4476, %v4037
        %v4478 = vmul.u32.u64.compose %v4477, 2863311531
        %v4479 = vextract.low.u32 %v4478
        %v4480 = vextract.high.u32 %v4478
        %v4481 = vshrl.u32 %v4480, 4
        %v4482 = vmul.u32 %v4481, 24
        %v4483 = vsub.s32 %v4477, %v4482
        %v4484 = vsub.s32 0, %v4483
        %v4485 = vsel %vm4475, %v4484, %v4483
        %vm4486 = vcmp.lt.s32.totalorder %v4038, 0
        %v4487 = vsub.s32 0, %v4038
        %v4488 = vsel %vm4486, %v4487, %v4038
        %v4489 = vmul.u32.u64.compose %v4488, 2863311531
        %v4490 = vextract.low.u32 %v4489
        %v4491 = vextract.high.u32 %v4489
        %v4492 = vshrl.u32 %v4491, 4
        %v4493 = vmul.u32 %v4492, 24
        %v4494 = vsub.s32 %v4488, %v4493
        %v4495 = vsub.s32 0, %v4494
        %v4496 = vsel %vm4486, %v4495, %v4494
        %vm4497 = vcmp.lt.s32.totalorder %v4039, 0
        %v4498 = vsub.s32 0, %v4039
        %v4499 = vsel %vm4497, %v4498, %v4039
        %v4500 = vmul.u32.u64.compose %v4499, 2863311531
        %v4501 = vextract.low.u32 %v4500
        %v4502 = vextract.high.u32 %v4500
        %v4503 = vshrl.u32 %v4502, 4
        %v4504 = vmul.u32 %v4503, 24
        %v4505 = vsub.s32 %v4499, %v4504
        %v4506 = vsub.s32 0, %v4505
        %v4507 = vsel %vm4497, %v4506, %v4505
        %vm4508 = vcmp.lt.s32.totalorder %v4040, 0
        %v4509 = vsub.s32 0, %v4040
        %v4510 = vsel %vm4508, %v4509, %v4040
        %v4511 = vmul.u32.u64.compose %v4510, 2863311531
        %v4512 = vextract.low.u32 %v4511
        %v4513 = vextract.high.u32 %v4511
        %v4514 = vshrl.u32 %v4513, 4
        %v4515 = vmul.u32 %v4514, 24
        %v4516 = vsub.s32 %v4510, %v4515
        %v4517 = vsub.s32 0, %v4516
        %v4518 = vsel %vm4508, %v4517, %v4516
        %vm4519 = vcmp.lt.s32.totalorder %v4041, 0
        %v4520 = vsub.s32 0, %v4041
        %v4521 = vsel %vm4519, %v4520, %v4041
        %v4522 = vmul.u32.u64.compose %v4521, 2863311531
        %v4523 = vextract.low.u32 %v4522
        %v4524 = vextract.high.u32 %v4522
        %v4525 = vshrl.u32 %v4524, 4
        %v4526 = vmul.u32 %v4525, 24
        %v4527 = vsub.s32 %v4521, %v4526
        %v4528 = vsub.s32 0, %v4527
        %v4529 = vsel %vm4519, %v4528, %v4527
        %vm4530 = vcmp.lt.s32.totalorder %v4042, 0
        %v4531 = vsub.s32 0, %v4042
        %v4532 = vsel %vm4530, %v4531, %v4042
        %v4533 = vmul.u32.u64.compose %v4532, 2863311531
        %v4534 = vextract.low.u32 %v4533
        %v4535 = vextract.high.u32 %v4533
        %v4536 = vshrl.u32 %v4535, 4
        %v4537 = vmul.u32 %v4536, 24
        %v4538 = vsub.s32 %v4532, %v4537
        %v4539 = vsub.s32 0, %v4538
        %v4540 = vsel %vm4530, %v4539, %v4538
        %vm4541 = vcmp.lt.s32.totalorder %v4043, 0
        %v4542 = vsub.s32 0, %v4043
        %v4543 = vsel %vm4541, %v4542, %v4043
        %v4544 = vmul.u32.u64.compose %v4543, 2863311531
        %v4545 = vextract.low.u32 %v4544
        %v4546 = vextract.high.u32 %v4544
        %v4547 = vshrl.u32 %v4546, 4
        %v4548 = vmul.u32 %v4547, 24
        %v4549 = vsub.s32 %v4543, %v4548
        %v4550 = vsub.s32 0, %v4549
        %v4551 = vsel %vm4541, %v4550, %v4549
        %vm4552 = vcmp.lt.s32.totalorder %v4044, 0
        %v4553 = vsub.s32 0, %v4044
        %v4554 = vsel %vm4552, %v4553, %v4044
        %v4555 = vmul.u32.u64.compose %v4554, 2863311531
        %v4556 = vextract.low.u32 %v4555
        %v4557 = vextract.high.u32 %v4555
        %v4558 = vshrl.u32 %v4557, 4
        %v4559 = vmul.u32 %v4558, 24
        %v4560 = vsub.s32 %v4554, %v4559
        %v4561 = vsub.s32 0, %v4560
        %v4562 = vsel %vm4552, %v4561, %v4560
        %vm4563 = vcmp.lt.s32.totalorder %v4045, 0
        %v4564 = vsub.s32 0, %v4045
        %v4565 = vsel %vm4563, %v4564, %v4045
        %v4566 = vmul.u32.u64.compose %v4565, 2863311531
        %v4567 = vextract.low.u32 %v4566
        %v4568 = vextract.high.u32 %v4566
        %v4569 = vshrl.u32 %v4568, 4
        %v4570 = vmul.u32 %v4569, 24
        %v4571 = vsub.s32 %v4565, %v4570
        %v4572 = vsub.s32 0, %v4571
        %v4573 = vsel %vm4563, %v4572, %v4571
        %vm4574 = vcmp.ne.s32.totalorder %v4056, 0
        %vm4575 = vcmp.ne.s32.totalorder %v4067, 0
        %vm4576 = vcmp.ne.s32.totalorder %v4078, 0
        %vm4577 = vcmp.ne.s32.totalorder %v4089, 0
        %vm4578 = vcmp.ne.s32.totalorder %v4100, 0
        %vm4579 = vcmp.ne.s32.totalorder %v4111, 0
        %vm4580 = vcmp.ne.s32.totalorder %v4122, 0
        %vm4581 = vcmp.ne.s32.totalorder %v4133, 0
        %vm4582 = vcmp.ne.s32.totalorder %v4144, 0
        %vm4583 = vcmp.ne.s32.totalorder %v4155, 0
        %vm4584 = vcmp.ne.s32.totalorder %v4166, 0
        %vm4585 = vcmp.ne.s32.totalorder %v4177, 0
        %vm4586 = vcmp.ne.s32.totalorder %v4188, 0
        %vm4587 = vcmp.ne.s32.totalorder %v4199, 0
        %vm4588 = vcmp.ne.s32.totalorder %v4210, 0
        %vm4589 = vcmp.ne.s32.totalorder %v4221, 0
        %vm4590 = vcmp.ne.s32.totalorder %v4232, 0
        %vm4591 = vcmp.ne.s32.totalorder %v4243, 0
        %vm4592 = vcmp.ne.s32.totalorder %v4254, 0
        %vm4593 = vcmp.ne.s32.totalorder %v4265, 0
        %vm4594 = vcmp.ne.s32.totalorder %v4276, 0
        %vm4595 = vcmp.ne.s32.totalorder %v4287, 0
        %vm4596 = vcmp.ne.s32.totalorder %v4298, 0
        %vm4597 = vcmp.ne.s32.totalorder %v4309, 0
        %vm4598 = vcmp.ne.s32.totalorder %v4320, 0
        %vm4599 = vcmp.ne.s32.totalorder %v4331, 0
        %vm4600 = vcmp.ne.s32.totalorder %v4342, 0
        %vm4601 = vcmp.ne.s32.totalorder %v4353, 0
        %vm4602 = vcmp.ne.s32.totalorder %v4364, 0
        %vm4603 = vcmp.ne.s32.totalorder %v4375, 0
        %vm4604 = vcmp.ne.s32.totalorder %v4386, 0
        %vm4605 = vcmp.ne.s32.totalorder %v4397, 0
        %vm4606 = vcmp.ne.s32.totalorder %v4408, 0
        %vm4607 = vcmp.ne.s32.totalorder %v4419, 0
        %vm4608 = vcmp.ne.s32.totalorder %v4430, 0
        %vm4609 = vcmp.ne.s32.totalorder %v4441, 0
        %vm4610 = vcmp.ne.s32.totalorder %v4452, 0
        %vm4611 = vcmp.ne.s32.totalorder %v4463, 0
        %vm4612 = vcmp.ne.s32.totalorder %v4474, 0
        %vm4613 = vcmp.ne.s32.totalorder %v4485, 0
        %vm4614 = vcmp.ne.s32.totalorder %v4496, 0
        %vm4615 = vcmp.ne.s32.totalorder %v4507, 0
        %vm4616 = vcmp.ne.s32.totalorder %v4518, 0
        %vm4617 = vcmp.ne.s32.totalorder %v4529, 0
        %vm4618 = vcmp.ne.s32.totalorder %v4540, 0
        %vm4619 = vcmp.ne.s32.totalorder %v4551, 0
        %vm4620 = vcmp.ne.s32.totalorder %v4562, 0
        %vm4621 = vcmp.ne.s32.totalorder %v4573, 0
        %vm4622 = vcmp.lt.s32.totalorder %v4056, 0
        %vm4623 = vcmp.lt.s32.totalorder %v4067, 0
        %vm4624 = vcmp.lt.s32.totalorder %v4078, 0
        %vm4625 = vcmp.lt.s32.totalorder %v4089, 0
        %vm4626 = vcmp.lt.s32.totalorder %v4100, 0
        %vm4627 = vcmp.lt.s32.totalorder %v4111, 0
        %vm4628 = vcmp.lt.s32.totalorder %v4122, 0
        %vm4629 = vcmp.lt.s32.totalorder %v4133, 0
        %vm4630 = vcmp.lt.s32.totalorder %v4144, 0
        %vm4631 = vcmp.lt.s32.totalorder %v4155, 0
        %vm4632 = vcmp.lt.s32.totalorder %v4166, 0
        %vm4633 = vcmp.lt.s32.totalorder %v4177, 0
        %vm4634 = vcmp.lt.s32.totalorder %v4188, 0
        %vm4635 = vcmp.lt.s32.totalorder %v4199, 0
        %vm4636 = vcmp.lt.s32.totalorder %v4210, 0
        %vm4637 = vcmp.lt.s32.totalorder %v4221, 0
        %vm4638 = vcmp.lt.s32.totalorder %v4232, 0
        %vm4639 = vcmp.lt.s32.totalorder %v4243, 0
        %vm4640 = vcmp.lt.s32.totalorder %v4254, 0
        %vm4641 = vcmp.lt.s32.totalorder %v4265, 0
        %vm4642 = vcmp.lt.s32.totalorder %v4276, 0
        %vm4643 = vcmp.lt.s32.totalorder %v4287, 0
        %vm4644 = vcmp.lt.s32.totalorder %v4298, 0
        %vm4645 = vcmp.lt.s32.totalorder %v4309, 0
        %vm4646 = vcmp.lt.s32.totalorder %v4320, 0
        %vm4647 = vcmp.lt.s32.totalorder %v4331, 0
        %vm4648 = vcmp.lt.s32.totalorder %v4342, 0
        %vm4649 = vcmp.lt.s32.totalorder %v4353, 0
        %vm4650 = vcmp.lt.s32.totalorder %v4364, 0
        %vm4651 = vcmp.lt.s32.totalorder %v4375, 0
        %vm4652 = vcmp.lt.s32.totalorder %v4386, 0
        %vm4653 = vcmp.lt.s32.totalorder %v4397, 0
        %vm4654 = vcmp.lt.s32.totalorder %v4408, 0
        %vm4655 = vcmp.lt.s32.totalorder %v4419, 0
        %vm4656 = vcmp.lt.s32.totalorder %v4430, 0
        %vm4657 = vcmp.lt.s32.totalorder %v4441, 0
        %vm4658 = vcmp.lt.s32.totalorder %v4452, 0
        %vm4659 = vcmp.lt.s32.totalorder %v4463, 0
        %vm4660 = vcmp.lt.s32.totalorder %v4474, 0
        %vm4661 = vcmp.lt.s32.totalorder %v4485, 0
        %vm4662 = vcmp.lt.s32.totalorder %v4496, 0
        %vm4663 = vcmp.lt.s32.totalorder %v4507, 0
        %vm4664 = vcmp.lt.s32.totalorder %v4518, 0
        %vm4665 = vcmp.lt.s32.totalorder %v4529, 0
        %vm4666 = vcmp.lt.s32.totalorder %v4540, 0
        %vm4667 = vcmp.lt.s32.totalorder %v4551, 0
        %vm4668 = vcmp.lt.s32.totalorder %v4562, 0
        %vm4669 = vcmp.lt.s32.totalorder %v4573, 0
        %vm4670 = vmand %vm4622, %vm4574
        %vm4671 = vmand %vm4623, %vm4575
        %vm4672 = vmand %vm4624, %vm4576
        %vm4673 = vmand %vm4625, %vm4577
        %vm4674 = vmand %vm4626, %vm4578
        %vm4675 = vmand %vm4627, %vm4579
        %vm4676 = vmand %vm4628, %vm4580
        %vm4677 = vmand %vm4629, %vm4581
        %vm4678 = vmand %vm4630, %vm4582
        %vm4679 = vmand %vm4631, %vm4583
        %vm4680 = vmand %vm4632, %vm4584
        %vm4681 = vmand %vm4633, %vm4585
        %vm4682 = vmand %vm4634, %vm4586
        %vm4683 = vmand %vm4635, %vm4587
        %vm4684 = vmand %vm4636, %vm4588
        %vm4685 = vmand %vm4637, %vm4589
        %vm4686 = vmand %vm4638, %vm4590
        %vm4687 = vmand %vm4639, %vm4591
        %vm4688 = vmand %vm4640, %vm4592
        %vm4689 = vmand %vm4641, %vm4593
        %vm4690 = vmand %vm4642, %vm4594
        %vm4691 = vmand %vm4643, %vm4595
        %vm4692 = vmand %vm4644, %vm4596
        %vm4693 = vmand %vm4645, %vm4597
        %vm4694 = vmand %vm4646, %vm4598
        %vm4695 = vmand %vm4647, %vm4599
        %vm4696 = vmand %vm4648, %vm4600
        %vm4697 = vmand %vm4649, %vm4601
        %vm4698 = vmand %vm4650, %vm4602
        %vm4699 = vmand %vm4651, %vm4603
        %vm4700 = vmand %vm4652, %vm4604
        %vm4701 = vmand %vm4653, %vm4605
        %vm4702 = vmand %vm4654, %vm4606
        %vm4703 = vmand %vm4655, %vm4607
        %vm4704 = vmand %vm4656, %vm4608
        %vm4705 = vmand %vm4657, %vm4609
        %vm4706 = vmand %vm4658, %vm4610
        %vm4707 = vmand %vm4659, %vm4611
        %vm4708 = vmand %vm4660, %vm4612
        %vm4709 = vmand %vm4661, %vm4613
        %vm4710 = vmand %vm4662, %vm4614
        %vm4711 = vmand %vm4663, %vm4615
        %vm4712 = vmand %vm4664, %vm4616
        %vm4713 = vmand %vm4665, %vm4617
        %vm4714 = vmand %vm4666, %vm4618
        %vm4715 = vmand %vm4667, %vm4619
        %vm4716 = vmand %vm4668, %vm4620
        %vm4717 = vmand %vm4669, %vm4621
        %v4718 = vadd.s32 %v4056, 24
        %v4719 = vadd.s32 %v4067, 24
        %v4720 = vadd.s32 %v4078, 24
        %v4721 = vadd.s32 %v4089, 24
        %v4722 = vadd.s32 %v4100, 24
        %v4723 = vadd.s32 %v4111, 24
        %v4724 = vadd.s32 %v4122, 24
        %v4725 = vadd.s32 %v4133, 24
        %v4726 = vadd.s32 %v4144, 24
        %v4727 = vadd.s32 %v4155, 24
        %v4728 = vadd.s32 %v4166, 24
        %v4729 = vadd.s32 %v4177, 24
        %v4730 = vadd.s32 %v4188, 24
        %v4731 = vadd.s32 %v4199, 24
        %v4732 = vadd.s32 %v4210, 24
        %v4733 = vadd.s32 %v4221, 24
        %v4734 = vadd.s32 %v4232, 24
        %v4735 = vadd.s32 %v4243, 24
        %v4736 = vadd.s32 %v4254, 24
        %v4737 = vadd.s32 %v4265, 24
        %v4738 = vadd.s32 %v4276, 24
        %v4739 = vadd.s32 %v4287, 24
        %v4740 = vadd.s32 %v4298, 24
        %v4741 = vadd.s32 %v4309, 24
        %v4742 = vadd.s32 %v4320, 24
        %v4743 = vadd.s32 %v4331, 24
        %v4744 = vadd.s32 %v4342, 24
        %v4745 = vadd.s32 %v4353, 24
        %v4746 = vadd.s32 %v4364, 24
        %v4747 = vadd.s32 %v4375, 24
        %v4748 = vadd.s32 %v4386, 24
        %v4749 = vadd.s32 %v4397, 24
        %v4750 = vadd.s32 %v4408, 24
        %v4751 = vadd.s32 %v4419, 24
        %v4752 = vadd.s32 %v4430, 24
        %v4753 = vadd.s32 %v4441, 24
        %v4754 = vadd.s32 %v4452, 24
        %v4755 = vadd.s32 %v4463, 24
        %v4756 = vadd.s32 %v4474, 24
        %v4757 = vadd.s32 %v4485, 24
        %v4758 = vadd.s32 %v4496, 24
        %v4759 = vadd.s32 %v4507, 24
        %v4760 = vadd.s32 %v4518, 24
        %v4761 = vadd.s32 %v4529, 24
        %v4762 = vadd.s32 %v4540, 24
        %v4763 = vadd.s32 %v4551, 24
        %v4764 = vadd.s32 %v4562, 24
        %v4765 = vadd.s32 %v4573, 24
        %v4766 = vsel %vm4670, %v4718, %v4056
        %v4767 = vsel %vm4671, %v4719, %v4067
        %v4768 = vsel %vm4672, %v4720, %v4078
        %v4769 = vsel %vm4673, %v4721, %v4089
        %v4770 = vsel %vm4674, %v4722, %v4100
        %v4771 = vsel %vm4675, %v4723, %v4111
        %v4772 = vsel %vm4676, %v4724, %v4122
        %v4773 = vsel %vm4677, %v4725, %v4133
        %v4774 = vsel %vm4678, %v4726, %v4144
        %v4775 = vsel %vm4679, %v4727, %v4155
        %v4776 = vsel %vm4680, %v4728, %v4166
        %v4777 = vsel %vm4681, %v4729, %v4177
        %v4778 = vsel %vm4682, %v4730, %v4188
        %v4779 = vsel %vm4683, %v4731, %v4199
        %v4780 = vsel %vm4684, %v4732, %v4210
        %v4781 = vsel %vm4685, %v4733, %v4221
        %v4782 = vsel %vm4686, %v4734, %v4232
        %v4783 = vsel %vm4687, %v4735, %v4243
        %v4784 = vsel %vm4688, %v4736, %v4254
        %v4785 = vsel %vm4689, %v4737, %v4265
        %v4786 = vsel %vm4690, %v4738, %v4276
        %v4787 = vsel %vm4691, %v4739, %v4287
        %v4788 = vsel %vm4692, %v4740, %v4298
        %v4789 = vsel %vm4693, %v4741, %v4309
        %v4790 = vsel %vm4694, %v4742, %v4320
        %v4791 = vsel %vm4695, %v4743, %v4331
        %v4792 = vsel %vm4696, %v4744, %v4342
        %v4793 = vsel %vm4697, %v4745, %v4353
        %v4794 = vsel %vm4698, %v4746, %v4364
        %v4795 = vsel %vm4699, %v4747, %v4375
        %v4796 = vsel %vm4700, %v4748, %v4386
        %v4797 = vsel %vm4701, %v4749, %v4397
        %v4798 = vsel %vm4702, %v4750, %v4408
        %v4799 = vsel %vm4703, %v4751, %v4419
        %v4800 = vsel %vm4704, %v4752, %v4430
        %v4801 = vsel %vm4705, %v4753, %v4441
        %v4802 = vsel %vm4706, %v4754, %v4452
        %v4803 = vsel %vm4707, %v4755, %v4463
        %v4804 = vsel %vm4708, %v4756, %v4474
        %v4805 = vsel %vm4709, %v4757, %v4485
        %v4806 = vsel %vm4710, %v4758, %v4496
        %v4807 = vsel %vm4711, %v4759, %v4507
        %v4808 = vsel %vm4712, %v4760, %v4518
        %v4809 = vsel %vm4713, %v4761, %v4529
        %v4810 = vsel %vm4714, %v4762, %v4540
        %v4811 = vsel %vm4715, %v4763, %v4551
        %v4812 = vsel %vm4716, %v4764, %v4562
        %v4813 = vsel %vm4717, %v4765, %v4573
        %vm4814 = vcmp.lt.s32.totalorder %v4766, 16
        %vm4815 = vcmp.lt.s32.totalorder %v4767, 16
        %vm4816 = vcmp.lt.s32.totalorder %v4768, 16
        %vm4817 = vcmp.lt.s32.totalorder %v4769, 16
        %vm4818 = vcmp.lt.s32.totalorder %v4770, 16
        %vm4819 = vcmp.lt.s32.totalorder %v4771, 16
        %vm4820 = vcmp.lt.s32.totalorder %v4772, 16
        %vm4821 = vcmp.lt.s32.totalorder %v4773, 16
        %vm4822 = vcmp.lt.s32.totalorder %v4774, 16
        %vm4823 = vcmp.lt.s32.totalorder %v4775, 16
        %vm4824 = vcmp.lt.s32.totalorder %v4776, 16
        %vm4825 = vcmp.lt.s32.totalorder %v4777, 16
        %vm4826 = vcmp.lt.s32.totalorder %v4778, 16
        %vm4827 = vcmp.lt.s32.totalorder %v4779, 16
        %vm4828 = vcmp.lt.s32.totalorder %v4780, 16
        %vm4829 = vcmp.lt.s32.totalorder %v4781, 16
        %vm4830 = vcmp.lt.s32.totalorder %v4782, 16
        %vm4831 = vcmp.lt.s32.totalorder %v4783, 16
        %vm4832 = vcmp.lt.s32.totalorder %v4784, 16
        %vm4833 = vcmp.lt.s32.totalorder %v4785, 16
        %vm4834 = vcmp.lt.s32.totalorder %v4786, 16
        %vm4835 = vcmp.lt.s32.totalorder %v4787, 16
        %vm4836 = vcmp.lt.s32.totalorder %v4788, 16
        %vm4837 = vcmp.lt.s32.totalorder %v4789, 16
        %vm4838 = vcmp.lt.s32.totalorder %v4790, 16
        %vm4839 = vcmp.lt.s32.totalorder %v4791, 16
        %vm4840 = vcmp.lt.s32.totalorder %v4792, 16
        %vm4841 = vcmp.lt.s32.totalorder %v4793, 16
        %vm4842 = vcmp.lt.s32.totalorder %v4794, 16
        %vm4843 = vcmp.lt.s32.totalorder %v4795, 16
        %vm4844 = vcmp.lt.s32.totalorder %v4796, 16
        %vm4845 = vcmp.lt.s32.totalorder %v4797, 16
        %vm4846 = vcmp.lt.s32.totalorder %v4798, 16
        %vm4847 = vcmp.lt.s32.totalorder %v4799, 16
        %vm4848 = vcmp.lt.s32.totalorder %v4800, 16
        %vm4849 = vcmp.lt.s32.totalorder %v4801, 16
        %vm4850 = vcmp.lt.s32.totalorder %v4802, 16
        %vm4851 = vcmp.lt.s32.totalorder %v4803, 16
        %vm4852 = vcmp.lt.s32.totalorder %v4804, 16
        %vm4853 = vcmp.lt.s32.totalorder %v4805, 16
        %vm4854 = vcmp.lt.s32.totalorder %v4806, 16
        %vm4855 = vcmp.lt.s32.totalorder %v4807, 16
        %vm4856 = vcmp.lt.s32.totalorder %v4808, 16
        %vm4857 = vcmp.lt.s32.totalorder %v4809, 16
        %vm4858 = vcmp.lt.s32.totalorder %v4810, 16
        %vm4859 = vcmp.lt.s32.totalorder %v4811, 16
        %vm4860 = vcmp.lt.s32.totalorder %v4812, 16
        %vm4861 = vcmp.lt.s32.totalorder %v4813, 16
        %v4862 = vsel %vm4814, 1, 0
        %v4863 = vsel %vm4815, 1, 0
        %v4864 = vsel %vm4816, 1, 0
        %v4865 = vsel %vm4817, 1, 0
        %v4866 = vsel %vm4818, 1, 0
        %v4867 = vsel %vm4819, 1, 0
        %v4868 = vsel %vm4820, 1, 0
        %v4869 = vsel %vm4821, 1, 0
        %v4870 = vsel %vm4822, 1, 0
        %v4871 = vsel %vm4823, 1, 0
        %v4872 = vsel %vm4824, 1, 0
        %v4873 = vsel %vm4825, 1, 0
        %v4874 = vsel %vm4826, 1, 0
        %v4875 = vsel %vm4827, 1, 0
        %v4876 = vsel %vm4828, 1, 0
        %v4877 = vsel %vm4829, 1, 0
        %v4878 = vsel %vm4830, 1, 0
        %v4879 = vsel %vm4831, 1, 0
        %v4880 = vsel %vm4832, 1, 0
        %v4881 = vsel %vm4833, 1, 0
        %v4882 = vsel %vm4834, 1, 0
        %v4883 = vsel %vm4835, 1, 0
        %v4884 = vsel %vm4836, 1, 0
        %v4885 = vsel %vm4837, 1, 0
        %v4886 = vsel %vm4838, 1, 0
        %v4887 = vsel %vm4839, 1, 0
        %v4888 = vsel %vm4840, 1, 0
        %v4889 = vsel %vm4841, 1, 0
        %v4890 = vsel %vm4842, 1, 0
        %v4891 = vsel %vm4843, 1, 0
        %v4892 = vsel %vm4844, 1, 0
        %v4893 = vsel %vm4845, 1, 0
        %v4894 = vsel %vm4846, 1, 0
        %v4895 = vsel %vm4847, 1, 0
        %v4896 = vsel %vm4848, 1, 0
        %v4897 = vsel %vm4849, 1, 0
        %v4898 = vsel %vm4850, 1, 0
        %v4899 = vsel %vm4851, 1, 0
        %v4900 = vsel %vm4852, 1, 0
        %v4901 = vsel %vm4853, 1, 0
        %v4902 = vsel %vm4854, 1, 0
        %v4903 = vsel %vm4855, 1, 0
        %v4904 = vsel %vm4856, 1, 0
        %v4905 = vsel %vm4857, 1, 0
        %v4906 = vsel %vm4858, 1, 0
        %v4907 = vsel %vm4859, 1, 0
        %v4908 = vsel %vm4860, 1, 0
        %v4909 = vsel %vm4861, 1, 0
        %vm4910 = vcmp.eq.s32.totalorder %v4862, 1
        %vm4911 = vcmp.eq.s32.totalorder %v4863, 1
        %vm4912 = vcmp.eq.s32.totalorder %v4864, 1
        %vm4913 = vcmp.eq.s32.totalorder %v4865, 1
        %vm4914 = vcmp.eq.s32.totalorder %v4866, 1
        %vm4915 = vcmp.eq.s32.totalorder %v4867, 1
        %vm4916 = vcmp.eq.s32.totalorder %v4868, 1
        %vm4917 = vcmp.eq.s32.totalorder %v4869, 1
        %vm4918 = vcmp.eq.s32.totalorder %v4870, 1
        %vm4919 = vcmp.eq.s32.totalorder %v4871, 1
        %vm4920 = vcmp.eq.s32.totalorder %v4872, 1
        %vm4921 = vcmp.eq.s32.totalorder %v4873, 1
        %vm4922 = vcmp.eq.s32.totalorder %v4874, 1
        %vm4923 = vcmp.eq.s32.totalorder %v4875, 1
        %vm4924 = vcmp.eq.s32.totalorder %v4876, 1
        %vm4925 = vcmp.eq.s32.totalorder %v4877, 1
        %vm4926 = vcmp.eq.s32.totalorder %v4878, 1
        %vm4927 = vcmp.eq.s32.totalorder %v4879, 1
        %vm4928 = vcmp.eq.s32.totalorder %v4880, 1
        %vm4929 = vcmp.eq.s32.totalorder %v4881, 1
        %vm4930 = vcmp.eq.s32.totalorder %v4882, 1
        %vm4931 = vcmp.eq.s32.totalorder %v4883, 1
        %vm4932 = vcmp.eq.s32.totalorder %v4884, 1
        %vm4933 = vcmp.eq.s32.totalorder %v4885, 1
        %vm4934 = vcmp.eq.s32.totalorder %v4886, 1
        %vm4935 = vcmp.eq.s32.totalorder %v4887, 1
        %vm4936 = vcmp.eq.s32.totalorder %v4888, 1
        %vm4937 = vcmp.eq.s32.totalorder %v4889, 1
        %vm4938 = vcmp.eq.s32.totalorder %v4890, 1
        %vm4939 = vcmp.eq.s32.totalorder %v4891, 1
        %vm4940 = vcmp.eq.s32.totalorder %v4892, 1
        %vm4941 = vcmp.eq.s32.totalorder %v4893, 1
        %vm4942 = vcmp.eq.s32.totalorder %v4894, 1
        %vm4943 = vcmp.eq.s32.totalorder %v4895, 1
        %vm4944 = vcmp.eq.s32.totalorder %v4896, 1
        %vm4945 = vcmp.eq.s32.totalorder %v4897, 1
        %vm4946 = vcmp.eq.s32.totalorder %v4898, 1
        %vm4947 = vcmp.eq.s32.totalorder %v4899, 1
        %vm4948 = vcmp.eq.s32.totalorder %v4900, 1
        %vm4949 = vcmp.eq.s32.totalorder %v4901, 1
        %vm4950 = vcmp.eq.s32.totalorder %v4902, 1
        %vm4951 = vcmp.eq.s32.totalorder %v4903, 1
        %vm4952 = vcmp.eq.s32.totalorder %v4904, 1
        %vm4953 = vcmp.eq.s32.totalorder %v4905, 1
        %vm4954 = vcmp.eq.s32.totalorder %v4906, 1
        %vm4955 = vcmp.eq.s32.totalorder %v4907, 1
        %vm4956 = vcmp.eq.s32.totalorder %v4908, 1
        %vm4957 = vcmp.eq.s32.totalorder %v4909, 1
        %v4958 = vsel %vm4910, %v3949, 0.0
        %v4959 = vsel %vm4911, %v3950, 0.0
        %v4960 = vsel %vm4912, %v3951, 0.0
        %v4961 = vsel %vm4913, %v3952, 0.0
        %v4962 = vsel %vm4914, %v3953, 0.0
        %v4963 = vsel %vm4915, %v3954, 0.0
        %v4964 = vsel %vm4916, %v3955, 0.0
        %v4965 = vsel %vm4917, %v3956, 0.0
        %v4966 = vsel %vm4918, %v3957, 0.0
        %v4967 = vsel %vm4919, %v3958, 0.0
        %v4968 = vsel %vm4920, %v3959, 0.0
        %v4969 = vsel %vm4921, %v3960, 0.0
        %v4970 = vsel %vm4922, %v3961, 0.0
        %v4971 = vsel %vm4923, %v3962, 0.0
        %v4972 = vsel %vm4924, %v3963, 0.0
        %v4973 = vsel %vm4925, %v3964, 0.0
        %v4974 = vsel %vm4926, %v3965, 0.0
        %v4975 = vsel %vm4927, %v3966, 0.0
        %v4976 = vsel %vm4928, %v3967, 0.0
        %v4977 = vsel %vm4929, %v3968, 0.0
        %v4978 = vsel %vm4930, %v3969, 0.0
        %v4979 = vsel %vm4931, %v3970, 0.0
        %v4980 = vsel %vm4932, %v3971, 0.0
        %v4981 = vsel %vm4933, %v3972, 0.0
        %v4982 = vsel %vm4934, %v3973, 0.0
        %v4983 = vsel %vm4935, %v3974, 0.0
        %v4984 = vsel %vm4936, %v3975, 0.0
        %v4985 = vsel %vm4937, %v3976, 0.0
        %v4986 = vsel %vm4938, %v3977, 0.0
        %v4987 = vsel %vm4939, %v3978, 0.0
        %v4988 = vsel %vm4940, %v3979, 0.0
        %v4989 = vsel %vm4941, %v3980, 0.0
        %v4990 = vsel %vm4942, %v3981, 0.0
        %v4991 = vsel %vm4943, %v3982, 0.0
        %v4992 = vsel %vm4944, %v3983, 0.0
        %v4993 = vsel %vm4945, %v3984, 0.0
        %v4994 = vsel %vm4946, %v3985, 0.0
        %v4995 = vsel %vm4947, %v3986, 0.0
        %v4996 = vsel %vm4948, %v3987, 0.0
        %v4997 = vsel %vm4949, %v3988, 0.0
        %v4998 = vsel %vm4950, %v3989, 0.0
        %v4999 = vsel %vm4951, %v3990, 0.0
        %v5000 = vsel %vm4952, %v3991, 0.0
        %v5001 = vsel %vm4953, %v3992, 0.0
        %v5002 = vsel %vm4954, %v3993, 0.0
        %v5003 = vsel %vm4955, %v3994, 0.0
        %v5004 = vsel %vm4956, %v3995, 0.0
        %v5005 = vsel %vm4957, %v3996, 0.0
        %5006 = vst.msk [vmem:[#allocation2] sm:$0xff] %vm372, 0.0
        %5007 = vst.msk [vmem:[#allocation2 + $0x8] sm:$0xff] %vm372, 0.0
        %5008 = vst.msk [vmem:[#allocation2 + $0x10] sm:$0xff] %vm372, 0.0
        %5009 = vst.msk [vmem:[#allocation2 + $0x18] sm:$0xff] %vm372, 0.0
        %5010 = vst.msk [vmem:[#allocation2 + $0x20] sm:$0xff] %vm372, 0.0
        %5011 = vst.msk [vmem:[#allocation2 + $0x28] sm:$0xff] %vm372, 0.0
        %5012 = vst.msk [vmem:[#allocation2 + $0x198] sm:$0xff] %vm372, 0.0
        %5013 = vst.msk [vmem:[#allocation2 + $0x1a0] sm:$0xff] %vm372, 0.0
        %5014 = vst.msk [vmem:[#allocation2 + $0x1a8] sm:$0xff] %vm372, 0.0
        %5015 = vst.msk [vmem:[#allocation2 + $0x1b0] sm:$0xff] %vm372, 0.0
        %5016 = vst.msk [vmem:[#allocation2 + $0x19] sm:$0xff] %vm372, %v4958
        %5017 = vst.msk [vmem:[#allocation2 + $0x21] sm:$0xff] %vm372, %v4959
        %5018 = vst.msk [vmem:[#allocation2 + $0x29] sm:$0xff] %vm372, %v4960
        %5019 = vst.msk [vmem:[#allocation2 + $0x31] sm:$0xff] %vm372, %v4961
        %5020 = vst.msk [vmem:[#allocation2 + $0x39] sm:$0xff] %vm372, %v4962
        %5021 = vst.msk [vmem:[#allocation2 + $0x41] sm:$0xff] %vm372, %v4963
        %5022 = vst.msk [vmem:[#allocation2 + $0x49] sm:$0xff] %vm372, %v4964
        %5023 = vst.msk [vmem:[#allocation2 + $0x51] sm:$0xff] %vm372, %v4965
        %5024 = vst.msk [vmem:[#allocation2 + $0x59] sm:$0xff] %vm372, %v4966
        %5025 = vst.msk [vmem:[#allocation2 + $0x61] sm:$0xff] %vm372, %v4967
        %5026 = vst.msk [vmem:[#allocation2 + $0x69] sm:$0xff] %vm372, %v4968
        %5027 = vst.msk [vmem:[#allocation2 + $0x71] sm:$0xff] %vm372, %v4969
        %5028 = vst.msk [vmem:[#allocation2 + $0x79] sm:$0xff] %vm372, %v4970
        %5029 = vst.msk [vmem:[#allocation2 + $0x81] sm:$0xff] %vm372, %v4971
        %5030 = vst.msk [vmem:[#allocation2 + $0x89] sm:$0xff] %vm372, %v4972
        %5031 = vst.msk [vmem:[#allocation2 + $0x91] sm:$0xff] %vm372, %v4973
        %5032 = vst.msk [vmem:[#allocation2 + $0x99] sm:$0xff] %vm372, %v4974
        %5033 = vst.msk [vmem:[#allocation2 + $0xa1] sm:$0xff] %vm372, %v4975
        %5034 = vst.msk [vmem:[#allocation2 + $0xa9] sm:$0xff] %vm372, %v4976
        %5035 = vst.msk [vmem:[#allocation2 + $0xb1] sm:$0xff] %vm372, %v4977
        %5036 = vst.msk [vmem:[#allocation2 + $0xb9] sm:$0xff] %vm372, %v4978
        %5037 = vst.msk [vmem:[#allocation2 + $0xc1] sm:$0xff] %vm372, %v4979
        %5038 = vst.msk [vmem:[#allocation2 + $0xc9] sm:$0xff] %vm372, %v4980
        %5039 = vst.msk [vmem:[#allocation2 + $0xd1] sm:$0xff] %vm372, %v4981
        %5040 = vst.msk [vmem:[#allocation2 + $0xd9] sm:$0xff] %vm372, %v4982
        %5041 = vst.msk [vmem:[#allocation2 + $0xe1] sm:$0xff] %vm372, %v4983
        %5042 = vst.msk [vmem:[#allocation2 + $0xe9] sm:$0xff] %vm372, %v4984
        %5043 = vst.msk [vmem:[#allocation2 + $0xf1] sm:$0xff] %vm372, %v4985
        %5044 = vst.msk [vmem:[#allocation2 + $0xf9] sm:$0xff] %vm372, %v4986
        %5045 = vst.msk [vmem:[#allocation2 + $0x101] sm:$0xff] %vm372, %v4987
        %5046 = vst.msk [vmem:[#allocation2 + $0x109] sm:$0xff] %vm372, %v4988
        %5047 = vst.msk [vmem:[#allocation2 + $0x111] sm:$0xff] %vm372, %v4989
        %5048 = vst.msk [vmem:[#allocation2 + $0x119] sm:$0xff] %vm372, %v4990
        %5049 = vst.msk [vmem:[#allocation2 + $0x121] sm:$0xff] %vm372, %v4991
        %5050 = vst.msk [vmem:[#allocation2 + $0x129] sm:$0xff] %vm372, %v4992
        %5051 = vst.msk [vmem:[#allocation2 + $0x131] sm:$0xff] %vm372, %v4993
        %5052 = vst.msk [vmem:[#allocation2 + $0x139] sm:$0xff] %vm372, %v4994
        %5053 = vst.msk [vmem:[#allocation2 + $0x141] sm:$0xff] %vm372, %v4995
        %5054 = vst.msk [vmem:[#allocation2 + $0x149] sm:$0xff] %vm372, %v4996
        %5055 = vst.msk [vmem:[#allocation2 + $0x151] sm:$0xff] %vm372, %v4997
        %5056 = vst.msk [vmem:[#allocation2 + $0x159] sm:$0xff] %vm372, %v4998
        %5057 = vst.msk [vmem:[#allocation2 + $0x161] sm:$0xff] %vm372, %v4999
        %5058 = vst.msk [vmem:[#allocation2 + $0x169] sm:$0xff] %vm372, %v5000
        %5059 = vst.msk [vmem:[#allocation2 + $0x171] sm:$0xff] %vm372, %v5001
        %5060 = vst.msk [vmem:[#allocation2 + $0x179] sm:$0xff] %vm372, %v5002
        %5061 = vst.msk [vmem:[#allocation2 + $0x181] sm:$0xff] %vm372, %v5003
        %5062 = vst.msk [vmem:[#allocation2 + $0x189] sm:$0xff] %vm372, %v5004
        %5063 = vst.msk [vmem:[#allocation2 + $0x191] sm:$0xff] %vm372, %v5005
      $region48: #{basic_block_forward.1} parent=43 // pred_fallthru
        _
      %v5064 = vld [vmem:[#allocation2] sm:$0xff]
      %v5065 = vld [vmem:[#allocation2 + $0x8] sm:$0xff]
      %v5066 = vld [vmem:[#allocation2 + $0x10] sm:$0xff]
      %v5067 = vld [vmem:[#allocation2 + $0x18] sm:$0xff]
      %v5068 = vld [vmem:[#allocation2 + $0x20] sm:$0xff]
      %v5069 = vld [vmem:[#allocation2 + $0x28] sm:$0xff]
      %v5070 = vld [vmem:[#allocation2 + $0x30] sm:$0xff]
      %v5071 = vld [vmem:[#allocation2 + $0x38] sm:$0xff]
      %v5072 = vld [vmem:[#allocation2 + $0x40] sm:$0xff]
      %v5073 = vld [vmem:[#allocation2 + $0x48] sm:$0xff]
      %v5074 = vld [vmem:[#allocation2 + $0x50] sm:$0xff]
      %v5075 = vld [vmem:[#allocation2 + $0x58] sm:$0xff]
      %v5076 = vld [vmem:[#allocation2 + $0x60] sm:$0xff]
      %v5077 = vld [vmem:[#allocation2 + $0x68] sm:$0xff]
      %v5078 = vld [vmem:[#allocation2 + $0x70] sm:$0xff]
      %v5079 = vld [vmem:[#allocation2 + $0x78] sm:$0xff]
      %v5080 = vld [vmem:[#allocation2 + $0x80] sm:$0xff]
      %v5081 = vld [vmem:[#allocation2 + $0x88] sm:$0xff]
      %v5082 = vld [vmem:[#allocation2 + $0x90] sm:$0xff]
      %v5083 = vld [vmem:[#allocation2 + $0x98] sm:$0xff]
      %v5084 = vld [vmem:[#allocation2 + $0xa0] sm:$0xff]
      %v5085 = vld [vmem:[#allocation2 + $0xa8] sm:$0xff]
      %v5086 = vld [vmem:[#allocation2 + $0xb0] sm:$0xff]
      %v5087 = vld [vmem:[#allocation2 + $0xb8] sm:$0xff]
      %v5088 = vld [vmem:[#allocation2 + $0xc0] sm:$0xff]
      %v5089 = vld [vmem:[#allocation2 + $0xc8] sm:$0xff]
      %v5090 = vld [vmem:[#allocation2 + $0xd0] sm:$0xff]
      %v5091 = vld [vmem:[#allocation2 + $0xd8] sm:$0xff]
      %v5092 = vld [vmem:[#allocation2 + $0xe0] sm:$0xff]
      %v5093 = vld [vmem:[#allocation2 + $0xe8] sm:$0xff]
      %v5094 = vld [vmem:[#allocation2 + $0xf0] sm:$0xff]
      %v5095 = vld [vmem:[#allocation2 + $0xf8] sm:$0xff]
      %v5096 = vld [vmem:[#allocation2 + $0x100] sm:$0xff]
      %v5097 = vld [vmem:[#allocation2 + $0x108] sm:$0xff]
      %v5098 = vld [vmem:[#allocation2 + $0x110] sm:$0xff]
      %v5099 = vld [vmem:[#allocation2 + $0x118] sm:$0xff]
      %v5100 = vld [vmem:[#allocation2 + $0x120] sm:$0xff]
      %v5101 = vld [vmem:[#allocation2 + $0x128] sm:$0xff]
      %v5102 = vld [vmem:[#allocation2 + $0x130] sm:$0xff]
      %v5103 = vld [vmem:[#allocation2 + $0x138] sm:$0xff]
      %v5104 = vld [vmem:[#allocation2 + $0x140] sm:$0xff]
      %v5105 = vld [vmem:[#allocation2 + $0x148] sm:$0xff]
      %v5106 = vld [vmem:[#allocation2 + $0x150] sm:$0xff]
      %v5107 = vld [vmem:[#allocation2 + $0x158] sm:$0xff]
      %v5108 = vld [vmem:[#allocation2 + $0x160] sm:$0xff]
      %v5109 = vld [vmem:[#allocation2 + $0x168] sm:$0xff]
      %v5110 = vld [vmem:[#allocation2 + $0x170] sm:$0xff]
      %v5111 = vld [vmem:[#allocation2 + $0x178] sm:$0xff]
      %vm5112 = vcmask 64512
      %5113 = vst.msk [vmem:[#allocation4] sm:$0xff] %vm5112, %v5064
      %5114 = vst.msk [vmem:[#allocation4 + $0x8] sm:$0xff] %vm5112, %v5065
      %5115 = vst.msk [vmem:[#allocation4 + $0x10] sm:$0xff] %vm5112, %v5066
      %5116 = vst.msk [vmem:[#allocation4 + $0x18] sm:$0xff] %vm5112, %v5067
      %5117 = vst.msk [vmem:[#allocation4 + $0x20] sm:$0xff] %vm5112, %v5068
      %5118 = vst.msk [vmem:[#allocation4 + $0x28] sm:$0xff] %vm5112, %v5069
      %5119 = vst.msk [vmem:[#allocation4 + $0x30] sm:$0xff] %vm5112, %v5070
      %5120 = vst.msk [vmem:[#allocation4 + $0x38] sm:$0xff] %vm5112, %v5071
      %5121 = vst.msk [vmem:[#allocation4 + $0x40] sm:$0xff] %vm5112, %v5072
      %5122 = vst.msk [vmem:[#allocation4 + $0x48] sm:$0xff] %vm5112, %v5073
      %5123 = vst.msk [vmem:[#allocation4 + $0x50] sm:$0xff] %vm5112, %v5074
      %5124 = vst.msk [vmem:[#allocation4 + $0x58] sm:$0xff] %vm5112, %v5075
      %5125 = vst.msk [vmem:[#allocation4 + $0x60] sm:$0xff] %vm5112, %v5076
      %5126 = vst.msk [vmem:[#allocation4 + $0x68] sm:$0xff] %vm5112, %v5077
      %5127 = vst.msk [vmem:[#allocation4 + $0x70] sm:$0xff] %vm5112, %v5078
      %5128 = vst.msk [vmem:[#allocation4 + $0x78] sm:$0xff] %vm5112, %v5079
      %5129 = vst.msk [vmem:[#allocation4 + $0x80] sm:$0xff] %vm5112, %v5080
      %5130 = vst.msk [vmem:[#allocation4 + $0x88] sm:$0xff] %vm5112, %v5081
      %5131 = vst.msk [vmem:[#allocation4 + $0x90] sm:$0xff] %vm5112, %v5082
      %5132 = vst.msk [vmem:[#allocation4 + $0x98] sm:$0xff] %vm5112, %v5083
      %5133 = vst.msk [vmem:[#allocation4 + $0xa0] sm:$0xff] %vm5112, %v5084
      %5134 = vst.msk [vmem:[#allocation4 + $0xa8] sm:$0xff] %vm5112, %v5085
      %5135 = vst.msk [vmem:[#allocation4 + $0xb0] sm:$0xff] %vm5112, %v5086
      %5136 = vst.msk [vmem:[#allocation4 + $0xb8] sm:$0xff] %vm5112, %v5087
      %5137 = vst.msk [vmem:[#allocation4 + $0xc0] sm:$0xff] %vm5112, %v5088
      %5138 = vst.msk [vmem:[#allocation4 + $0xc8] sm:$0xff] %vm5112, %v5089
      %5139 = vst.msk [vmem:[#allocation4 + $0xd0] sm:$0xff] %vm5112, %v5090
      %5140 = vst.msk [vmem:[#allocation4 + $0xd8] sm:$0xff] %vm5112, %v5091
      %5141 = vst.msk [vmem:[#allocation4 + $0xe0] sm:$0xff] %vm5112, %v5092
      %5142 = vst.msk [vmem:[#allocation4 + $0xe8] sm:$0xff] %vm5112, %v5093
      %5143 = vst.msk [vmem:[#allocation4 + $0xf0] sm:$0xff] %vm5112, %v5094
      %5144 = vst.msk [vmem:[#allocation4 + $0xf8] sm:$0xff] %vm5112, %v5095
      %5145 = vst.msk [vmem:[#allocation4 + $0x100] sm:$0xff] %vm5112, %v5096
      %5146 = vst.msk [vmem:[#allocation4 + $0x108] sm:$0xff] %vm5112, %v5097
      %5147 = vst.msk [vmem:[#allocation4 + $0x110] sm:$0xff] %vm5112, %v5098
      %5148 = vst.msk [vmem:[#allocation4 + $0x118] sm:$0xff] %vm5112, %v5099
      %5149 = vst.msk [vmem:[#allocation4 + $0x120] sm:$0xff] %vm5112, %v5100
      %5150 = vst.msk [vmem:[#allocation4 + $0x128] sm:$0xff] %vm5112, %v5101
      %5151 = vst.msk [vmem:[#allocation4 + $0x130] sm:$0xff] %vm5112, %v5102
      %5152 = vst.msk [vmem:[#allocation4 + $0x138] sm:$0xff] %vm5112, %v5103
      %5153 = vst.msk [vmem:[#allocation4 + $0x140] sm:$0xff] %vm5112, %v5104
      %5154 = vst.msk [vmem:[#allocation4 + $0x148] sm:$0xff] %vm5112, %v5105
      %5155 = vst.msk [vmem:[#allocation4 + $0x150] sm:$0xff] %vm5112, %v5106
      %5156 = vst.msk [vmem:[#allocation4 + $0x158] sm:$0xff] %vm5112, %v5107
      %5157 = vst.msk [vmem:[#allocation4 + $0x160] sm:$0xff] %vm5112, %v5108
      %5158 = vst.msk [vmem:[#allocation4 + $0x168] sm:$0xff] %vm5112, %v5109
      %5159 = vst.msk [vmem:[#allocation4 + $0x170] sm:$0xff] %vm5112, %v5110
      %5160 = vst.msk [vmem:[#allocation4 + $0x178] sm:$0xff] %vm5112, %v5111
      %v5161 = vld [vmem:[#allocation2 + $0x1] sm:$0xff]
      %v5162 = vld [vmem:[#allocation2 + $0x9] sm:$0xff]
      %v5163 = vld [vmem:[#allocation2 + $0x11] sm:$0xff]
      %v5164 = vld [vmem:[#allocation2 + $0x19] sm:$0xff]
      %v5165 = vld [vmem:[#allocation2 + $0x21] sm:$0xff]
      %v5166 = vld [vmem:[#allocation2 + $0x29] sm:$0xff]
      %v5167 = vld [vmem:[#allocation2 + $0x31] sm:$0xff]
      %v5168 = vld [vmem:[#allocation2 + $0x39] sm:$0xff]
      %v5169 = vld [vmem:[#allocation2 + $0x41] sm:$0xff]
      %v5170 = vld [vmem:[#allocation2 + $0x49] sm:$0xff]
      %v5171 = vld [vmem:[#allocation2 + $0x51] sm:$0xff]
      %v5172 = vld [vmem:[#allocation2 + $0x59] sm:$0xff]
      %v5173 = vld [vmem:[#allocation2 + $0x61] sm:$0xff]
      %v5174 = vld [vmem:[#allocation2 + $0x69] sm:$0xff]
      %v5175 = vld [vmem:[#allocation2 + $0x71] sm:$0xff]
      %v5176 = vld [vmem:[#allocation2 + $0x79] sm:$0xff]
      %v5177 = vld [vmem:[#allocation2 + $0x81] sm:$0xff]
      %v5178 = vld [vmem:[#allocation2 + $0x89] sm:$0xff]
      %v5179 = vld [vmem:[#allocation2 + $0x91] sm:$0xff]
      %v5180 = vld [vmem:[#allocation2 + $0x99] sm:$0xff]
      %v5181 = vld [vmem:[#allocation2 + $0xa1] sm:$0xff]
      %v5182 = vld [vmem:[#allocation2 + $0xa9] sm:$0xff]
      %v5183 = vld [vmem:[#allocation2 + $0xb1] sm:$0xff]
      %v5184 = vld [vmem:[#allocation2 + $0xb9] sm:$0xff]
      %v5185 = vld [vmem:[#allocation2 + $0xc1] sm:$0xff]
      %v5186 = vld [vmem:[#allocation2 + $0xc9] sm:$0xff]
      %v5187 = vld [vmem:[#allocation2 + $0xd1] sm:$0xff]
      %v5188 = vld [vmem:[#allocation2 + $0xd9] sm:$0xff]
      %v5189 = vld [vmem:[#allocation2 + $0xe1] sm:$0xff]
      %v5190 = vld [vmem:[#allocation2 + $0xe9] sm:$0xff]
      %v5191 = vld [vmem:[#allocation2 + $0xf1] sm:$0xff]
      %v5192 = vld [vmem:[#allocation2 + $0xf9] sm:$0xff]
      %v5193 = vld [vmem:[#allocation2 + $0x101] sm:$0xff]
      %v5194 = vld [vmem:[#allocation2 + $0x109] sm:$0xff]
      %v5195 = vld [vmem:[#allocation2 + $0x111] sm:$0xff]
      %v5196 = vld [vmem:[#allocation2 + $0x119] sm:$0xff]
      %v5197 = vld [vmem:[#allocation2 + $0x121] sm:$0xff]
      %v5198 = vld [vmem:[#allocation2 + $0x129] sm:$0xff]
      %v5199 = vld [vmem:[#allocation2 + $0x131] sm:$0xff]
      %v5200 = vld [vmem:[#allocation2 + $0x139] sm:$0xff]
      %v5201 = vld [vmem:[#allocation2 + $0x141] sm:$0xff]
      %v5202 = vld [vmem:[#allocation2 + $0x149] sm:$0xff]
      %v5203 = vld [vmem:[#allocation2 + $0x151] sm:$0xff]
      %v5204 = vld [vmem:[#allocation2 + $0x159] sm:$0xff]
      %v5205 = vld [vmem:[#allocation2 + $0x161] sm:$0xff]
      %v5206 = vld [vmem:[#allocation2 + $0x169] sm:$0xff]
      %v5207 = vld [vmem:[#allocation2 + $0x171] sm:$0xff]
      %v5208 = vld [vmem:[#allocation2 + $0x179] sm:$0xff]
      %5257 = vrot.lane.b32.xlu0 %v5161, 8
      %v5258 = vpop.permute.xlu0 %5257
      %5259 = vrot.lane.b32.xlu0 %v5162, 8
      %v5260 = vpop.permute.xlu0 %5259
      %5261 = vrot.lane.b32.xlu0 %v5163, 8
      %v5262 = vpop.permute.xlu0 %5261
      %5263 = vrot.lane.b32.xlu0 %v5164, 8
      %v5264 = vpop.permute.xlu0 %5263
      %5265 = vrot.lane.b32.xlu0 %v5165, 8
      %v5266 = vpop.permute.xlu0 %5265
      %5267 = vrot.lane.b32.xlu0 %v5166, 8
      %v5268 = vpop.permute.xlu0 %5267
      %5269 = vrot.lane.b32.xlu0 %v5167, 8
      %v5270 = vpop.permute.xlu0 %5269
      %5271 = vrot.lane.b32.xlu0 %v5168, 8
      %v5272 = vpop.permute.xlu0 %5271
      %5273 = vrot.lane.b32.xlu0 %v5169, 8
      %v5274 = vpop.permute.xlu0 %5273
      %5275 = vrot.lane.b32.xlu0 %v5170, 8
      %v5276 = vpop.permute.xlu0 %5275
      %5277 = vrot.lane.b32.xlu0 %v5171, 8
      %v5278 = vpop.permute.xlu0 %5277
      %5279 = vrot.lane.b32.xlu0 %v5172, 8
      %v5280 = vpop.permute.xlu0 %5279
      %5281 = vrot.lane.b32.xlu0 %v5173, 8
      %v5282 = vpop.permute.xlu0 %5281
      %5283 = vrot.lane.b32.xlu0 %v5174, 8
      %v5284 = vpop.permute.xlu0 %5283
      %5285 = vrot.lane.b32.xlu0 %v5175, 8
      %v5286 = vpop.permute.xlu0 %5285
      %5287 = vrot.lane.b32.xlu0 %v5176, 8
      %v5288 = vpop.permute.xlu0 %5287
      %5289 = vrot.lane.b32.xlu0 %v5177, 8
      %v5290 = vpop.permute.xlu0 %5289
      %5291 = vrot.lane.b32.xlu0 %v5178, 8
      %v5292 = vpop.permute.xlu0 %5291
      %5293 = vrot.lane.b32.xlu0 %v5179, 8
      %v5294 = vpop.permute.xlu0 %5293
      %5295 = vrot.lane.b32.xlu0 %v5180, 8
      %v5296 = vpop.permute.xlu0 %5295
      %5297 = vrot.lane.b32.xlu0 %v5181, 8
      %v5298 = vpop.permute.xlu0 %5297
      %5299 = vrot.lane.b32.xlu0 %v5182, 8
      %v5300 = vpop.permute.xlu0 %5299
      %5301 = vrot.lane.b32.xlu0 %v5183, 8
      %v5302 = vpop.permute.xlu0 %5301
      %5303 = vrot.lane.b32.xlu0 %v5184, 8
      %v5304 = vpop.permute.xlu0 %5303
      %5305 = vrot.lane.b32.xlu0 %v5185, 8
      %v5306 = vpop.permute.xlu0 %5305
      %5307 = vrot.lane.b32.xlu0 %v5186, 8
      %v5308 = vpop.permute.xlu0 %5307
      %5309 = vrot.lane.b32.xlu0 %v5187, 8
      %v5310 = vpop.permute.xlu0 %5309
      %5311 = vrot.lane.b32.xlu0 %v5188, 8
      %v5312 = vpop.permute.xlu0 %5311
      %5313 = vrot.lane.b32.xlu0 %v5189, 8
      %v5314 = vpop.permute.xlu0 %5313
      %5315 = vrot.lane.b32.xlu0 %v5190, 8
      %v5316 = vpop.permute.xlu0 %5315
      %5317 = vrot.lane.b32.xlu0 %v5191, 8
      %v5318 = vpop.permute.xlu0 %5317
      %5319 = vrot.lane.b32.xlu0 %v5192, 8
      %v5320 = vpop.permute.xlu0 %5319
      %5321 = vrot.lane.b32.xlu0 %v5193, 8
      %v5322 = vpop.permute.xlu0 %5321
      %5323 = vrot.lane.b32.xlu0 %v5194, 8
      %v5324 = vpop.permute.xlu0 %5323
      %5325 = vrot.lane.b32.xlu0 %v5195, 8
      %v5326 = vpop.permute.xlu0 %5325
      %5327 = vrot.lane.b32.xlu0 %v5196, 8
      %v5328 = vpop.permute.xlu0 %5327
      %5329 = vrot.lane.b32.xlu0 %v5197, 8
      %v5330 = vpop.permute.xlu0 %5329
      %5331 = vrot.lane.b32.xlu0 %v5198, 8
      %v5332 = vpop.permute.xlu0 %5331
      %5333 = vrot.lane.b32.xlu0 %v5199, 8
      %v5334 = vpop.permute.xlu0 %5333
      %5335 = vrot.lane.b32.xlu0 %v5200, 8
      %v5336 = vpop.permute.xlu0 %5335
      %5337 = vrot.lane.b32.xlu0 %v5201, 8
      %v5338 = vpop.permute.xlu0 %5337
      %5339 = vrot.lane.b32.xlu0 %v5202, 8
      %v5340 = vpop.permute.xlu0 %5339
      %5341 = vrot.lane.b32.xlu0 %v5203, 8
      %v5342 = vpop.permute.xlu0 %5341
      %5343 = vrot.lane.b32.xlu0 %v5204, 8
      %v5344 = vpop.permute.xlu0 %5343
      %5345 = vrot.lane.b32.xlu0 %v5205, 8
      %v5346 = vpop.permute.xlu0 %5345
      %5347 = vrot.lane.b32.xlu0 %v5206, 8
      %v5348 = vpop.permute.xlu0 %5347
      %5349 = vrot.lane.b32.xlu0 %v5207, 8
      %v5350 = vpop.permute.xlu0 %5349
      %5351 = vrot.lane.b32.xlu0 %v5208, 8
      %v5352 = vpop.permute.xlu0 %5351
      %vm5401 = vcmask 130112
      %5402 = vst.msk [vmem:[#allocation4] sm:$0xff] %vm5401, %v5258
      %5403 = vst.msk [vmem:[#allocation4 + $0x8] sm:$0xff] %vm5401, %v5260
      %5404 = vst.msk [vmem:[#allocation4 + $0x10] sm:$0xff] %vm5401, %v5262
      %5405 = vst.msk [vmem:[#allocation4 + $0x18] sm:$0xff] %vm5401, %v5264
      %5406 = vst.msk [vmem:[#allocation4 + $0x20] sm:$0xff] %vm5401, %v5266
      %5407 = vst.msk [vmem:[#allocation4 + $0x28] sm:$0xff] %vm5401, %v5268
      %5408 = vst.msk [vmem:[#allocation4 + $0x30] sm:$0xff] %vm5401, %v5270
      %5409 = vst.msk [vmem:[#allocation4 + $0x38] sm:$0xff] %vm5401, %v5272
      %5410 = vst.msk [vmem:[#allocation4 + $0x40] sm:$0xff] %vm5401, %v5274
      %5411 = vst.msk [vmem:[#allocation4 + $0x48] sm:$0xff] %vm5401, %v5276
      %5412 = vst.msk [vmem:[#allocation4 + $0x50] sm:$0xff] %vm5401, %v5278
      %5413 = vst.msk [vmem:[#allocation4 + $0x58] sm:$0xff] %vm5401, %v5280
      %5414 = vst.msk [vmem:[#allocation4 + $0x60] sm:$0xff] %vm5401, %v5282
      %5415 = vst.msk [vmem:[#allocation4 + $0x68] sm:$0xff] %vm5401, %v5284
      %5416 = vst.msk [vmem:[#allocation4 + $0x70] sm:$0xff] %vm5401, %v5286
      %5417 = vst.msk [vmem:[#allocation4 + $0x78] sm:$0xff] %vm5401, %v5288
      %5418 = vst.msk [vmem:[#allocation4 + $0x80] sm:$0xff] %vm5401, %v5290
      %5419 = vst.msk [vmem:[#allocation4 + $0x88] sm:$0xff] %vm5401, %v5292
      %5420 = vst.msk [vmem:[#allocation4 + $0x90] sm:$0xff] %vm5401, %v5294
      %5421 = vst.msk [vmem:[#allocation4 + $0x98] sm:$0xff] %vm5401, %v5296
      %5422 = vst.msk [vmem:[#allocation4 + $0xa0] sm:$0xff] %vm5401, %v5298
      %5423 = vst.msk [vmem:[#allocation4 + $0xa8] sm:$0xff] %vm5401, %v5300
      %5424 = vst.msk [vmem:[#allocation4 + $0xb0] sm:$0xff] %vm5401, %v5302
      %5425 = vst.msk [vmem:[#allocation4 + $0xb8] sm:$0xff] %vm5401, %v5304
      %5426 = vst.msk [vmem:[#allocation4 + $0xc0] sm:$0xff] %vm5401, %v5306
      %5427 = vst.msk [vmem:[#allocation4 + $0xc8] sm:$0xff] %vm5401, %v5308
      %5428 = vst.msk [vmem:[#allocation4 + $0xd0] sm:$0xff] %vm5401, %v5310
      %5429 = vst.msk [vmem:[#allocation4 + $0xd8] sm:$0xff] %vm5401, %v5312
      %5430 = vst.msk [vmem:[#allocation4 + $0xe0] sm:$0xff] %vm5401, %v5314
      %5431 = vst.msk [vmem:[#allocation4 + $0xe8] sm:$0xff] %vm5401, %v5316
      %5432 = vst.msk [vmem:[#allocation4 + $0xf0] sm:$0xff] %vm5401, %v5318
      %5433 = vst.msk [vmem:[#allocation4 + $0xf8] sm:$0xff] %vm5401, %v5320
      %5434 = vst.msk [vmem:[#allocation4 + $0x100] sm:$0xff] %vm5401, %v5322
      %5435 = vst.msk [vmem:[#allocation4 + $0x108] sm:$0xff] %vm5401, %v5324
      %5436 = vst.msk [vmem:[#allocation4 + $0x110] sm:$0xff] %vm5401, %v5326
      %5437 = vst.msk [vmem:[#allocation4 + $0x118] sm:$0xff] %vm5401, %v5328
      %5438 = vst.msk [vmem:[#allocation4 + $0x120] sm:$0xff] %vm5401, %v5330
      %5439 = vst.msk [vmem:[#allocation4 + $0x128] sm:$0xff] %vm5401, %v5332
      %5440 = vst.msk [vmem:[#allocation4 + $0x130] sm:$0xff] %vm5401, %v5334
      %5441 = vst.msk [vmem:[#allocation4 + $0x138] sm:$0xff] %vm5401, %v5336
      %5442 = vst.msk [vmem:[#allocation4 + $0x140] sm:$0xff] %vm5401, %v5338
      %5443 = vst.msk [vmem:[#allocation4 + $0x148] sm:$0xff] %vm5401, %v5340
      %5444 = vst.msk [vmem:[#allocation4 + $0x150] sm:$0xff] %vm5401, %v5342
      %5445 = vst.msk [vmem:[#allocation4 + $0x158] sm:$0xff] %vm5401, %v5344
      %5446 = vst.msk [vmem:[#allocation4 + $0x160] sm:$0xff] %vm5401, %v5346
      %5447 = vst.msk [vmem:[#allocation4 + $0x168] sm:$0xff] %vm5401, %v5348
      %5448 = vst.msk [vmem:[#allocation4 + $0x170] sm:$0xff] %vm5401, %v5350
      %5449 = vst.msk [vmem:[#allocation4 + $0x178] sm:$0xff] %vm5401, %v5352
      %v5450 = vld [vmem:[#allocation2 + $0x2] sm:$0xff]
      %v5451 = vld [vmem:[#allocation2 + $0xa] sm:$0xff]
      %v5452 = vld [vmem:[#allocation2 + $0x12] sm:$0xff]
      %v5453 = vld [vmem:[#allocation2 + $0x1a] sm:$0xff]
      %v5454 = vld [vmem:[#allocation2 + $0x22] sm:$0xff]
      %v5455 = vld [vmem:[#allocation2 + $0x2a] sm:$0xff]
      %v5456 = vld [vmem:[#allocation2 + $0x32] sm:$0xff]
      %v5457 = vld [vmem:[#allocation2 + $0x3a] sm:$0xff]
      %v5458 = vld [vmem:[#allocation2 + $0x42] sm:$0xff]
      %v5459 = vld [vmem:[#allocation2 + $0x4a] sm:$0xff]
      %v5460 = vld [vmem:[#allocation2 + $0x52] sm:$0xff]
      %v5461 = vld [vmem:[#allocation2 + $0x5a] sm:$0xff]
      %v5462 = vld [vmem:[#allocation2 + $0x62] sm:$0xff]
      %v5463 = vld [vmem:[#allocation2 + $0x6a] sm:$0xff]
      %v5464 = vld [vmem:[#allocation2 + $0x72] sm:$0xff]
      %v5465 = vld [vmem:[#allocation2 + $0x7a] sm:$0xff]
      %v5466 = vld [vmem:[#allocation2 + $0x82] sm:$0xff]
      %v5467 = vld [vmem:[#allocation2 + $0x8a] sm:$0xff]
      %v5468 = vld [vmem:[#allocation2 + $0x92] sm:$0xff]
      %v5469 = vld [vmem:[#allocation2 + $0x9a] sm:$0xff]
      %v5470 = vld [vmem:[#allocation2 + $0xa2] sm:$0xff]
      %v5471 = vld [vmem:[#allocation2 + $0xaa] sm:$0xff]
      %v5472 = vld [vmem:[#allocation2 + $0xb2] sm:$0xff]
      %v5473 = vld [vmem:[#allocation2 + $0xba] sm:$0xff]
      %v5474 = vld [vmem:[#allocation2 + $0xc2] sm:$0xff]
      %v5475 = vld [vmem:[#allocation2 + $0xca] sm:$0xff]
      %v5476 = vld [vmem:[#allocation2 + $0xd2] sm:$0xff]
      %v5477 = vld [vmem:[#allocation2 + $0xda] sm:$0xff]
      %v5478 = vld [vmem:[#allocation2 + $0xe2] sm:$0xff]
      %v5479 = vld [vmem:[#allocation2 + $0xea] sm:$0xff]
      %v5480 = vld [vmem:[#allocation2 + $0xf2] sm:$0xff]
      %v5481 = vld [vmem:[#allocation2 + $0xfa] sm:$0xff]
      %v5482 = vld [vmem:[#allocation2 + $0x102] sm:$0xff]
      %v5483 = vld [vmem:[#allocation2 + $0x10a] sm:$0xff]
      %v5484 = vld [vmem:[#allocation2 + $0x112] sm:$0xff]
      %v5485 = vld [vmem:[#allocation2 + $0x11a] sm:$0xff]
      %v5486 = vld [vmem:[#allocation2 + $0x122] sm:$0xff]
      %v5487 = vld [vmem:[#allocation2 + $0x12a] sm:$0xff]
      %v5488 = vld [vmem:[#allocation2 + $0x132] sm:$0xff]
      %v5489 = vld [vmem:[#allocation2 + $0x13a] sm:$0xff]
      %v5490 = vld [vmem:[#allocation2 + $0x142] sm:$0xff]
      %v5491 = vld [vmem:[#allocation2 + $0x14a] sm:$0xff]
      %v5492 = vld [vmem:[#allocation2 + $0x152] sm:$0xff]
      %v5493 = vld [vmem:[#allocation2 + $0x15a] sm:$0xff]
      %v5494 = vld [vmem:[#allocation2 + $0x162] sm:$0xff]
      %v5495 = vld [vmem:[#allocation2 + $0x16a] sm:$0xff]
      %v5496 = vld [vmem:[#allocation2 + $0x172] sm:$0xff]
      %v5497 = vld [vmem:[#allocation2 + $0x17a] sm:$0xff]
      %5546 = vrot.lane.b32.xlu0 %v5450, 16
      %v5547 = vpop.permute.xlu0 %5546
      %5548 = vrot.lane.b32.xlu0 %v5451, 16
      %v5549 = vpop.permute.xlu0 %5548
      %5550 = vrot.lane.b32.xlu0 %v5452, 16
      %v5551 = vpop.permute.xlu0 %5550
      %5552 = vrot.lane.b32.xlu0 %v5453, 16
      %v5553 = vpop.permute.xlu0 %5552
      %5554 = vrot.lane.b32.xlu0 %v5454, 16
      %v5555 = vpop.permute.xlu0 %5554
      %5556 = vrot.lane.b32.xlu0 %v5455, 16
      %v5557 = vpop.permute.xlu0 %5556
      %5558 = vrot.lane.b32.xlu0 %v5456, 16
      %v5559 = vpop.permute.xlu0 %5558
      %5560 = vrot.lane.b32.xlu0 %v5457, 16
      %v5561 = vpop.permute.xlu0 %5560
      %5562 = vrot.lane.b32.xlu0 %v5458, 16
      %v5563 = vpop.permute.xlu0 %5562
      %5564 = vrot.lane.b32.xlu0 %v5459, 16
      %v5565 = vpop.permute.xlu0 %5564
      %5566 = vrot.lane.b32.xlu0 %v5460, 16
      %v5567 = vpop.permute.xlu0 %5566
      %5568 = vrot.lane.b32.xlu0 %v5461, 16
      %v5569 = vpop.permute.xlu0 %5568
      %5570 = vrot.lane.b32.xlu0 %v5462, 16
      %v5571 = vpop.permute.xlu0 %5570
      %5572 = vrot.lane.b32.xlu0 %v5463, 16
      %v5573 = vpop.permute.xlu0 %5572
      %5574 = vrot.lane.b32.xlu0 %v5464, 16
      %v5575 = vpop.permute.xlu0 %5574
      %5576 = vrot.lane.b32.xlu0 %v5465, 16
      %v5577 = vpop.permute.xlu0 %5576
      %5578 = vrot.lane.b32.xlu0 %v5466, 16
      %v5579 = vpop.permute.xlu0 %5578
      %5580 = vrot.lane.b32.xlu0 %v5467, 16
      %v5581 = vpop.permute.xlu0 %5580
      %5582 = vrot.lane.b32.xlu0 %v5468, 16
      %v5583 = vpop.permute.xlu0 %5582
      %5584 = vrot.lane.b32.xlu0 %v5469, 16
      %v5585 = vpop.permute.xlu0 %5584
      %5586 = vrot.lane.b32.xlu0 %v5470, 16
      %v5587 = vpop.permute.xlu0 %5586
      %5588 = vrot.lane.b32.xlu0 %v5471, 16
      %v5589 = vpop.permute.xlu0 %5588
      %5590 = vrot.lane.b32.xlu0 %v5472, 16
      %v5591 = vpop.permute.xlu0 %5590
      %5592 = vrot.lane.b32.xlu0 %v5473, 16
      %v5593 = vpop.permute.xlu0 %5592
      %5594 = vrot.lane.b32.xlu0 %v5474, 16
      %v5595 = vpop.permute.xlu0 %5594
      %5596 = vrot.lane.b32.xlu0 %v5475, 16
      %v5597 = vpop.permute.xlu0 %5596
      %5598 = vrot.lane.b32.xlu0 %v5476, 16
      %v5599 = vpop.permute.xlu0 %5598
      %5600 = vrot.lane.b32.xlu0 %v5477, 16
      %v5601 = vpop.permute.xlu0 %5600
      %5602 = vrot.lane.b32.xlu0 %v5478, 16
      %v5603 = vpop.permute.xlu0 %5602
      %5604 = vrot.lane.b32.xlu0 %v5479, 16
      %v5605 = vpop.permute.xlu0 %5604
      %5606 = vrot.lane.b32.xlu0 %v5480, 16
      %v5607 = vpop.permute.xlu0 %5606
      %5608 = vrot.lane.b32.xlu0 %v5481, 16
      %v5609 = vpop.permute.xlu0 %5608
      %5610 = vrot.lane.b32.xlu0 %v5482, 16
      %v5611 = vpop.permute.xlu0 %5610
      %5612 = vrot.lane.b32.xlu0 %v5483, 16
      %v5613 = vpop.permute.xlu0 %5612
      %5614 = vrot.lane.b32.xlu0 %v5484, 16
      %v5615 = vpop.permute.xlu0 %5614
      %5616 = vrot.lane.b32.xlu0 %v5485, 16
      %v5617 = vpop.permute.xlu0 %5616
      %5618 = vrot.lane.b32.xlu0 %v5486, 16
      %v5619 = vpop.permute.xlu0 %5618
      %5620 = vrot.lane.b32.xlu0 %v5487, 16
      %v5621 = vpop.permute.xlu0 %5620
      %5622 = vrot.lane.b32.xlu0 %v5488, 16
      %v5623 = vpop.permute.xlu0 %5622
      %5624 = vrot.lane.b32.xlu0 %v5489, 16
      %v5625 = vpop.permute.xlu0 %5624
      %5626 = vrot.lane.b32.xlu0 %v5490, 16
      %v5627 = vpop.permute.xlu0 %5626
      %5628 = vrot.lane.b32.xlu0 %v5491, 16
      %v5629 = vpop.permute.xlu0 %5628
      %5630 = vrot.lane.b32.xlu0 %v5492, 16
      %v5631 = vpop.permute.xlu0 %5630
      %5632 = vrot.lane.b32.xlu0 %v5493, 16
      %v5633 = vpop.permute.xlu0 %5632
      %5634 = vrot.lane.b32.xlu0 %v5494, 16
      %v5635 = vpop.permute.xlu0 %5634
      %5636 = vrot.lane.b32.xlu0 %v5495, 16
      %v5637 = vpop.permute.xlu0 %5636
      %5638 = vrot.lane.b32.xlu0 %v5496, 16
      %v5639 = vpop.permute.xlu0 %5638
      %5640 = vrot.lane.b32.xlu0 %v5497, 16
      %v5641 = vpop.permute.xlu0 %5640
      %vm5690 = vcmask 195712
      %5691 = vst.msk [vmem:[#allocation4] sm:$0xff] %vm5690, %v5547
      %5692 = vst.msk [vmem:[#allocation4 + $0x8] sm:$0xff] %vm5690, %v5549
      %5693 = vst.msk [vmem:[#allocation4 + $0x10] sm:$0xff] %vm5690, %v5551
      %5694 = vst.msk [vmem:[#allocation4 + $0x18] sm:$0xff] %vm5690, %v5553
      %5695 = vst.msk [vmem:[#allocation4 + $0x20] sm:$0xff] %vm5690, %v5555
      %5696 = vst.msk [vmem:[#allocation4 + $0x28] sm:$0xff] %vm5690, %v5557
      %5697 = vst.msk [vmem:[#allocation4 + $0x30] sm:$0xff] %vm5690, %v5559
      %5698 = vst.msk [vmem:[#allocation4 + $0x38] sm:$0xff] %vm5690, %v5561
      %5699 = vst.msk [vmem:[#allocation4 + $0x40] sm:$0xff] %vm5690, %v5563
      %5700 = vst.msk [vmem:[#allocation4 + $0x48] sm:$0xff] %vm5690, %v5565
      %5701 = vst.msk [vmem:[#allocation4 + $0x50] sm:$0xff] %vm5690, %v5567
      %5702 = vst.msk [vmem:[#allocation4 + $0x58] sm:$0xff] %vm5690, %v5569
      %5703 = vst.msk [vmem:[#allocation4 + $0x60] sm:$0xff] %vm5690, %v5571
      %5704 = vst.msk [vmem:[#allocation4 + $0x68] sm:$0xff] %vm5690, %v5573
      %5705 = vst.msk [vmem:[#allocation4 + $0x70] sm:$0xff] %vm5690, %v5575
      %5706 = vst.msk [vmem:[#allocation4 + $0x78] sm:$0xff] %vm5690, %v5577
      %5707 = vst.msk [vmem:[#allocation4 + $0x80] sm:$0xff] %vm5690, %v5579
      %5708 = vst.msk [vmem:[#allocation4 + $0x88] sm:$0xff] %vm5690, %v5581
      %5709 = vst.msk [vmem:[#allocation4 + $0x90] sm:$0xff] %vm5690, %v5583
      %5710 = vst.msk [vmem:[#allocation4 + $0x98] sm:$0xff] %vm5690, %v5585
      %5711 = vst.msk [vmem:[#allocation4 + $0xa0] sm:$0xff] %vm5690, %v5587
      %5712 = vst.msk [vmem:[#allocation4 + $0xa8] sm:$0xff] %vm5690, %v5589
      %5713 = vst.msk [vmem:[#allocation4 + $0xb0] sm:$0xff] %vm5690, %v5591
      %5714 = vst.msk [vmem:[#allocation4 + $0xb8] sm:$0xff] %vm5690, %v5593
      %5715 = vst.msk [vmem:[#allocation4 + $0xc0] sm:$0xff] %vm5690, %v5595
      %5716 = vst.msk [vmem:[#allocation4 + $0xc8] sm:$0xff] %vm5690, %v5597
      %5717 = vst.msk [vmem:[#allocation4 + $0xd0] sm:$0xff] %vm5690, %v5599
      %5718 = vst.msk [vmem:[#allocation4 + $0xd8] sm:$0xff] %vm5690, %v5601
      %5719 = vst.msk [vmem:[#allocation4 + $0xe0] sm:$0xff] %vm5690, %v5603
      %5720 = vst.msk [vmem:[#allocation4 + $0xe8] sm:$0xff] %vm5690, %v5605
      %5721 = vst.msk [vmem:[#allocation4 + $0xf0] sm:$0xff] %vm5690, %v5607
      %5722 = vst.msk [vmem:[#allocation4 + $0xf8] sm:$0xff] %vm5690, %v5609
      %5723 = vst.msk [vmem:[#allocation4 + $0x100] sm:$0xff] %vm5690, %v5611
      %5724 = vst.msk [vmem:[#allocation4 + $0x108] sm:$0xff] %vm5690, %v5613
      %5725 = vst.msk [vmem:[#allocation4 + $0x110] sm:$0xff] %vm5690, %v5615
      %5726 = vst.msk [vmem:[#allocation4 + $0x118] sm:$0xff] %vm5690, %v5617
      %5727 = vst.msk [vmem:[#allocation4 + $0x120] sm:$0xff] %vm5690, %v5619
      %5728 = vst.msk [vmem:[#allocation4 + $0x128] sm:$0xff] %vm5690, %v5621
      %5729 = vst.msk [vmem:[#allocation4 + $0x130] sm:$0xff] %vm5690, %v5623
      %5730 = vst.msk [vmem:[#allocation4 + $0x138] sm:$0xff] %vm5690, %v5625
      %5731 = vst.msk [vmem:[#allocation4 + $0x140] sm:$0xff] %vm5690, %v5627
      %5732 = vst.msk [vmem:[#allocation4 + $0x148] sm:$0xff] %vm5690, %v5629
      %5733 = vst.msk [vmem:[#allocation4 + $0x150] sm:$0xff] %vm5690, %v5631
      %5734 = vst.msk [vmem:[#allocation4 + $0x158] sm:$0xff] %vm5690, %v5633
      %5735 = vst.msk [vmem:[#allocation4 + $0x160] sm:$0xff] %vm5690, %v5635
      %5736 = vst.msk [vmem:[#allocation4 + $0x168] sm:$0xff] %vm5690, %v5637
      %5737 = vst.msk [vmem:[#allocation4 + $0x170] sm:$0xff] %vm5690, %v5639
      %5738 = vst.msk [vmem:[#allocation4 + $0x178] sm:$0xff] %vm5690, %v5641
      %v5739 = vld [vmem:[#allocation4] sm:$0xff]
      %v5740 = vld [vmem:[#allocation4 + $0x8] sm:$0xff]
      %v5741 = vld [vmem:[#allocation4 + $0x10] sm:$0xff]
      %v5742 = vld [vmem:[#allocation4 + $0x18] sm:$0xff]
      %v5743 = vld [vmem:[#allocation4 + $0x20] sm:$0xff]
      %v5744 = vld [vmem:[#allocation4 + $0x28] sm:$0xff]
      %v5745 = vld [vmem:[#allocation4 + $0x30] sm:$0xff]
      %v5746 = vld [vmem:[#allocation4 + $0x38] sm:$0xff]
      %v5747 = vld [vmem:[#allocation4 + $0x40] sm:$0xff]
      %v5748 = vld [vmem:[#allocation4 + $0x48] sm:$0xff]
      %v5749 = vld [vmem:[#allocation4 + $0x50] sm:$0xff]
      %v5750 = vld [vmem:[#allocation4 + $0x58] sm:$0xff]
      %v5751 = vld [vmem:[#allocation4 + $0x60] sm:$0xff]
      %v5752 = vld [vmem:[#allocation4 + $0x68] sm:$0xff]
      %v5753 = vld [vmem:[#allocation4 + $0x70] sm:$0xff]
      %v5754 = vld [vmem:[#allocation4 + $0x78] sm:$0xff]
      %v5755 = vld [vmem:[#allocation4 + $0x80] sm:$0xff]
      %v5756 = vld [vmem:[#allocation4 + $0x88] sm:$0xff]
      %v5757 = vld [vmem:[#allocation4 + $0x90] sm:$0xff]
      %v5758 = vld [vmem:[#allocation4 + $0x98] sm:$0xff]
      %v5759 = vld [vmem:[#allocation4 + $0xa0] sm:$0xff]
      %v5760 = vld [vmem:[#allocation4 + $0xa8] sm:$0xff]
      %v5761 = vld [vmem:[#allocation4 + $0xb0] sm:$0xff]
      %v5762 = vld [vmem:[#allocation4 + $0xb8] sm:$0xff]
      %v5763 = vld [vmem:[#allocation4 + $0xc0] sm:$0xff]
      %v5764 = vld [vmem:[#allocation4 + $0xc8] sm:$0xff]
      %v5765 = vld [vmem:[#allocation4 + $0xd0] sm:$0xff]
      %v5766 = vld [vmem:[#allocation4 + $0xd8] sm:$0xff]
      %v5767 = vld [vmem:[#allocation4 + $0xe0] sm:$0xff]
      %v5768 = vld [vmem:[#allocation4 + $0xe8] sm:$0xff]
      %v5769 = vld [vmem:[#allocation4 + $0xf0] sm:$0xff]
      %v5770 = vld [vmem:[#allocation4 + $0xf8] sm:$0xff]
      %v5771 = vld [vmem:[#allocation4 + $0x100] sm:$0xff]
      %v5772 = vld [vmem:[#allocation4 + $0x108] sm:$0xff]
      %v5773 = vld [vmem:[#allocation4 + $0x110] sm:$0xff]
      %v5774 = vld [vmem:[#allocation4 + $0x118] sm:$0xff]
      %v5775 = vld [vmem:[#allocation4 + $0x120] sm:$0xff]
      %v5776 = vld [vmem:[#allocation4 + $0x128] sm:$0xff]
      %v5777 = vld [vmem:[#allocation4 + $0x130] sm:$0xff]
      %v5778 = vld [vmem:[#allocation4 + $0x138] sm:$0xff]
      %v5779 = vld [vmem:[#allocation4 + $0x140] sm:$0xff]
      %v5780 = vld [vmem:[#allocation4 + $0x148] sm:$0xff]
      %v5781 = vld [vmem:[#allocation4 + $0x150] sm:$0xff]
      %v5782 = vld [vmem:[#allocation4 + $0x158] sm:$0xff]
      %v5783 = vld [vmem:[#allocation4 + $0x160] sm:$0xff]
      %v5784 = vld [vmem:[#allocation4 + $0x168] sm:$0xff]
      %v5785 = vld [vmem:[#allocation4 + $0x170] sm:$0xff]
      %v5786 = vld [vmem:[#allocation4 + $0x178] sm:$0xff]
      %v5787 = vld [vmem:[%s304] sm:$0xff]
      %v5788 = vld [vmem:[%s304 + $0x8] sm:$0xff]
      %v5789 = vld [vmem:[%s304 + $0x10] sm:$0xff]
      %v5790 = vld [vmem:[#allocation2 + $0x18] sm:$0xff]
      %v5791 = vld [vmem:[#allocation2 + $0x20] sm:$0xff]
      %v5792 = vld [vmem:[#allocation2 + $0x28] sm:$0xff]
      %v5793 = vld [vmem:[#allocation2 + $0x30] sm:$0xff]
      %v5794 = vld [vmem:[#allocation2 + $0x38] sm:$0xff]
      %v5795 = vld [vmem:[#allocation2 + $0x40] sm:$0xff]
      %v5796 = vld [vmem:[#allocation2 + $0x48] sm:$0xff]
      %v5797 = vld [vmem:[#allocation2 + $0x50] sm:$0xff]
      %v5798 = vld [vmem:[#allocation2 + $0x58] sm:$0xff]
      %v5799 = vld [vmem:[#allocation2 + $0x60] sm:$0xff]
      %v5800 = vld [vmem:[#allocation2 + $0x68] sm:$0xff]
      %v5801 = vld [vmem:[#allocation2 + $0x70] sm:$0xff]
      %v5802 = vld [vmem:[#allocation2 + $0x78] sm:$0xff]
      %v5803 = vld [vmem:[#allocation2 + $0x80] sm:$0xff]
      %v5804 = vld [vmem:[#allocation2 + $0x88] sm:$0xff]
      %v5805 = vld [vmem:[#allocation2 + $0x90] sm:$0xff]
      %v5806 = vld [vmem:[#allocation2 + $0x98] sm:$0xff]
      %v5807 = vld [vmem:[#allocation2 + $0xa0] sm:$0xff]
      %v5808 = vld [vmem:[#allocation2 + $0xa8] sm:$0xff]
      %v5809 = vld [vmem:[#allocation2 + $0xb0] sm:$0xff]
      %v5810 = vld [vmem:[#allocation2 + $0xb8] sm:$0xff]
      %v5811 = vld [vmem:[#allocation2 + $0xc0] sm:$0xff]
      %v5812 = vld [vmem:[#allocation2 + $0xc8] sm:$0xff]
      %v5813 = vld [vmem:[#allocation2 + $0xd0] sm:$0xff]
      %v5814 = vld [vmem:[#allocation2 + $0xd8] sm:$0xff]
      %v5815 = vld [vmem:[#allocation2 + $0xe0] sm:$0xff]
      %v5816 = vld [vmem:[#allocation2 + $0xe8] sm:$0xff]
      %v5817 = vld [vmem:[#allocation2 + $0xf0] sm:$0xff]
      %v5818 = vld [vmem:[#allocation2 + $0xf8] sm:$0xff]
      %v5819 = vld [vmem:[#allocation2 + $0x100] sm:$0xff]
      %v5820 = vld [vmem:[#allocation2 + $0x108] sm:$0xff]
      %v5821 = vld [vmem:[#allocation2 + $0x110] sm:$0xff]
      %v5822 = vld [vmem:[#allocation2 + $0x118] sm:$0xff]
      %v5823 = vld [vmem:[#allocation2 + $0x120] sm:$0xff]
      %v5824 = vld [vmem:[#allocation2 + $0x128] sm:$0xff]
      %v5825 = vld [vmem:[#allocation2 + $0x130] sm:$0xff]
      %v5826 = vld [vmem:[#allocation2 + $0x138] sm:$0xff]
      %v5827 = vld [vmem:[#allocation2 + $0x140] sm:$0xff]
      %v5828 = vld [vmem:[#allocation2 + $0x148] sm:$0xff]
      %v5829 = vld [vmem:[#allocation2 + $0x150] sm:$0xff]
      %v5830 = vld [vmem:[#allocation2 + $0x158] sm:$0xff]
      %v5831 = vld [vmem:[#allocation2 + $0x160] sm:$0xff]
      %v5832 = vld [vmem:[#allocation2 + $0x168] sm:$0xff]
      %v5833 = vld [vmem:[#allocation2 + $0x170] sm:$0xff]
      %v5834 = vld [vmem:[#allocation2 + $0x178] sm:$0xff]
      %v5835 = vld [vmem:[#allocation2 + $0x180] sm:$0xff]
      %v5836 = vld [vmem:[#allocation2 + $0x188] sm:$0xff]
      %v5837 = vld [vmem:[#allocation2 + $0x190] sm:$0xff]
      %5838 = vst.msk [vmem:[#allocation4] sm:$0xff] %vm5112, %v5790
      %5839 = vst.msk [vmem:[#allocation4 + $0x8] sm:$0xff] %vm5112, %v5791
      %5840 = vst.msk [vmem:[#allocation4 + $0x10] sm:$0xff] %vm5112, %v5792
      %5841 = vst.msk [vmem:[#allocation4 + $0x18] sm:$0xff] %vm5112, %v5793
      %5842 = vst.msk [vmem:[#allocation4 + $0x20] sm:$0xff] %vm5112, %v5794
      %5843 = vst.msk [vmem:[#allocation4 + $0x28] sm:$0xff] %vm5112, %v5795
      %5844 = vst.msk [vmem:[#allocation4 + $0x30] sm:$0xff] %vm5112, %v5796
      %5845 = vst.msk [vmem:[#allocation4 + $0x38] sm:$0xff] %vm5112, %v5797
      %5846 = vst.msk [vmem:[#allocation4 + $0x40] sm:$0xff] %vm5112, %v5798
      %5847 = vst.msk [vmem:[#allocation4 + $0x48] sm:$0xff] %vm5112, %v5799
      %5848 = vst.msk [vmem:[#allocation4 + $0x50] sm:$0xff] %vm5112, %v5800
      %5849 = vst.msk [vmem:[#allocation4 + $0x58] sm:$0xff] %vm5112, %v5801
      %5850 = vst.msk [vmem:[#allocation4 + $0x60] sm:$0xff] %vm5112, %v5802
      %5851 = vst.msk [vmem:[#allocation4 + $0x68] sm:$0xff] %vm5112, %v5803
      %5852 = vst.msk [vmem:[#allocation4 + $0x70] sm:$0xff] %vm5112, %v5804
      %5853 = vst.msk [vmem:[#allocation4 + $0x78] sm:$0xff] %vm5112, %v5805
      %5854 = vst.msk [vmem:[#allocation4 + $0x80] sm:$0xff] %vm5112, %v5806
      %5855 = vst.msk [vmem:[#allocation4 + $0x88] sm:$0xff] %vm5112, %v5807
      %5856 = vst.msk [vmem:[#allocation4 + $0x90] sm:$0xff] %vm5112, %v5808
      %5857 = vst.msk [vmem:[#allocation4 + $0x98] sm:$0xff] %vm5112, %v5809
      %5858 = vst.msk [vmem:[#allocation4 + $0xa0] sm:$0xff] %vm5112, %v5810
      %5859 = vst.msk [vmem:[#allocation4 + $0xa8] sm:$0xff] %vm5112, %v5811
      %5860 = vst.msk [vmem:[#allocation4 + $0xb0] sm:$0xff] %vm5112, %v5812
      %5861 = vst.msk [vmem:[#allocation4 + $0xb8] sm:$0xff] %vm5112, %v5813
      %5862 = vst.msk [vmem:[#allocation4 + $0xc0] sm:$0xff] %vm5112, %v5814
      %5863 = vst.msk [vmem:[#allocation4 + $0xc8] sm:$0xff] %vm5112, %v5815
      %5864 = vst.msk [vmem:[#allocation4 + $0xd0] sm:$0xff] %vm5112, %v5816
      %5865 = vst.msk [vmem:[#allocation4 + $0xd8] sm:$0xff] %vm5112, %v5817
      %5866 = vst.msk [vmem:[#allocation4 + $0xe0] sm:$0xff] %vm5112, %v5818
      %5867 = vst.msk [vmem:[#allocation4 + $0xe8] sm:$0xff] %vm5112, %v5819
      %5868 = vst.msk [vmem:[#allocation4 + $0xf0] sm:$0xff] %vm5112, %v5820
      %5869 = vst.msk [vmem:[#allocation4 + $0xf8] sm:$0xff] %vm5112, %v5821
      %5870 = vst.msk [vmem:[#allocation4 + $0x100] sm:$0xff] %vm5112, %v5822
      %5871 = vst.msk [vmem:[#allocation4 + $0x108] sm:$0xff] %vm5112, %v5823
      %5872 = vst.msk [vmem:[#allocation4 + $0x110] sm:$0xff] %vm5112, %v5824
      %5873 = vst.msk [vmem:[#allocation4 + $0x118] sm:$0xff] %vm5112, %v5825
      %5874 = vst.msk [vmem:[#allocation4 + $0x120] sm:$0xff] %vm5112, %v5826
      %5875 = vst.msk [vmem:[#allocation4 + $0x128] sm:$0xff] %vm5112, %v5827
      %5876 = vst.msk [vmem:[#allocation4 + $0x130] sm:$0xff] %vm5112, %v5828
      %5877 = vst.msk [vmem:[#allocation4 + $0x138] sm:$0xff] %vm5112, %v5829
      %5878 = vst.msk [vmem:[#allocation4 + $0x140] sm:$0xff] %vm5112, %v5830
      %5879 = vst.msk [vmem:[#allocation4 + $0x148] sm:$0xff] %vm5112, %v5831
      %5880 = vst.msk [vmem:[#allocation4 + $0x150] sm:$0xff] %vm5112, %v5832
      %5881 = vst.msk [vmem:[#allocation4 + $0x158] sm:$0xff] %vm5112, %v5833
      %5882 = vst.msk [vmem:[#allocation4 + $0x160] sm:$0xff] %vm5112, %v5834
      %5883 = vst.msk [vmem:[#allocation4 + $0x168] sm:$0xff] %vm5112, %v5835
      %5884 = vst.msk [vmem:[#allocation4 + $0x170] sm:$0xff] %vm5112, %v5836
      %5885 = vst.msk [vmem:[#allocation4 + $0x178] sm:$0xff] %vm5112, %v5837
      %v5886 = vld [vmem:[#allocation2 + $0x19] sm:$0xff]
      %v5887 = vld [vmem:[#allocation2 + $0x21] sm:$0xff]
      %v5888 = vld [vmem:[#allocation2 + $0x29] sm:$0xff]
      %v5889 = vld [vmem:[#allocation2 + $0x31] sm:$0xff]
      %v5890 = vld [vmem:[#allocation2 + $0x39] sm:$0xff]
      %v5891 = vld [vmem:[#allocation2 + $0x41] sm:$0xff]
      %v5892 = vld [vmem:[#allocation2 + $0x49] sm:$0xff]
      %v5893 = vld [vmem:[#allocation2 + $0x51] sm:$0xff]
      %v5894 = vld [vmem:[#allocation2 + $0x59] sm:$0xff]
      %v5895 = vld [vmem:[#allocation2 + $0x61] sm:$0xff]
      %v5896 = vld [vmem:[#allocation2 + $0x69] sm:$0xff]
      %v5897 = vld [vmem:[#allocation2 + $0x71] sm:$0xff]
      %v5898 = vld [vmem:[#allocation2 + $0x79] sm:$0xff]
      %v5899 = vld [vmem:[#allocation2 + $0x81] sm:$0xff]
      %v5900 = vld [vmem:[#allocation2 + $0x89] sm:$0xff]
      %v5901 = vld [vmem:[#allocation2 + $0x91] sm:$0xff]
      %v5902 = vld [vmem:[#allocation2 + $0x99] sm:$0xff]
      %v5903 = vld [vmem:[#allocation2 + $0xa1] sm:$0xff]
      %v5904 = vld [vmem:[#allocation2 + $0xa9] sm:$0xff]
      %v5905 = vld [vmem:[#allocation2 + $0xb1] sm:$0xff]
      %v5906 = vld [vmem:[#allocation2 + $0xb9] sm:$0xff]
      %v5907 = vld [vmem:[#allocation2 + $0xc1] sm:$0xff]
      %v5908 = vld [vmem:[#allocation2 + $0xc9] sm:$0xff]
      %v5909 = vld [vmem:[#allocation2 + $0xd1] sm:$0xff]
      %v5910 = vld [vmem:[#allocation2 + $0xd9] sm:$0xff]
      %v5911 = vld [vmem:[#allocation2 + $0xe1] sm:$0xff]
      %v5912 = vld [vmem:[#allocation2 + $0xe9] sm:$0xff]
      %v5913 = vld [vmem:[#allocation2 + $0xf1] sm:$0xff]
      %v5914 = vld [vmem:[#allocation2 + $0xf9] sm:$0xff]
      %v5915 = vld [vmem:[#allocation2 + $0x101] sm:$0xff]
      %v5916 = vld [vmem:[#allocation2 + $0x109] sm:$0xff]
      %v5917 = vld [vmem:[#allocation2 + $0x111] sm:$0xff]
      %v5918 = vld [vmem:[#allocation2 + $0x119] sm:$0xff]
      %v5919 = vld [vmem:[#allocation2 + $0x121] sm:$0xff]
      %v5920 = vld [vmem:[#allocation2 + $0x129] sm:$0xff]
      %v5921 = vld [vmem:[#allocation2 + $0x131] sm:$0xff]
      %v5922 = vld [vmem:[#allocation2 + $0x139] sm:$0xff]
      %v5923 = vld [vmem:[#allocation2 + $0x141] sm:$0xff]
      %v5924 = vld [vmem:[#allocation2 + $0x149] sm:$0xff]
      %v5925 = vld [vmem:[#allocation2 + $0x151] sm:$0xff]
      %v5926 = vld [vmem:[#allocation2 + $0x159] sm:$0xff]
      %v5927 = vld [vmem:[#allocation2 + $0x161] sm:$0xff]
      %v5928 = vld [vmem:[#allocation2 + $0x169] sm:$0xff]
      %v5929 = vld [vmem:[#allocation2 + $0x171] sm:$0xff]
      %v5930 = vld [vmem:[#allocation2 + $0x179] sm:$0xff]
      %v5931 = vld [vmem:[#allocation2 + $0x181] sm:$0xff]
      %v5932 = vld [vmem:[#allocation2 + $0x189] sm:$0xff]
      %v5933 = vld [vmem:[#allocation2 + $0x191] sm:$0xff]
      %5982 = vrot.lane.b32.xlu0 %v5886, 8
      %v5983 = vpop.permute.xlu0 %5982
      %5984 = vrot.lane.b32.xlu0 %v5887, 8
      %v5985 = vpop.permute.xlu0 %5984
      %5986 = vrot.lane.b32.xlu0 %v5888, 8
      %v5987 = vpop.permute.xlu0 %5986
      %5988 = vrot.lane.b32.xlu0 %v5889, 8
      %v5989 = vpop.permute.xlu0 %5988
      %5990 = vrot.lane.b32.xlu0 %v5890, 8
      %v5991 = vpop.permute.xlu0 %5990
      %5992 = vrot.lane.b32.xlu0 %v5891, 8
      %v5993 = vpop.permute.xlu0 %5992
      %5994 = vrot.lane.b32.xlu0 %v5892, 8
      %v5995 = vpop.permute.xlu0 %5994
      %5996 = vrot.lane.b32.xlu0 %v5893, 8
      %v5997 = vpop.permute.xlu0 %5996
      %5998 = vrot.lane.b32.xlu0 %v5894, 8
      %v5999 = vpop.permute.xlu0 %5998
      %6000 = vrot.lane.b32.xlu0 %v5895, 8
      %v6001 = vpop.permute.xlu0 %6000
      %6002 = vrot.lane.b32.xlu0 %v5896, 8
      %v6003 = vpop.permute.xlu0 %6002
      %6004 = vrot.lane.b32.xlu0 %v5897, 8
      %v6005 = vpop.permute.xlu0 %6004
      %6006 = vrot.lane.b32.xlu0 %v5898, 8
      %v6007 = vpop.permute.xlu0 %6006
      %6008 = vrot.lane.b32.xlu0 %v5899, 8
      %v6009 = vpop.permute.xlu0 %6008
      %6010 = vrot.lane.b32.xlu0 %v5900, 8
      %v6011 = vpop.permute.xlu0 %6010
      %6012 = vrot.lane.b32.xlu0 %v5901, 8
      %v6013 = vpop.permute.xlu0 %6012
      %6014 = vrot.lane.b32.xlu0 %v5902, 8
      %v6015 = vpop.permute.xlu0 %6014
      %6016 = vrot.lane.b32.xlu0 %v5903, 8
      %v6017 = vpop.permute.xlu0 %6016
      %6018 = vrot.lane.b32.xlu0 %v5904, 8
      %v6019 = vpop.permute.xlu0 %6018
      %6020 = vrot.lane.b32.xlu0 %v5905, 8
      %v6021 = vpop.permute.xlu0 %6020
      %6022 = vrot.lane.b32.xlu0 %v5906, 8
      %v6023 = vpop.permute.xlu0 %6022
      %6024 = vrot.lane.b32.xlu0 %v5907, 8
      %v6025 = vpop.permute.xlu0 %6024
      %6026 = vrot.lane.b32.xlu0 %v5908, 8
      %v6027 = vpop.permute.xlu0 %6026
      %6028 = vrot.lane.b32.xlu0 %v5909, 8
      %v6029 = vpop.permute.xlu0 %6028
      %6030 = vrot.lane.b32.xlu0 %v5910, 8
      %v6031 = vpop.permute.xlu0 %6030
      %6032 = vrot.lane.b32.xlu0 %v5911, 8
      %v6033 = vpop.permute.xlu0 %6032
      %6034 = vrot.lane.b32.xlu0 %v5912, 8
      %v6035 = vpop.permute.xlu0 %6034
      %6036 = vrot.lane.b32.xlu0 %v5913, 8
      %v6037 = vpop.permute.xlu0 %6036
      %6038 = vrot.lane.b32.xlu0 %v5914, 8
      %v6039 = vpop.permute.xlu0 %6038
      %6040 = vrot.lane.b32.xlu0 %v5915, 8
      %v6041 = vpop.permute.xlu0 %6040
      %6042 = vrot.lane.b32.xlu0 %v5916, 8
      %v6043 = vpop.permute.xlu0 %6042
      %6044 = vrot.lane.b32.xlu0 %v5917, 8
      %v6045 = vpop.permute.xlu0 %6044
      %6046 = vrot.lane.b32.xlu0 %v5918, 8
      %v6047 = vpop.permute.xlu0 %6046
      %6048 = vrot.lane.b32.xlu0 %v5919, 8
      %v6049 = vpop.permute.xlu0 %6048
      %6050 = vrot.lane.b32.xlu0 %v5920, 8
      %v6051 = vpop.permute.xlu0 %6050
      %6052 = vrot.lane.b32.xlu0 %v5921, 8
      %v6053 = vpop.permute.xlu0 %6052
      %6054 = vrot.lane.b32.xlu0 %v5922, 8
      %v6055 = vpop.permute.xlu0 %6054
      %6056 = vrot.lane.b32.xlu0 %v5923, 8
      %v6057 = vpop.permute.xlu0 %6056
      %6058 = vrot.lane.b32.xlu0 %v5924, 8
      %v6059 = vpop.permute.xlu0 %6058
      %6060 = vrot.lane.b32.xlu0 %v5925, 8
      %v6061 = vpop.permute.xlu0 %6060
      %6062 = vrot.lane.b32.xlu0 %v5926, 8
      %v6063 = vpop.permute.xlu0 %6062
      %6064 = vrot.lane.b32.xlu0 %v5927, 8
      %v6065 = vpop.permute.xlu0 %6064
      %6066 = vrot.lane.b32.xlu0 %v5928, 8
      %v6067 = vpop.permute.xlu0 %6066
      %6068 = vrot.lane.b32.xlu0 %v5929, 8
      %v6069 = vpop.permute.xlu0 %6068
      %6070 = vrot.lane.b32.xlu0 %v5930, 8
      %v6071 = vpop.permute.xlu0 %6070
      %6072 = vrot.lane.b32.xlu0 %v5931, 8
      %v6073 = vpop.permute.xlu0 %6072
      %6074 = vrot.lane.b32.xlu0 %v5932, 8
      %v6075 = vpop.permute.xlu0 %6074
      %6076 = vrot.lane.b32.xlu0 %v5933, 8
      %v6077 = vpop.permute.xlu0 %6076
      %6126 = vst.msk [vmem:[#allocation4] sm:$0xff] %vm5401, %v5983
      %6127 = vst.msk [vmem:[#allocation4 + $0x8] sm:$0xff] %vm5401, %v5985
      %6128 = vst.msk [vmem:[#allocation4 + $0x10] sm:$0xff] %vm5401, %v5987
      %6129 = vst.msk [vmem:[#allocation4 + $0x18] sm:$0xff] %vm5401, %v5989
      %6130 = vst.msk [vmem:[#allocation4 + $0x20] sm:$0xff] %vm5401, %v5991
      %6131 = vst.msk [vmem:[#allocation4 + $0x28] sm:$0xff] %vm5401, %v5993
      %6132 = vst.msk [vmem:[#allocation4 + $0x30] sm:$0xff] %vm5401, %v5995
      %6133 = vst.msk [vmem:[#allocation4 + $0x38] sm:$0xff] %vm5401, %v5997
      %6134 = vst.msk [vmem:[#allocation4 + $0x40] sm:$0xff] %vm5401, %v5999
      %6135 = vst.msk [vmem:[#allocation4 + $0x48] sm:$0xff] %vm5401, %v6001
      %6136 = vst.msk [vmem:[#allocation4 + $0x50] sm:$0xff] %vm5401, %v6003
      %6137 = vst.msk [vmem:[#allocation4 + $0x58] sm:$0xff] %vm5401, %v6005
      %6138 = vst.msk [vmem:[#allocation4 + $0x60] sm:$0xff] %vm5401, %v6007
      %6139 = vst.msk [vmem:[#allocation4 + $0x68] sm:$0xff] %vm5401, %v6009
      %6140 = vst.msk [vmem:[#allocation4 + $0x70] sm:$0xff] %vm5401, %v6011
      %6141 = vst.msk [vmem:[#allocation4 + $0x78] sm:$0xff] %vm5401, %v6013
      %6142 = vst.msk [vmem:[#allocation4 + $0x80] sm:$0xff] %vm5401, %v6015
      %6143 = vst.msk [vmem:[#allocation4 + $0x88] sm:$0xff] %vm5401, %v6017
      %6144 = vst.msk [vmem:[#allocation4 + $0x90] sm:$0xff] %vm5401, %v6019
      %6145 = vst.msk [vmem:[#allocation4 + $0x98] sm:$0xff] %vm5401, %v6021
      %6146 = vst.msk [vmem:[#allocation4 + $0xa0] sm:$0xff] %vm5401, %v6023
      %6147 = vst.msk [vmem:[#allocation4 + $0xa8] sm:$0xff] %vm5401, %v6025
      %6148 = vst.msk [vmem:[#allocation4 + $0xb0] sm:$0xff] %vm5401, %v6027
      %6149 = vst.msk [vmem:[#allocation4 + $0xb8] sm:$0xff] %vm5401, %v6029
      %6150 = vst.msk [vmem:[#allocation4 + $0xc0] sm:$0xff] %vm5401, %v6031
      %6151 = vst.msk [vmem:[#allocation4 + $0xc8] sm:$0xff] %vm5401, %v6033
      %6152 = vst.msk [vmem:[#allocation4 + $0xd0] sm:$0xff] %vm5401, %v6035
      %6153 = vst.msk [vmem:[#allocation4 + $0xd8] sm:$0xff] %vm5401, %v6037
      %6154 = vst.msk [vmem:[#allocation4 + $0xe0] sm:$0xff] %vm5401, %v6039
      %6155 = vst.msk [vmem:[#allocation4 + $0xe8] sm:$0xff] %vm5401, %v6041
      %6156 = vst.msk [vmem:[#allocation4 + $0xf0] sm:$0xff] %vm5401, %v6043
      %6157 = vst.msk [vmem:[#allocation4 + $0xf8] sm:$0xff] %vm5401, %v6045
      %6158 = vst.msk [vmem:[#allocation4 + $0x100] sm:$0xff] %vm5401, %v6047
      %6159 = vst.msk [vmem:[#allocation4 + $0x108] sm:$0xff] %vm5401, %v6049
      %6160 = vst.msk [vmem:[#allocation4 + $0x110] sm:$0xff] %vm5401, %v6051
      %6161 = vst.msk [vmem:[#allocation4 + $0x118] sm:$0xff] %vm5401, %v6053
      %6162 = vst.msk [vmem:[#allocation4 + $0x120] sm:$0xff] %vm5401, %v6055
      %6163 = vst.msk [vmem:[#allocation4 + $0x128] sm:$0xff] %vm5401, %v6057
      %6164 = vst.msk [vmem:[#allocation4 + $0x130] sm:$0xff] %vm5401, %v6059
      %6165 = vst.msk [vmem:[#allocation4 + $0x138] sm:$0xff] %vm5401, %v6061
      %6166 = vst.msk [vmem:[#allocation4 + $0x140] sm:$0xff] %vm5401, %v6063
      %6167 = vst.msk [vmem:[#allocation4 + $0x148] sm:$0xff] %vm5401, %v6065
      %6168 = vst.msk [vmem:[#allocation4 + $0x150] sm:$0xff] %vm5401, %v6067
      %6169 = vst.msk [vmem:[#allocation4 + $0x158] sm:$0xff] %vm5401, %v6069
      %6170 = vst.msk [vmem:[#allocation4 + $0x160] sm:$0xff] %vm5401, %v6071
      %6171 = vst.msk [vmem:[#allocation4 + $0x168] sm:$0xff] %vm5401, %v6073
      %6172 = vst.msk [vmem:[#allocation4 + $0x170] sm:$0xff] %vm5401, %v6075
      %6173 = vst.msk [vmem:[#allocation4 + $0x178] sm:$0xff] %vm5401, %v6077
      %v6174 = vld [vmem:[#allocation2 + $0x1a] sm:$0xff]
      %v6175 = vld [vmem:[#allocation2 + $0x22] sm:$0xff]
      %v6176 = vld [vmem:[#allocation2 + $0x2a] sm:$0xff]
      %v6177 = vld [vmem:[#allocation2 + $0x32] sm:$0xff]
      %v6178 = vld [vmem:[#allocation2 + $0x3a] sm:$0xff]
      %v6179 = vld [vmem:[#allocation2 + $0x42] sm:$0xff]
      %v6180 = vld [vmem:[#allocation2 + $0x4a] sm:$0xff]
      %v6181 = vld [vmem:[#allocation2 + $0x52] sm:$0xff]
      %v6182 = vld [vmem:[#allocation2 + $0x5a] sm:$0xff]
      %v6183 = vld [vmem:[#allocation2 + $0x62] sm:$0xff]
      %v6184 = vld [vmem:[#allocation2 + $0x6a] sm:$0xff]
      %v6185 = vld [vmem:[#allocation2 + $0x72] sm:$0xff]
      %v6186 = vld [vmem:[#allocation2 + $0x7a] sm:$0xff]
      %v6187 = vld [vmem:[#allocation2 + $0x82] sm:$0xff]
      %v6188 = vld [vmem:[#allocation2 + $0x8a] sm:$0xff]
      %v6189 = vld [vmem:[#allocation2 + $0x92] sm:$0xff]
      %v6190 = vld [vmem:[#allocation2 + $0x9a] sm:$0xff]
      %v6191 = vld [vmem:[#allocation2 + $0xa2] sm:$0xff]
      %v6192 = vld [vmem:[#allocation2 + $0xaa] sm:$0xff]
      %v6193 = vld [vmem:[#allocation2 + $0xb2] sm:$0xff]
      %v6194 = vld [vmem:[#allocation2 + $0xba] sm:$0xff]
      %v6195 = vld [vmem:[#allocation2 + $0xc2] sm:$0xff]
      %v6196 = vld [vmem:[#allocation2 + $0xca] sm:$0xff]
      %v6197 = vld [vmem:[#allocation2 + $0xd2] sm:$0xff]
      %v6198 = vld [vmem:[#allocation2 + $0xda] sm:$0xff]
      %v6199 = vld [vmem:[#allocation2 + $0xe2] sm:$0xff]
      %v6200 = vld [vmem:[#allocation2 + $0xea] sm:$0xff]
      %v6201 = vld [vmem:[#allocation2 + $0xf2] sm:$0xff]
      %v6202 = vld [vmem:[#allocation2 + $0xfa] sm:$0xff]
      %v6203 = vld [vmem:[#allocation2 + $0x102] sm:$0xff]
      %v6204 = vld [vmem:[#allocation2 + $0x10a] sm:$0xff]
      %v6205 = vld [vmem:[#allocation2 + $0x112] sm:$0xff]
      %v6206 = vld [vmem:[#allocation2 + $0x11a] sm:$0xff]
      %v6207 = vld [vmem:[#allocation2 + $0x122] sm:$0xff]
      %v6208 = vld [vmem:[#allocation2 + $0x12a] sm:$0xff]
      %v6209 = vld [vmem:[#allocation2 + $0x132] sm:$0xff]
      %v6210 = vld [vmem:[#allocation2 + $0x13a] sm:$0xff]
      %v6211 = vld [vmem:[#allocation2 + $0x142] sm:$0xff]
      %v6212 = vld [vmem:[#allocation2 + $0x14a] sm:$0xff]
      %v6213 = vld [vmem:[#allocation2 + $0x152] sm:$0xff]
      %v6214 = vld [vmem:[#allocation2 + $0x15a] sm:$0xff]
      %v6215 = vld [vmem:[#allocation2 + $0x162] sm:$0xff]
      %v6216 = vld [vmem:[#allocation2 + $0x16a] sm:$0xff]
      %v6217 = vld [vmem:[#allocation2 + $0x172] sm:$0xff]
      %v6218 = vld [vmem:[#allocation2 + $0x17a] sm:$0xff]
      %v6219 = vld [vmem:[#allocation2 + $0x182] sm:$0xff]
      %v6220 = vld [vmem:[#allocation2 + $0x18a] sm:$0xff]
      %v6221 = vld [vmem:[#allocation2 + $0x192] sm:$0xff]
      %6270 = vrot.lane.b32.xlu0 %v6174, 16
      %v6271 = vpop.permute.xlu0 %6270
      %6272 = vrot.lane.b32.xlu0 %v6175, 16
      %v6273 = vpop.permute.xlu0 %6272
      %6274 = vrot.lane.b32.xlu0 %v6176, 16
      %v6275 = vpop.permute.xlu0 %6274
      %6276 = vrot.lane.b32.xlu0 %v6177, 16
      %v6277 = vpop.permute.xlu0 %6276
      %6278 = vrot.lane.b32.xlu0 %v6178, 16
      %v6279 = vpop.permute.xlu0 %6278
      %6280 = vrot.lane.b32.xlu0 %v6179, 16
      %v6281 = vpop.permute.xlu0 %6280
      %6282 = vrot.lane.b32.xlu0 %v6180, 16
      %v6283 = vpop.permute.xlu0 %6282
      %6284 = vrot.lane.b32.xlu0 %v6181, 16
      %v6285 = vpop.permute.xlu0 %6284
      %6286 = vrot.lane.b32.xlu0 %v6182, 16
      %v6287 = vpop.permute.xlu0 %6286
      %6288 = vrot.lane.b32.xlu0 %v6183, 16
      %v6289 = vpop.permute.xlu0 %6288
      %6290 = vrot.lane.b32.xlu0 %v6184, 16
      %v6291 = vpop.permute.xlu0 %6290
      %6292 = vrot.lane.b32.xlu0 %v6185, 16
      %v6293 = vpop.permute.xlu0 %6292
      %6294 = vrot.lane.b32.xlu0 %v6186, 16
      %v6295 = vpop.permute.xlu0 %6294
      %6296 = vrot.lane.b32.xlu0 %v6187, 16
      %v6297 = vpop.permute.xlu0 %6296
      %6298 = vrot.lane.b32.xlu0 %v6188, 16
      %v6299 = vpop.permute.xlu0 %6298
      %6300 = vrot.lane.b32.xlu0 %v6189, 16
      %v6301 = vpop.permute.xlu0 %6300
      %6302 = vrot.lane.b32.xlu0 %v6190, 16
      %v6303 = vpop.permute.xlu0 %6302
      %6304 = vrot.lane.b32.xlu0 %v6191, 16
      %v6305 = vpop.permute.xlu0 %6304
      %6306 = vrot.lane.b32.xlu0 %v6192, 16
      %v6307 = vpop.permute.xlu0 %6306
      %6308 = vrot.lane.b32.xlu0 %v6193, 16
      %v6309 = vpop.permute.xlu0 %6308
      %6310 = vrot.lane.b32.xlu0 %v6194, 16
      %v6311 = vpop.permute.xlu0 %6310
      %6312 = vrot.lane.b32.xlu0 %v6195, 16
      %v6313 = vpop.permute.xlu0 %6312
      %6314 = vrot.lane.b32.xlu0 %v6196, 16
      %v6315 = vpop.permute.xlu0 %6314
      %6316 = vrot.lane.b32.xlu0 %v6197, 16
      %v6317 = vpop.permute.xlu0 %6316
      %6318 = vrot.lane.b32.xlu0 %v6198, 16
      %v6319 = vpop.permute.xlu0 %6318
      %6320 = vrot.lane.b32.xlu0 %v6199, 16
      %v6321 = vpop.permute.xlu0 %6320
      %6322 = vrot.lane.b32.xlu0 %v6200, 16
      %v6323 = vpop.permute.xlu0 %6322
      %6324 = vrot.lane.b32.xlu0 %v6201, 16
      %v6325 = vpop.permute.xlu0 %6324
      %6326 = vrot.lane.b32.xlu0 %v6202, 16
      %v6327 = vpop.permute.xlu0 %6326
      %6328 = vrot.lane.b32.xlu0 %v6203, 16
      %v6329 = vpop.permute.xlu0 %6328
      %6330 = vrot.lane.b32.xlu0 %v6204, 16
      %v6331 = vpop.permute.xlu0 %6330
      %6332 = vrot.lane.b32.xlu0 %v6205, 16
      %v6333 = vpop.permute.xlu0 %6332
      %6334 = vrot.lane.b32.xlu0 %v6206, 16
      %v6335 = vpop.permute.xlu0 %6334
      %6336 = vrot.lane.b32.xlu0 %v6207, 16
      %v6337 = vpop.permute.xlu0 %6336
      %6338 = vrot.lane.b32.xlu0 %v6208, 16
      %v6339 = vpop.permute.xlu0 %6338
      %6340 = vrot.lane.b32.xlu0 %v6209, 16
      %v6341 = vpop.permute.xlu0 %6340
      %6342 = vrot.lane.b32.xlu0 %v6210, 16
      %v6343 = vpop.permute.xlu0 %6342
      %6344 = vrot.lane.b32.xlu0 %v6211, 16
      %v6345 = vpop.permute.xlu0 %6344
      %6346 = vrot.lane.b32.xlu0 %v6212, 16
      %v6347 = vpop.permute.xlu0 %6346
      %6348 = vrot.lane.b32.xlu0 %v6213, 16
      %v6349 = vpop.permute.xlu0 %6348
      %6350 = vrot.lane.b32.xlu0 %v6214, 16
      %v6351 = vpop.permute.xlu0 %6350
      %6352 = vrot.lane.b32.xlu0 %v6215, 16
      %v6353 = vpop.permute.xlu0 %6352
      %6354 = vrot.lane.b32.xlu0 %v6216, 16
      %v6355 = vpop.permute.xlu0 %6354
      %6356 = vrot.lane.b32.xlu0 %v6217, 16
      %v6357 = vpop.permute.xlu0 %6356
      %6358 = vrot.lane.b32.xlu0 %v6218, 16
      %v6359 = vpop.permute.xlu0 %6358
      %6360 = vrot.lane.b32.xlu0 %v6219, 16
      %v6361 = vpop.permute.xlu0 %6360
      %6362 = vrot.lane.b32.xlu0 %v6220, 16
      %v6363 = vpop.permute.xlu0 %6362
      %6364 = vrot.lane.b32.xlu0 %v6221, 16
      %v6365 = vpop.permute.xlu0 %6364
      %6414 = vst.msk [vmem:[#allocation4] sm:$0xff] %vm5690, %v6271
      %6415 = vst.msk [vmem:[#allocation4 + $0x8] sm:$0xff] %vm5690, %v6273
      %6416 = vst.msk [vmem:[#allocation4 + $0x10] sm:$0xff] %vm5690, %v6275
      %6417 = vst.msk [vmem:[#allocation4 + $0x18] sm:$0xff] %vm5690, %v6277
      %6418 = vst.msk [vmem:[#allocation4 + $0x20] sm:$0xff] %vm5690, %v6279
      %6419 = vst.msk [vmem:[#allocation4 + $0x28] sm:$0xff] %vm5690, %v6281
      %6420 = vst.msk [vmem:[#allocation4 + $0x30] sm:$0xff] %vm5690, %v6283
      %6421 = vst.msk [vmem:[#allocation4 + $0x38] sm:$0xff] %vm5690, %v6285
      %6422 = vst.msk [vmem:[#allocation4 + $0x40] sm:$0xff] %vm5690, %v6287
      %6423 = vst.msk [vmem:[#allocation4 + $0x48] sm:$0xff] %vm5690, %v6289
      %6424 = vst.msk [vmem:[#allocation4 + $0x50] sm:$0xff] %vm5690, %v6291
      %6425 = vst.msk [vmem:[#allocation4 + $0x58] sm:$0xff] %vm5690, %v6293
      %6426 = vst.msk [vmem:[#allocation4 + $0x60] sm:$0xff] %vm5690, %v6295
      %6427 = vst.msk [vmem:[#allocation4 + $0x68] sm:$0xff] %vm5690, %v6297
      %6428 = vst.msk [vmem:[#allocation4 + $0x70] sm:$0xff] %vm5690, %v6299
      %6429 = vst.msk [vmem:[#allocation4 + $0x78] sm:$0xff] %vm5690, %v6301
      %6430 = vst.msk [vmem:[#allocation4 + $0x80] sm:$0xff] %vm5690, %v6303
      %6431 = vst.msk [vmem:[#allocation4 + $0x88] sm:$0xff] %vm5690, %v6305
      %6432 = vst.msk [vmem:[#allocation4 + $0x90] sm:$0xff] %vm5690, %v6307
      %6433 = vst.msk [vmem:[#allocation4 + $0x98] sm:$0xff] %vm5690, %v6309
      %6434 = vst.msk [vmem:[#allocation4 + $0xa0] sm:$0xff] %vm5690, %v6311
      %6435 = vst.msk [vmem:[#allocation4 + $0xa8] sm:$0xff] %vm5690, %v6313
      %6436 = vst.msk [vmem:[#allocation4 + $0xb0] sm:$0xff] %vm5690, %v6315
      %6437 = vst.msk [vmem:[#allocation4 + $0xb8] sm:$0xff] %vm5690, %v6317
      %6438 = vst.msk [vmem:[#allocation4 + $0xc0] sm:$0xff] %vm5690, %v6319
      %6439 = vst.msk [vmem:[#allocation4 + $0xc8] sm:$0xff] %vm5690, %v6321
      %6440 = vst.msk [vmem:[#allocation4 + $0xd0] sm:$0xff] %vm5690, %v6323
      %6441 = vst.msk [vmem:[#allocation4 + $0xd8] sm:$0xff] %vm5690, %v6325
      %6442 = vst.msk [vmem:[#allocation4 + $0xe0] sm:$0xff] %vm5690, %v6327
      %6443 = vst.msk [vmem:[#allocation4 + $0xe8] sm:$0xff] %vm5690, %v6329
      %6444 = vst.msk [vmem:[#allocation4 + $0xf0] sm:$0xff] %vm5690, %v6331
      %6445 = vst.msk [vmem:[#allocation4 + $0xf8] sm:$0xff] %vm5690, %v6333
      %6446 = vst.msk [vmem:[#allocation4 + $0x100] sm:$0xff] %vm5690, %v6335
      %6447 = vst.msk [vmem:[#allocation4 + $0x108] sm:$0xff] %vm5690, %v6337
      %6448 = vst.msk [vmem:[#allocation4 + $0x110] sm:$0xff] %vm5690, %v6339
      %6449 = vst.msk [vmem:[#allocation4 + $0x118] sm:$0xff] %vm5690, %v6341
      %6450 = vst.msk [vmem:[#allocation4 + $0x120] sm:$0xff] %vm5690, %v6343
      %6451 = vst.msk [vmem:[#allocation4 + $0x128] sm:$0xff] %vm5690, %v6345
      %6452 = vst.msk [vmem:[#allocation4 + $0x130] sm:$0xff] %vm5690, %v6347
      %6453 = vst.msk [vmem:[#allocation4 + $0x138] sm:$0xff] %vm5690, %v6349
      %6454 = vst.msk [vmem:[#allocation4 + $0x140] sm:$0xff] %vm5690, %v6351
      %6455 = vst.msk [vmem:[#allocation4 + $0x148] sm:$0xff] %vm5690, %v6353
      %6456 = vst.msk [vmem:[#allocation4 + $0x150] sm:$0xff] %vm5690, %v6355
      %6457 = vst.msk [vmem:[#allocation4 + $0x158] sm:$0xff] %vm5690, %v6357
      %6458 = vst.msk [vmem:[#allocation4 + $0x160] sm:$0xff] %vm5690, %v6359
      %6459 = vst.msk [vmem:[#allocation4 + $0x168] sm:$0xff] %vm5690, %v6361
      %6460 = vst.msk [vmem:[#allocation4 + $0x170] sm:$0xff] %vm5690, %v6363
      %6461 = vst.msk [vmem:[#allocation4 + $0x178] sm:$0xff] %vm5690, %v6365
      %v6462 = vld [vmem:[#allocation4] sm:$0xff]
      %v6463 = vld [vmem:[#allocation4 + $0x8] sm:$0xff]
      %v6464 = vld [vmem:[#allocation4 + $0x10] sm:$0xff]
      %v6465 = vld [vmem:[#allocation4 + $0x18] sm:$0xff]
      %v6466 = vld [vmem:[#allocation4 + $0x20] sm:$0xff]
      %v6467 = vld [vmem:[#allocation4 + $0x28] sm:$0xff]
      %v6468 = vld [vmem:[#allocation4 + $0x30] sm:$0xff]
      %v6469 = vld [vmem:[#allocation4 + $0x38] sm:$0xff]
      %v6470 = vld [vmem:[#allocation4 + $0x40] sm:$0xff]
      %v6471 = vld [vmem:[#allocation4 + $0x48] sm:$0xff]
      %v6472 = vld [vmem:[#allocation4 + $0x50] sm:$0xff]
      %v6473 = vld [vmem:[#allocation4 + $0x58] sm:$0xff]
      %v6474 = vld [vmem:[#allocation4 + $0x60] sm:$0xff]
      %v6475 = vld [vmem:[#allocation4 + $0x68] sm:$0xff]
      %v6476 = vld [vmem:[#allocation4 + $0x70] sm:$0xff]
      %v6477 = vld [vmem:[#allocation4 + $0x78] sm:$0xff]
      %v6478 = vld [vmem:[#allocation4 + $0x80] sm:$0xff]
      %v6479 = vld [vmem:[#allocation4 + $0x88] sm:$0xff]
      %v6480 = vld [vmem:[#allocation4 + $0x90] sm:$0xff]
      %v6481 = vld [vmem:[#allocation4 + $0x98] sm:$0xff]
      %v6482 = vld [vmem:[#allocation4 + $0xa0] sm:$0xff]
      %v6483 = vld [vmem:[#allocation4 + $0xa8] sm:$0xff]
      %v6484 = vld [vmem:[#allocation4 + $0xb0] sm:$0xff]
      %v6485 = vld [vmem:[#allocation4 + $0xb8] sm:$0xff]
      %v6486 = vld [vmem:[#allocation4 + $0xc0] sm:$0xff]
      %v6487 = vld [vmem:[#allocation4 + $0xc8] sm:$0xff]
      %v6488 = vld [vmem:[#allocation4 + $0xd0] sm:$0xff]
      %v6489 = vld [vmem:[#allocation4 + $0xd8] sm:$0xff]
      %v6490 = vld [vmem:[#allocation4 + $0xe0] sm:$0xff]
      %v6491 = vld [vmem:[#allocation4 + $0xe8] sm:$0xff]
      %v6492 = vld [vmem:[#allocation4 + $0xf0] sm:$0xff]
      %v6493 = vld [vmem:[#allocation4 + $0xf8] sm:$0xff]
      %v6494 = vld [vmem:[#allocation4 + $0x100] sm:$0xff]
      %v6495 = vld [vmem:[#allocation4 + $0x108] sm:$0xff]
      %v6496 = vld [vmem:[#allocation4 + $0x110] sm:$0xff]
      %v6497 = vld [vmem:[#allocation4 + $0x118] sm:$0xff]
      %v6498 = vld [vmem:[#allocation4 + $0x120] sm:$0xff]
      %v6499 = vld [vmem:[#allocation4 + $0x128] sm:$0xff]
      %v6500 = vld [vmem:[#allocation4 + $0x130] sm:$0xff]
      %v6501 = vld [vmem:[#allocation4 + $0x138] sm:$0xff]
      %v6502 = vld [vmem:[#allocation4 + $0x140] sm:$0xff]
      %v6503 = vld [vmem:[#allocation4 + $0x148] sm:$0xff]
      %v6504 = vld [vmem:[#allocation4 + $0x150] sm:$0xff]
      %v6505 = vld [vmem:[#allocation4 + $0x158] sm:$0xff]
      %v6506 = vld [vmem:[#allocation4 + $0x160] sm:$0xff]
      %v6507 = vld [vmem:[#allocation4 + $0x168] sm:$0xff]
      %v6508 = vld [vmem:[#allocation4 + $0x170] sm:$0xff]
      %v6509 = vld [vmem:[#allocation4 + $0x178] sm:$0xff]
      %s6510 = scalar_lea.vmem %s304, 24
      %v6511 = vld [vmem:[%s6510] sm:$0xff]
      %v6512 = vld [vmem:[%s6510 + $0x8] sm:$0xff]
      %v6513 = vld [vmem:[%s6510 + $0x10] sm:$0xff]
      %vm6514 = vcmask 195584
      %v6516 = vsel %vm6514, %v6462, 0
      %v6519 = vsel %vm6514, %v6463, 0
      %v6522 = vsel %vm6514, %v6464, 0
      %v6525 = vsel %vm6514, %v6465, 0
      %v6528 = vsel %vm6514, %v6466, 0
      %v6531 = vsel %vm6514, %v6467, 0
      %v6534 = vsel %vm6514, %v6468, 0
      %v6537 = vsel %vm6514, %v6469, 0
      %v6540 = vsel %vm6514, %v6470, 0
      %v6543 = vsel %vm6514, %v6471, 0
      %v6546 = vsel %vm6514, %v6472, 0
      %v6549 = vsel %vm6514, %v6473, 0
      %v6552 = vsel %vm6514, %v6474, 0
      %v6555 = vsel %vm6514, %v6475, 0
      %v6558 = vsel %vm6514, %v6476, 0
      %v6561 = vsel %vm6514, %v6477, 0
      %v6564 = vsel %vm6514, %v6478, 0
      %v6567 = vsel %vm6514, %v6479, 0
      %v6570 = vsel %vm6514, %v6480, 0
      %v6573 = vsel %vm6514, %v6481, 0
      %v6576 = vsel %vm6514, %v6482, 0
      %v6579 = vsel %vm6514, %v6483, 0
      %v6582 = vsel %vm6514, %v6484, 0
      %v6585 = vsel %vm6514, %v6485, 0
      %v6588 = vsel %vm6514, %v6486, 0
      %v6591 = vsel %vm6514, %v6487, 0
      %v6594 = vsel %vm6514, %v6488, 0
      %v6597 = vsel %vm6514, %v6489, 0
      %v6600 = vsel %vm6514, %v6490, 0
      %v6603 = vsel %vm6514, %v6491, 0
      %v6606 = vsel %vm6514, %v6492, 0
      %v6609 = vsel %vm6514, %v6493, 0
      %v6612 = vsel %vm6514, %v6494, 0
      %v6615 = vsel %vm6514, %v6495, 0
      %v6618 = vsel %vm6514, %v6496, 0
      %v6621 = vsel %vm6514, %v6497, 0
      %v6624 = vsel %vm6514, %v6498, 0
      %v6627 = vsel %vm6514, %v6499, 0
      %v6630 = vsel %vm6514, %v6500, 0
      %v6633 = vsel %vm6514, %v6501, 0
      %v6636 = vsel %vm6514, %v6502, 0
      %v6639 = vsel %vm6514, %v6503, 0
      %v6642 = vsel %vm6514, %v6504, 0
      %v6645 = vsel %vm6514, %v6505, 0
      %v6648 = vsel %vm6514, %v6506, 0
      %v6651 = vsel %vm6514, %v6507, 0
      %v6654 = vsel %vm6514, %v6508, 0
      %v6657 = vsel %vm6514, %v6509, 0
      %6659 = vmatprep.subr.mxu0 0.0
      %6660 = vmatpush1.msra.mxu0 %v6511
      %6661 = vmatprep.subr.mxu0 0.0
      %6662 = vmatpush1.msra.mxu0 %v6512
      %6663 = vmatprep.subr.mxu0 0.0
      %6664 = vmatpush1.msra.mxu0 %v6513
      %6665 = vmatprep.subr.mxu0 0.0
      %6666 = vmatpush1.msra.mxu0 0.0
      %6667 = vmatprep.subr.mxu0 0.0
      %6668 = vmatpush1.msra.mxu0 0.0
      %6669 = vmatprep.subr.mxu0 0.0
      %6670 = vmatpush1.msra.mxu0 0.0
      %6671 = vmatprep.subr.mxu0 0.0
      %6672 = vmatpush1.msra.mxu0 0.0
      %6673 = vmatprep.subr.mxu0 0.0
      %6674 = vmatpush1.msra.mxu0 0.0
      %6675 = vmatprep.subr.mxu0 0.0
      %6676 = vmatpush1.msra.mxu0 0.0
      %6677 = vmatprep.subr.mxu0 0.0
      %6678 = vmatpush1.msra.mxu0 0.0
      %6679 = vmatprep.subr.mxu0 0.0
      %6680 = vmatpush1.msra.mxu0 0.0
      %6681 = vmatprep.subr.mxu0 0.0
      %6682 = vmatpush1.msra.mxu0 0.0
      %6683 = vmatprep.subr.mxu0 0.0
      %6684 = vmatpush1.msra.mxu0 0.0
      %6685 = vmatprep.subr.mxu0 0.0
      %6686 = vmatpush1.msra.mxu0 0.0
      %6687 = vmatprep.subr.mxu0 0.0
      %6688 = vmatpush1.msra.mxu0 0.0
      %6689 = vmatprep.subr.mxu0 0.0
      %6690 = vmatpush1.msra.mxu0 0.0
      %6691 = vmatprep.subr.mxu0 0.0
      %6692 = vmatpush1.msra.mxu0 0.0
      %6693 = vmatprep.subr.mxu0 0.0
      %6694 = vmatpush1.msra.mxu0 0.0
      %6695 = vmatprep.subr.mxu0 0.0
      %6696 = vmatpush1.msra.mxu0 0.0
      %6697 = vmatprep.subr.mxu0 0.0
      %6698 = vmatpush1.msra.mxu0 0.0
      %6699 = vmatprep.subr.mxu0 0.0
      %6700 = vmatpush1.msra.mxu0 0.0
      %6701 = vmatprep.subr.mxu0 0.0
      %6702 = vmatpush1.msra.mxu0 0.0
      %6703 = vmatprep.subr.mxu0 0.0
      %6704 = vmatpush1.msra.mxu0 0.0
      %6705 = vmatprep.subr.mxu0 0.0
      %6706 = vmatpush1.msra.mxu0 0.0
      %6707 = vmatprep.subr.mxu0 0.0
      %6708 = vmatpush1.msra.mxu0 0.0
      %6709 = vmatprep.subr.mxu0 0.0
      %6710 = vmatpush1.msra.mxu0 0.0
      %6711 = vmatprep.subr.mxu0 0.0
      %6712 = vmatpush1.msra.mxu0 0.0
      %6713 = vmatprep.subr.mxu0 0.0
      %6714 = vmatpush1.msra.mxu0 0.0
      %6715 = vmatprep.subr.mxu0 0.0
      %6716 = vmatpush1.msra.mxu0 0.0
      %6717 = vmatprep.subr.mxu0 0.0
      %6718 = vmatpush1.msra.mxu0 0.0
      %6719 = vmatprep.subr.mxu0 0.0
      %6720 = vmatpush1.msra.mxu0 0.0
      %6721 = vmatprep.subr.mxu0 0.0
      %6722 = vmatpush1.msra.mxu0 0.0
      %6723 = vmatprep.mubr.f32.mxu0 0.0
      %6724 = vmatmul.mubr.f32.gmra.mrb[0].mxu0 %v6516
      %v6725 = vpop.f32.mrb[0].mxu0
      %v6726 = vadd.f32 0.0, %v6725
      %v6727 = vpop.f32.mrb[0].mxu0
      %6728 = vmatprep.mubr.f32.mxu0 0.0
      %6729 = vmatmul.mubr.f32.gmra.mrb[0].mxu0 %v6519
      %v6730 = vpop.f32.mrb[0].mxu0
      %v6731 = vadd.f32 0.0, %v6730
      %v6732 = vpop.f32.mrb[0].mxu0
      %6733 = vmatprep.mubr.f32.mxu0 0.0
      %6734 = vmatmul.mubr.f32.gmra.mrb[0].mxu0 %v6522
      %v6735 = vpop.f32.mrb[0].mxu0
      %v6736 = vadd.f32 0.0, %v6735
      %v6737 = vpop.f32.mrb[0].mxu0
      %6738 = vmatprep.mubr.f32.mxu0 0.0
      %6739 = vmatmul.mubr.f32.gmra.mrb[0].mxu0 %v6525
      %v6740 = vpop.f32.mrb[0].mxu0
      %v6741 = vadd.f32 0.0, %v6740
      %v6742 = vpop.f32.mrb[0].mxu0
      %6743 = vmatprep.mubr.f32.mxu0 0.0
      %6744 = vmatmul.mubr.f32.gmra.mrb[0].mxu0 %v6528
      %v6745 = vpop.f32.mrb[0].mxu0
      %v6746 = vadd.f32 0.0, %v6745
      %v6747 = vpop.f32.mrb[0].mxu0
      %6748 = vmatprep.mubr.f32.mxu0 0.0
      %6749 = vmatmul.mubr.f32.gmra.mrb[0].mxu0 %v6531
      %v6750 = vpop.f32.mrb[0].mxu0
      %v6751 = vadd.f32 0.0, %v6750
      %v6752 = vpop.f32.mrb[0].mxu0
      %6753 = vmatprep.mubr.f32.mxu0 0.0
      %6754 = vmatmul.mubr.f32.gmra.mrb[0].mxu0 %v6534
      %v6755 = vpop.f32.mrb[0].mxu0
      %v6756 = vadd.f32 0.0, %v6755
      %v6757 = vpop.f32.mrb[0].mxu0
      %6758 = vmatprep.mubr.f32.mxu0 0.0
      %6759 = vmatmul.mubr.f32.gmra.mrb[0].mxu0 %v6537
      %v6760 = vpop.f32.mrb[0].mxu0
      %v6761 = vadd.f32 0.0, %v6760
      %v6762 = vpop.f32.mrb[0].mxu0
      %6763 = vmatprep.mubr.f32.mxu0 0.0
      %6764 = vmatmul.mubr.f32.gmra.mrb[0].mxu0 %v6540
      %v6765 = vpop.f32.mrb[0].mxu0
      %v6766 = vadd.f32 0.0, %v6765
      %v6767 = vpop.f32.mrb[0].mxu0
      %6768 = vmatprep.mubr.f32.mxu0 0.0
      %6769 = vmatmul.mubr.f32.gmra.mrb[0].mxu0 %v6543
      %v6770 = vpop.f32.mrb[0].mxu0
      %v6771 = vadd.f32 0.0, %v6770
      %v6772 = vpop.f32.mrb[0].mxu0
      %6773 = vmatprep.mubr.f32.mxu0 0.0
      %6774 = vmatmul.mubr.f32.gmra.mrb[0].mxu0 %v6546
      %v6775 = vpop.f32.mrb[0].mxu0
      %v6776 = vadd.f32 0.0, %v6775
      %v6777 = vpop.f32.mrb[0].mxu0
      %6778 = vmatprep.mubr.f32.mxu0 0.0
      %6779 = vmatmul.mubr.f32.gmra.mrb[0].mxu0 %v6549
      %v6780 = vpop.f32.mrb[0].mxu0
      %v6781 = vadd.f32 0.0, %v6780
      %v6782 = vpop.f32.mrb[0].mxu0
      %6783 = vmatprep.mubr.f32.mxu0 0.0
      %6784 = vmatmul.mubr.f32.gmra.mrb[0].mxu0 %v6552
      %v6785 = vpop.f32.mrb[0].mxu0
      %v6786 = vadd.f32 0.0, %v6785
      %v6787 = vpop.f32.mrb[0].mxu0
      %6788 = vmatprep.mubr.f32.mxu0 0.0
      %6789 = vmatmul.mubr.f32.gmra.mrb[0].mxu0 %v6555
      %v6790 = vpop.f32.mrb[0].mxu0
      %v6791 = vadd.f32 0.0, %v6790
      %v6792 = vpop.f32.mrb[0].mxu0
      %6793 = vmatprep.mubr.f32.mxu0 0.0
      %6794 = vmatmul.mubr.f32.gmra.mrb[0].mxu0 %v6558
      %v6795 = vpop.f32.mrb[0].mxu0
      %v6796 = vadd.f32 0.0, %v6795
      %v6797 = vpop.f32.mrb[0].mxu0
      %6798 = vmatprep.mubr.f32.mxu0 0.0
      %6799 = vmatmul.mubr.f32.gmra.mrb[0].mxu0 %v6561
      %v6800 = vpop.f32.mrb[0].mxu0
      %v6801 = vadd.f32 0.0, %v6800
      %v6802 = vpop.f32.mrb[0].mxu0
      %6803 = vmatprep.mubr.f32.mxu0 0.0
      %6804 = vmatmul.mubr.f32.gmra.mrb[0].mxu0 %v6564
      %v6805 = vpop.f32.mrb[0].mxu0
      %v6806 = vadd.f32 0.0, %v6805
      %v6807 = vpop.f32.mrb[0].mxu0
      %6808 = vmatprep.mubr.f32.mxu0 0.0
      %6809 = vmatmul.mubr.f32.gmra.mrb[0].mxu0 %v6567
      %v6810 = vpop.f32.mrb[0].mxu0
      %v6811 = vadd.f32 0.0, %v6810
      %v6812 = vpop.f32.mrb[0].mxu0
      %6813 = vmatprep.mubr.f32.mxu0 0.0
      %6814 = vmatmul.mubr.f32.gmra.mrb[0].mxu0 %v6570
      %v6815 = vpop.f32.mrb[0].mxu0
      %v6816 = vadd.f32 0.0, %v6815
      %v6817 = vpop.f32.mrb[0].mxu0
      %6818 = vmatprep.mubr.f32.mxu0 0.0
      %6819 = vmatmul.mubr.f32.gmra.mrb[0].mxu0 %v6573
      %v6820 = vpop.f32.mrb[0].mxu0
      %v6821 = vadd.f32 0.0, %v6820
      %v6822 = vpop.f32.mrb[0].mxu0
      %6823 = vmatprep.mubr.f32.mxu0 0.0
      %6824 = vmatmul.mubr.f32.gmra.mrb[0].mxu0 %v6576
      %v6825 = vpop.f32.mrb[0].mxu0
      %v6826 = vadd.f32 0.0, %v6825
      %v6827 = vpop.f32.mrb[0].mxu0
      %6828 = vmatprep.mubr.f32.mxu0 0.0
      %6829 = vmatmul.mubr.f32.gmra.mrb[0].mxu0 %v6579
      %v6830 = vpop.f32.mrb[0].mxu0
      %v6831 = vadd.f32 0.0, %v6830
      %v6832 = vpop.f32.mrb[0].mxu0
      %6833 = vmatprep.mubr.f32.mxu0 0.0
      %6834 = vmatmul.mubr.f32.gmra.mrb[0].mxu0 %v6582
      %v6835 = vpop.f32.mrb[0].mxu0
      %v6836 = vadd.f32 0.0, %v6835
      %v6837 = vpop.f32.mrb[0].mxu0
      %6838 = vmatprep.mubr.f32.mxu0 0.0
      %6839 = vmatmul.mubr.f32.gmra.mrb[0].mxu0 %v6585
      %v6840 = vpop.f32.mrb[0].mxu0
      %v6841 = vadd.f32 0.0, %v6840
      %v6842 = vpop.f32.mrb[0].mxu0
      %6843 = vmatprep.mubr.f32.mxu0 0.0
      %6844 = vmatmul.mubr.f32.gmra.mrb[0].mxu0 %v6588
      %v6845 = vpop.f32.mrb[0].mxu0
      %v6846 = vadd.f32 0.0, %v6845
      %v6847 = vpop.f32.mrb[0].mxu0
      %6848 = vmatprep.mubr.f32.mxu0 0.0
      %6849 = vmatmul.mubr.f32.gmra.mrb[0].mxu0 %v6591
      %v6850 = vpop.f32.mrb[0].mxu0
      %v6851 = vadd.f32 0.0, %v6850
      %v6852 = vpop.f32.mrb[0].mxu0
      %6853 = vmatprep.mubr.f32.mxu0 0.0
      %6854 = vmatmul.mubr.f32.gmra.mrb[0].mxu0 %v6594
      %v6855 = vpop.f32.mrb[0].mxu0
      %v6856 = vadd.f32 0.0, %v6855
      %v6857 = vpop.f32.mrb[0].mxu0
      %6858 = vmatprep.mubr.f32.mxu0 0.0
      %6859 = vmatmul.mubr.f32.gmra.mrb[0].mxu0 %v6597
      %v6860 = vpop.f32.mrb[0].mxu0
      %v6861 = vadd.f32 0.0, %v6860
      %v6862 = vpop.f32.mrb[0].mxu0
      %6863 = vmatprep.mubr.f32.mxu0 0.0
      %6864 = vmatmul.mubr.f32.gmra.mrb[0].mxu0 %v6600
      %v6865 = vpop.f32.mrb[0].mxu0
      %v6866 = vadd.f32 0.0, %v6865
      %v6867 = vpop.f32.mrb[0].mxu0
      %6868 = vmatprep.mubr.f32.mxu0 0.0
      %6869 = vmatmul.mubr.f32.gmra.mrb[0].mxu0 %v6603
      %v6870 = vpop.f32.mrb[0].mxu0
      %v6871 = vadd.f32 0.0, %v6870
      %v6872 = vpop.f32.mrb[0].mxu0
      %6873 = vmatprep.mubr.f32.mxu0 0.0
      %6874 = vmatmul.mubr.f32.gmra.mrb[0].mxu0 %v6606
      %v6875 = vpop.f32.mrb[0].mxu0
      %v6876 = vadd.f32 0.0, %v6875
      %v6877 = vpop.f32.mrb[0].mxu0
      %6878 = vmatprep.mubr.f32.mxu0 0.0
      %6879 = vmatmul.mubr.f32.gmra.mrb[0].mxu0 %v6609
      %v6880 = vpop.f32.mrb[0].mxu0
      %v6881 = vadd.f32 0.0, %v6880
      %v6882 = vpop.f32.mrb[0].mxu0
      %6883 = vmatprep.mubr.f32.mxu0 0.0
      %6884 = vmatmul.mubr.f32.gmra.mrb[0].mxu0 %v6612
      %v6885 = vpop.f32.mrb[0].mxu0
      %v6886 = vadd.f32 0.0, %v6885
      %v6887 = vpop.f32.mrb[0].mxu0
      %6888 = vmatprep.mubr.f32.mxu0 0.0
      %6889 = vmatmul.mubr.f32.gmra.mrb[0].mxu0 %v6615
      %v6890 = vpop.f32.mrb[0].mxu0
      %v6891 = vadd.f32 0.0, %v6890
      %v6892 = vpop.f32.mrb[0].mxu0
      %6893 = vmatprep.mubr.f32.mxu0 0.0
      %6894 = vmatmul.mubr.f32.gmra.mrb[0].mxu0 %v6618
      %v6895 = vpop.f32.mrb[0].mxu0
      %v6896 = vadd.f32 0.0, %v6895
      %v6897 = vpop.f32.mrb[0].mxu0
      %6898 = vmatprep.mubr.f32.mxu0 0.0
      %6899 = vmatmul.mubr.f32.gmra.mrb[0].mxu0 %v6621
      %v6900 = vpop.f32.mrb[0].mxu0
      %v6901 = vadd.f32 0.0, %v6900
      %v6902 = vpop.f32.mrb[0].mxu0
      %6903 = vmatprep.mubr.f32.mxu0 0.0
      %6904 = vmatmul.mubr.f32.gmra.mrb[0].mxu0 %v6624
      %v6905 = vpop.f32.mrb[0].mxu0
      %v6906 = vadd.f32 0.0, %v6905
      %v6907 = vpop.f32.mrb[0].mxu0
      %6908 = vmatprep.mubr.f32.mxu0 0.0
      %6909 = vmatmul.mubr.f32.gmra.mrb[0].mxu0 %v6627
      %v6910 = vpop.f32.mrb[0].mxu0
      %v6911 = vadd.f32 0.0, %v6910
      %v6912 = vpop.f32.mrb[0].mxu0
      %6913 = vmatprep.mubr.f32.mxu0 0.0
      %6914 = vmatmul.mubr.f32.gmra.mrb[0].mxu0 %v6630
      %v6915 = vpop.f32.mrb[0].mxu0
      %v6916 = vadd.f32 0.0, %v6915
      %v6917 = vpop.f32.mrb[0].mxu0
      %6918 = vmatprep.mubr.f32.mxu0 0.0
      %6919 = vmatmul.mubr.f32.gmra.mrb[0].mxu0 %v6633
      %v6920 = vpop.f32.mrb[0].mxu0
      %v6921 = vadd.f32 0.0, %v6920
      %v6922 = vpop.f32.mrb[0].mxu0
      %6923 = vmatprep.mubr.f32.mxu0 0.0
      %6924 = vmatmul.mubr.f32.gmra.mrb[0].mxu0 %v6636
      %v6925 = vpop.f32.mrb[0].mxu0
      %v6926 = vadd.f32 0.0, %v6925
      %v6927 = vpop.f32.mrb[0].mxu0
      %6928 = vmatprep.mubr.f32.mxu0 0.0
      %6929 = vmatmul.mubr.f32.gmra.mrb[0].mxu0 %v6639
      %v6930 = vpop.f32.mrb[0].mxu0
      %v6931 = vadd.f32 0.0, %v6930
      %v6932 = vpop.f32.mrb[0].mxu0
      %6933 = vmatprep.mubr.f32.mxu0 0.0
      %6934 = vmatmul.mubr.f32.gmra.mrb[0].mxu0 %v6642
      %v6935 = vpop.f32.mrb[0].mxu0
      %v6936 = vadd.f32 0.0, %v6935
      %v6937 = vpop.f32.mrb[0].mxu0
      %6938 = vmatprep.mubr.f32.mxu0 0.0
      %6939 = vmatmul.mubr.f32.gmra.mrb[0].mxu0 %v6645
      %v6940 = vpop.f32.mrb[0].mxu0
      %v6941 = vadd.f32 0.0, %v6940
      %v6942 = vpop.f32.mrb[0].mxu0
      %6943 = vmatprep.mubr.f32.mxu0 0.0
      %6944 = vmatmul.mubr.f32.gmra.mrb[0].mxu0 %v6648
      %v6945 = vpop.f32.mrb[0].mxu0
      %v6946 = vadd.f32 0.0, %v6945
      %v6947 = vpop.f32.mrb[0].mxu0
      %6948 = vmatprep.mubr.f32.mxu0 0.0
      %6949 = vmatmul.mubr.f32.gmra.mrb[0].mxu0 %v6651
      %v6950 = vpop.f32.mrb[0].mxu0
      %v6951 = vadd.f32 0.0, %v6950
      %v6952 = vpop.f32.mrb[0].mxu0
      %6953 = vmatprep.mubr.f32.mxu0 0.0
      %6954 = vmatmul.mubr.f32.gmra.mrb[0].mxu0 %v6654
      %v6955 = vpop.f32.mrb[0].mxu0
      %v6956 = vadd.f32 0.0, %v6955
      %v6957 = vpop.f32.mrb[0].mxu0
      %6958 = vmatprep.mubr.f32.mxu0 0.0
      %6959 = vmatmul.mubr.f32.gmra.mrb[0].mxu0 %v6657
      %v6960 = vpop.f32.mrb[0].mxu0
      %v6961 = vadd.f32 0.0, %v6960
      %v6962 = vpop.f32.mrb[0].mxu0
      %6963 = vdwg.mxu0
      %v6965 = vsel %vm6514, %v5739, 0
      %v6968 = vsel %vm6514, %v5740, 0
      %v6971 = vsel %vm6514, %v5741, 0
      %v6974 = vsel %vm6514, %v5742, 0
      %v6977 = vsel %vm6514, %v5743, 0
      %v6980 = vsel %vm6514, %v5744, 0
      %v6983 = vsel %vm6514, %v5745, 0
      %v6986 = vsel %vm6514, %v5746, 0
      %v6989 = vsel %vm6514, %v5747, 0
      %v6992 = vsel %vm6514, %v5748, 0
      %v6995 = vsel %vm6514, %v5749, 0
      %v6998 = vsel %vm6514, %v5750, 0
      %v7001 = vsel %vm6514, %v5751, 0
      %v7004 = vsel %vm6514, %v5752, 0
      %v7007 = vsel %vm6514, %v5753, 0
      %v7010 = vsel %vm6514, %v5754, 0
      %v7013 = vsel %vm6514, %v5755, 0
      %v7016 = vsel %vm6514, %v5756, 0
      %v7019 = vsel %vm6514, %v5757, 0
      %v7022 = vsel %vm6514, %v5758, 0
      %v7025 = vsel %vm6514, %v5759, 0
      %v7028 = vsel %vm6514, %v5760, 0
      %v7031 = vsel %vm6514, %v5761, 0
      %v7034 = vsel %vm6514, %v5762, 0
      %v7037 = vsel %vm6514, %v5763, 0
      %v7040 = vsel %vm6514, %v5764, 0
      %v7043 = vsel %vm6514, %v5765, 0
      %v7046 = vsel %vm6514, %v5766, 0
      %v7049 = vsel %vm6514, %v5767, 0
      %v7052 = vsel %vm6514, %v5768, 0
      %v7055 = vsel %vm6514, %v5769, 0
      %v7058 = vsel %vm6514, %v5770, 0
      %v7061 = vsel %vm6514, %v5771, 0
      %v7064 = vsel %vm6514, %v5772, 0
      %v7067 = vsel %vm6514, %v5773, 0
      %v7070 = vsel %vm6514, %v5774, 0
      %v7073 = vsel %vm6514, %v5775, 0
      %v7076 = vsel %vm6514, %v5776, 0
      %v7079 = vsel %vm6514, %v5777, 0
      %v7082 = vsel %vm6514, %v5778, 0
      %v7085 = vsel %vm6514, %v5779, 0
      %v7088 = vsel %vm6514, %v5780, 0
      %v7091 = vsel %vm6514, %v5781, 0
      %v7094 = vsel %vm6514, %v5782, 0
      %v7097 = vsel %vm6514, %v5783, 0
      %v7100 = vsel %vm6514, %v5784, 0
      %v7103 = vsel %vm6514, %v5785, 0
      %v7106 = vsel %vm6514, %v5786, 0
      %7108 = vmatprep.subr.mxu0 0.0
      %7109 = vmatpush1.msra.mxu0 %v5787
      %7110 = vmatprep.subr.mxu0 0.0
      %7111 = vmatpush1.msra.mxu0 %v5788
      %7112 = vmatprep.subr.mxu0 0.0
      %7113 = vmatpush1.msra.mxu0 %v5789
      %7114 = vmatprep.subr.mxu0 0.0
      %7115 = vmatpush1.msra.mxu0 0.0
      %7116 = vmatprep.subr.mxu0 0.0
      %7117 = vmatpush1.msra.mxu0 0.0
      %7118 = vmatprep.subr.mxu0 0.0
      %7119 = vmatpush1.msra.mxu0 0.0
      %7120 = vmatprep.subr.mxu0 0.0
      %7121 = vmatpush1.msra.mxu0 0.0
      %7122 = vmatprep.subr.mxu0 0.0
      %7123 = vmatpush1.msra.mxu0 0.0
      %7124 = vmatprep.subr.mxu0 0.0
      %7125 = vmatpush1.msra.mxu0 0.0
      %7126 = vmatprep.subr.mxu0 0.0
      %7127 = vmatpush1.msra.mxu0 0.0
      %7128 = vmatprep.subr.mxu0 0.0
      %7129 = vmatpush1.msra.mxu0 0.0
      %7130 = vmatprep.subr.mxu0 0.0
      %7131 = vmatpush1.msra.mxu0 0.0
      %7132 = vmatprep.subr.mxu0 0.0
      %7133 = vmatpush1.msra.mxu0 0.0
      %7134 = vmatprep.subr.mxu0 0.0
      %7135 = vmatpush1.msra.mxu0 0.0
      %7136 = vmatprep.subr.mxu0 0.0
      %7137 = vmatpush1.msra.mxu0 0.0
      %7138 = vmatprep.subr.mxu0 0.0
      %7139 = vmatpush1.msra.mxu0 0.0
      %7140 = vmatprep.subr.mxu0 0.0
      %7141 = vmatpush1.msra.mxu0 0.0
      %7142 = vmatprep.subr.mxu0 0.0
      %7143 = vmatpush1.msra.mxu0 0.0
      %7144 = vmatprep.subr.mxu0 0.0
      %7145 = vmatpush1.msra.mxu0 0.0
      %7146 = vmatprep.subr.mxu0 0.0
      %7147 = vmatpush1.msra.mxu0 0.0
      %7148 = vmatprep.subr.mxu0 0.0
      %7149 = vmatpush1.msra.mxu0 0.0
      %7150 = vmatprep.subr.mxu0 0.0
      %7151 = vmatpush1.msra.mxu0 0.0
      %7152 = vmatprep.subr.mxu0 0.0
      %7153 = vmatpush1.msra.mxu0 0.0
      %7154 = vmatprep.subr.mxu0 0.0
      %7155 = vmatpush1.msra.mxu0 0.0
      %7156 = vmatprep.subr.mxu0 0.0
      %7157 = vmatpush1.msra.mxu0 0.0
      %7158 = vmatprep.subr.mxu0 0.0
      %7159 = vmatpush1.msra.mxu0 0.0
      %7160 = vmatprep.subr.mxu0 0.0
      %7161 = vmatpush1.msra.mxu0 0.0
      %7162 = vmatprep.subr.mxu0 0.0
      %7163 = vmatpush1.msra.mxu0 0.0
      %7164 = vmatprep.subr.mxu0 0.0
      %7165 = vmatpush1.msra.mxu0 0.0
      %7166 = vmatprep.subr.mxu0 0.0
      %7167 = vmatpush1.msra.mxu0 0.0
      %7168 = vmatprep.subr.mxu0 0.0
      %7169 = vmatpush1.msra.mxu0 0.0
      %7170 = vmatprep.subr.mxu0 0.0
      %7171 = vmatpush1.msra.mxu0 0.0
      %7172 = vmatprep.mubr.f32.mxu0 0.0
      %7173 = vmatmul.mubr.f32.gmra.mrb[0].mxu0 %v6965
      %v7174 = vpop.f32.mrb[0].mxu0
      %v7175 = vadd.f32 %v6726, %v7174
      %v7176 = vpop.f32.mrb[0].mxu0
      %7177 = vmatprep.mubr.f32.mxu0 0.0
      %7178 = vmatmul.mubr.f32.gmra.mrb[0].mxu0 %v6968
      %v7179 = vpop.f32.mrb[0].mxu0
      %v7180 = vadd.f32 %v6731, %v7179
      %v7181 = vpop.f32.mrb[0].mxu0
      %7182 = vmatprep.mubr.f32.mxu0 0.0
      %7183 = vmatmul.mubr.f32.gmra.mrb[0].mxu0 %v6971
      %v7184 = vpop.f32.mrb[0].mxu0
      %v7185 = vadd.f32 %v6736, %v7184
      %v7186 = vpop.f32.mrb[0].mxu0
      %7187 = vmatprep.mubr.f32.mxu0 0.0
      %7188 = vmatmul.mubr.f32.gmra.mrb[0].mxu0 %v6974
      %v7189 = vpop.f32.mrb[0].mxu0
      %v7190 = vadd.f32 %v6741, %v7189
      %v7191 = vpop.f32.mrb[0].mxu0
      %7192 = vmatprep.mubr.f32.mxu0 0.0
      %7193 = vmatmul.mubr.f32.gmra.mrb[0].mxu0 %v6977
      %v7194 = vpop.f32.mrb[0].mxu0
      %v7195 = vadd.f32 %v6746, %v7194
      %v7196 = vpop.f32.mrb[0].mxu0
      %7197 = vmatprep.mubr.f32.mxu0 0.0
      %7198 = vmatmul.mubr.f32.gmra.mrb[0].mxu0 %v6980
      %v7199 = vpop.f32.mrb[0].mxu0
      %v7200 = vadd.f32 %v6751, %v7199
      %v7201 = vpop.f32.mrb[0].mxu0
      %7202 = vmatprep.mubr.f32.mxu0 0.0
      %7203 = vmatmul.mubr.f32.gmra.mrb[0].mxu0 %v6983
      %v7204 = vpop.f32.mrb[0].mxu0
      %v7205 = vadd.f32 %v6756, %v7204
      %v7206 = vpop.f32.mrb[0].mxu0
      %7207 = vmatprep.mubr.f32.mxu0 0.0
      %7208 = vmatmul.mubr.f32.gmra.mrb[0].mxu0 %v6986
      %v7209 = vpop.f32.mrb[0].mxu0
      %v7210 = vadd.f32 %v6761, %v7209
      %v7211 = vpop.f32.mrb[0].mxu0
      %7212 = vmatprep.mubr.f32.mxu0 0.0
      %7213 = vmatmul.mubr.f32.gmra.mrb[0].mxu0 %v6989
      %v7214 = vpop.f32.mrb[0].mxu0
      %v7215 = vadd.f32 %v6766, %v7214
      %v7216 = vpop.f32.mrb[0].mxu0
      %7217 = vmatprep.mubr.f32.mxu0 0.0
      %7218 = vmatmul.mubr.f32.gmra.mrb[0].mxu0 %v6992
      %v7219 = vpop.f32.mrb[0].mxu0
      %v7220 = vadd.f32 %v6771, %v7219
      %v7221 = vpop.f32.mrb[0].mxu0
      %7222 = vmatprep.mubr.f32.mxu0 0.0
      %7223 = vmatmul.mubr.f32.gmra.mrb[0].mxu0 %v6995
      %v7224 = vpop.f32.mrb[0].mxu0
      %v7225 = vadd.f32 %v6776, %v7224
      %v7226 = vpop.f32.mrb[0].mxu0
      %7227 = vmatprep.mubr.f32.mxu0 0.0
      %7228 = vmatmul.mubr.f32.gmra.mrb[0].mxu0 %v6998
      %v7229 = vpop.f32.mrb[0].mxu0
      %v7230 = vadd.f32 %v6781, %v7229
      %v7231 = vpop.f32.mrb[0].mxu0
      %7232 = vmatprep.mubr.f32.mxu0 0.0
      %7233 = vmatmul.mubr.f32.gmra.mrb[0].mxu0 %v7001
      %v7234 = vpop.f32.mrb[0].mxu0
      %v7235 = vadd.f32 %v6786, %v7234
      %v7236 = vpop.f32.mrb[0].mxu0
      %7237 = vmatprep.mubr.f32.mxu0 0.0
      %7238 = vmatmul.mubr.f32.gmra.mrb[0].mxu0 %v7004
      %v7239 = vpop.f32.mrb[0].mxu0
      %v7240 = vadd.f32 %v6791, %v7239
      %v7241 = vpop.f32.mrb[0].mxu0
      %7242 = vmatprep.mubr.f32.mxu0 0.0
      %7243 = vmatmul.mubr.f32.gmra.mrb[0].mxu0 %v7007
      %v7244 = vpop.f32.mrb[0].mxu0
      %v7245 = vadd.f32 %v6796, %v7244
      %v7246 = vpop.f32.mrb[0].mxu0
      %7247 = vmatprep.mubr.f32.mxu0 0.0
      %7248 = vmatmul.mubr.f32.gmra.mrb[0].mxu0 %v7010
      %v7249 = vpop.f32.mrb[0].mxu0
      %v7250 = vadd.f32 %v6801, %v7249
      %v7251 = vpop.f32.mrb[0].mxu0
      %7252 = vmatprep.mubr.f32.mxu0 0.0
      %7253 = vmatmul.mubr.f32.gmra.mrb[0].mxu0 %v7013
      %v7254 = vpop.f32.mrb[0].mxu0
      %v7255 = vadd.f32 %v6806, %v7254
      %v7256 = vpop.f32.mrb[0].mxu0
      %7257 = vmatprep.mubr.f32.mxu0 0.0
      %7258 = vmatmul.mubr.f32.gmra.mrb[0].mxu0 %v7016
      %v7259 = vpop.f32.mrb[0].mxu0
      %v7260 = vadd.f32 %v6811, %v7259
      %v7261 = vpop.f32.mrb[0].mxu0
      %7262 = vmatprep.mubr.f32.mxu0 0.0
      %7263 = vmatmul.mubr.f32.gmra.mrb[0].mxu0 %v7019
      %v7264 = vpop.f32.mrb[0].mxu0
      %v7265 = vadd.f32 %v6816, %v7264
      %v7266 = vpop.f32.mrb[0].mxu0
      %7267 = vmatprep.mubr.f32.mxu0 0.0
      %7268 = vmatmul.mubr.f32.gmra.mrb[0].mxu0 %v7022
      %v7269 = vpop.f32.mrb[0].mxu0
      %v7270 = vadd.f32 %v6821, %v7269
      %v7271 = vpop.f32.mrb[0].mxu0
      %7272 = vmatprep.mubr.f32.mxu0 0.0
      %7273 = vmatmul.mubr.f32.gmra.mrb[0].mxu0 %v7025
      %v7274 = vpop.f32.mrb[0].mxu0
      %v7275 = vadd.f32 %v6826, %v7274
      %v7276 = vpop.f32.mrb[0].mxu0
      %7277 = vmatprep.mubr.f32.mxu0 0.0
      %7278 = vmatmul.mubr.f32.gmra.mrb[0].mxu0 %v7028
      %v7279 = vpop.f32.mrb[0].mxu0
      %v7280 = vadd.f32 %v6831, %v7279
      %v7281 = vpop.f32.mrb[0].mxu0
      %7282 = vmatprep.mubr.f32.mxu0 0.0
      %7283 = vmatmul.mubr.f32.gmra.mrb[0].mxu0 %v7031
      %v7284 = vpop.f32.mrb[0].mxu0
      %v7285 = vadd.f32 %v6836, %v7284
      %v7286 = vpop.f32.mrb[0].mxu0
      %7287 = vmatprep.mubr.f32.mxu0 0.0
      %7288 = vmatmul.mubr.f32.gmra.mrb[0].mxu0 %v7034
      %v7289 = vpop.f32.mrb[0].mxu0
      %v7290 = vadd.f32 %v6841, %v7289
      %v7291 = vpop.f32.mrb[0].mxu0
      %7292 = vmatprep.mubr.f32.mxu0 0.0
      %7293 = vmatmul.mubr.f32.gmra.mrb[0].mxu0 %v7037
      %v7294 = vpop.f32.mrb[0].mxu0
      %v7295 = vadd.f32 %v6846, %v7294
      %v7296 = vpop.f32.mrb[0].mxu0
      %7297 = vmatprep.mubr.f32.mxu0 0.0
      %7298 = vmatmul.mubr.f32.gmra.mrb[0].mxu0 %v7040
      %v7299 = vpop.f32.mrb[0].mxu0
      %v7300 = vadd.f32 %v6851, %v7299
      %v7301 = vpop.f32.mrb[0].mxu0
      %7302 = vmatprep.mubr.f32.mxu0 0.0
      %7303 = vmatmul.mubr.f32.gmra.mrb[0].mxu0 %v7043
      %v7304 = vpop.f32.mrb[0].mxu0
      %v7305 = vadd.f32 %v6856, %v7304
      %v7306 = vpop.f32.mrb[0].mxu0
      %7307 = vmatprep.mubr.f32.mxu0 0.0
      %7308 = vmatmul.mubr.f32.gmra.mrb[0].mxu0 %v7046
      %v7309 = vpop.f32.mrb[0].mxu0
      %v7310 = vadd.f32 %v6861, %v7309
      %v7311 = vpop.f32.mrb[0].mxu0
      %7312 = vmatprep.mubr.f32.mxu0 0.0
      %7313 = vmatmul.mubr.f32.gmra.mrb[0].mxu0 %v7049
      %v7314 = vpop.f32.mrb[0].mxu0
      %v7315 = vadd.f32 %v6866, %v7314
      %v7316 = vpop.f32.mrb[0].mxu0
      %7317 = vmatprep.mubr.f32.mxu0 0.0
      %7318 = vmatmul.mubr.f32.gmra.mrb[0].mxu0 %v7052
      %v7319 = vpop.f32.mrb[0].mxu0
      %v7320 = vadd.f32 %v6871, %v7319
      %v7321 = vpop.f32.mrb[0].mxu0
      %7322 = vmatprep.mubr.f32.mxu0 0.0
      %7323 = vmatmul.mubr.f32.gmra.mrb[0].mxu0 %v7055
      %v7324 = vpop.f32.mrb[0].mxu0
      %v7325 = vadd.f32 %v6876, %v7324
      %v7326 = vpop.f32.mrb[0].mxu0
      %7327 = vmatprep.mubr.f32.mxu0 0.0
      %7328 = vmatmul.mubr.f32.gmra.mrb[0].mxu0 %v7058
      %v7329 = vpop.f32.mrb[0].mxu0
      %v7330 = vadd.f32 %v6881, %v7329
      %v7331 = vpop.f32.mrb[0].mxu0
      %7332 = vmatprep.mubr.f32.mxu0 0.0
      %7333 = vmatmul.mubr.f32.gmra.mrb[0].mxu0 %v7061
      %v7334 = vpop.f32.mrb[0].mxu0
      %v7335 = vadd.f32 %v6886, %v7334
      %v7336 = vpop.f32.mrb[0].mxu0
      %7337 = vmatprep.mubr.f32.mxu0 0.0
      %7338 = vmatmul.mubr.f32.gmra.mrb[0].mxu0 %v7064
      %v7339 = vpop.f32.mrb[0].mxu0
      %v7340 = vadd.f32 %v6891, %v7339
      %v7341 = vpop.f32.mrb[0].mxu0
      %7342 = vmatprep.mubr.f32.mxu0 0.0
      %7343 = vmatmul.mubr.f32.gmra.mrb[0].mxu0 %v7067
      %v7344 = vpop.f32.mrb[0].mxu0
      %v7345 = vadd.f32 %v6896, %v7344
      %v7346 = vpop.f32.mrb[0].mxu0
      %7347 = vmatprep.mubr.f32.mxu0 0.0
      %7348 = vmatmul.mubr.f32.gmra.mrb[0].mxu0 %v7070
      %v7349 = vpop.f32.mrb[0].mxu0
      %v7350 = vadd.f32 %v6901, %v7349
      %v7351 = vpop.f32.mrb[0].mxu0
      %7352 = vmatprep.mubr.f32.mxu0 0.0
      %7353 = vmatmul.mubr.f32.gmra.mrb[0].mxu0 %v7073
      %v7354 = vpop.f32.mrb[0].mxu0
      %v7355 = vadd.f32 %v6906, %v7354
      %v7356 = vpop.f32.mrb[0].mxu0
      %7357 = vmatprep.mubr.f32.mxu0 0.0
      %7358 = vmatmul.mubr.f32.gmra.mrb[0].mxu0 %v7076
      %v7359 = vpop.f32.mrb[0].mxu0
      %v7360 = vadd.f32 %v6911, %v7359
      %v7361 = vpop.f32.mrb[0].mxu0
      %7362 = vmatprep.mubr.f32.mxu0 0.0
      %7363 = vmatmul.mubr.f32.gmra.mrb[0].mxu0 %v7079
      %v7364 = vpop.f32.mrb[0].mxu0
      %v7365 = vadd.f32 %v6916, %v7364
      %v7366 = vpop.f32.mrb[0].mxu0
      %7367 = vmatprep.mubr.f32.mxu0 0.0
      %7368 = vmatmul.mubr.f32.gmra.mrb[0].mxu0 %v7082
      %v7369 = vpop.f32.mrb[0].mxu0
      %v7370 = vadd.f32 %v6921, %v7369
      %v7371 = vpop.f32.mrb[0].mxu0
      %7372 = vmatprep.mubr.f32.mxu0 0.0
      %7373 = vmatmul.mubr.f32.gmra.mrb[0].mxu0 %v7085
      %v7374 = vpop.f32.mrb[0].mxu0
      %v7375 = vadd.f32 %v6926, %v7374
      %v7376 = vpop.f32.mrb[0].mxu0
      %7377 = vmatprep.mubr.f32.mxu0 0.0
      %7378 = vmatmul.mubr.f32.gmra.mrb[0].mxu0 %v7088
      %v7379 = vpop.f32.mrb[0].mxu0
      %v7380 = vadd.f32 %v6931, %v7379
      %v7381 = vpop.f32.mrb[0].mxu0
      %7382 = vmatprep.mubr.f32.mxu0 0.0
      %7383 = vmatmul.mubr.f32.gmra.mrb[0].mxu0 %v7091
      %v7384 = vpop.f32.mrb[0].mxu0
      %v7385 = vadd.f32 %v6936, %v7384
      %v7386 = vpop.f32.mrb[0].mxu0
      %7387 = vmatprep.mubr.f32.mxu0 0.0
      %7388 = vmatmul.mubr.f32.gmra.mrb[0].mxu0 %v7094
      %v7389 = vpop.f32.mrb[0].mxu0
      %v7390 = vadd.f32 %v6941, %v7389
      %v7391 = vpop.f32.mrb[0].mxu0
      %7392 = vmatprep.mubr.f32.mxu0 0.0
      %7393 = vmatmul.mubr.f32.gmra.mrb[0].mxu0 %v7097
      %v7394 = vpop.f32.mrb[0].mxu0
      %v7395 = vadd.f32 %v6946, %v7394
      %v7396 = vpop.f32.mrb[0].mxu0
      %7397 = vmatprep.mubr.f32.mxu0 0.0
      %7398 = vmatmul.mubr.f32.gmra.mrb[0].mxu0 %v7100
      %v7399 = vpop.f32.mrb[0].mxu0
      %v7400 = vadd.f32 %v6951, %v7399
      %v7401 = vpop.f32.mrb[0].mxu0
      %7402 = vmatprep.mubr.f32.mxu0 0.0
      %7403 = vmatmul.mubr.f32.gmra.mrb[0].mxu0 %v7103
      %v7404 = vpop.f32.mrb[0].mxu0
      %v7405 = vadd.f32 %v6956, %v7404
      %v7406 = vpop.f32.mrb[0].mxu0
      %7407 = vmatprep.mubr.f32.mxu0 0.0
      %7408 = vmatmul.mubr.f32.gmra.mrb[0].mxu0 %v7106
      %v7409 = vpop.f32.mrb[0].mxu0
      %v7410 = vadd.f32 %v6961, %v7409
      %v7411 = vpop.f32.mrb[0].mxu0
      %7412 = vdwg.mxu0
      %v7413 = vld [vmem:[#allocation2 + $0x30] sm:$0xff]
      %v7414 = vld [vmem:[#allocation2 + $0x38] sm:$0xff]
      %v7415 = vld [vmem:[#allocation2 + $0x40] sm:$0xff]
      %v7416 = vld [vmem:[#allocation2 + $0x48] sm:$0xff]
      %v7417 = vld [vmem:[#allocation2 + $0x50] sm:$0xff]
      %v7418 = vld [vmem:[#allocation2 + $0x58] sm:$0xff]
      %v7419 = vld [vmem:[#allocation2 + $0x60] sm:$0xff]
      %v7420 = vld [vmem:[#allocation2 + $0x68] sm:$0xff]
      %v7421 = vld [vmem:[#allocation2 + $0x70] sm:$0xff]
      %v7422 = vld [vmem:[#allocation2 + $0x78] sm:$0xff]
      %v7423 = vld [vmem:[#allocation2 + $0x80] sm:$0xff]
      %v7424 = vld [vmem:[#allocation2 + $0x88] sm:$0xff]
      %v7425 = vld [vmem:[#allocation2 + $0x90] sm:$0xff]
      %v7426 = vld [vmem:[#allocation2 + $0x98] sm:$0xff]
      %v7427 = vld [vmem:[#allocation2 + $0xa0] sm:$0xff]
      %v7428 = vld [vmem:[#allocation2 + $0xa8] sm:$0xff]
      %v7429 = vld [vmem:[#allocation2 + $0xb0] sm:$0xff]
      %v7430 = vld [vmem:[#allocation2 + $0xb8] sm:$0xff]
      %v7431 = vld [vmem:[#allocation2 + $0xc0] sm:$0xff]
      %v7432 = vld [vmem:[#allocation2 + $0xc8] sm:$0xff]
      %v7433 = vld [vmem:[#allocation2 + $0xd0] sm:$0xff]
      %v7434 = vld [vmem:[#allocation2 + $0xd8] sm:$0xff]
      %v7435 = vld [vmem:[#allocation2 + $0xe0] sm:$0xff]
      %v7436 = vld [vmem:[#allocation2 + $0xe8] sm:$0xff]
      %v7437 = vld [vmem:[#allocation2 + $0xf0] sm:$0xff]
      %v7438 = vld [vmem:[#allocation2 + $0xf8] sm:$0xff]
      %v7439 = vld [vmem:[#allocation2 + $0x100] sm:$0xff]
      %v7440 = vld [vmem:[#allocation2 + $0x108] sm:$0xff]
      %v7441 = vld [vmem:[#allocation2 + $0x110] sm:$0xff]
      %v7442 = vld [vmem:[#allocation2 + $0x118] sm:$0xff]
      %v7443 = vld [vmem:[#allocation2 + $0x120] sm:$0xff]
      %v7444 = vld [vmem:[#allocation2 + $0x128] sm:$0xff]
      %v7445 = vld [vmem:[#allocation2 + $0x130] sm:$0xff]
      %v7446 = vld [vmem:[#allocation2 + $0x138] sm:$0xff]
      %v7447 = vld [vmem:[#allocation2 + $0x140] sm:$0xff]
      %v7448 = vld [vmem:[#allocation2 + $0x148] sm:$0xff]
      %v7449 = vld [vmem:[#allocation2 + $0x150] sm:$0xff]
      %v7450 = vld [vmem:[#allocation2 + $0x158] sm:$0xff]
      %v7451 = vld [vmem:[#allocation2 + $0x160] sm:$0xff]
      %v7452 = vld [vmem:[#allocation2 + $0x168] sm:$0xff]
      %v7453 = vld [vmem:[#allocation2 + $0x170] sm:$0xff]
      %v7454 = vld [vmem:[#allocation2 + $0x178] sm:$0xff]
      %v7455 = vld [vmem:[#allocation2 + $0x180] sm:$0xff]
      %v7456 = vld [vmem:[#allocation2 + $0x188] sm:$0xff]
      %v7457 = vld [vmem:[#allocation2 + $0x190] sm:$0xff]
      %v7458 = vld [vmem:[#allocation2 + $0x198] sm:$0xff]
      %v7459 = vld [vmem:[#allocation2 + $0x1a0] sm:$0xff]
      %v7460 = vld [vmem:[#allocation2 + $0x1a8] sm:$0xff]
      %7461 = vst.msk [vmem:[#allocation4] sm:$0xff] %vm5112, %v7413
      %7462 = vst.msk [vmem:[#allocation4 + $0x8] sm:$0xff] %vm5112, %v7414
      %7463 = vst.msk [vmem:[#allocation4 + $0x10] sm:$0xff] %vm5112, %v7415
      %7464 = vst.msk [vmem:[#allocation4 + $0x18] sm:$0xff] %vm5112, %v7416
      %7465 = vst.msk [vmem:[#allocation4 + $0x20] sm:$0xff] %vm5112, %v7417
      %7466 = vst.msk [vmem:[#allocation4 + $0x28] sm:$0xff] %vm5112, %v7418
      %7467 = vst.msk [vmem:[#allocation4 + $0x30] sm:$0xff] %vm5112, %v7419
      %7468 = vst.msk [vmem:[#allocation4 + $0x38] sm:$0xff] %vm5112, %v7420
      %7469 = vst.msk [vmem:[#allocation4 + $0x40] sm:$0xff] %vm5112, %v7421
      %7470 = vst.msk [vmem:[#allocation4 + $0x48] sm:$0xff] %vm5112, %v7422
      %7471 = vst.msk [vmem:[#allocation4 + $0x50] sm:$0xff] %vm5112, %v7423
      %7472 = vst.msk [vmem:[#allocation4 + $0x58] sm:$0xff] %vm5112, %v7424
      %7473 = vst.msk [vmem:[#allocation4 + $0x60] sm:$0xff] %vm5112, %v7425
      %7474 = vst.msk [vmem:[#allocation4 + $0x68] sm:$0xff] %vm5112, %v7426
      %7475 = vst.msk [vmem:[#allocation4 + $0x70] sm:$0xff] %vm5112, %v7427
      %7476 = vst.msk [vmem:[#allocation4 + $0x78] sm:$0xff] %vm5112, %v7428
      %7477 = vst.msk [vmem:[#allocation4 + $0x80] sm:$0xff] %vm5112, %v7429
      %7478 = vst.msk [vmem:[#allocation4 + $0x88] sm:$0xff] %vm5112, %v7430
      %7479 = vst.msk [vmem:[#allocation4 + $0x90] sm:$0xff] %vm5112, %v7431
      %7480 = vst.msk [vmem:[#allocation4 + $0x98] sm:$0xff] %vm5112, %v7432
      %7481 = vst.msk [vmem:[#allocation4 + $0xa0] sm:$0xff] %vm5112, %v7433
      %7482 = vst.msk [vmem:[#allocation4 + $0xa8] sm:$0xff] %vm5112, %v7434
      %7483 = vst.msk [vmem:[#allocation4 + $0xb0] sm:$0xff] %vm5112, %v7435
      %7484 = vst.msk [vmem:[#allocation4 + $0xb8] sm:$0xff] %vm5112, %v7436
      %7485 = vst.msk [vmem:[#allocation4 + $0xc0] sm:$0xff] %vm5112, %v7437
      %7486 = vst.msk [vmem:[#allocation4 + $0xc8] sm:$0xff] %vm5112, %v7438
      %7487 = vst.msk [vmem:[#allocation4 + $0xd0] sm:$0xff] %vm5112, %v7439
      %7488 = vst.msk [vmem:[#allocation4 + $0xd8] sm:$0xff] %vm5112, %v7440
      %7489 = vst.msk [vmem:[#allocation4 + $0xe0] sm:$0xff] %vm5112, %v7441
      %7490 = vst.msk [vmem:[#allocation4 + $0xe8] sm:$0xff] %vm5112, %v7442
      %7491 = vst.msk [vmem:[#allocation4 + $0xf0] sm:$0xff] %vm5112, %v7443
      %7492 = vst.msk [vmem:[#allocation4 + $0xf8] sm:$0xff] %vm5112, %v7444
      %7493 = vst.msk [vmem:[#allocation4 + $0x100] sm:$0xff] %vm5112, %v7445
      %7494 = vst.msk [vmem:[#allocation4 + $0x108] sm:$0xff] %vm5112, %v7446
      %7495 = vst.msk [vmem:[#allocation4 + $0x110] sm:$0xff] %vm5112, %v7447
      %7496 = vst.msk [vmem:[#allocation4 + $0x118] sm:$0xff] %vm5112, %v7448
      %7497 = vst.msk [vmem:[#allocation4 + $0x120] sm:$0xff] %vm5112, %v7449
      %7498 = vst.msk [vmem:[#allocation4 + $0x128] sm:$0xff] %vm5112, %v7450
      %7499 = vst.msk [vmem:[#allocation4 + $0x130] sm:$0xff] %vm5112, %v7451
      %7500 = vst.msk [vmem:[#allocation4 + $0x138] sm:$0xff] %vm5112, %v7452
      %7501 = vst.msk [vmem:[#allocation4 + $0x140] sm:$0xff] %vm5112, %v7453
      %7502 = vst.msk [vmem:[#allocation4 + $0x148] sm:$0xff] %vm5112, %v7454
      %7503 = vst.msk [vmem:[#allocation4 + $0x150] sm:$0xff] %vm5112, %v7455
      %7504 = vst.msk [vmem:[#allocation4 + $0x158] sm:$0xff] %vm5112, %v7456
      %7505 = vst.msk [vmem:[#allocation4 + $0x160] sm:$0xff] %vm5112, %v7457
      %7506 = vst.msk [vmem:[#allocation4 + $0x168] sm:$0xff] %vm5112, %v7458
      %7507 = vst.msk [vmem:[#allocation4 + $0x170] sm:$0xff] %vm5112, %v7459
      %7508 = vst.msk [vmem:[#allocation4 + $0x178] sm:$0xff] %vm5112, %v7460
      %v7509 = vld [vmem:[#allocation2 + $0x31] sm:$0xff]
      %v7510 = vld [vmem:[#allocation2 + $0x39] sm:$0xff]
      %v7511 = vld [vmem:[#allocation2 + $0x41] sm:$0xff]
      %v7512 = vld [vmem:[#allocation2 + $0x49] sm:$0xff]
      %v7513 = vld [vmem:[#allocation2 + $0x51] sm:$0xff]
      %v7514 = vld [vmem:[#allocation2 + $0x59] sm:$0xff]
      %v7515 = vld [vmem:[#allocation2 + $0x61] sm:$0xff]
      %v7516 = vld [vmem:[#allocation2 + $0x69] sm:$0xff]
      %v7517 = vld [vmem:[#allocation2 + $0x71] sm:$0xff]
      %v7518 = vld [vmem:[#allocation2 + $0x79] sm:$0xff]
      %v7519 = vld [vmem:[#allocation2 + $0x81] sm:$0xff]
      %v7520 = vld [vmem:[#allocation2 + $0x89] sm:$0xff]
      %v7521 = vld [vmem:[#allocation2 + $0x91] sm:$0xff]
      %v7522 = vld [vmem:[#allocation2 + $0x99] sm:$0xff]
      %v7523 = vld [vmem:[#allocation2 + $0xa1] sm:$0xff]
      %v7524 = vld [vmem:[#allocation2 + $0xa9] sm:$0xff]
      %v7525 = vld [vmem:[#allocation2 + $0xb1] sm:$0xff]
      %v7526 = vld [vmem:[#allocation2 + $0xb9] sm:$0xff]
      %v7527 = vld [vmem:[#allocation2 + $0xc1] sm:$0xff]
      %v7528 = vld [vmem:[#allocation2 + $0xc9] sm:$0xff]
      %v7529 = vld [vmem:[#allocation2 + $0xd1] sm:$0xff]
      %v7530 = vld [vmem:[#allocation2 + $0xd9] sm:$0xff]
      %v7531 = vld [vmem:[#allocation2 + $0xe1] sm:$0xff]
      %v7532 = vld [vmem:[#allocation2 + $0xe9] sm:$0xff]
      %v7533 = vld [vmem:[#allocation2 + $0xf1] sm:$0xff]
      %v7534 = vld [vmem:[#allocation2 + $0xf9] sm:$0xff]
      %v7535 = vld [vmem:[#allocation2 + $0x101] sm:$0xff]
      %v7536 = vld [vmem:[#allocation2 + $0x109] sm:$0xff]
      %v7537 = vld [vmem:[#allocation2 + $0x111] sm:$0xff]
      %v7538 = vld [vmem:[#allocation2 + $0x119] sm:$0xff]
      %v7539 = vld [vmem:[#allocation2 + $0x121] sm:$0xff]
      %v7540 = vld [vmem:[#allocation2 + $0x129] sm:$0xff]
      %v7541 = vld [vmem:[#allocation2 + $0x131] sm:$0xff]
      %v7542 = vld [vmem:[#allocation2 + $0x139] sm:$0xff]
      %v7543 = vld [vmem:[#allocation2 + $0x141] sm:$0xff]
      %v7544 = vld [vmem:[#allocation2 + $0x149] sm:$0xff]
      %v7545 = vld [vmem:[#allocation2 + $0x151] sm:$0xff]
      %v7546 = vld [vmem:[#allocation2 + $0x159] sm:$0xff]
      %v7547 = vld [vmem:[#allocation2 + $0x161] sm:$0xff]
      %v7548 = vld [vmem:[#allocation2 + $0x169] sm:$0xff]
      %v7549 = vld [vmem:[#allocation2 + $0x171] sm:$0xff]
      %v7550 = vld [vmem:[#allocation2 + $0x179] sm:$0xff]
      %v7551 = vld [vmem:[#allocation2 + $0x181] sm:$0xff]
      %v7552 = vld [vmem:[#allocation2 + $0x189] sm:$0xff]
      %v7553 = vld [vmem:[#allocation2 + $0x191] sm:$0xff]
      %v7554 = vld [vmem:[#allocation2 + $0x199] sm:$0xff]
      %v7555 = vld [vmem:[#allocation2 + $0x1a1] sm:$0xff]
      %v7556 = vld [vmem:[#allocation2 + $0x1a9] sm:$0xff]
      %7605 = vrot.lane.b32.xlu0 %v7509, 8
      %v7606 = vpop.permute.xlu0 %7605
      %7607 = vrot.lane.b32.xlu0 %v7510, 8
      %v7608 = vpop.permute.xlu0 %7607
      %7609 = vrot.lane.b32.xlu0 %v7511, 8
      %v7610 = vpop.permute.xlu0 %7609
      %7611 = vrot.lane.b32.xlu0 %v7512, 8
      %v7612 = vpop.permute.xlu0 %7611
      %7613 = vrot.lane.b32.xlu0 %v7513, 8
      %v7614 = vpop.permute.xlu0 %7613
      %7615 = vrot.lane.b32.xlu0 %v7514, 8
      %v7616 = vpop.permute.xlu0 %7615
      %7617 = vrot.lane.b32.xlu0 %v7515, 8
      %v7618 = vpop.permute.xlu0 %7617
      %7619 = vrot.lane.b32.xlu0 %v7516, 8
      %v7620 = vpop.permute.xlu0 %7619
      %7621 = vrot.lane.b32.xlu0 %v7517, 8
      %v7622 = vpop.permute.xlu0 %7621
      %7623 = vrot.lane.b32.xlu0 %v7518, 8
      %v7624 = vpop.permute.xlu0 %7623
      %7625 = vrot.lane.b32.xlu0 %v7519, 8
      %v7626 = vpop.permute.xlu0 %7625
      %7627 = vrot.lane.b32.xlu0 %v7520, 8
      %v7628 = vpop.permute.xlu0 %7627
      %7629 = vrot.lane.b32.xlu0 %v7521, 8
      %v7630 = vpop.permute.xlu0 %7629
      %7631 = vrot.lane.b32.xlu0 %v7522, 8
      %v7632 = vpop.permute.xlu0 %7631
      %7633 = vrot.lane.b32.xlu0 %v7523, 8
      %v7634 = vpop.permute.xlu0 %7633
      %7635 = vrot.lane.b32.xlu0 %v7524, 8
      %v7636 = vpop.permute.xlu0 %7635
      %7637 = vrot.lane.b32.xlu0 %v7525, 8
      %v7638 = vpop.permute.xlu0 %7637
      %7639 = vrot.lane.b32.xlu0 %v7526, 8
      %v7640 = vpop.permute.xlu0 %7639
      %7641 = vrot.lane.b32.xlu0 %v7527, 8
      %v7642 = vpop.permute.xlu0 %7641
      %7643 = vrot.lane.b32.xlu0 %v7528, 8
      %v7644 = vpop.permute.xlu0 %7643
      %7645 = vrot.lane.b32.xlu0 %v7529, 8
      %v7646 = vpop.permute.xlu0 %7645
      %7647 = vrot.lane.b32.xlu0 %v7530, 8
      %v7648 = vpop.permute.xlu0 %7647
      %7649 = vrot.lane.b32.xlu0 %v7531, 8
      %v7650 = vpop.permute.xlu0 %7649
      %7651 = vrot.lane.b32.xlu0 %v7532, 8
      %v7652 = vpop.permute.xlu0 %7651
      %7653 = vrot.lane.b32.xlu0 %v7533, 8
      %v7654 = vpop.permute.xlu0 %7653
      %7655 = vrot.lane.b32.xlu0 %v7534, 8
      %v7656 = vpop.permute.xlu0 %7655
      %7657 = vrot.lane.b32.xlu0 %v7535, 8
      %v7658 = vpop.permute.xlu0 %7657
      %7659 = vrot.lane.b32.xlu0 %v7536, 8
      %v7660 = vpop.permute.xlu0 %7659
      %7661 = vrot.lane.b32.xlu0 %v7537, 8
      %v7662 = vpop.permute.xlu0 %7661
      %7663 = vrot.lane.b32.xlu0 %v7538, 8
      %v7664 = vpop.permute.xlu0 %7663
      %7665 = vrot.lane.b32.xlu0 %v7539, 8
      %v7666 = vpop.permute.xlu0 %7665
      %7667 = vrot.lane.b32.xlu0 %v7540, 8
      %v7668 = vpop.permute.xlu0 %7667
      %7669 = vrot.lane.b32.xlu0 %v7541, 8
      %v7670 = vpop.permute.xlu0 %7669
      %7671 = vrot.lane.b32.xlu0 %v7542, 8
      %v7672 = vpop.permute.xlu0 %7671
      %7673 = vrot.lane.b32.xlu0 %v7543, 8
      %v7674 = vpop.permute.xlu0 %7673
      %7675 = vrot.lane.b32.xlu0 %v7544, 8
      %v7676 = vpop.permute.xlu0 %7675
      %7677 = vrot.lane.b32.xlu0 %v7545, 8
      %v7678 = vpop.permute.xlu0 %7677
      %7679 = vrot.lane.b32.xlu0 %v7546, 8
      %v7680 = vpop.permute.xlu0 %7679
      %7681 = vrot.lane.b32.xlu0 %v7547, 8
      %v7682 = vpop.permute.xlu0 %7681
      %7683 = vrot.lane.b32.xlu0 %v7548, 8
      %v7684 = vpop.permute.xlu0 %7683
      %7685 = vrot.lane.b32.xlu0 %v7549, 8
      %v7686 = vpop.permute.xlu0 %7685
      %7687 = vrot.lane.b32.xlu0 %v7550, 8
      %v7688 = vpop.permute.xlu0 %7687
      %7689 = vrot.lane.b32.xlu0 %v7551, 8
      %v7690 = vpop.permute.xlu0 %7689
      %7691 = vrot.lane.b32.xlu0 %v7552, 8
      %v7692 = vpop.permute.xlu0 %7691
      %7693 = vrot.lane.b32.xlu0 %v7553, 8
      %v7694 = vpop.permute.xlu0 %7693
      %7695 = vrot.lane.b32.xlu0 %v7554, 8
      %v7696 = vpop.permute.xlu0 %7695
      %7697 = vrot.lane.b32.xlu0 %v7555, 8
      %v7698 = vpop.permute.xlu0 %7697
      %7699 = vrot.lane.b32.xlu0 %v7556, 8
      %v7700 = vpop.permute.xlu0 %7699
      %7749 = vst.msk [vmem:[#allocation4] sm:$0xff] %vm5401, %v7606
      %7750 = vst.msk [vmem:[#allocation4 + $0x8] sm:$0xff] %vm5401, %v7608
      %7751 = vst.msk [vmem:[#allocation4 + $0x10] sm:$0xff] %vm5401, %v7610
      %7752 = vst.msk [vmem:[#allocation4 + $0x18] sm:$0xff] %vm5401, %v7612
      %7753 = vst.msk [vmem:[#allocation4 + $0x20] sm:$0xff] %vm5401, %v7614
      %7754 = vst.msk [vmem:[#allocation4 + $0x28] sm:$0xff] %vm5401, %v7616
      %7755 = vst.msk [vmem:[#allocation4 + $0x30] sm:$0xff] %vm5401, %v7618
      %7756 = vst.msk [vmem:[#allocation4 + $0x38] sm:$0xff] %vm5401, %v7620
      %7757 = vst.msk [vmem:[#allocation4 + $0x40] sm:$0xff] %vm5401, %v7622
      %7758 = vst.msk [vmem:[#allocation4 + $0x48] sm:$0xff] %vm5401, %v7624
      %7759 = vst.msk [vmem:[#allocation4 + $0x50] sm:$0xff] %vm5401, %v7626
      %7760 = vst.msk [vmem:[#allocation4 + $0x58] sm:$0xff] %vm5401, %v7628
      %7761 = vst.msk [vmem:[#allocation4 + $0x60] sm:$0xff] %vm5401, %v7630
      %7762 = vst.msk [vmem:[#allocation4 + $0x68] sm:$0xff] %vm5401, %v7632
      %7763 = vst.msk [vmem:[#allocation4 + $0x70] sm:$0xff] %vm5401, %v7634
      %7764 = vst.msk [vmem:[#allocation4 + $0x78] sm:$0xff] %vm5401, %v7636
      %7765 = vst.msk [vmem:[#allocation4 + $0x80] sm:$0xff] %vm5401, %v7638
      %7766 = vst.msk [vmem:[#allocation4 + $0x88] sm:$0xff] %vm5401, %v7640
      %7767 = vst.msk [vmem:[#allocation4 + $0x90] sm:$0xff] %vm5401, %v7642
      %7768 = vst.msk [vmem:[#allocation4 + $0x98] sm:$0xff] %vm5401, %v7644
      %7769 = vst.msk [vmem:[#allocation4 + $0xa0] sm:$0xff] %vm5401, %v7646
      %7770 = vst.msk [vmem:[#allocation4 + $0xa8] sm:$0xff] %vm5401, %v7648
      %7771 = vst.msk [vmem:[#allocation4 + $0xb0] sm:$0xff] %vm5401, %v7650
      %7772 = vst.msk [vmem:[#allocation4 + $0xb8] sm:$0xff] %vm5401, %v7652
      %7773 = vst.msk [vmem:[#allocation4 + $0xc0] sm:$0xff] %vm5401, %v7654
      %7774 = vst.msk [vmem:[#allocation4 + $0xc8] sm:$0xff] %vm5401, %v7656
      %7775 = vst.msk [vmem:[#allocation4 + $0xd0] sm:$0xff] %vm5401, %v7658
      %7776 = vst.msk [vmem:[#allocation4 + $0xd8] sm:$0xff] %vm5401, %v7660
      %7777 = vst.msk [vmem:[#allocation4 + $0xe0] sm:$0xff] %vm5401, %v7662
      %7778 = vst.msk [vmem:[#allocation4 + $0xe8] sm:$0xff] %vm5401, %v7664
      %7779 = vst.msk [vmem:[#allocation4 + $0xf0] sm:$0xff] %vm5401, %v7666
      %7780 = vst.msk [vmem:[#allocation4 + $0xf8] sm:$0xff] %vm5401, %v7668
      %7781 = vst.msk [vmem:[#allocation4 + $0x100] sm:$0xff] %vm5401, %v7670
      %7782 = vst.msk [vmem:[#allocation4 + $0x108] sm:$0xff] %vm5401, %v7672
      %7783 = vst.msk [vmem:[#allocation4 + $0x110] sm:$0xff] %vm5401, %v7674
      %7784 = vst.msk [vmem:[#allocation4 + $0x118] sm:$0xff] %vm5401, %v7676
      %7785 = vst.msk [vmem:[#allocation4 + $0x120] sm:$0xff] %vm5401, %v7678
      %7786 = vst.msk [vmem:[#allocation4 + $0x128] sm:$0xff] %vm5401, %v7680
      %7787 = vst.msk [vmem:[#allocation4 + $0x130] sm:$0xff] %vm5401, %v7682
      %7788 = vst.msk [vmem:[#allocation4 + $0x138] sm:$0xff] %vm5401, %v7684
      %7789 = vst.msk [vmem:[#allocation4 + $0x140] sm:$0xff] %vm5401, %v7686
      %7790 = vst.msk [vmem:[#allocation4 + $0x148] sm:$0xff] %vm5401, %v7688
      %7791 = vst.msk [vmem:[#allocation4 + $0x150] sm:$0xff] %vm5401, %v7690
      %7792 = vst.msk [vmem:[#allocation4 + $0x158] sm:$0xff] %vm5401, %v7692
      %7793 = vst.msk [vmem:[#allocation4 + $0x160] sm:$0xff] %vm5401, %v7694
      %7794 = vst.msk [vmem:[#allocation4 + $0x168] sm:$0xff] %vm5401, %v7696
      %7795 = vst.msk [vmem:[#allocation4 + $0x170] sm:$0xff] %vm5401, %v7698
      %7796 = vst.msk [vmem:[#allocation4 + $0x178] sm:$0xff] %vm5401, %v7700
      %v7797 = vld [vmem:[#allocation2 + $0x32] sm:$0xff]
      %v7798 = vld [vmem:[#allocation2 + $0x3a] sm:$0xff]
      %v7799 = vld [vmem:[#allocation2 + $0x42] sm:$0xff]
      %v7800 = vld [vmem:[#allocation2 + $0x4a] sm:$0xff]
      %v7801 = vld [vmem:[#allocation2 + $0x52] sm:$0xff]
      %v7802 = vld [vmem:[#allocation2 + $0x5a] sm:$0xff]
      %v7803 = vld [vmem:[#allocation2 + $0x62] sm:$0xff]
      %v7804 = vld [vmem:[#allocation2 + $0x6a] sm:$0xff]
      %v7805 = vld [vmem:[#allocation2 + $0x72] sm:$0xff]
      %v7806 = vld [vmem:[#allocation2 + $0x7a] sm:$0xff]
      %v7807 = vld [vmem:[#allocation2 + $0x82] sm:$0xff]
      %v7808 = vld [vmem:[#allocation2 + $0x8a] sm:$0xff]
      %v7809 = vld [vmem:[#allocation2 + $0x92] sm:$0xff]
      %v7810 = vld [vmem:[#allocation2 + $0x9a] sm:$0xff]
      %v7811 = vld [vmem:[#allocation2 + $0xa2] sm:$0xff]
      %v7812 = vld [vmem:[#allocation2 + $0xaa] sm:$0xff]
      %v7813 = vld [vmem:[#allocation2 + $0xb2] sm:$0xff]
      %v7814 = vld [vmem:[#allocation2 + $0xba] sm:$0xff]
      %v7815 = vld [vmem:[#allocation2 + $0xc2] sm:$0xff]
      %v7816 = vld [vmem:[#allocation2 + $0xca] sm:$0xff]
      %v7817 = vld [vmem:[#allocation2 + $0xd2] sm:$0xff]
      %v7818 = vld [vmem:[#allocation2 + $0xda] sm:$0xff]
      %v7819 = vld [vmem:[#allocation2 + $0xe2] sm:$0xff]
      %v7820 = vld [vmem:[#allocation2 + $0xea] sm:$0xff]
      %v7821 = vld [vmem:[#allocation2 + $0xf2] sm:$0xff]
      %v7822 = vld [vmem:[#allocation2 + $0xfa] sm:$0xff]
      %v7823 = vld [vmem:[#allocation2 + $0x102] sm:$0xff]
      %v7824 = vld [vmem:[#allocation2 + $0x10a] sm:$0xff]
      %v7825 = vld [vmem:[#allocation2 + $0x112] sm:$0xff]
      %v7826 = vld [vmem:[#allocation2 + $0x11a] sm:$0xff]
      %v7827 = vld [vmem:[#allocation2 + $0x122] sm:$0xff]
      %v7828 = vld [vmem:[#allocation2 + $0x12a] sm:$0xff]
      %v7829 = vld [vmem:[#allocation2 + $0x132] sm:$0xff]
      %v7830 = vld [vmem:[#allocation2 + $0x13a] sm:$0xff]
      %v7831 = vld [vmem:[#allocation2 + $0x142] sm:$0xff]
      %v7832 = vld [vmem:[#allocation2 + $0x14a] sm:$0xff]
      %v7833 = vld [vmem:[#allocation2 + $0x152] sm:$0xff]
      %v7834 = vld [vmem:[#allocation2 + $0x15a] sm:$0xff]
      %v7835 = vld [vmem:[#allocation2 + $0x162] sm:$0xff]
      %v7836 = vld [vmem:[#allocation2 + $0x16a] sm:$0xff]
      %v7837 = vld [vmem:[#allocation2 + $0x172] sm:$0xff]
      %v7838 = vld [vmem:[#allocation2 + $0x17a] sm:$0xff]
      %v7839 = vld [vmem:[#allocation2 + $0x182] sm:$0xff]
      %v7840 = vld [vmem:[#allocation2 + $0x18a] sm:$0xff]
      %v7841 = vld [vmem:[#allocation2 + $0x192] sm:$0xff]
      %v7842 = vld [vmem:[#allocation2 + $0x19a] sm:$0xff]
      %v7843 = vld [vmem:[#allocation2 + $0x1a2] sm:$0xff]
      %v7844 = vld [vmem:[#allocation2 + $0x1aa] sm:$0xff]
      %7893 = vrot.lane.b32.xlu0 %v7797, 16
      %v7894 = vpop.permute.xlu0 %7893
      %7895 = vrot.lane.b32.xlu0 %v7798, 16
      %v7896 = vpop.permute.xlu0 %7895
      %7897 = vrot.lane.b32.xlu0 %v7799, 16
      %v7898 = vpop.permute.xlu0 %7897
      %7899 = vrot.lane.b32.xlu0 %v7800, 16
      %v7900 = vpop.permute.xlu0 %7899
      %7901 = vrot.lane.b32.xlu0 %v7801, 16
      %v7902 = vpop.permute.xlu0 %7901
      %7903 = vrot.lane.b32.xlu0 %v7802, 16
      %v7904 = vpop.permute.xlu0 %7903
      %7905 = vrot.lane.b32.xlu0 %v7803, 16
      %v7906 = vpop.permute.xlu0 %7905
      %7907 = vrot.lane.b32.xlu0 %v7804, 16
      %v7908 = vpop.permute.xlu0 %7907
      %7909 = vrot.lane.b32.xlu0 %v7805, 16
      %v7910 = vpop.permute.xlu0 %7909
      %7911 = vrot.lane.b32.xlu0 %v7806, 16
      %v7912 = vpop.permute.xlu0 %7911
      %7913 = vrot.lane.b32.xlu0 %v7807, 16
      %v7914 = vpop.permute.xlu0 %7913
      %7915 = vrot.lane.b32.xlu0 %v7808, 16
      %v7916 = vpop.permute.xlu0 %7915
      %7917 = vrot.lane.b32.xlu0 %v7809, 16
      %v7918 = vpop.permute.xlu0 %7917
      %7919 = vrot.lane.b32.xlu0 %v7810, 16
      %v7920 = vpop.permute.xlu0 %7919
      %7921 = vrot.lane.b32.xlu0 %v7811, 16
      %v7922 = vpop.permute.xlu0 %7921
      %7923 = vrot.lane.b32.xlu0 %v7812, 16
      %v7924 = vpop.permute.xlu0 %7923
      %7925 = vrot.lane.b32.xlu0 %v7813, 16
      %v7926 = vpop.permute.xlu0 %7925
      %7927 = vrot.lane.b32.xlu0 %v7814, 16
      %v7928 = vpop.permute.xlu0 %7927
      %7929 = vrot.lane.b32.xlu0 %v7815, 16
      %v7930 = vpop.permute.xlu0 %7929
      %7931 = vrot.lane.b32.xlu0 %v7816, 16
      %v7932 = vpop.permute.xlu0 %7931
      %7933 = vrot.lane.b32.xlu0 %v7817, 16
      %v7934 = vpop.permute.xlu0 %7933
      %7935 = vrot.lane.b32.xlu0 %v7818, 16
      %v7936 = vpop.permute.xlu0 %7935
      %7937 = vrot.lane.b32.xlu0 %v7819, 16
      %v7938 = vpop.permute.xlu0 %7937
      %7939 = vrot.lane.b32.xlu0 %v7820, 16
      %v7940 = vpop.permute.xlu0 %7939
      %7941 = vrot.lane.b32.xlu0 %v7821, 16
      %v7942 = vpop.permute.xlu0 %7941
      %7943 = vrot.lane.b32.xlu0 %v7822, 16
      %v7944 = vpop.permute.xlu0 %7943
      %7945 = vrot.lane.b32.xlu0 %v7823, 16
      %v7946 = vpop.permute.xlu0 %7945
      %7947 = vrot.lane.b32.xlu0 %v7824, 16
      %v7948 = vpop.permute.xlu0 %7947
      %7949 = vrot.lane.b32.xlu0 %v7825, 16
      %v7950 = vpop.permute.xlu0 %7949
      %7951 = vrot.lane.b32.xlu0 %v7826, 16
      %v7952 = vpop.permute.xlu0 %7951
      %7953 = vrot.lane.b32.xlu0 %v7827, 16
      %v7954 = vpop.permute.xlu0 %7953
      %7955 = vrot.lane.b32.xlu0 %v7828, 16
      %v7956 = vpop.permute.xlu0 %7955
      %7957 = vrot.lane.b32.xlu0 %v7829, 16
      %v7958 = vpop.permute.xlu0 %7957
      %7959 = vrot.lane.b32.xlu0 %v7830, 16
      %v7960 = vpop.permute.xlu0 %7959
      %7961 = vrot.lane.b32.xlu0 %v7831, 16
      %v7962 = vpop.permute.xlu0 %7961
      %7963 = vrot.lane.b32.xlu0 %v7832, 16
      %v7964 = vpop.permute.xlu0 %7963
      %7965 = vrot.lane.b32.xlu0 %v7833, 16
      %v7966 = vpop.permute.xlu0 %7965
      %7967 = vrot.lane.b32.xlu0 %v7834, 16
      %v7968 = vpop.permute.xlu0 %7967
      %7969 = vrot.lane.b32.xlu0 %v7835, 16
      %v7970 = vpop.permute.xlu0 %7969
      %7971 = vrot.lane.b32.xlu0 %v7836, 16
      %v7972 = vpop.permute.xlu0 %7971
      %7973 = vrot.lane.b32.xlu0 %v7837, 16
      %v7974 = vpop.permute.xlu0 %7973
      %7975 = vrot.lane.b32.xlu0 %v7838, 16
      %v7976 = vpop.permute.xlu0 %7975
      %7977 = vrot.lane.b32.xlu0 %v7839, 16
      %v7978 = vpop.permute.xlu0 %7977
      %7979 = vrot.lane.b32.xlu0 %v7840, 16
      %v7980 = vpop.permute.xlu0 %7979
      %7981 = vrot.lane.b32.xlu0 %v7841, 16
      %v7982 = vpop.permute.xlu0 %7981
      %7983 = vrot.lane.b32.xlu0 %v7842, 16
      %v7984 = vpop.permute.xlu0 %7983
      %7985 = vrot.lane.b32.xlu0 %v7843, 16
      %v7986 = vpop.permute.xlu0 %7985
      %7987 = vrot.lane.b32.xlu0 %v7844, 16
      %v7988 = vpop.permute.xlu0 %7987
      %8037 = vst.msk [vmem:[#allocation4] sm:$0xff] %vm5690, %v7894
      %8038 = vst.msk [vmem:[#allocation4 + $0x8] sm:$0xff] %vm5690, %v7896
      %8039 = vst.msk [vmem:[#allocation4 + $0x10] sm:$0xff] %vm5690, %v7898
      %8040 = vst.msk [vmem:[#allocation4 + $0x18] sm:$0xff] %vm5690, %v7900
      %8041 = vst.msk [vmem:[#allocation4 + $0x20] sm:$0xff] %vm5690, %v7902
      %8042 = vst.msk [vmem:[#allocation4 + $0x28] sm:$0xff] %vm5690, %v7904
      %8043 = vst.msk [vmem:[#allocation4 + $0x30] sm:$0xff] %vm5690, %v7906
      %8044 = vst.msk [vmem:[#allocation4 + $0x38] sm:$0xff] %vm5690, %v7908
      %8045 = vst.msk [vmem:[#allocation4 + $0x40] sm:$0xff] %vm5690, %v7910
      %8046 = vst.msk [vmem:[#allocation4 + $0x48] sm:$0xff] %vm5690, %v7912
      %8047 = vst.msk [vmem:[#allocation4 + $0x50] sm:$0xff] %vm5690, %v7914
      %8048 = vst.msk [vmem:[#allocation4 + $0x58] sm:$0xff] %vm5690, %v7916
      %8049 = vst.msk [vmem:[#allocation4 + $0x60] sm:$0xff] %vm5690, %v7918
      %8050 = vst.msk [vmem:[#allocation4 + $0x68] sm:$0xff] %vm5690, %v7920
      %8051 = vst.msk [vmem:[#allocation4 + $0x70] sm:$0xff] %vm5690, %v7922
      %8052 = vst.msk [vmem:[#allocation4 + $0x78] sm:$0xff] %vm5690, %v7924
      %8053 = vst.msk [vmem:[#allocation4 + $0x80] sm:$0xff] %vm5690, %v7926
      %8054 = vst.msk [vmem:[#allocation4 + $0x88] sm:$0xff] %vm5690, %v7928
      %8055 = vst.msk [vmem:[#allocation4 + $0x90] sm:$0xff] %vm5690, %v7930
      %8056 = vst.msk [vmem:[#allocation4 + $0x98] sm:$0xff] %vm5690, %v7932
      %8057 = vst.msk [vmem:[#allocation4 + $0xa0] sm:$0xff] %vm5690, %v7934
      %8058 = vst.msk [vmem:[#allocation4 + $0xa8] sm:$0xff] %vm5690, %v7936
      %8059 = vst.msk [vmem:[#allocation4 + $0xb0] sm:$0xff] %vm5690, %v7938
      %8060 = vst.msk [vmem:[#allocation4 + $0xb8] sm:$0xff] %vm5690, %v7940
      %8061 = vst.msk [vmem:[#allocation4 + $0xc0] sm:$0xff] %vm5690, %v7942
      %8062 = vst.msk [vmem:[#allocation4 + $0xc8] sm:$0xff] %vm5690, %v7944
      %8063 = vst.msk [vmem:[#allocation4 + $0xd0] sm:$0xff] %vm5690, %v7946
      %8064 = vst.msk [vmem:[#allocation4 + $0xd8] sm:$0xff] %vm5690, %v7948
      %8065 = vst.msk [vmem:[#allocation4 + $0xe0] sm:$0xff] %vm5690, %v7950
      %8066 = vst.msk [vmem:[#allocation4 + $0xe8] sm:$0xff] %vm5690, %v7952
      %8067 = vst.msk [vmem:[#allocation4 + $0xf0] sm:$0xff] %vm5690, %v7954
      %8068 = vst.msk [vmem:[#allocation4 + $0xf8] sm:$0xff] %vm5690, %v7956
      %8069 = vst.msk [vmem:[#allocation4 + $0x100] sm:$0xff] %vm5690, %v7958
      %8070 = vst.msk [vmem:[#allocation4 + $0x108] sm:$0xff] %vm5690, %v7960
      %8071 = vst.msk [vmem:[#allocation4 + $0x110] sm:$0xff] %vm5690, %v7962
      %8072 = vst.msk [vmem:[#allocation4 + $0x118] sm:$0xff] %vm5690, %v7964
      %8073 = vst.msk [vmem:[#allocation4 + $0x120] sm:$0xff] %vm5690, %v7966
      %8074 = vst.msk [vmem:[#allocation4 + $0x128] sm:$0xff] %vm5690, %v7968
      %8075 = vst.msk [vmem:[#allocation4 + $0x130] sm:$0xff] %vm5690, %v7970
      %8076 = vst.msk [vmem:[#allocation4 + $0x138] sm:$0xff] %vm5690, %v7972
      %8077 = vst.msk [vmem:[#allocation4 + $0x140] sm:$0xff] %vm5690, %v7974
      %8078 = vst.msk [vmem:[#allocation4 + $0x148] sm:$0xff] %vm5690, %v7976
      %8079 = vst.msk [vmem:[#allocation4 + $0x150] sm:$0xff] %vm5690, %v7978
      %8080 = vst.msk [vmem:[#allocation4 + $0x158] sm:$0xff] %vm5690, %v7980
      %8081 = vst.msk [vmem:[#allocation4 + $0x160] sm:$0xff] %vm5690, %v7982
      %8082 = vst.msk [vmem:[#allocation4 + $0x168] sm:$0xff] %vm5690, %v7984
      %8083 = vst.msk [vmem:[#allocation4 + $0x170] sm:$0xff] %vm5690, %v7986
      %8084 = vst.msk [vmem:[#allocation4 + $0x178] sm:$0xff] %vm5690, %v7988
      %v8085 = vld [vmem:[#allocation4] sm:$0xff]
      %v8086 = vld [vmem:[#allocation4 + $0x8] sm:$0xff]
      %v8087 = vld [vmem:[#allocation4 + $0x10] sm:$0xff]
      %v8088 = vld [vmem:[#allocation4 + $0x18] sm:$0xff]
      %v8089 = vld [vmem:[#allocation4 + $0x20] sm:$0xff]
      %v8090 = vld [vmem:[#allocation4 + $0x28] sm:$0xff]
      %v8091 = vld [vmem:[#allocation4 + $0x30] sm:$0xff]
      %v8092 = vld [vmem:[#allocation4 + $0x38] sm:$0xff]
      %v8093 = vld [vmem:[#allocation4 + $0x40] sm:$0xff]
      %v8094 = vld [vmem:[#allocation4 + $0x48] sm:$0xff]
      %v8095 = vld [vmem:[#allocation4 + $0x50] sm:$0xff]
      %v8096 = vld [vmem:[#allocation4 + $0x58] sm:$0xff]
      %v8097 = vld [vmem:[#allocation4 + $0x60] sm:$0xff]
      %v8098 = vld [vmem:[#allocation4 + $0x68] sm:$0xff]
      %v8099 = vld [vmem:[#allocation4 + $0x70] sm:$0xff]
      %v8100 = vld [vmem:[#allocation4 + $0x78] sm:$0xff]
      %v8101 = vld [vmem:[#allocation4 + $0x80] sm:$0xff]
      %v8102 = vld [vmem:[#allocation4 + $0x88] sm:$0xff]
      %v8103 = vld [vmem:[#allocation4 + $0x90] sm:$0xff]
      %v8104 = vld [vmem:[#allocation4 + $0x98] sm:$0xff]
      %v8105 = vld [vmem:[#allocation4 + $0xa0] sm:$0xff]
      %v8106 = vld [vmem:[#allocation4 + $0xa8] sm:$0xff]
      %v8107 = vld [vmem:[#allocation4 + $0xb0] sm:$0xff]
      %v8108 = vld [vmem:[#allocation4 + $0xb8] sm:$0xff]
      %v8109 = vld [vmem:[#allocation4 + $0xc0] sm:$0xff]
      %v8110 = vld [vmem:[#allocation4 + $0xc8] sm:$0xff]
      %v8111 = vld [vmem:[#allocation4 + $0xd0] sm:$0xff]
      %v8112 = vld [vmem:[#allocation4 + $0xd8] sm:$0xff]
      %v8113 = vld [vmem:[#allocation4 + $0xe0] sm:$0xff]
      %v8114 = vld [vmem:[#allocation4 + $0xe8] sm:$0xff]
      %v8115 = vld [vmem:[#allocation4 + $0xf0] sm:$0xff]
      %v8116 = vld [vmem:[#allocation4 + $0xf8] sm:$0xff]
      %v8117 = vld [vmem:[#allocation4 + $0x100] sm:$0xff]
      %v8118 = vld [vmem:[#allocation4 + $0x108] sm:$0xff]
      %v8119 = vld [vmem:[#allocation4 + $0x110] sm:$0xff]
      %v8120 = vld [vmem:[#allocation4 + $0x118] sm:$0xff]
      %v8121 = vld [vmem:[#allocation4 + $0x120] sm:$0xff]
      %v8122 = vld [vmem:[#allocation4 + $0x128] sm:$0xff]
      %v8123 = vld [vmem:[#allocation4 + $0x130] sm:$0xff]
      %v8124 = vld [vmem:[#allocation4 + $0x138] sm:$0xff]
      %v8125 = vld [vmem:[#allocation4 + $0x140] sm:$0xff]
      %v8126 = vld [vmem:[#allocation4 + $0x148] sm:$0xff]
      %v8127 = vld [vmem:[#allocation4 + $0x150] sm:$0xff]
      %v8128 = vld [vmem:[#allocation4 + $0x158] sm:$0xff]
      %v8129 = vld [vmem:[#allocation4 + $0x160] sm:$0xff]
      %v8130 = vld [vmem:[#allocation4 + $0x168] sm:$0xff]
      %v8131 = vld [vmem:[#allocation4 + $0x170] sm:$0xff]
      %v8132 = vld [vmem:[#allocation4 + $0x178] sm:$0xff]
      %s8133 = scalar_lea.vmem %s304, 48
      %v8134 = vld [vmem:[%s8133] sm:$0xff]
      %v8135 = vld [vmem:[%s8133 + $0x8] sm:$0xff]
      %v8136 = vld [vmem:[%s8133 + $0x10] sm:$0xff]
      %v8138 = vsel %vm6514, %v8085, 0
      %v8141 = vsel %vm6514, %v8086, 0
      %v8144 = vsel %vm6514, %v8087, 0
      %v8147 = vsel %vm6514, %v8088, 0
      %v8150 = vsel %vm6514, %v8089, 0
      %v8153 = vsel %vm6514, %v8090, 0
      %v8156 = vsel %vm6514, %v8091, 0
      %v8159 = vsel %vm6514, %v8092, 0
      %v8162 = vsel %vm6514, %v8093, 0
      %v8165 = vsel %vm6514, %v8094, 0
      %v8168 = vsel %vm6514, %v8095, 0
      %v8171 = vsel %vm6514, %v8096, 0
      %v8174 = vsel %vm6514, %v8097, 0
      %v8177 = vsel %vm6514, %v8098, 0
      %v8180 = vsel %vm6514, %v8099, 0
      %v8183 = vsel %vm6514, %v8100, 0
      %v8186 = vsel %vm6514, %v8101, 0
      %v8189 = vsel %vm6514, %v8102, 0
      %v8192 = vsel %vm6514, %v8103, 0
      %v8195 = vsel %vm6514, %v8104, 0
      %v8198 = vsel %vm6514, %v8105, 0
      %v8201 = vsel %vm6514, %v8106, 0
      %v8204 = vsel %vm6514, %v8107, 0
      %v8207 = vsel %vm6514, %v8108, 0
      %v8210 = vsel %vm6514, %v8109, 0
      %v8213 = vsel %vm6514, %v8110, 0
      %v8216 = vsel %vm6514, %v8111, 0
      %v8219 = vsel %vm6514, %v8112, 0
      %v8222 = vsel %vm6514, %v8113, 0
      %v8225 = vsel %vm6514, %v8114, 0
      %v8228 = vsel %vm6514, %v8115, 0
      %v8231 = vsel %vm6514, %v8116, 0
      %v8234 = vsel %vm6514, %v8117, 0
      %v8237 = vsel %vm6514, %v8118, 0
      %v8240 = vsel %vm6514, %v8119, 0
      %v8243 = vsel %vm6514, %v8120, 0
      %v8246 = vsel %vm6514, %v8121, 0
      %v8249 = vsel %vm6514, %v8122, 0
      %v8252 = vsel %vm6514, %v8123, 0
      %v8255 = vsel %vm6514, %v8124, 0
      %v8258 = vsel %vm6514, %v8125, 0
      %v8261 = vsel %vm6514, %v8126, 0
      %v8264 = vsel %vm6514, %v8127, 0
      %v8267 = vsel %vm6514, %v8128, 0
      %v8270 = vsel %vm6514, %v8129, 0
      %v8273 = vsel %vm6514, %v8130, 0
      %v8276 = vsel %vm6514, %v8131, 0
      %v8279 = vsel %vm6514, %v8132, 0
      %8281 = vmatprep.subr.mxu0 0.0
      %8282 = vmatpush1.msra.mxu0 %v8134
      %8283 = vmatprep.subr.mxu0 0.0
      %8284 = vmatpush1.msra.mxu0 %v8135
      %8285 = vmatprep.subr.mxu0 0.0
      %8286 = vmatpush1.msra.mxu0 %v8136
      %8287 = vmatprep.subr.mxu0 0.0
      %8288 = vmatpush1.msra.mxu0 0.0
      %8289 = vmatprep.subr.mxu0 0.0
      %8290 = vmatpush1.msra.mxu0 0.0
      %8291 = vmatprep.subr.mxu0 0.0
      %8292 = vmatpush1.msra.mxu0 0.0
      %8293 = vmatprep.subr.mxu0 0.0
      %8294 = vmatpush1.msra.mxu0 0.0
      %8295 = vmatprep.subr.mxu0 0.0
      %8296 = vmatpush1.msra.mxu0 0.0
      %8297 = vmatprep.subr.mxu0 0.0
      %8298 = vmatpush1.msra.mxu0 0.0
      %8299 = vmatprep.subr.mxu0 0.0
      %8300 = vmatpush1.msra.mxu0 0.0
      %8301 = vmatprep.subr.mxu0 0.0
      %8302 = vmatpush1.msra.mxu0 0.0
      %8303 = vmatprep.subr.mxu0 0.0
      %8304 = vmatpush1.msra.mxu0 0.0
      %8305 = vmatprep.subr.mxu0 0.0
      %8306 = vmatpush1.msra.mxu0 0.0
      %8307 = vmatprep.subr.mxu0 0.0
      %8308 = vmatpush1.msra.mxu0 0.0
      %8309 = vmatprep.subr.mxu0 0.0
      %8310 = vmatpush1.msra.mxu0 0.0
      %8311 = vmatprep.subr.mxu0 0.0
      %8312 = vmatpush1.msra.mxu0 0.0
      %8313 = vmatprep.subr.mxu0 0.0
      %8314 = vmatpush1.msra.mxu0 0.0
      %8315 = vmatprep.subr.mxu0 0.0
      %8316 = vmatpush1.msra.mxu0 0.0
      %8317 = vmatprep.subr.mxu0 0.0
      %8318 = vmatpush1.msra.mxu0 0.0
      %8319 = vmatprep.subr.mxu0 0.0
      %8320 = vmatpush1.msra.mxu0 0.0
      %8321 = vmatprep.subr.mxu0 0.0
      %8322 = vmatpush1.msra.mxu0 0.0
      %8323 = vmatprep.subr.mxu0 0.0
      %8324 = vmatpush1.msra.mxu0 0.0
      %8325 = vmatprep.subr.mxu0 0.0
      %8326 = vmatpush1.msra.mxu0 0.0
      %8327 = vmatprep.subr.mxu0 0.0
      %8328 = vmatpush1.msra.mxu0 0.0
      %8329 = vmatprep.subr.mxu0 0.0
      %8330 = vmatpush1.msra.mxu0 0.0
      %8331 = vmatprep.subr.mxu0 0.0
      %8332 = vmatpush1.msra.mxu0 0.0
      %8333 = vmatprep.subr.mxu0 0.0
      %8334 = vmatpush1.msra.mxu0 0.0
      %8335 = vmatprep.subr.mxu0 0.0
      %8336 = vmatpush1.msra.mxu0 0.0
      %8337 = vmatprep.subr.mxu0 0.0
      %8338 = vmatpush1.msra.mxu0 0.0
      %8339 = vmatprep.subr.mxu0 0.0
      %8340 = vmatpush1.msra.mxu0 0.0
      %8341 = vmatprep.subr.mxu0 0.0
      %8342 = vmatpush1.msra.mxu0 0.0
      %8343 = vmatprep.subr.mxu0 0.0
      %8344 = vmatpush1.msra.mxu0 0.0
      %8345 = vmatprep.mubr.f32.mxu0 0.0
      %8346 = vmatmul.mubr.f32.gmra.mrb[0].mxu0 %v8138
      %v8347 = vpop.f32.mrb[0].mxu0
      %v8348 = vadd.f32 0.0, %v8347
      %v8349 = vpop.f32.mrb[0].mxu0
      %8350 = vmatprep.mubr.f32.mxu0 0.0
      %8351 = vmatmul.mubr.f32.gmra.mrb[0].mxu0 %v8141
      %v8352 = vpop.f32.mrb[0].mxu0
      %v8353 = vadd.f32 0.0, %v8352
      %v8354 = vpop.f32.mrb[0].mxu0
      %8355 = vmatprep.mubr.f32.mxu0 0.0
      %8356 = vmatmul.mubr.f32.gmra.mrb[0].mxu0 %v8144
      %v8357 = vpop.f32.mrb[0].mxu0
      %v8358 = vadd.f32 0.0, %v8357
      %v8359 = vpop.f32.mrb[0].mxu0
      %8360 = vmatprep.mubr.f32.mxu0 0.0
      %8361 = vmatmul.mubr.f32.gmra.mrb[0].mxu0 %v8147
      %v8362 = vpop.f32.mrb[0].mxu0
      %v8363 = vadd.f32 0.0, %v8362
      %v8364 = vpop.f32.mrb[0].mxu0
      %8365 = vmatprep.mubr.f32.mxu0 0.0
      %8366 = vmatmul.mubr.f32.gmra.mrb[0].mxu0 %v8150
      %v8367 = vpop.f32.mrb[0].mxu0
      %v8368 = vadd.f32 0.0, %v8367
      %v8369 = vpop.f32.mrb[0].mxu0
      %8370 = vmatprep.mubr.f32.mxu0 0.0
      %8371 = vmatmul.mubr.f32.gmra.mrb[0].mxu0 %v8153
      %v8372 = vpop.f32.mrb[0].mxu0
      %v8373 = vadd.f32 0.0, %v8372
      %v8374 = vpop.f32.mrb[0].mxu0
      %8375 = vmatprep.mubr.f32.mxu0 0.0
      %8376 = vmatmul.mubr.f32.gmra.mrb[0].mxu0 %v8156
      %v8377 = vpop.f32.mrb[0].mxu0
      %v8378 = vadd.f32 0.0, %v8377
      %v8379 = vpop.f32.mrb[0].mxu0
      %8380 = vmatprep.mubr.f32.mxu0 0.0
      %8381 = vmatmul.mubr.f32.gmra.mrb[0].mxu0 %v8159
      %v8382 = vpop.f32.mrb[0].mxu0
      %v8383 = vadd.f32 0.0, %v8382
      %v8384 = vpop.f32.mrb[0].mxu0
      %8385 = vmatprep.mubr.f32.mxu0 0.0
      %8386 = vmatmul.mubr.f32.gmra.mrb[0].mxu0 %v8162
      %v8387 = vpop.f32.mrb[0].mxu0
      %v8388 = vadd.f32 0.0, %v8387
      %v8389 = vpop.f32.mrb[0].mxu0
      %8390 = vmatprep.mubr.f32.mxu0 0.0
      %8391 = vmatmul.mubr.f32.gmra.mrb[0].mxu0 %v8165
      %v8392 = vpop.f32.mrb[0].mxu0
      %v8393 = vadd.f32 0.0, %v8392
      %v8394 = vpop.f32.mrb[0].mxu0
      %8395 = vmatprep.mubr.f32.mxu0 0.0
      %8396 = vmatmul.mubr.f32.gmra.mrb[0].mxu0 %v8168
      %v8397 = vpop.f32.mrb[0].mxu0
      %v8398 = vadd.f32 0.0, %v8397
      %v8399 = vpop.f32.mrb[0].mxu0
      %8400 = vmatprep.mubr.f32.mxu0 0.0
      %8401 = vmatmul.mubr.f32.gmra.mrb[0].mxu0 %v8171
      %v8402 = vpop.f32.mrb[0].mxu0
      %v8403 = vadd.f32 0.0, %v8402
      %v8404 = vpop.f32.mrb[0].mxu0
      %8405 = vmatprep.mubr.f32.mxu0 0.0
      %8406 = vmatmul.mubr.f32.gmra.mrb[0].mxu0 %v8174
      %v8407 = vpop.f32.mrb[0].mxu0
      %v8408 = vadd.f32 0.0, %v8407
      %v8409 = vpop.f32.mrb[0].mxu0
      %8410 = vmatprep.mubr.f32.mxu0 0.0
      %8411 = vmatmul.mubr.f32.gmra.mrb[0].mxu0 %v8177
      %v8412 = vpop.f32.mrb[0].mxu0
      %v8413 = vadd.f32 0.0, %v8412
      %v8414 = vpop.f32.mrb[0].mxu0
      %8415 = vmatprep.mubr.f32.mxu0 0.0
      %8416 = vmatmul.mubr.f32.gmra.mrb[0].mxu0 %v8180
      %v8417 = vpop.f32.mrb[0].mxu0
      %v8418 = vadd.f32 0.0, %v8417
      %v8419 = vpop.f32.mrb[0].mxu0
      %8420 = vmatprep.mubr.f32.mxu0 0.0
      %8421 = vmatmul.mubr.f32.gmra.mrb[0].mxu0 %v8183
      %v8422 = vpop.f32.mrb[0].mxu0
      %v8423 = vadd.f32 0.0, %v8422
      %v8424 = vpop.f32.mrb[0].mxu0
      %8425 = vmatprep.mubr.f32.mxu0 0.0
      %8426 = vmatmul.mubr.f32.gmra.mrb[0].mxu0 %v8186
      %v8427 = vpop.f32.mrb[0].mxu0
      %v8428 = vadd.f32 0.0, %v8427
      %v8429 = vpop.f32.mrb[0].mxu0
      %8430 = vmatprep.mubr.f32.mxu0 0.0
      %8431 = vmatmul.mubr.f32.gmra.mrb[0].mxu0 %v8189
      %v8432 = vpop.f32.mrb[0].mxu0
      %v8433 = vadd.f32 0.0, %v8432
      %v8434 = vpop.f32.mrb[0].mxu0
      %8435 = vmatprep.mubr.f32.mxu0 0.0
      %8436 = vmatmul.mubr.f32.gmra.mrb[0].mxu0 %v8192
      %v8437 = vpop.f32.mrb[0].mxu0
      %v8438 = vadd.f32 0.0, %v8437
      %v8439 = vpop.f32.mrb[0].mxu0
      %8440 = vmatprep.mubr.f32.mxu0 0.0
      %8441 = vmatmul.mubr.f32.gmra.mrb[0].mxu0 %v8195
      %v8442 = vpop.f32.mrb[0].mxu0
      %v8443 = vadd.f32 0.0, %v8442
      %v8444 = vpop.f32.mrb[0].mxu0
      %8445 = vmatprep.mubr.f32.mxu0 0.0
      %8446 = vmatmul.mubr.f32.gmra.mrb[0].mxu0 %v8198
      %v8447 = vpop.f32.mrb[0].mxu0
      %v8448 = vadd.f32 0.0, %v8447
      %v8449 = vpop.f32.mrb[0].mxu0
      %8450 = vmatprep.mubr.f32.mxu0 0.0
      %8451 = vmatmul.mubr.f32.gmra.mrb[0].mxu0 %v8201
      %v8452 = vpop.f32.mrb[0].mxu0
      %v8453 = vadd.f32 0.0, %v8452
      %v8454 = vpop.f32.mrb[0].mxu0
      %8455 = vmatprep.mubr.f32.mxu0 0.0
      %8456 = vmatmul.mubr.f32.gmra.mrb[0].mxu0 %v8204
      %v8457 = vpop.f32.mrb[0].mxu0
      %v8458 = vadd.f32 0.0, %v8457
      %v8459 = vpop.f32.mrb[0].mxu0
      %8460 = vmatprep.mubr.f32.mxu0 0.0
      %8461 = vmatmul.mubr.f32.gmra.mrb[0].mxu0 %v8207
      %v8462 = vpop.f32.mrb[0].mxu0
      %v8463 = vadd.f32 0.0, %v8462
      %v8464 = vpop.f32.mrb[0].mxu0
      %8465 = vmatprep.mubr.f32.mxu0 0.0
      %8466 = vmatmul.mubr.f32.gmra.mrb[0].mxu0 %v8210
      %v8467 = vpop.f32.mrb[0].mxu0
      %v8468 = vadd.f32 0.0, %v8467
      %v8469 = vpop.f32.mrb[0].mxu0
      %8470 = vmatprep.mubr.f32.mxu0 0.0
      %8471 = vmatmul.mubr.f32.gmra.mrb[0].mxu0 %v8213
      %v8472 = vpop.f32.mrb[0].mxu0
      %v8473 = vadd.f32 0.0, %v8472
      %v8474 = vpop.f32.mrb[0].mxu0
      %8475 = vmatprep.mubr.f32.mxu0 0.0
      %8476 = vmatmul.mubr.f32.gmra.mrb[0].mxu0 %v8216
      %v8477 = vpop.f32.mrb[0].mxu0
      %v8478 = vadd.f32 0.0, %v8477
      %v8479 = vpop.f32.mrb[0].mxu0
      %8480 = vmatprep.mubr.f32.mxu0 0.0
      %8481 = vmatmul.mubr.f32.gmra.mrb[0].mxu0 %v8219
      %v8482 = vpop.f32.mrb[0].mxu0
      %v8483 = vadd.f32 0.0, %v8482
      %v8484 = vpop.f32.mrb[0].mxu0
      %8485 = vmatprep.mubr.f32.mxu0 0.0
      %8486 = vmatmul.mubr.f32.gmra.mrb[0].mxu0 %v8222
      %v8487 = vpop.f32.mrb[0].mxu0
      %v8488 = vadd.f32 0.0, %v8487
      %v8489 = vpop.f32.mrb[0].mxu0
      %8490 = vmatprep.mubr.f32.mxu0 0.0
      %8491 = vmatmul.mubr.f32.gmra.mrb[0].mxu0 %v8225
      %v8492 = vpop.f32.mrb[0].mxu0
      %v8493 = vadd.f32 0.0, %v8492
      %v8494 = vpop.f32.mrb[0].mxu0
      %8495 = vmatprep.mubr.f32.mxu0 0.0
      %8496 = vmatmul.mubr.f32.gmra.mrb[0].mxu0 %v8228
      %v8497 = vpop.f32.mrb[0].mxu0
      %v8498 = vadd.f32 0.0, %v8497
      %v8499 = vpop.f32.mrb[0].mxu0
      %8500 = vmatprep.mubr.f32.mxu0 0.0
      %8501 = vmatmul.mubr.f32.gmra.mrb[0].mxu0 %v8231
      %v8502 = vpop.f32.mrb[0].mxu0
      %v8503 = vadd.f32 0.0, %v8502
      %v8504 = vpop.f32.mrb[0].mxu0
      %8505 = vmatprep.mubr.f32.mxu0 0.0
      %8506 = vmatmul.mubr.f32.gmra.mrb[0].mxu0 %v8234
      %v8507 = vpop.f32.mrb[0].mxu0
      %v8508 = vadd.f32 0.0, %v8507
      %v8509 = vpop.f32.mrb[0].mxu0
      %8510 = vmatprep.mubr.f32.mxu0 0.0
      %8511 = vmatmul.mubr.f32.gmra.mrb[0].mxu0 %v8237
      %v8512 = vpop.f32.mrb[0].mxu0
      %v8513 = vadd.f32 0.0, %v8512
      %v8514 = vpop.f32.mrb[0].mxu0
      %8515 = vmatprep.mubr.f32.mxu0 0.0
      %8516 = vmatmul.mubr.f32.gmra.mrb[0].mxu0 %v8240
      %v8517 = vpop.f32.mrb[0].mxu0
      %v8518 = vadd.f32 0.0, %v8517
      %v8519 = vpop.f32.mrb[0].mxu0
      %8520 = vmatprep.mubr.f32.mxu0 0.0
      %8521 = vmatmul.mubr.f32.gmra.mrb[0].mxu0 %v8243
      %v8522 = vpop.f32.mrb[0].mxu0
      %v8523 = vadd.f32 0.0, %v8522
      %v8524 = vpop.f32.mrb[0].mxu0
      %8525 = vmatprep.mubr.f32.mxu0 0.0
      %8526 = vmatmul.mubr.f32.gmra.mrb[0].mxu0 %v8246
      %v8527 = vpop.f32.mrb[0].mxu0
      %v8528 = vadd.f32 0.0, %v8527
      %v8529 = vpop.f32.mrb[0].mxu0
      %8530 = vmatprep.mubr.f32.mxu0 0.0
      %8531 = vmatmul.mubr.f32.gmra.mrb[0].mxu0 %v8249
      %v8532 = vpop.f32.mrb[0].mxu0
      %v8533 = vadd.f32 0.0, %v8532
      %v8534 = vpop.f32.mrb[0].mxu0
      %8535 = vmatprep.mubr.f32.mxu0 0.0
      %8536 = vmatmul.mubr.f32.gmra.mrb[0].mxu0 %v8252
      %v8537 = vpop.f32.mrb[0].mxu0
      %v8538 = vadd.f32 0.0, %v8537
      %v8539 = vpop.f32.mrb[0].mxu0
      %8540 = vmatprep.mubr.f32.mxu0 0.0
      %8541 = vmatmul.mubr.f32.gmra.mrb[0].mxu0 %v8255
      %v8542 = vpop.f32.mrb[0].mxu0
      %v8543 = vadd.f32 0.0, %v8542
      %v8544 = vpop.f32.mrb[0].mxu0
      %8545 = vmatprep.mubr.f32.mxu0 0.0
      %8546 = vmatmul.mubr.f32.gmra.mrb[0].mxu0 %v8258
      %v8547 = vpop.f32.mrb[0].mxu0
      %v8548 = vadd.f32 0.0, %v8547
      %v8549 = vpop.f32.mrb[0].mxu0
      %8550 = vmatprep.mubr.f32.mxu0 0.0
      %8551 = vmatmul.mubr.f32.gmra.mrb[0].mxu0 %v8261
      %v8552 = vpop.f32.mrb[0].mxu0
      %v8553 = vadd.f32 0.0, %v8552
      %v8554 = vpop.f32.mrb[0].mxu0
      %8555 = vmatprep.mubr.f32.mxu0 0.0
      %8556 = vmatmul.mubr.f32.gmra.mrb[0].mxu0 %v8264
      %v8557 = vpop.f32.mrb[0].mxu0
      %v8558 = vadd.f32 0.0, %v8557
      %v8559 = vpop.f32.mrb[0].mxu0
      %8560 = vmatprep.mubr.f32.mxu0 0.0
      %8561 = vmatmul.mubr.f32.gmra.mrb[0].mxu0 %v8267
      %v8562 = vpop.f32.mrb[0].mxu0
      %v8563 = vadd.f32 0.0, %v8562
      %v8564 = vpop.f32.mrb[0].mxu0
      %8565 = vmatprep.mubr.f32.mxu0 0.0
      %8566 = vmatmul.mubr.f32.gmra.mrb[0].mxu0 %v8270
      %v8567 = vpop.f32.mrb[0].mxu0
      %v8568 = vadd.f32 0.0, %v8567
      %v8569 = vpop.f32.mrb[0].mxu0
      %8570 = vmatprep.mubr.f32.mxu0 0.0
      %8571 = vmatmul.mubr.f32.gmra.mrb[0].mxu0 %v8273
      %v8572 = vpop.f32.mrb[0].mxu0
      %v8573 = vadd.f32 0.0, %v8572
      %v8574 = vpop.f32.mrb[0].mxu0
      %8575 = vmatprep.mubr.f32.mxu0 0.0
      %8576 = vmatmul.mubr.f32.gmra.mrb[0].mxu0 %v8276
      %v8577 = vpop.f32.mrb[0].mxu0
      %v8578 = vadd.f32 0.0, %v8577
      %v8579 = vpop.f32.mrb[0].mxu0
      %8580 = vmatprep.mubr.f32.mxu0 0.0
      %8581 = vmatmul.mubr.f32.gmra.mrb[0].mxu0 %v8279
      %v8582 = vpop.f32.mrb[0].mxu0
      %v8583 = vadd.f32 0.0, %v8582
      %v8584 = vpop.f32.mrb[0].mxu0
      %8585 = vdwg.mxu0
      %v8586 = vadd.f32 %v7175, %v8348
      %v8587 = vadd.f32 %v7180, %v8353
      %v8588 = vadd.f32 %v7185, %v8358
      %v8589 = vadd.f32 %v7190, %v8363
      %v8590 = vadd.f32 %v7195, %v8368
      %v8591 = vadd.f32 %v7200, %v8373
      %v8592 = vadd.f32 %v7205, %v8378
      %v8593 = vadd.f32 %v7210, %v8383
      %v8594 = vadd.f32 %v7215, %v8388
      %v8595 = vadd.f32 %v7220, %v8393
      %v8596 = vadd.f32 %v7225, %v8398
      %v8597 = vadd.f32 %v7230, %v8403
      %v8598 = vadd.f32 %v7235, %v8408
      %v8599 = vadd.f32 %v7240, %v8413
      %v8600 = vadd.f32 %v7245, %v8418
      %v8601 = vadd.f32 %v7250, %v8423
      %v8602 = vadd.f32 %v7255, %v8428
      %v8603 = vadd.f32 %v7260, %v8433
      %v8604 = vadd.f32 %v7265, %v8438
      %v8605 = vadd.f32 %v7270, %v8443
      %v8606 = vadd.f32 %v7275, %v8448
      %v8607 = vadd.f32 %v7280, %v8453
      %v8608 = vadd.f32 %v7285, %v8458
      %v8609 = vadd.f32 %v7290, %v8463
      %v8610 = vadd.f32 %v7295, %v8468
      %v8611 = vadd.f32 %v7300, %v8473
      %v8612 = vadd.f32 %v7305, %v8478
      %v8613 = vadd.f32 %v7310, %v8483
      %v8614 = vadd.f32 %v7315, %v8488
      %v8615 = vadd.f32 %v7320, %v8493
      %v8616 = vadd.f32 %v7325, %v8498
      %v8617 = vadd.f32 %v7330, %v8503
      %v8618 = vadd.f32 %v7335, %v8508
      %v8619 = vadd.f32 %v7340, %v8513
      %v8620 = vadd.f32 %v7345, %v8518
      %v8621 = vadd.f32 %v7350, %v8523
      %v8622 = vadd.f32 %v7355, %v8528
      %v8623 = vadd.f32 %v7360, %v8533
      %v8624 = vadd.f32 %v7365, %v8538
      %v8625 = vadd.f32 %v7370, %v8543
      %v8626 = vadd.f32 %v7375, %v8548
      %v8627 = vadd.f32 %v7380, %v8553
      %v8628 = vadd.f32 %v7385, %v8558
      %v8629 = vadd.f32 %v7390, %v8563
      %v8630 = vadd.f32 %v7395, %v8568
      %v8631 = vadd.f32 %v7400, %v8573
      %v8632 = vadd.f32 %v7405, %v8578
      %v8633 = vadd.f32 %v7410, %v8583
      %v8634 = vld [vmem:[%s307] sm:$0x1]
      %v8636 = vlaneseq
      %v8637 = vshrl.u32 %v8636, 7
      %v8638 = vsub.s32 0, %v8637
      %v8639 = vrot.slane %v8634, %v8638
      %v8641 = vadd.f32 %v8586, %v8639
      %v8642 = vadd.f32 %v8587, %v8639
      %v8643 = vadd.f32 %v8588, %v8639
      %v8644 = vadd.f32 %v8589, %v8639
      %v8645 = vadd.f32 %v8590, %v8639
      %v8646 = vadd.f32 %v8591, %v8639
      %v8647 = vadd.f32 %v8592, %v8639
      %v8648 = vadd.f32 %v8593, %v8639
      %v8649 = vadd.f32 %v8594, %v8639
      %v8650 = vadd.f32 %v8595, %v8639
      %v8651 = vadd.f32 %v8596, %v8639
      %v8652 = vadd.f32 %v8597, %v8639
      %v8653 = vadd.f32 %v8598, %v8639
      %v8654 = vadd.f32 %v8599, %v8639
      %v8655 = vadd.f32 %v8600, %v8639
      %v8656 = vadd.f32 %v8601, %v8639
      %v8657 = vadd.f32 %v8602, %v8639
      %v8658 = vadd.f32 %v8603, %v8639
      %v8659 = vadd.f32 %v8604, %v8639
      %v8660 = vadd.f32 %v8605, %v8639
      %v8661 = vadd.f32 %v8606, %v8639
      %v8662 = vadd.f32 %v8607, %v8639
      %v8663 = vadd.f32 %v8608, %v8639
      %v8664 = vadd.f32 %v8609, %v8639
      %v8665 = vadd.f32 %v8610, %v8639
      %v8666 = vadd.f32 %v8611, %v8639
      %v8667 = vadd.f32 %v8612, %v8639
      %v8668 = vadd.f32 %v8613, %v8639
      %v8669 = vadd.f32 %v8614, %v8639
      %v8670 = vadd.f32 %v8615, %v8639
      %v8671 = vadd.f32 %v8616, %v8639
      %v8672 = vadd.f32 %v8617, %v8639
      %v8673 = vadd.f32 %v8618, %v8639
      %v8674 = vadd.f32 %v8619, %v8639
      %v8675 = vadd.f32 %v8620, %v8639
      %v8676 = vadd.f32 %v8621, %v8639
      %v8677 = vadd.f32 %v8622, %v8639
      %v8678 = vadd.f32 %v8623, %v8639
      %v8679 = vadd.f32 %v8624, %v8639
      %v8680 = vadd.f32 %v8625, %v8639
      %v8681 = vadd.f32 %v8626, %v8639
      %v8682 = vadd.f32 %v8627, %v8639
      %v8683 = vadd.f32 %v8628, %v8639
      %v8684 = vadd.f32 %v8629, %v8639
      %v8685 = vadd.f32 %v8630, %v8639
      %v8686 = vadd.f32 %v8631, %v8639
      %v8687 = vadd.f32 %v8632, %v8639
      %v8688 = vadd.f32 %v8633, %v8639
      %v8689 = vld [vmem:[%s300 + $0x19] sm:$0xff]
      %v8690 = vld [vmem:[%s300 + $0x21] sm:$0xff]
      %v8691 = vld [vmem:[%s300 + $0x29] sm:$0xff]
      %v8692 = vld [vmem:[%s300 + $0x31] sm:$0xff]
      %v8693 = vld [vmem:[%s300 + $0x39] sm:$0xff]
      %v8694 = vld [vmem:[%s300 + $0x41] sm:$0xff]
      %v8695 = vld [vmem:[%s300 + $0x49] sm:$0xff]
      %v8696 = vld [vmem:[%s300 + $0x51] sm:$0xff]
      %v8697 = vld [vmem:[%s300 + $0x59] sm:$0xff]
      %v8698 = vld [vmem:[%s300 + $0x61] sm:$0xff]
      %v8699 = vld [vmem:[%s300 + $0x69] sm:$0xff]
      %v8700 = vld [vmem:[%s300 + $0x71] sm:$0xff]
      %v8701 = vld [vmem:[%s300 + $0x79] sm:$0xff]
      %v8702 = vld [vmem:[%s300 + $0x81] sm:$0xff]
      %v8703 = vld [vmem:[%s300 + $0x89] sm:$0xff]
      %v8704 = vld [vmem:[%s300 + $0x91] sm:$0xff]
      %v8705 = vld [vmem:[%s300 + $0x99] sm:$0xff]
      %v8706 = vld [vmem:[%s300 + $0xa1] sm:$0xff]
      %v8707 = vld [vmem:[%s300 + $0xa9] sm:$0xff]
      %v8708 = vld [vmem:[%s300 + $0xb1] sm:$0xff]
      %v8709 = vld [vmem:[%s300 + $0xb9] sm:$0xff]
      %v8710 = vld [vmem:[%s300 + $0xc1] sm:$0xff]
      %v8711 = vld [vmem:[%s300 + $0xc9] sm:$0xff]
      %v8712 = vld [vmem:[%s300 + $0xd1] sm:$0xff]
      %v8713 = vld [vmem:[%s300 + $0xd9] sm:$0xff]
      %v8714 = vld [vmem:[%s300 + $0xe1] sm:$0xff]
      %v8715 = vld [vmem:[%s300 + $0xe9] sm:$0xff]
      %v8716 = vld [vmem:[%s300 + $0xf1] sm:$0xff]
      %v8717 = vld [vmem:[%s300 + $0xf9] sm:$0xff]
      %v8718 = vld [vmem:[%s300 + $0x101] sm:$0xff]
      %v8719 = vld [vmem:[%s300 + $0x109] sm:$0xff]
      %v8720 = vld [vmem:[%s300 + $0x111] sm:$0xff]
      %v8721 = vld [vmem:[%s300 + $0x119] sm:$0xff]
      %v8722 = vld [vmem:[%s300 + $0x121] sm:$0xff]
      %v8723 = vld [vmem:[%s300 + $0x129] sm:$0xff]
      %v8724 = vld [vmem:[%s300 + $0x131] sm:$0xff]
      %v8725 = vld [vmem:[%s300 + $0x139] sm:$0xff]
      %v8726 = vld [vmem:[%s300 + $0x141] sm:$0xff]
      %v8727 = vld [vmem:[%s300 + $0x149] sm:$0xff]
      %v8728 = vld [vmem:[%s300 + $0x151] sm:$0xff]
      %v8729 = vld [vmem:[%s300 + $0x159] sm:$0xff]
      %v8730 = vld [vmem:[%s300 + $0x161] sm:$0xff]
      %v8731 = vld [vmem:[%s300 + $0x169] sm:$0xff]
      %v8732 = vld [vmem:[%s300 + $0x171] sm:$0xff]
      %v8733 = vld [vmem:[%s300 + $0x179] sm:$0xff]
      %v8734 = vld [vmem:[%s300 + $0x181] sm:$0xff]
      %v8735 = vld [vmem:[%s300 + $0x189] sm:$0xff]
      %v8736 = vld [vmem:[%s300 + $0x191] sm:$0xff]
      %v8737 = vld [vmem:[%s311] sm:$0xff]
      %v8739 = vsel %vm5112, %v8689, 0
      %v8742 = vsel %vm5112, %v8690, 0
      %v8745 = vsel %vm5112, %v8691, 0
      %v8748 = vsel %vm5112, %v8692, 0
      %v8751 = vsel %vm5112, %v8693, 0
      %v8754 = vsel %vm5112, %v8694, 0
      %v8757 = vsel %vm5112, %v8695, 0
      %v8760 = vsel %vm5112, %v8696, 0
      %v8763 = vsel %vm5112, %v8697, 0
      %v8766 = vsel %vm5112, %v8698, 0
      %v8769 = vsel %vm5112, %v8699, 0
      %v8772 = vsel %vm5112, %v8700, 0
      %v8775 = vsel %vm5112, %v8701, 0
      %v8778 = vsel %vm5112, %v8702, 0
      %v8781 = vsel %vm5112, %v8703, 0
      %v8784 = vsel %vm5112, %v8704, 0
      %v8787 = vsel %vm5112, %v8705, 0
      %v8790 = vsel %vm5112, %v8706, 0
      %v8793 = vsel %vm5112, %v8707, 0
      %v8796 = vsel %vm5112, %v8708, 0
      %v8799 = vsel %vm5112, %v8709, 0
      %v8802 = vsel %vm5112, %v8710, 0
      %v8805 = vsel %vm5112, %v8711, 0
      %v8808 = vsel %vm5112, %v8712, 0
      %v8811 = vsel %vm5112, %v8713, 0
      %v8814 = vsel %vm5112, %v8714, 0
      %v8817 = vsel %vm5112, %v8715, 0
      %v8820 = vsel %vm5112, %v8716, 0
      %v8823 = vsel %vm5112, %v8717, 0
      %v8826 = vsel %vm5112, %v8718, 0
      %v8829 = vsel %vm5112, %v8719, 0
      %v8832 = vsel %vm5112, %v8720, 0
      %v8835 = vsel %vm5112, %v8721, 0
      %v8838 = vsel %vm5112, %v8722, 0
      %v8841 = vsel %vm5112, %v8723, 0
      %v8844 = vsel %vm5112, %v8724, 0
      %v8847 = vsel %vm5112, %v8725, 0
      %v8850 = vsel %vm5112, %v8726, 0
      %v8853 = vsel %vm5112, %v8727, 0
      %v8856 = vsel %vm5112, %v8728, 0
      %v8859 = vsel %vm5112, %v8729, 0
      %v8862 = vsel %vm5112, %v8730, 0
      %v8865 = vsel %vm5112, %v8731, 0
      %v8868 = vsel %vm5112, %v8732, 0
      %v8871 = vsel %vm5112, %v8733, 0
      %v8874 = vsel %vm5112, %v8734, 0
      %v8877 = vsel %vm5112, %v8735, 0
      %v8880 = vsel %vm5112, %v8736, 0
      %8882 = vmatprep.subr.mxu0 0.0
      %8883 = vmatpush1.msra.mxu0 %v8737
      %8884 = vmatprep.subr.mxu0 0.0
      %8885 = vmatpush1.msra.mxu0 0.0
      %8886 = vmatprep.subr.mxu0 0.0
      %8887 = vmatpush1.msra.mxu0 0.0
      %8888 = vmatprep.subr.mxu0 0.0
      %8889 = vmatpush1.msra.mxu0 0.0
      %8890 = vmatprep.subr.mxu0 0.0
      %8891 = vmatpush1.msra.mxu0 0.0
      %8892 = vmatprep.subr.mxu0 0.0
      %8893 = vmatpush1.msra.mxu0 0.0
      %8894 = vmatprep.subr.mxu0 0.0
      %8895 = vmatpush1.msra.mxu0 0.0
      %8896 = vmatprep.subr.mxu0 0.0
      %8897 = vmatpush1.msra.mxu0 0.0
      %8898 = vmatprep.subr.mxu0 0.0
      %8899 = vmatpush1.msra.mxu0 0.0
      %8900 = vmatprep.subr.mxu0 0.0
      %8901 = vmatpush1.msra.mxu0 0.0
      %8902 = vmatprep.subr.mxu0 0.0
      %8903 = vmatpush1.msra.mxu0 0.0
      %8904 = vmatprep.subr.mxu0 0.0
      %8905 = vmatpush1.msra.mxu0 0.0
      %8906 = vmatprep.subr.mxu0 0.0
      %8907 = vmatpush1.msra.mxu0 0.0
      %8908 = vmatprep.subr.mxu0 0.0
      %8909 = vmatpush1.msra.mxu0 0.0
      %8910 = vmatprep.subr.mxu0 0.0
      %8911 = vmatpush1.msra.mxu0 0.0
      %8912 = vmatprep.subr.mxu0 0.0
      %8913 = vmatpush1.msra.mxu0 0.0
      %8914 = vmatprep.subr.mxu0 0.0
      %8915 = vmatpush1.msra.mxu0 0.0
      %8916 = vmatprep.subr.mxu0 0.0
      %8917 = vmatpush1.msra.mxu0 0.0
      %8918 = vmatprep.subr.mxu0 0.0
      %8919 = vmatpush1.msra.mxu0 0.0
      %8920 = vmatprep.subr.mxu0 0.0
      %8921 = vmatpush1.msra.mxu0 0.0
      %8922 = vmatprep.subr.mxu0 0.0
      %8923 = vmatpush1.msra.mxu0 0.0
      %8924 = vmatprep.subr.mxu0 0.0
      %8925 = vmatpush1.msra.mxu0 0.0
      %8926 = vmatprep.subr.mxu0 0.0
      %8927 = vmatpush1.msra.mxu0 0.0
      %8928 = vmatprep.subr.mxu0 0.0
      %8929 = vmatpush1.msra.mxu0 0.0
      %8930 = vmatprep.subr.mxu0 0.0
      %8931 = vmatpush1.msra.mxu0 0.0
      %8932 = vmatprep.subr.mxu0 0.0
      %8933 = vmatpush1.msra.mxu0 0.0
      %8934 = vmatprep.subr.mxu0 0.0
      %8935 = vmatpush1.msra.mxu0 0.0
      %8936 = vmatprep.subr.mxu0 0.0
      %8937 = vmatpush1.msra.mxu0 0.0
      %8938 = vmatprep.subr.mxu0 0.0
      %8939 = vmatpush1.msra.mxu0 0.0
      %8940 = vmatprep.subr.mxu0 0.0
      %8941 = vmatpush1.msra.mxu0 0.0
      %8942 = vmatprep.subr.mxu0 0.0
      %8943 = vmatpush1.msra.mxu0 0.0
      %8944 = vmatprep.subr.mxu0 0.0
      %8945 = vmatpush1.msra.mxu0 0.0
      %8946 = vmatprep.mubr.f32.mxu0 0.0
      %8947 = vmatmul.mubr.f32.gmra.mrb[0].mxu0 %v8739
      %v8948 = vpop.f32.mrb[0].mxu0
      %v8949 = vadd.f32 0.0, %v8948
      %v8950 = vpop.f32.mrb[0].mxu0
      %8951 = vmatprep.mubr.f32.mxu0 0.0
      %8952 = vmatmul.mubr.f32.gmra.mrb[0].mxu0 %v8742
      %v8953 = vpop.f32.mrb[0].mxu0
      %v8954 = vadd.f32 0.0, %v8953
      %v8955 = vpop.f32.mrb[0].mxu0
      %8956 = vmatprep.mubr.f32.mxu0 0.0
      %8957 = vmatmul.mubr.f32.gmra.mrb[0].mxu0 %v8745
      %v8958 = vpop.f32.mrb[0].mxu0
      %v8959 = vadd.f32 0.0, %v8958
      %v8960 = vpop.f32.mrb[0].mxu0
      %8961 = vmatprep.mubr.f32.mxu0 0.0
      %8962 = vmatmul.mubr.f32.gmra.mrb[0].mxu0 %v8748
      %v8963 = vpop.f32.mrb[0].mxu0
      %v8964 = vadd.f32 0.0, %v8963
      %v8965 = vpop.f32.mrb[0].mxu0
      %8966 = vmatprep.mubr.f32.mxu0 0.0
      %8967 = vmatmul.mubr.f32.gmra.mrb[0].mxu0 %v8751
      %v8968 = vpop.f32.mrb[0].mxu0
      %v8969 = vadd.f32 0.0, %v8968
      %v8970 = vpop.f32.mrb[0].mxu0
      %8971 = vmatprep.mubr.f32.mxu0 0.0
      %8972 = vmatmul.mubr.f32.gmra.mrb[0].mxu0 %v8754
      %v8973 = vpop.f32.mrb[0].mxu0
      %v8974 = vadd.f32 0.0, %v8973
      %v8975 = vpop.f32.mrb[0].mxu0
      %8976 = vmatprep.mubr.f32.mxu0 0.0
      %8977 = vmatmul.mubr.f32.gmra.mrb[0].mxu0 %v8757
      %v8978 = vpop.f32.mrb[0].mxu0
      %v8979 = vadd.f32 0.0, %v8978
      %v8980 = vpop.f32.mrb[0].mxu0
      %8981 = vmatprep.mubr.f32.mxu0 0.0
      %8982 = vmatmul.mubr.f32.gmra.mrb[0].mxu0 %v8760
      %v8983 = vpop.f32.mrb[0].mxu0
      %v8984 = vadd.f32 0.0, %v8983
      %v8985 = vpop.f32.mrb[0].mxu0
      %8986 = vmatprep.mubr.f32.mxu0 0.0
      %8987 = vmatmul.mubr.f32.gmra.mrb[0].mxu0 %v8763
      %v8988 = vpop.f32.mrb[0].mxu0
      %v8989 = vadd.f32 0.0, %v8988
      %v8990 = vpop.f32.mrb[0].mxu0
      %8991 = vmatprep.mubr.f32.mxu0 0.0
      %8992 = vmatmul.mubr.f32.gmra.mrb[0].mxu0 %v8766
      %v8993 = vpop.f32.mrb[0].mxu0
      %v8994 = vadd.f32 0.0, %v8993
      %v8995 = vpop.f32.mrb[0].mxu0
      %8996 = vmatprep.mubr.f32.mxu0 0.0
      %8997 = vmatmul.mubr.f32.gmra.mrb[0].mxu0 %v8769
      %v8998 = vpop.f32.mrb[0].mxu0
      %v8999 = vadd.f32 0.0, %v8998
      %v9000 = vpop.f32.mrb[0].mxu0
      %9001 = vmatprep.mubr.f32.mxu0 0.0
      %9002 = vmatmul.mubr.f32.gmra.mrb[0].mxu0 %v8772
      %v9003 = vpop.f32.mrb[0].mxu0
      %v9004 = vadd.f32 0.0, %v9003
      %v9005 = vpop.f32.mrb[0].mxu0
      %9006 = vmatprep.mubr.f32.mxu0 0.0
      %9007 = vmatmul.mubr.f32.gmra.mrb[0].mxu0 %v8775
      %v9008 = vpop.f32.mrb[0].mxu0
      %v9009 = vadd.f32 0.0, %v9008
      %v9010 = vpop.f32.mrb[0].mxu0
      %9011 = vmatprep.mubr.f32.mxu0 0.0
      %9012 = vmatmul.mubr.f32.gmra.mrb[0].mxu0 %v8778
      %v9013 = vpop.f32.mrb[0].mxu0
      %v9014 = vadd.f32 0.0, %v9013
      %v9015 = vpop.f32.mrb[0].mxu0
      %9016 = vmatprep.mubr.f32.mxu0 0.0
      %9017 = vmatmul.mubr.f32.gmra.mrb[0].mxu0 %v8781
      %v9018 = vpop.f32.mrb[0].mxu0
      %v9019 = vadd.f32 0.0, %v9018
      %v9020 = vpop.f32.mrb[0].mxu0
      %9021 = vmatprep.mubr.f32.mxu0 0.0
      %9022 = vmatmul.mubr.f32.gmra.mrb[0].mxu0 %v8784
      %v9023 = vpop.f32.mrb[0].mxu0
      %v9024 = vadd.f32 0.0, %v9023
      %v9025 = vpop.f32.mrb[0].mxu0
      %9026 = vmatprep.mubr.f32.mxu0 0.0
      %9027 = vmatmul.mubr.f32.gmra.mrb[0].mxu0 %v8787
      %v9028 = vpop.f32.mrb[0].mxu0
      %v9029 = vadd.f32 0.0, %v9028
      %v9030 = vpop.f32.mrb[0].mxu0
      %9031 = vmatprep.mubr.f32.mxu0 0.0
      %9032 = vmatmul.mubr.f32.gmra.mrb[0].mxu0 %v8790
      %v9033 = vpop.f32.mrb[0].mxu0
      %v9034 = vadd.f32 0.0, %v9033
      %v9035 = vpop.f32.mrb[0].mxu0
      %9036 = vmatprep.mubr.f32.mxu0 0.0
      %9037 = vmatmul.mubr.f32.gmra.mrb[0].mxu0 %v8793
      %v9038 = vpop.f32.mrb[0].mxu0
      %v9039 = vadd.f32 0.0, %v9038
      %v9040 = vpop.f32.mrb[0].mxu0
      %9041 = vmatprep.mubr.f32.mxu0 0.0
      %9042 = vmatmul.mubr.f32.gmra.mrb[0].mxu0 %v8796
      %v9043 = vpop.f32.mrb[0].mxu0
      %v9044 = vadd.f32 0.0, %v9043
      %v9045 = vpop.f32.mrb[0].mxu0
      %9046 = vmatprep.mubr.f32.mxu0 0.0
      %9047 = vmatmul.mubr.f32.gmra.mrb[0].mxu0 %v8799
      %v9048 = vpop.f32.mrb[0].mxu0
      %v9049 = vadd.f32 0.0, %v9048
      %v9050 = vpop.f32.mrb[0].mxu0
      %9051 = vmatprep.mubr.f32.mxu0 0.0
      %9052 = vmatmul.mubr.f32.gmra.mrb[0].mxu0 %v8802
      %v9053 = vpop.f32.mrb[0].mxu0
      %v9054 = vadd.f32 0.0, %v9053
      %v9055 = vpop.f32.mrb[0].mxu0
      %9056 = vmatprep.mubr.f32.mxu0 0.0
      %9057 = vmatmul.mubr.f32.gmra.mrb[0].mxu0 %v8805
      %v9058 = vpop.f32.mrb[0].mxu0
      %v9059 = vadd.f32 0.0, %v9058
      %v9060 = vpop.f32.mrb[0].mxu0
      %9061 = vmatprep.mubr.f32.mxu0 0.0
      %9062 = vmatmul.mubr.f32.gmra.mrb[0].mxu0 %v8808
      %v9063 = vpop.f32.mrb[0].mxu0
      %v9064 = vadd.f32 0.0, %v9063
      %v9065 = vpop.f32.mrb[0].mxu0
      %9066 = vmatprep.mubr.f32.mxu0 0.0
      %9067 = vmatmul.mubr.f32.gmra.mrb[0].mxu0 %v8811
      %v9068 = vpop.f32.mrb[0].mxu0
      %v9069 = vadd.f32 0.0, %v9068
      %v9070 = vpop.f32.mrb[0].mxu0
      %9071 = vmatprep.mubr.f32.mxu0 0.0
      %9072 = vmatmul.mubr.f32.gmra.mrb[0].mxu0 %v8814
      %v9073 = vpop.f32.mrb[0].mxu0
      %v9074 = vadd.f32 0.0, %v9073
      %v9075 = vpop.f32.mrb[0].mxu0
      %9076 = vmatprep.mubr.f32.mxu0 0.0
      %9077 = vmatmul.mubr.f32.gmra.mrb[0].mxu0 %v8817
      %v9078 = vpop.f32.mrb[0].mxu0
      %v9079 = vadd.f32 0.0, %v9078
      %v9080 = vpop.f32.mrb[0].mxu0
      %9081 = vmatprep.mubr.f32.mxu0 0.0
      %9082 = vmatmul.mubr.f32.gmra.mrb[0].mxu0 %v8820
      %v9083 = vpop.f32.mrb[0].mxu0
      %v9084 = vadd.f32 0.0, %v9083
      %v9085 = vpop.f32.mrb[0].mxu0
      %9086 = vmatprep.mubr.f32.mxu0 0.0
      %9087 = vmatmul.mubr.f32.gmra.mrb[0].mxu0 %v8823
      %v9088 = vpop.f32.mrb[0].mxu0
      %v9089 = vadd.f32 0.0, %v9088
      %v9090 = vpop.f32.mrb[0].mxu0
      %9091 = vmatprep.mubr.f32.mxu0 0.0
      %9092 = vmatmul.mubr.f32.gmra.mrb[0].mxu0 %v8826
      %v9093 = vpop.f32.mrb[0].mxu0
      %v9094 = vadd.f32 0.0, %v9093
      %v9095 = vpop.f32.mrb[0].mxu0
      %9096 = vmatprep.mubr.f32.mxu0 0.0
      %9097 = vmatmul.mubr.f32.gmra.mrb[0].mxu0 %v8829
      %v9098 = vpop.f32.mrb[0].mxu0
      %v9099 = vadd.f32 0.0, %v9098
      %v9100 = vpop.f32.mrb[0].mxu0
      %9101 = vmatprep.mubr.f32.mxu0 0.0
      %9102 = vmatmul.mubr.f32.gmra.mrb[0].mxu0 %v8832
      %v9103 = vpop.f32.mrb[0].mxu0
      %v9104 = vadd.f32 0.0, %v9103
      %v9105 = vpop.f32.mrb[0].mxu0
      %9106 = vmatprep.mubr.f32.mxu0 0.0
      %9107 = vmatmul.mubr.f32.gmra.mrb[0].mxu0 %v8835
      %v9108 = vpop.f32.mrb[0].mxu0
      %v9109 = vadd.f32 0.0, %v9108
      %v9110 = vpop.f32.mrb[0].mxu0
      %9111 = vmatprep.mubr.f32.mxu0 0.0
      %9112 = vmatmul.mubr.f32.gmra.mrb[0].mxu0 %v8838
      %v9113 = vpop.f32.mrb[0].mxu0
      %v9114 = vadd.f32 0.0, %v9113
      %v9115 = vpop.f32.mrb[0].mxu0
      %9116 = vmatprep.mubr.f32.mxu0 0.0
      %9117 = vmatmul.mubr.f32.gmra.mrb[0].mxu0 %v8841
      %v9118 = vpop.f32.mrb[0].mxu0
      %v9119 = vadd.f32 0.0, %v9118
      %v9120 = vpop.f32.mrb[0].mxu0
      %9121 = vmatprep.mubr.f32.mxu0 0.0
      %9122 = vmatmul.mubr.f32.gmra.mrb[0].mxu0 %v8844
      %v9123 = vpop.f32.mrb[0].mxu0
      %v9124 = vadd.f32 0.0, %v9123
      %v9125 = vpop.f32.mrb[0].mxu0
      %9126 = vmatprep.mubr.f32.mxu0 0.0
      %9127 = vmatmul.mubr.f32.gmra.mrb[0].mxu0 %v8847
      %v9128 = vpop.f32.mrb[0].mxu0
      %v9129 = vadd.f32 0.0, %v9128
      %v9130 = vpop.f32.mrb[0].mxu0
      %9131 = vmatprep.mubr.f32.mxu0 0.0
      %9132 = vmatmul.mubr.f32.gmra.mrb[0].mxu0 %v8850
      %v9133 = vpop.f32.mrb[0].mxu0
      %v9134 = vadd.f32 0.0, %v9133
      %v9135 = vpop.f32.mrb[0].mxu0
      %9136 = vmatprep.mubr.f32.mxu0 0.0
      %9137 = vmatmul.mubr.f32.gmra.mrb[0].mxu0 %v8853
      %v9138 = vpop.f32.mrb[0].mxu0
      %v9139 = vadd.f32 0.0, %v9138
      %v9140 = vpop.f32.mrb[0].mxu0
      %9141 = vmatprep.mubr.f32.mxu0 0.0
      %9142 = vmatmul.mubr.f32.gmra.mrb[0].mxu0 %v8856
      %v9143 = vpop.f32.mrb[0].mxu0
      %v9144 = vadd.f32 0.0, %v9143
      %v9145 = vpop.f32.mrb[0].mxu0
      %9146 = vmatprep.mubr.f32.mxu0 0.0
      %9147 = vmatmul.mubr.f32.gmra.mrb[0].mxu0 %v8859
      %v9148 = vpop.f32.mrb[0].mxu0
      %v9149 = vadd.f32 0.0, %v9148
      %v9150 = vpop.f32.mrb[0].mxu0
      %9151 = vmatprep.mubr.f32.mxu0 0.0
      %9152 = vmatmul.mubr.f32.gmra.mrb[0].mxu0 %v8862
      %v9153 = vpop.f32.mrb[0].mxu0
      %v9154 = vadd.f32 0.0, %v9153
      %v9155 = vpop.f32.mrb[0].mxu0
      %9156 = vmatprep.mubr.f32.mxu0 0.0
      %9157 = vmatmul.mubr.f32.gmra.mrb[0].mxu0 %v8865
      %v9158 = vpop.f32.mrb[0].mxu0
      %v9159 = vadd.f32 0.0, %v9158
      %v9160 = vpop.f32.mrb[0].mxu0
      %9161 = vmatprep.mubr.f32.mxu0 0.0
      %9162 = vmatmul.mubr.f32.gmra.mrb[0].mxu0 %v8868
      %v9163 = vpop.f32.mrb[0].mxu0
      %v9164 = vadd.f32 0.0, %v9163
      %v9165 = vpop.f32.mrb[0].mxu0
      %9166 = vmatprep.mubr.f32.mxu0 0.0
      %9167 = vmatmul.mubr.f32.gmra.mrb[0].mxu0 %v8871
      %v9168 = vpop.f32.mrb[0].mxu0
      %v9169 = vadd.f32 0.0, %v9168
      %v9170 = vpop.f32.mrb[0].mxu0
      %9171 = vmatprep.mubr.f32.mxu0 0.0
      %9172 = vmatmul.mubr.f32.gmra.mrb[0].mxu0 %v8874
      %v9173 = vpop.f32.mrb[0].mxu0
      %v9174 = vadd.f32 0.0, %v9173
      %v9175 = vpop.f32.mrb[0].mxu0
      %9176 = vmatprep.mubr.f32.mxu0 0.0
      %9177 = vmatmul.mubr.f32.gmra.mrb[0].mxu0 %v8877
      %v9178 = vpop.f32.mrb[0].mxu0
      %v9179 = vadd.f32 0.0, %v9178
      %v9180 = vpop.f32.mrb[0].mxu0
      %9181 = vmatprep.mubr.f32.mxu0 0.0
      %9182 = vmatmul.mubr.f32.gmra.mrb[0].mxu0 %v8880
      %v9183 = vpop.f32.mrb[0].mxu0
      %v9184 = vadd.f32 0.0, %v9183
      %v9185 = vpop.f32.mrb[0].mxu0
      %9186 = vdwg.mxu0
      %v9187 = vadd.f32 %v8641, %v8949
      %v9188 = vadd.f32 %v8642, %v8954
      %v9189 = vadd.f32 %v8643, %v8959
      %v9190 = vadd.f32 %v8644, %v8964
      %v9191 = vadd.f32 %v8645, %v8969
      %v9192 = vadd.f32 %v8646, %v8974
      %v9193 = vadd.f32 %v8647, %v8979
      %v9194 = vadd.f32 %v8648, %v8984
      %v9195 = vadd.f32 %v8649, %v8989
      %v9196 = vadd.f32 %v8650, %v8994
      %v9197 = vadd.f32 %v8651, %v8999
      %v9198 = vadd.f32 %v8652, %v9004
      %v9199 = vadd.f32 %v8653, %v9009
      %v9200 = vadd.f32 %v8654, %v9014
      %v9201 = vadd.f32 %v8655, %v9019
      %v9202 = vadd.f32 %v8656, %v9024
      %v9203 = vadd.f32 %v8657, %v9029
      %v9204 = vadd.f32 %v8658, %v9034
      %v9205 = vadd.f32 %v8659, %v9039
      %v9206 = vadd.f32 %v8660, %v9044
      %v9207 = vadd.f32 %v8661, %v9049
      %v9208 = vadd.f32 %v8662, %v9054
      %v9209 = vadd.f32 %v8663, %v9059
      %v9210 = vadd.f32 %v8664, %v9064
      %v9211 = vadd.f32 %v8665, %v9069
      %v9212 = vadd.f32 %v8666, %v9074
      %v9213 = vadd.f32 %v8667, %v9079
      %v9214 = vadd.f32 %v8668, %v9084
      %v9215 = vadd.f32 %v8669, %v9089
      %v9216 = vadd.f32 %v8670, %v9094
      %v9217 = vadd.f32 %v8671, %v9099
      %v9218 = vadd.f32 %v8672, %v9104
      %v9219 = vadd.f32 %v8673, %v9109
      %v9220 = vadd.f32 %v8674, %v9114
      %v9221 = vadd.f32 %v8675, %v9119
      %v9222 = vadd.f32 %v8676, %v9124
      %v9223 = vadd.f32 %v8677, %v9129
      %v9224 = vadd.f32 %v8678, %v9134
      %v9225 = vadd.f32 %v8679, %v9139
      %v9226 = vadd.f32 %v8680, %v9144
      %v9227 = vadd.f32 %v8681, %v9149
      %v9228 = vadd.f32 %v8682, %v9154
      %v9229 = vadd.f32 %v8683, %v9159
      %v9230 = vadd.f32 %v8684, %v9164
      %v9231 = vadd.f32 %v8685, %v9169
      %v9232 = vadd.f32 %v8686, %v9174
      %v9233 = vadd.f32 %v8687, %v9179
      %v9234 = vadd.f32 %v8688, %v9184
      %v9235 = vmax.f32 %v9187, 0.0
      %v9236 = vmax.f32 %v9188, 0.0
      %v9237 = vmax.f32 %v9189, 0.0
      %v9238 = vmax.f32 %v9190, 0.0
      %v9239 = vmax.f32 %v9191, 0.0
      %v9240 = vmax.f32 %v9192, 0.0
      %v9241 = vmax.f32 %v9193, 0.0
      %v9242 = vmax.f32 %v9194, 0.0
      %v9243 = vmax.f32 %v9195, 0.0
      %v9244 = vmax.f32 %v9196, 0.0
      %v9245 = vmax.f32 %v9197, 0.0
      %v9246 = vmax.f32 %v9198, 0.0
      %v9247 = vmax.f32 %v9199, 0.0
      %v9248 = vmax.f32 %v9200, 0.0
      %v9249 = vmax.f32 %v9201, 0.0
      %v9250 = vmax.f32 %v9202, 0.0
      %v9251 = vmax.f32 %v9203, 0.0
      %v9252 = vmax.f32 %v9204, 0.0
      %v9253 = vmax.f32 %v9205, 0.0
      %v9254 = vmax.f32 %v9206, 0.0
      %v9255 = vmax.f32 %v9207, 0.0
      %v9256 = vmax.f32 %v9208, 0.0
      %v9257 = vmax.f32 %v9209, 0.0
      %v9258 = vmax.f32 %v9210, 0.0
      %v9259 = vmax.f32 %v9211, 0.0
      %v9260 = vmax.f32 %v9212, 0.0
      %v9261 = vmax.f32 %v9213, 0.0
      %v9262 = vmax.f32 %v9214, 0.0
      %v9263 = vmax.f32 %v9215, 0.0
      %v9264 = vmax.f32 %v9216, 0.0
      %v9265 = vmax.f32 %v9217, 0.0
      %v9266 = vmax.f32 %v9218, 0.0
      %v9267 = vmax.f32 %v9219, 0.0
      %v9268 = vmax.f32 %v9220, 0.0
      %v9269 = vmax.f32 %v9221, 0.0
      %v9270 = vmax.f32 %v9222, 0.0
      %v9271 = vmax.f32 %v9223, 0.0
      %v9272 = vmax.f32 %v9224, 0.0
      %v9273 = vmax.f32 %v9225, 0.0
      %v9274 = vmax.f32 %v9226, 0.0
      %v9275 = vmax.f32 %v9227, 0.0
      %v9276 = vmax.f32 %v9228, 0.0
      %v9277 = vmax.f32 %v9229, 0.0
      %v9278 = vmax.f32 %v9230, 0.0
      %v9279 = vmax.f32 %v9231, 0.0
      %v9280 = vmax.f32 %v9232, 0.0
      %v9281 = vmax.f32 %v9233, 0.0
      %v9282 = vmax.f32 %v9234, 0.0
      %9283 = vst.msk [vmem:[%s319] sm:$0xff] %vm5112, %v9235
      %9284 = vst.msk [vmem:[%s319 + $0x8] sm:$0xff] %vm5112, %v9236
      %9285 = vst.msk [vmem:[%s319 + $0x10] sm:$0xff] %vm5112, %v9237
      %9286 = vst.msk [vmem:[%s319 + $0x18] sm:$0xff] %vm5112, %v9238
      %9287 = vst.msk [vmem:[%s319 + $0x20] sm:$0xff] %vm5112, %v9239
      %9288 = vst.msk [vmem:[%s319 + $0x28] sm:$0xff] %vm5112, %v9240
      %9289 = vst.msk [vmem:[%s319 + $0x30] sm:$0xff] %vm5112, %v9241
      %9290 = vst.msk [vmem:[%s319 + $0x38] sm:$0xff] %vm5112, %v9242
      %9291 = vst.msk [vmem:[%s319 + $0x40] sm:$0xff] %vm5112, %v9243
      %9292 = vst.msk [vmem:[%s319 + $0x48] sm:$0xff] %vm5112, %v9244
      %9293 = vst.msk [vmem:[%s319 + $0x50] sm:$0xff] %vm5112, %v9245
      %9294 = vst.msk [vmem:[%s319 + $0x58] sm:$0xff] %vm5112, %v9246
      %9295 = vst.msk [vmem:[%s319 + $0x60] sm:$0xff] %vm5112, %v9247
      %9296 = vst.msk [vmem:[%s319 + $0x68] sm:$0xff] %vm5112, %v9248
      %9297 = vst.msk [vmem:[%s319 + $0x70] sm:$0xff] %vm5112, %v9249
      %9298 = vst.msk [vmem:[%s319 + $0x78] sm:$0xff] %vm5112, %v9250
      %9299 = vst.msk [vmem:[%s319 + $0x80] sm:$0xff] %vm5112, %v9251
      %9300 = vst.msk [vmem:[%s319 + $0x88] sm:$0xff] %vm5112, %v9252
      %9301 = vst.msk [vmem:[%s319 + $0x90] sm:$0xff] %vm5112, %v9253
      %9302 = vst.msk [vmem:[%s319 + $0x98] sm:$0xff] %vm5112, %v9254
      %9303 = vst.msk [vmem:[%s319 + $0xa0] sm:$0xff] %vm5112, %v9255
      %9304 = vst.msk [vmem:[%s319 + $0xa8] sm:$0xff] %vm5112, %v9256
      %9305 = vst.msk [vmem:[%s319 + $0xb0] sm:$0xff] %vm5112, %v9257
      %9306 = vst.msk [vmem:[%s319 + $0xb8] sm:$0xff] %vm5112, %v9258
      %9307 = vst.msk [vmem:[%s319 + $0xc0] sm:$0xff] %vm5112, %v9259
      %9308 = vst.msk [vmem:[%s319 + $0xc8] sm:$0xff] %vm5112, %v9260
      %9309 = vst.msk [vmem:[%s319 + $0xd0] sm:$0xff] %vm5112, %v9261
      %9310 = vst.msk [vmem:[%s319 + $0xd8] sm:$0xff] %vm5112, %v9262
      %9311 = vst.msk [vmem:[%s319 + $0xe0] sm:$0xff] %vm5112, %v9263
      %9312 = vst.msk [vmem:[%s319 + $0xe8] sm:$0xff] %vm5112, %v9264
      %9313 = vst.msk [vmem:[%s319 + $0xf0] sm:$0xff] %vm5112, %v9265
      %9314 = vst.msk [vmem:[%s319 + $0xf8] sm:$0xff] %vm5112, %v9266
      %9315 = vst.msk [vmem:[%s319 + $0x100] sm:$0xff] %vm5112, %v9267
      %9316 = vst.msk [vmem:[%s319 + $0x108] sm:$0xff] %vm5112, %v9268
      %9317 = vst.msk [vmem:[%s319 + $0x110] sm:$0xff] %vm5112, %v9269
      %9318 = vst.msk [vmem:[%s319 + $0x118] sm:$0xff] %vm5112, %v9270
      %9319 = vst.msk [vmem:[%s319 + $0x120] sm:$0xff] %vm5112, %v9271
      %9320 = vst.msk [vmem:[%s319 + $0x128] sm:$0xff] %vm5112, %v9272
      %9321 = vst.msk [vmem:[%s319 + $0x130] sm:$0xff] %vm5112, %v9273
      %9322 = vst.msk [vmem:[%s319 + $0x138] sm:$0xff] %vm5112, %v9274
      %9323 = vst.msk [vmem:[%s319 + $0x140] sm:$0xff] %vm5112, %v9275
      %9324 = vst.msk [vmem:[%s319 + $0x148] sm:$0xff] %vm5112, %v9276
      %9325 = vst.msk [vmem:[%s319 + $0x150] sm:$0xff] %vm5112, %v9277
      %9326 = vst.msk [vmem:[%s319 + $0x158] sm:$0xff] %vm5112, %v9278
      %9327 = vst.msk [vmem:[%s319 + $0x160] sm:$0xff] %vm5112, %v9279
      %9328 = vst.msk [vmem:[%s319 + $0x168] sm:$0xff] %vm5112, %v9280
      %9329 = vst.msk [vmem:[%s319 + $0x170] sm:$0xff] %vm5112, %v9281
      %9330 = vst.msk [vmem:[%s319 + $0x178] sm:$0xff] %vm5112, %v9282
      %p9331 = scmp.lt.s32.totalorder %s21, 1
      %s9332 = scalar_select %p9331, %s21, 1
      %p9333 = scmp.lt.s32.totalorder %s22, 0
      %s9334 = scalar_select %p9333, %s22, 0
      %s9335 = smul.addr %s9332, 48
      %s9336 = sadd.s32 %s9334, %s9335
      %s9337 = smul.addr %s9336, 8
      %s9338 = scalar_lea.vmem %s6, %s9337
      // Predicated region
      $region49: #{basic_block_forward.1} parent=43 // pred_check
        %p9339 = pneg %p195
      $region50: #{basic_block_forward.1} parent=43 // pred_check_branch
        %9341 = sbr.rel (%p9339) target = $region52
      $region51: #{basic_block_forward.1} parent=43 // pred_region
        _
      $region52: #{basic_block_forward.1} parent=43 // pred_fallthru
        _
    $region44: #{basic_block_forward.1} parent=5 // pred_fallthru
      _
    %p9342 = scmp.le.s32.totalorder 2, %s12
    // Predicated region
    $region53: #{basic_block_forward.1} parent=5 // pred_check
      %p9343 = pneg %p9342
    $region54: #{basic_block_forward.1} parent=5 // pred_check_branch
      %9345 = sbr.rel (%p9343) target = $region56
    $region55: #{basic_block_forward.1} parent=5 // pred_region
      %s9346 = ssub.s32 %s12, 2
      // Predicated region
      $region57: #{basic_block_forward.1} parent=55 // pred_check
        %p9347 = pneg %p201
      $region58: #{basic_block_forward.1} parent=55 // pred_check_branch
        %9349 = sbr.rel (%p9347) target = $region60
      $region59: #{basic_block_forward.1} parent=55 // pred_region
        %p9350 = scmp.lt.s32.totalorder %s23, 1
        %s9351 = scalar_select %p9350, %s23, 1
        %p9352 = scmp.lt.s32.totalorder %s24, 0
        %s9353 = scalar_select %p9352, %s24, 0
        %s9354 = smul.addr %s9351, 48
        %s9355 = sadd.s32 %s9353, %s9354
        %s9356 = smul.addr %s9355, 8
        %s9357 = scalar_lea.vmem %s6, %s9356
      $region60: #{basic_block_forward.1} parent=55 // pred_fallthru
        _
    $region56: #{basic_block_forward.1} parent=5 // pred_fallthru
      _
  $region6: #{basic_block_forward.1} parent=0 // loop_footer
    %s16 = sadd.s32 1, %s12
  $region7: #{basic_block_forward.1} parent=0 // loop_footer_branch
    %11 = sbr.rel target = $region3
  $region8: #{basic_block_forward.1} parent=0 // loop_exit
    _

</llo_original>
